<compile_context>
chip_gen: v7x
topology: tpu7x:2x2x1
jax: 0.10.0
libtpu: 0.0.40
codegen_flags: <defaults>
</compile_context>

<pallas_src>
import jax
import jax.numpy as jnp
import numpy as np
from jax import lax
from jax.experimental import pallas as pl
from jax.experimental.pallas import tpu as pltpu

IMG = 16                       # input spatial size (divisible by 2**N_BLOCKS)
N_BLOCKS = 4
HIDDEN = 32                    # Cout of every block (Cin zero-padded to HIDDEN)
GROUP = 4                      # images lane-packed per grid step
LANES = GROUP * HIDDEN         # 128: full vreg lane width
OFF = 2 ** (N_BLOCKS - 1)      # canvas offset = widest lattice stride (8)
P = 32                         # canvas side; multiple of 8 and >= OFF+IMG+1
R = P * P                      # canvas rows per image group (1024)
MARG = OFF * (P + 1)           # row margin so every shifted slice is in-bounds (264)
TOT = R + 2 * MARG             # scratch rows (1552)
CHUNK = 128                    # M-tile of the conv/pool loops (acc = 16 vregs)
N_CHUNKS = R // CHUNK
assert R % CHUNK == 0 and MARG % 8 == 0 and P % 8 == 0 and P >= OFF + IMG + 1


def conv4_fused_kernel(x_ref, w_ref, scale_ref, bias_ref, mask_ref, out_ref,
                       act_ref, conv_ref):
    """Whole Conv-4 backbone for one lane-packed group of GROUP images.

    x_ref:     (1, R, LANES)                 canvas interior with the images embedded
    w_ref:     (N_BLOCKS, 9, LANES, LANES)   bf16 block-diagonal per-tap weights
    scale_ref: (N_BLOCKS, 1, LANES)          folded BatchNorm scale (eval), lane-tiled
    bias_ref:  (N_BLOCKS, 1, LANES)          conv bias + folded BatchNorm shift
    mask_ref:  (N_BLOCKS, R, LANES)          1.0 on the next layer's canvas lattice
    out_ref:   (1, 1, LANES)                 final features (GROUP x HIDDEN lanes)
    act_ref:   (TOT, LANES) VMEM scratch     canvas holding the current layer input
    conv_ref:  (TOT, LANES) VMEM scratch     canvas holding the pre-pool conv output
    """
    f32 = jnp.float32
    bf16 = jnp.bfloat16

    # --- minimal zero-init: only the never-written margins ------------------
    # (done unconditionally -> safe under megacore grid sharding).  The act
    # interior is fully overwritten by the copy below; the conv interior is
    # always written by the conv loop before the pool reads it; the pool only
    # reads conv rows >= its own row, so conv's bottom margin is never read.
    zmarg = jnp.zeros((MARG, LANES), f32)
    act_ref[pl.ds(0, MARG), :] = zmarg
    act_ref[pl.ds(MARG + R, MARG), :] = zmarg
    conv_ref[pl.ds(MARG + R, MARG), :] = zmarg

    # --- place the lane-packed image group on the canvas interior -----------
    def copy_chunk(m, carry):
        off = pl.multiple_of(m * CHUNK, CHUNK)
        act_ref[pl.ds(MARG + off, CHUNK), :] = x_ref[0, pl.ds(off, CHUNK), :]
        return carry

    lax.fori_loop(0, N_CHUNKS, copy_chunk, 0)

    # --- 4 x [conv3x3(pad=1) -> BN(eval) -> ReLU -> maxpool2x2] --------------
    for l in range(N_BLOCKS):
        s = 1 << l                      # lattice stride of this layer's input
        taps = [(kh - 1) * s * P + (kw - 1) * s
                for kh in range(3) for kw in range(3)]
        scale = scale_ref[l]            # (1, LANES)
        bias = bias_ref[l]              # (1, LANES)

        # 3x3 conv as 9 shifted slices x block-diagonal (LANES,LANES) weights,
        # chunked over M so the f32 accumulator stays at 16 vregs.
        def conv_chunk(m, carry, taps=taps, scale=scale, bias=bias, l=l):
            off = pl.multiple_of(m * CHUNK, CHUNK)
            base = MARG + off
            acc = jnp.zeros((CHUNK, LANES), f32)
            for t, d in enumerate(taps):
                a = act_ref[pl.ds(base + d, CHUNK), :].astype(bf16)
                acc = acc + jnp.dot(a, w_ref[l, t],
                                    preferred_element_type=f32)
            # folded BatchNorm (eval) + ReLU (ReLU before pool keeps values
            # >= 0 so zero margins can never win the max).
            conv_ref[pl.ds(base, CHUNK), :] = jnp.maximum(
                acc * scale + bias, 0.0)
            return carry

        lax.fori_loop(0, N_CHUNKS, conv_chunk, 0)

        # 2x2 max-pool: 4 shifted reads + max; keep only the next lattice.
        def pool_chunk(m, carry, s=s, l=l):
            off = pl.multiple_of(m * CHUNK, CHUNK)
            base = MARG + off
            y00 = conv_ref[pl.ds(base, CHUNK), :]
            y01 = conv_ref[pl.ds(base + s, CHUNK), :]
            y10 = conv_ref[pl.ds(base + s * P, CHUNK), :]
            y11 = conv_ref[pl.ds(base + s * P + s, CHUNK), :]
            pooled = jnp.maximum(jnp.maximum(y00, y01), jnp.maximum(y10, y11))
            act_ref[pl.ds(base, CHUNK), :] = (
                pooled * mask_ref[l, pl.ds(off, CHUNK), :])
            return carry

        lax.fori_loop(0, N_CHUNKS, pool_chunk, 0)

    # Final 1x1xHIDDEN feature of every packed image sits at canvas (OFF, OFF).
    r_out = MARG + OFF * P + OFF
    out_ref[0, 0:1, :] = act_ref[pl.ds(r_out, 1), :]


def conv4_forward(x_nchw, w_all, scale_all, bias_all, mask_all):
    """ProtoNet.forward: fused Conv-4 backbone -> (B, HIDDEN) flat features."""
    B, C, H, W = x_nchw.shape
    assert H == IMG and W == IMG and C <= HIDDEN
    n_groups = pl.cdiv(B, GROUP)
    b_pad = n_groups * GROUP

    # NCHW -> NHWC, pad channels to HIDDEN, pad batch to a multiple of GROUP.
    x = jnp.transpose(x_nchw, (0, 2, 3, 1))
    x = jnp.pad(x, ((0, b_pad - B), (0, 0), (0, 0), (0, HIDDEN - C)))
    # Lane-pack GROUP images (lane = g*HIDDEN + c) and embed them on the
    # canvas interior; the zeros elsewhere double as the conv zero padding.
    xg = x.reshape(n_groups, GROUP, IMG, IMG, HIDDEN)
    xg = jnp.transpose(xg, (0, 2, 3, 1, 4)).reshape(n_groups, IMG, IMG, LANES)
    canvas = jnp.zeros((n_groups, P, P, LANES), jnp.float32)
    canvas = canvas.at[:, OFF:OFF + IMG, OFF:OFF + IMG, :].set(xg)
    canvas = canvas.reshape(n_groups, R, LANES)

    out = pl.pallas_call(
        conv4_fused_kernel,
        out_shape=jax.ShapeDtypeStruct((n_groups, 1, LANES), jnp.float32),
        grid=(n_groups,),
        in_specs=[
            pl.BlockSpec((1, R, LANES), lambda g: (g, 0, 0)),
            pl.BlockSpec((N_BLOCKS, 9, LANES, LANES), lambda g: (0, 0, 0, 0)),
            pl.BlockSpec((N_BLOCKS, 1, LANES), lambda g: (0, 0, 0)),
            pl.BlockSpec((N_BLOCKS, 1, LANES), lambda g: (0, 0, 0)),
            pl.BlockSpec((N_BLOCKS, R, LANES), lambda g: (0, 0, 0)),
        ],
        out_specs=pl.BlockSpec((1, 1, LANES), lambda g: (g, 0, 0)),
        scratch_shapes=[
            pltpu.VMEM((TOT, LANES), jnp.float32),
            pltpu.VMEM((TOT, LANES), jnp.float32),
        ],
        compiler_params=pltpu.CompilerParams(
            dimension_semantics=("parallel",)),
    )(canvas, w_all, scale_all, bias_all, mask_all)
    feats = out.reshape(b_pad, HIDDEN)
    return feats[:B]


def init_conv4_params(key, in_channels=3):
    """Deterministic synthetic Conv-4 parameters with BN folded (eval mode).

    Returns the per-layer per-tap weights (N_BLOCKS, 9, HIDDEN, HIDDEN) with
    Cin zero-padded to HIDDEN, plus folded BN scale/bias (N_BLOCKS, HIDDEN)."""
    dims = [in_channels] + [HIDDEN] * N_BLOCKS
    eps = 1e-5
    w_taps = np.zeros((N_BLOCKS, 9, HIDDEN, HIDDEN), np.float32)
    scale_s = np.zeros((N_BLOCKS, HIDDEN), np.float32)
    bias_s = np.zeros((N_BLOCKS, HIDDEN), np.float32)
    for l in range(N_BLOCKS):
        key, k1, k2 = jax.random.split(key, 3)
        cin, cout = dims[l], dims[l + 1]
        # PyTorch nn.Conv2d weight layout: (Cout, Cin, kh, kw)
        w_pt = 0.1 * jax.random.normal(k1, (cout, cin, 3, 3), jnp.float32)
        conv_bias = 0.1 * jax.random.normal(k2, (cout,), jnp.float32)
        # -> (kh, kw, Cin, Cout) -> (9, Cin, Cout); tap index t = kh*3 + kw
        w = np.asarray(jnp.transpose(w_pt, (2, 3, 1, 0)).reshape(9, cin, cout))
        w_taps[l, :, :cin, :] = w
        # nn.BatchNorm2d default init, eval mode: gamma=1, beta=0, mean=0, var=1
        gamma = np.ones((cout,), np.float32)
        beta = np.zeros((cout,), np.float32)
        running_mean = np.zeros((cout,), np.float32)
        running_var = np.ones((cout,), np.float32)
        scale = gamma / np.sqrt(running_var + eps)
        bias_eff = (np.asarray(conv_bias) - running_mean) * scale + beta
        scale_s[l] = scale
        bias_s[l] = bias_eff
    return jnp.asarray(w_taps), jnp.asarray(scale_s), jnp.asarray(bias_s)


def pack_params(w_taps, scale_s, bias_s):
    """Lane-pack params for the kernel: block-diagonal bf16 weights + tiled BN."""
    w_np = np.asarray(w_taps, np.float32)
    w_all = np.zeros((N_BLOCKS, 9, LANES, LANES), np.float32)
    for g in range(GROUP):
        w_all[:, :, g * HIDDEN:(g + 1) * HIDDEN,
              g * HIDDEN:(g + 1) * HIDDEN] = w_np
    scale_all = np.tile(np.asarray(scale_s, np.float32),
                        (1, GROUP)).reshape(N_BLOCKS, 1, LANES)
    bias_all = np.tile(np.asarray(bias_s, np.float32),
                       (1, GROUP)).reshape(N_BLOCKS, 1, LANES)
    return (jnp.asarray(w_all, dtype=jnp.bfloat16),
            jnp.asarray(scale_all), jnp.asarray(bias_all))


def make_pool_masks():
    """0/1 masks (pre-broadcast over lanes) of each block's pooled-output lattice."""
    masks = np.zeros((N_BLOCKS, R, LANES), np.float32)
    for l in range(N_BLOCKS):
        stride = 2 ** (l + 1)
        m1 = np.zeros((P,), np.float32)
        m1[OFF + stride * np.arange(IMG // stride)] = 1.0
        masks[l] = np.outer(m1, m1).reshape(R)[:, None]
    return jnp.asarray(masks)


def reference_forward(x_nchw, w_taps, scale_s, bias_s):
    """Pure-JAX reference of the same backbone (for validation)."""
    B, C, H, W = x_nchw.shape
    x = jnp.transpose(x_nchw, (0, 2, 3, 1))
    x = jnp.pad(x, ((0, 0), (0, 0), (0, 0), (0, HIDDEN - C)))
    for l in range(N_BLOCKS):
        Bc, Hc, Wc, _ = x.shape
        xp = jnp.pad(x, ((0, 0), (1, 1), (1, 1), (0, 0)))
        y = jnp.zeros((Bc, Hc, Wc, HIDDEN), jnp.float32)
        for kh in range(3):
            for kw in range(3):
                shifted = xp[:, kh:kh + Hc, kw:kw + Wc, :]
                y = y + jnp.einsum('bhwc,cd->bhwd', shifted,
                                   w_taps[l, kh * 3 + kw],
                                   precision=jax.lax.Precision.HIGHEST)
        y = jnp.maximum(y * scale_s[l] + bias_s[l], 0.0)
        x = y.reshape(Bc, Hc // 2, 2, Wc // 2, 2, HIDDEN).max(axis=(2, 4))
    return x.reshape(B, HIDDEN)


# TODO(synk): episodic / language methods (parse_feature, set_forward, correct,
# L3/LSL losses, RNN language models) are not part of nn.Module.forward and are
# not implemented.


if __name__ == "__main__":
    key = jax.random.PRNGKey(0)
    # 8 RGB 16x16 images -> 2 lane-packed groups -> grid=(2,), so both v7x
    # TensorCores get work while still exercising the 4-image lane packing.
    B, C, H, W = 8, 3, IMG, IMG

    key, kp, kx = jax.random.split(key, 3)
    w_taps, scale_s, bias_s = init_conv4_params(kp, in_channels=C)
    w_all, scale_all, bias_all = pack_params(w_taps, scale_s, bias_s)
    mask_all = make_pool_masks()
    x = jax.random.normal(kx, (B, C, H, W), jnp.float32)

    fwd = jax.jit(conv4_forward)
    out = jax.block_until_ready(fwd(x, w_all, scale_all, bias_all, mask_all))

    assert out.shape == (B, HIDDEN), out.shape
    assert bool(jnp.all(jnp.isfinite(out)))
    ref = reference_forward(x, w_taps, scale_s, bias_s)
    # atol slightly looser than the pure-f32 version because the kernel now
    # intentionally feeds bf16 operands to the MXU (f32 accumulation).
    assert bool(jnp.allclose(out, ref, rtol=5e-2, atol=1e-1)), \
        float(jnp.max(jnp.abs(out - ref)))
    print("KERNEL_OK")
</pallas_src>

<mosaic_0001>
module attributes {stable_mosaic.version = 11 : i64} {
  func.func @conv4_fused_kernel(%arg0: i32, %arg1: memref<1x1024x128xf32, #tpu.memory_space<vmem>>, %arg2: memref<4x9x128x128xbf16, #tpu.memory_space<vmem>>, %arg3: memref<4x1x128xf32, #tpu.memory_space<vmem>>, %arg4: memref<4x1x128xf32, #tpu.memory_space<vmem>>, %arg5: memref<4x1024x128xf32, #tpu.memory_space<vmem>>, %arg6: memref<1x1x128xf32, #tpu.memory_space<vmem>>, %arg7: memref<1552x128xf32, #tpu.memory_space<vmem>>, %arg8: memref<1552x128xf32, #tpu.memory_space<vmem>>) attributes {dimension_semantics = [#tpu.dimension_semantics<parallel>], iteration_bounds = array<i64: 2>, scalar_prefetch = 0 : i64, scratch_operands = 2 : i64, tpu.core_type = #tpu.core_type<tc>, window_params = [{transform_indices = @transform_0, window_bounds = array<i64: 1, 1024, 128>}, {pipeline_mode = #tpu.pipeline_mode<synchronous>, transform_indices = @transform_1, window_bounds = array<i64: 4, 9, 128, 128>}, {pipeline_mode = #tpu.pipeline_mode<synchronous>, transform_indices = @transform_2, window_bounds = array<i64: 4, 1, 128>}, {pipeline_mode = #tpu.pipeline_mode<synchronous>, transform_indices = @transform_3, window_bounds = array<i64: 4, 1, 128>}, {pipeline_mode = #tpu.pipeline_mode<synchronous>, transform_indices = @transform_4, window_bounds = array<i64: 4, 1024, 128>}, {transform_indices = @transform_5, window_bounds = array<i64: 1, 1, 128>}]} {
    %cst = arith.constant 0.000000e+00 : f32
    %0 = vector.broadcast %cst : f32 to vector<264x128xf32>
    %c0 = arith.constant 0 : index
    %c0_0 = arith.constant 0 : index
    %1 = vector.load %arg7[%c0, %c0_0] : memref<1552x128xf32, #tpu.memory_space<vmem>>, vector<264x128xf32>
    tpu.vector_store %arg7[%c0, %c0_0], %0 {strides = array<i32>} : memref<1552x128xf32, #tpu.memory_space<vmem>>, vector<264x128xf32>,
    %c1288 = arith.constant 1288 : index
    %c0_1 = arith.constant 0 : index
    %2 = vector.load %arg7[%c1288, %c0_1] : memref<1552x128xf32, #tpu.memory_space<vmem>>, vector<264x128xf32>
    tpu.vector_store %arg7[%c1288, %c0_1], %0 {strides = array<i32>} : memref<1552x128xf32, #tpu.memory_space<vmem>>, vector<264x128xf32>,
    %c1288_2 = arith.constant 1288 : index
    %c0_3 = arith.constant 0 : index
    %3 = vector.load %arg8[%c1288_2, %c0_3] : memref<1552x128xf32, #tpu.memory_space<vmem>>, vector<264x128xf32>
    tpu.vector_store %arg8[%c1288_2, %c0_3], %0 {strides = array<i32>} : memref<1552x128xf32, #tpu.memory_space<vmem>>, vector<264x128xf32>,
    %c0_i32 = arith.constant 0 : i32
    %c8_i32 = arith.constant 8 : i32
    %4 = arith.addi %c0_i32, %c8_i32 : i32
    %c1_i32 = arith.constant 1 : i32
    scf.for %arg9 = %c0_i32 to %4 step %c1_i32  : i32 {
      %c128_i32 = arith.constant 128 : i32
      %33 = arith.muli %arg9, %c128_i32 : i32
      %34 = tpu.assume_multiple %33, 128 : i32
      %c0_62 = arith.constant 0 : index
      %35 = arith.index_cast %34 : i32 to index
      %c0_63 = arith.constant 0 : index
      %36 = vector.load %arg1[%c0_62, %35, %c0_63] : memref<1x1024x128xf32, #tpu.memory_space<vmem>>, vector<1x128x128xf32>
      %37 = vector.shape_cast %36 : vector<1x128x128xf32> to vector<128x128xf32>
      %c264_i32 = arith.constant 264 : i32
      %38 = arith.addi %c264_i32, %34 : i32
      %39 = arith.index_cast %38 : i32 to index
      %c0_64 = arith.constant 0 : index
      %40 = vector.load %arg7[%39, %c0_64] : memref<1552x128xf32, #tpu.memory_space<vmem>>, vector<128x128xf32>
      tpu.vector_store %arg7[%39, %c0_64], %37 {strides = array<i32>} : memref<1552x128xf32, #tpu.memory_space<vmem>>, vector<128x128xf32>,
    }
    %c8_i32_4 = arith.constant 8 : i32
    %c0_5 = arith.constant 0 : index
    %c0_6 = arith.constant 0 : index
    %c0_7 = arith.constant 0 : index
    %5 = vector.load %arg3[%c0_5, %c0_6, %c0_7] : memref<4x1x128xf32, #tpu.memory_space<vmem>>, vector<1x1x128xf32>
    %6 = vector.shape_cast %5 : vector<1x1x128xf32> to vector<1x128xf32>
    %c0_8 = arith.constant 0 : index
    %c0_9 = arith.constant 0 : index
    %c0_10 = arith.constant 0 : index
    %7 = vector.load %arg4[%c0_8, %c0_9, %c0_10] : memref<4x1x128xf32, #tpu.memory_space<vmem>>, vector<1x1x128xf32>
    %8 = vector.shape_cast %7 : vector<1x1x128xf32> to vector<1x128xf32>
    %c0_i32_11 = arith.constant 0 : i32
    %c8_i32_12 = arith.constant 8 : i32
    %9 = arith.addi %c0_i32_11, %c8_i32_12 : i32
    %c1_i32_13 = arith.constant 1 : i32
    scf.for %arg9 = %c0_i32_11 to %9 step %c1_i32_13  : i32 {
      %c128_i32 = arith.constant 128 : i32
      %33 = arith.muli %arg9, %c128_i32 : i32
      %34 = tpu.assume_multiple %33, 128 : i32
      %c264_i32 = arith.constant 264 : i32
      %35 = arith.addi %c264_i32, %34 : i32
      %cst_62 = arith.constant 0.000000e+00 : f32
      %36 = vector.broadcast %cst_62 : f32 to vector<128x128xf32>
      %c-33_i32 = arith.constant -33 : i32
      %37 = arith.addi %35, %c-33_i32 : i32
      %38 = arith.index_cast %37 : i32 to index
      %c0_63 = arith.constant 0 : index
      %39 = vector.load %arg7[%38, %c0_63] : memref<1552x128xf32, #tpu.memory_space<vmem>>, vector<128x128xf32>
      %40 = arith.truncf %39 : vector<128x128xf32> to vector<128x128xbf16>
      %c0_64 = arith.constant 0 : index
      %c0_65 = arith.constant 0 : index
      %c0_66 = arith.constant 0 : index
      %c0_67 = arith.constant 0 : index
      %41 = vector.load %arg2[%c0_64, %c0_65, %c0_66, %c0_67] : memref<4x9x128x128xbf16, #tpu.memory_space<vmem>>, vector<1x1x128x128xbf16>
      %42 = vector.shape_cast %41 : vector<1x1x128x128xbf16> to vector<128x128xbf16>
      %cst_68 = arith.constant dense<0.000000e+00> : vector<128x128xf32>
      %43 = tpu.matmul %40, %42, %cst_68 {dimension_numbers = #tpu.dot_dimension_numbers<[1], [0], [0], [1], [0, 0, 1, 1], [], []>} : vector<128x128xbf16>, vector<128x128xbf16>, vector<128x128xf32> -> vector<128x128xf32>
      %44 = arith.addf %36, %43 : vector<128x128xf32>
      %c-32_i32 = arith.constant -32 : i32
      %45 = arith.addi %35, %c-32_i32 : i32
      %46 = arith.index_cast %45 : i32 to index
      %c0_69 = arith.constant 0 : index
      %47 = vector.load %arg7[%46, %c0_69] : memref<1552x128xf32, #tpu.memory_space<vmem>>, vector<128x128xf32>
      %48 = arith.truncf %47 : vector<128x128xf32> to vector<128x128xbf16>
      %c0_70 = arith.constant 0 : index
      %c1_71 = arith.constant 1 : index
      %c0_72 = arith.constant 0 : index
      %c0_73 = arith.constant 0 : index
      %49 = vector.load %arg2[%c0_70, %c1_71, %c0_72, %c0_73] : memref<4x9x128x128xbf16, #tpu.memory_space<vmem>>, vector<1x1x128x128xbf16>
      %50 = vector.shape_cast %49 : vector<1x1x128x128xbf16> to vector<128x128xbf16>
      %cst_74 = arith.constant dense<0.000000e+00> : vector<128x128xf32>
      %51 = tpu.matmul %48, %50, %cst_74 {dimension_numbers = #tpu.dot_dimension_numbers<[1], [0], [0], [1], [0, 0, 1, 1], [], []>} : vector<128x128xbf16>, vector<128x128xbf16>, vector<128x128xf32> -> vector<128x128xf32>
      %52 = arith.addf %44, %51 : vector<128x128xf32>
      %c-31_i32 = arith.constant -31 : i32
      %53 = arith.addi %35, %c-31_i32 : i32
      %54 = arith.index_cast %53 : i32 to index
      %c0_75 = arith.constant 0 : index
      %55 = vector.load %arg7[%54, %c0_75] : memref<1552x128xf32, #tpu.memory_space<vmem>>, vector<128x128xf32>
      %56 = arith.truncf %55 : vector<128x128xf32> to vector<128x128xbf16>
      %c0_76 = arith.constant 0 : index
      %c2_77 = arith.constant 2 : index
      %c0_78 = arith.constant 0 : index
      %c0_79 = arith.constant 0 : index
      %57 = vector.load %arg2[%c0_76, %c2_77, %c0_78, %c0_79] : memref<4x9x128x128xbf16, #tpu.memory_space<vmem>>, vector<1x1x128x128xbf16>
      %58 = vector.shape_cast %57 : vector<1x1x128x128xbf16> to vector<128x128xbf16>
      %cst_80 = arith.constant dense<0.000000e+00> : vector<128x128xf32>
      %59 = tpu.matmul %56, %58, %cst_80 {dimension_numbers = #tpu.dot_dimension_numbers<[1], [0], [0], [1], [0, 0, 1, 1], [], []>} : vector<128x128xbf16>, vector<128x128xbf16>, vector<128x128xf32> -> vector<128x128xf32>
      %60 = arith.addf %52, %59 : vector<128x128xf32>
      %c-1_i32 = arith.constant -1 : i32
      %61 = arith.addi %35, %c-1_i32 : i32
      %62 = arith.index_cast %61 : i32 to index
      %c0_81 = arith.constant 0 : index
      %63 = vector.load %arg7[%62, %c0_81] : memref<1552x128xf32, #tpu.memory_space<vmem>>, vector<128x128xf32>
      %64 = arith.truncf %63 : vector<128x128xf32> to vector<128x128xbf16>
      %c0_82 = arith.constant 0 : index
      %c3_83 = arith.constant 3 : index
      %c0_84 = arith.constant 0 : index
      %c0_85 = arith.constant 0 : index
      %65 = vector.load %arg2[%c0_82, %c3_83, %c0_84, %c0_85] : memref<4x9x128x128xbf16, #tpu.memory_space<vmem>>, vector<1x1x128x128xbf16>
      %66 = vector.shape_cast %65 : vector<1x1x128x128xbf16> to vector<128x128xbf16>
      %cst_86 = arith.constant dense<0.000000e+00> : vector<128x128xf32>
      %67 = tpu.matmul %64, %66, %cst_86 {dimension_numbers = #tpu.dot_dimension_numbers<[1], [0], [0], [1], [0, 0, 1, 1], [], []>} : vector<128x128xbf16>, vector<128x128xbf16>, vector<128x128xf32> -> vector<128x128xf32>
      %68 = arith.addf %60, %67 : vector<128x128xf32>
      %c0_i32_87 = arith.constant 0 : i32
      %69 = arith.addi %35, %c0_i32_87 : i32
      %70 = arith.index_cast %69 : i32 to index
      %c0_88 = arith.constant 0 : index
      %71 = vector.load %arg7[%70, %c0_88] : memref<1552x128xf32, #tpu.memory_space<vmem>>, vector<128x128xf32>
      %72 = arith.truncf %71 : vector<128x128xf32> to vector<128x128xbf16>
      %c0_89 = arith.constant 0 : index
      %c4 = arith.constant 4 : index
      %c0_90 = arith.constant 0 : index
      %c0_91 = arith.constant 0 : index
      %73 = vector.load %arg2[%c0_89, %c4, %c0_90, %c0_91] : memref<4x9x128x128xbf16, #tpu.memory_space<vmem>>, vector<1x1x128x128xbf16>
      %74 = vector.shape_cast %73 : vector<1x1x128x128xbf16> to vector<128x128xbf16>
      %cst_92 = arith.constant dense<0.000000e+00> : vector<128x128xf32>
      %75 = tpu.matmul %72, %74, %cst_92 {dimension_numbers = #tpu.dot_dimension_numbers<[1], [0], [0], [1], [0, 0, 1, 1], [], []>} : vector<128x128xbf16>, vector<128x128xbf16>, vector<128x128xf32> -> vector<128x128xf32>
      %76 = arith.addf %68, %75 : vector<128x128xf32>
      %c1_i32_93 = arith.constant 1 : i32
      %77 = arith.addi %35, %c1_i32_93 : i32
      %78 = arith.index_cast %77 : i32 to index
      %c0_94 = arith.constant 0 : index
      %79 = vector.load %arg7[%78, %c0_94] : memref<1552x128xf32, #tpu.memory_space<vmem>>, vector<128x128xf32>
      %80 = arith.truncf %79 : vector<128x128xf32> to vector<128x128xbf16>
      %c0_95 = arith.constant 0 : index
      %c5 = arith.constant 5 : index
      %c0_96 = arith.constant 0 : index
      %c0_97 = arith.constant 0 : index
      %81 = vector.load %arg2[%c0_95, %c5, %c0_96, %c0_97] : memref<4x9x128x128xbf16, #tpu.memory_space<vmem>>, vector<1x1x128x128xbf16>
      %82 = vector.shape_cast %81 : vector<1x1x128x128xbf16> to vector<128x128xbf16>
      %cst_98 = arith.constant dense<0.000000e+00> : vector<128x128xf32>
      %83 = tpu.matmul %80, %82, %cst_98 {dimension_numbers = #tpu.dot_dimension_numbers<[1], [0], [0], [1], [0, 0, 1, 1], [], []>} : vector<128x128xbf16>, vector<128x128xbf16>, vector<128x128xf32> -> vector<128x128xf32>
      %84 = arith.addf %76, %83 : vector<128x128xf32>
      %c31_i32 = arith.constant 31 : i32
      %85 = arith.addi %35, %c31_i32 : i32
      %86 = arith.index_cast %85 : i32 to index
      %c0_99 = arith.constant 0 : index
      %87 = vector.load %arg7[%86, %c0_99] : memref<1552x128xf32, #tpu.memory_space<vmem>>, vector<128x128xf32>
      %88 = arith.truncf %87 : vector<128x128xf32> to vector<128x128xbf16>
      %c0_100 = arith.constant 0 : index
      %c6 = arith.constant 6 : index
      %c0_101 = arith.constant 0 : index
      %c0_102 = arith.constant 0 : index
      %89 = vector.load %arg2[%c0_100, %c6, %c0_101, %c0_102] : memref<4x9x128x128xbf16, #tpu.memory_space<vmem>>, vector<1x1x128x128xbf16>
      %90 = vector.shape_cast %89 : vector<1x1x128x128xbf16> to vector<128x128xbf16>
      %cst_103 = arith.constant dense<0.000000e+00> : vector<128x128xf32>
      %91 = tpu.matmul %88, %90, %cst_103 {dimension_numbers = #tpu.dot_dimension_numbers<[1], [0], [0], [1], [0, 0, 1, 1], [], []>} : vector<128x128xbf16>, vector<128x128xbf16>, vector<128x128xf32> -> vector<128x128xf32>
      %92 = arith.addf %84, %91 : vector<128x128xf32>
      %c32_i32 = arith.constant 32 : i32
      %93 = arith.addi %35, %c32_i32 : i32
      %94 = arith.index_cast %93 : i32 to index
      %c0_104 = arith.constant 0 : index
      %95 = vector.load %arg7[%94, %c0_104] : memref<1552x128xf32, #tpu.memory_space<vmem>>, vector<128x128xf32>
      %96 = arith.truncf %95 : vector<128x128xf32> to vector<128x128xbf16>
      %c0_105 = arith.constant 0 : index
      %c7 = arith.constant 7 : index
      %c0_106 = arith.constant 0 : index
      %c0_107 = arith.constant 0 : index
      %97 = vector.load %arg2[%c0_105, %c7, %c0_106, %c0_107] : memref<4x9x128x128xbf16, #tpu.memory_space<vmem>>, vector<1x1x128x128xbf16>
      %98 = vector.shape_cast %97 : vector<1x1x128x128xbf16> to vector<128x128xbf16>
      %cst_108 = arith.constant dense<0.000000e+00> : vector<128x128xf32>
      %99 = tpu.matmul %96, %98, %cst_108 {dimension_numbers = #tpu.dot_dimension_numbers<[1], [0], [0], [1], [0, 0, 1, 1], [], []>} : vector<128x128xbf16>, vector<128x128xbf16>, vector<128x128xf32> -> vector<128x128xf32>
      %100 = arith.addf %92, %99 : vector<128x128xf32>
      %c33_i32 = arith.constant 33 : i32
      %101 = arith.addi %35, %c33_i32 : i32
      %102 = arith.index_cast %101 : i32 to index
      %c0_109 = arith.constant 0 : index
      %103 = vector.load %arg7[%102, %c0_109] : memref<1552x128xf32, #tpu.memory_space<vmem>>, vector<128x128xf32>
      %104 = arith.truncf %103 : vector<128x128xf32> to vector<128x128xbf16>
      %c0_110 = arith.constant 0 : index
      %c8 = arith.constant 8 : index
      %c0_111 = arith.constant 0 : index
      %c0_112 = arith.constant 0 : index
      %105 = vector.load %arg2[%c0_110, %c8, %c0_111, %c0_112] : memref<4x9x128x128xbf16, #tpu.memory_space<vmem>>, vector<1x1x128x128xbf16>
      %106 = vector.shape_cast %105 : vector<1x1x128x128xbf16> to vector<128x128xbf16>
      %cst_113 = arith.constant dense<0.000000e+00> : vector<128x128xf32>
      %107 = tpu.matmul %104, %106, %cst_113 {dimension_numbers = #tpu.dot_dimension_numbers<[1], [0], [0], [1], [0, 0, 1, 1], [], []>} : vector<128x128xbf16>, vector<128x128xbf16>, vector<128x128xf32> -> vector<128x128xf32>
      %108 = arith.addf %100, %107 : vector<128x128xf32>
      %109 = vector.broadcast %6 : vector<1x128xf32> to vector<128x128xf32>
      %110 = arith.mulf %108, %109 : vector<128x128xf32>
      %111 = vector.broadcast %8 : vector<1x128xf32> to vector<128x128xf32>
      %112 = arith.addf %110, %111 : vector<128x128xf32>
      %cst_114 = arith.constant 0.000000e+00 : f32
      %113 = vector.broadcast %cst_114 : f32 to vector<128x128xf32>
      %114 = arith.maximumf %112, %113 : vector<128x128xf32>
      %115 = arith.index_cast %35 : i32 to index
      %c0_115 = arith.constant 0 : index
      %116 = vector.load %arg8[%115, %c0_115] : memref<1552x128xf32, #tpu.memory_space<vmem>>, vector<128x128xf32>
      tpu.vector_store %arg8[%115, %c0_115], %114 {strides = array<i32>} : memref<1552x128xf32, #tpu.memory_space<vmem>>, vector<128x128xf32>,
    }
    %c8_i32_14 = arith.constant 8 : i32
    %c0_i32_15 = arith.constant 0 : i32
    %c8_i32_16 = arith.constant 8 : i32
    %10 = arith.addi %c0_i32_15, %c8_i32_16 : i32
    %c1_i32_17 = arith.constant 1 : i32
    scf.for %arg9 = %c0_i32_15 to %10 step %c1_i32_17  : i32 {
      %c128_i32 = arith.constant 128 : i32
      %33 = arith.muli %arg9, %c128_i32 : i32
      %34 = tpu.assume_multiple %33, 128 : i32
      %c264_i32 = arith.constant 264 : i32
      %35 = arith.addi %c264_i32, %34 : i32
      %36 = arith.index_cast %35 : i32 to index
      %c0_62 = arith.constant 0 : index
      %37 = vector.load %arg8[%36, %c0_62] : memref<1552x128xf32, #tpu.memory_space<vmem>>, vector<128x128xf32>
      %c1_i32_63 = arith.constant 1 : i32
      %38 = arith.addi %35, %c1_i32_63 : i32
      %39 = arith.index_cast %38 : i32 to index
      %c0_64 = arith.constant 0 : index
      %40 = vector.load %arg8[%39, %c0_64] : memref<1552x128xf32, #tpu.memory_space<vmem>>, vector<128x128xf32>
      %c32_i32 = arith.constant 32 : i32
      %41 = arith.addi %35, %c32_i32 : i32
      %42 = arith.index_cast %41 : i32 to index
      %c0_65 = arith.constant 0 : index
      %43 = vector.load %arg8[%42, %c0_65] : memref<1552x128xf32, #tpu.memory_space<vmem>>, vector<128x128xf32>
      %c32_i32_66 = arith.constant 32 : i32
      %44 = arith.addi %35, %c32_i32_66 : i32
      %c1_i32_67 = arith.constant 1 : i32
      %45 = arith.addi %44, %c1_i32_67 : i32
      %46 = arith.index_cast %45 : i32 to index
      %c0_68 = arith.constant 0 : index
      %47 = vector.load %arg8[%46, %c0_68] : memref<1552x128xf32, #tpu.memory_space<vmem>>, vector<128x128xf32>
      %48 = arith.maximumf %37, %40 : vector<128x128xf32>
      %49 = arith.maximumf %43, %47 : vector<128x128xf32>
      %50 = arith.maximumf %48, %49 : vector<128x128xf32>
      %c0_69 = arith.constant 0 : index
      %51 = arith.index_cast %34 : i32 to index
      %c0_70 = arith.constant 0 : index
      %52 = vector.load %arg5[%c0_69, %51, %c0_70] : memref<4x1024x128xf32, #tpu.memory_space<vmem>>, vector<1x128x128xf32>
      %53 = vector.shape_cast %52 : vector<1x128x128xf32> to vector<128x128xf32>
      %54 = arith.mulf %50, %53 : vector<128x128xf32>
      %55 = arith.index_cast %35 : i32 to index
      %c0_71 = arith.constant 0 : index
      %56 = vector.load %arg7[%55, %c0_71] : memref<1552x128xf32, #tpu.memory_space<vmem>>, vector<128x128xf32>
      tpu.vector_store %arg7[%55, %c0_71], %54 {strides = array<i32>} : memref<1552x128xf32, #tpu.memory_space<vmem>>, vector<128x128xf32>,
    }
    %c8_i32_18 = arith.constant 8 : i32
    %c1 = arith.constant 1 : index
    %c0_19 = arith.constant 0 : index
    %c0_20 = arith.constant 0 : index
    %11 = vector.load %arg3[%c1, %c0_19, %c0_20] : memref<4x1x128xf32, #tpu.memory_space<vmem>>, vector<1x1x128xf32>
    %12 = vector.shape_cast %11 : vector<1x1x128xf32> to vector<1x128xf32>
    %c1_21 = arith.constant 1 : index
    %c0_22 = arith.constant 0 : index
    %c0_23 = arith.constant 0 : index
    %13 = vector.load %arg4[%c1_21, %c0_22, %c0_23] : memref<4x1x128xf32, #tpu.memory_space<vmem>>, vector<1x1x128xf32>
    %14 = vector.shape_cast %13 : vector<1x1x128xf32> to vector<1x128xf32>
    %c0_i32_24 = arith.constant 0 : i32
    %c8_i32_25 = arith.constant 8 : i32
    %15 = arith.addi %c0_i32_24, %c8_i32_25 : i32
    %c1_i32_26 = arith.constant 1 : i32
    scf.for %arg9 = %c0_i32_24 to %15 step %c1_i32_26  : i32 {
      %c128_i32 = arith.constant 128 : i32
      %33 = arith.muli %arg9, %c128_i32 : i32
      %34 = tpu.assume_multiple %33, 128 : i32
      %c264_i32 = arith.constant 264 : i32
      %35 = arith.addi %c264_i32, %34 : i32
      %cst_62 = arith.constant 0.000000e+00 : f32
      %36 = vector.broadcast %cst_62 : f32 to vector<128x128xf32>
      %c-66_i32 = arith.constant -66 : i32
      %37 = arith.addi %35, %c-66_i32 : i32
      %38 = arith.index_cast %37 : i32 to index
      %c0_63 = arith.constant 0 : index
      %39 = vector.load %arg7[%38, %c0_63] : memref<1552x128xf32, #tpu.memory_space<vmem>>, vector<128x128xf32>
      %40 = arith.truncf %39 : vector<128x128xf32> to vector<128x128xbf16>
      %c1_64 = arith.constant 1 : index
      %c0_65 = arith.constant 0 : index
      %c0_66 = arith.constant 0 : index
      %c0_67 = arith.constant 0 : index
      %41 = vector.load %arg2[%c1_64, %c0_65, %c0_66, %c0_67] : memref<4x9x128x128xbf16, #tpu.memory_space<vmem>>, vector<1x1x128x128xbf16>
      %42 = vector.shape_cast %41 : vector<1x1x128x128xbf16> to vector<128x128xbf16>
      %cst_68 = arith.constant dense<0.000000e+00> : vector<128x128xf32>
      %43 = tpu.matmul %40, %42, %cst_68 {dimension_numbers = #tpu.dot_dimension_numbers<[1], [0], [0], [1], [0, 0, 1, 1], [], []>} : vector<128x128xbf16>, vector<128x128xbf16>, vector<128x128xf32> -> vector<128x128xf32>
      %44 = arith.addf %36, %43 : vector<128x128xf32>
      %c-64_i32 = arith.constant -64 : i32
      %45 = arith.addi %35, %c-64_i32 : i32
      %46 = arith.index_cast %45 : i32 to index
      %c0_69 = arith.constant 0 : index
      %47 = vector.load %arg7[%46, %c0_69] : memref<1552x128xf32, #tpu.memory_space<vmem>>, vector<128x128xf32>
      %48 = arith.truncf %47 : vector<128x128xf32> to vector<128x128xbf16>
      %c1_70 = arith.constant 1 : index
      %c1_71 = arith.constant 1 : index
      %c0_72 = arith.constant 0 : index
      %c0_73 = arith.constant 0 : index
      %49 = vector.load %arg2[%c1_70, %c1_71, %c0_72, %c0_73] : memref<4x9x128x128xbf16, #tpu.memory_space<vmem>>, vector<1x1x128x128xbf16>
      %50 = vector.shape_cast %49 : vector<1x1x128x128xbf16> to vector<128x128xbf16>
      %cst_74 = arith.constant dense<0.000000e+00> : vector<128x128xf32>
      %51 = tpu.matmul %48, %50, %cst_74 {dimension_numbers = #tpu.dot_dimension_numbers<[1], [0], [0], [1], [0, 0, 1, 1], [], []>} : vector<128x128xbf16>, vector<128x128xbf16>, vector<128x128xf32> -> vector<128x128xf32>
      %52 = arith.addf %44, %51 : vector<128x128xf32>
      %c-62_i32 = arith.constant -62 : i32
      %53 = arith.addi %35, %c-62_i32 : i32
      %54 = arith.index_cast %53 : i32 to index
      %c0_75 = arith.constant 0 : index
      %55 = vector.load %arg7[%54, %c0_75] : memref<1552x128xf32, #tpu.memory_space<vmem>>, vector<128x128xf32>
      %56 = arith.truncf %55 : vector<128x128xf32> to vector<128x128xbf16>
      %c1_76 = arith.constant 1 : index
      %c2_77 = arith.constant 2 : index
      %c0_78 = arith.constant 0 : index
      %c0_79 = arith.constant 0 : index
      %57 = vector.load %arg2[%c1_76, %c2_77, %c0_78, %c0_79] : memref<4x9x128x128xbf16, #tpu.memory_space<vmem>>, vector<1x1x128x128xbf16>
      %58 = vector.shape_cast %57 : vector<1x1x128x128xbf16> to vector<128x128xbf16>
      %cst_80 = arith.constant dense<0.000000e+00> : vector<128x128xf32>
      %59 = tpu.matmul %56, %58, %cst_80 {dimension_numbers = #tpu.dot_dimension_numbers<[1], [0], [0], [1], [0, 0, 1, 1], [], []>} : vector<128x128xbf16>, vector<128x128xbf16>, vector<128x128xf32> -> vector<128x128xf32>
      %60 = arith.addf %52, %59 : vector<128x128xf32>
      %c-2_i32 = arith.constant -2 : i32
      %61 = arith.addi %35, %c-2_i32 : i32
      %62 = arith.index_cast %61 : i32 to index
      %c0_81 = arith.constant 0 : index
      %63 = vector.load %arg7[%62, %c0_81] : memref<1552x128xf32, #tpu.memory_space<vmem>>, vector<128x128xf32>
      %64 = arith.truncf %63 : vector<128x128xf32> to vector<128x128xbf16>
      %c1_82 = arith.constant 1 : index
      %c3_83 = arith.constant 3 : index
      %c0_84 = arith.constant 0 : index
      %c0_85 = arith.constant 0 : index
      %65 = vector.load %arg2[%c1_82, %c3_83, %c0_84, %c0_85] : memref<4x9x128x128xbf16, #tpu.memory_space<vmem>>, vector<1x1x128x128xbf16>
      %66 = vector.shape_cast %65 : vector<1x1x128x128xbf16> to vector<128x128xbf16>
      %cst_86 = arith.constant dense<0.000000e+00> : vector<128x128xf32>
      %67 = tpu.matmul %64, %66, %cst_86 {dimension_numbers = #tpu.dot_dimension_numbers<[1], [0], [0], [1], [0, 0, 1, 1], [], []>} : vector<128x128xbf16>, vector<128x128xbf16>, vector<128x128xf32> -> vector<128x128xf32>
      %68 = arith.addf %60, %67 : vector<128x128xf32>
      %c0_i32_87 = arith.constant 0 : i32
      %69 = arith.addi %35, %c0_i32_87 : i32
      %70 = arith.index_cast %69 : i32 to index
      %c0_88 = arith.constant 0 : index
      %71 = vector.load %arg7[%70, %c0_88] : memref<1552x128xf32, #tpu.memory_space<vmem>>, vector<128x128xf32>
      %72 = arith.truncf %71 : vector<128x128xf32> to vector<128x128xbf16>
      %c1_89 = arith.constant 1 : index
      %c4 = arith.constant 4 : index
      %c0_90 = arith.constant 0 : index
      %c0_91 = arith.constant 0 : index
      %73 = vector.load %arg2[%c1_89, %c4, %c0_90, %c0_91] : memref<4x9x128x128xbf16, #tpu.memory_space<vmem>>, vector<1x1x128x128xbf16>
      %74 = vector.shape_cast %73 : vector<1x1x128x128xbf16> to vector<128x128xbf16>
      %cst_92 = arith.constant dense<0.000000e+00> : vector<128x128xf32>
      %75 = tpu.matmul %72, %74, %cst_92 {dimension_numbers = #tpu.dot_dimension_numbers<[1], [0], [0], [1], [0, 0, 1, 1], [], []>} : vector<128x128xbf16>, vector<128x128xbf16>, vector<128x128xf32> -> vector<128x128xf32>
      %76 = arith.addf %68, %75 : vector<128x128xf32>
      %c2_i32 = arith.constant 2 : i32
      %77 = arith.addi %35, %c2_i32 : i32
      %78 = arith.index_cast %77 : i32 to index
      %c0_93 = arith.constant 0 : index
      %79 = vector.load %arg7[%78, %c0_93] : memref<1552x128xf32, #tpu.memory_space<vmem>>, vector<128x128xf32>
      %80 = arith.truncf %79 : vector<128x128xf32> to vector<128x128xbf16>
      %c1_94 = arith.constant 1 : index
      %c5 = arith.constant 5 : index
      %c0_95 = arith.constant 0 : index
      %c0_96 = arith.constant 0 : index
      %81 = vector.load %arg2[%c1_94, %c5, %c0_95, %c0_96] : memref<4x9x128x128xbf16, #tpu.memory_space<vmem>>, vector<1x1x128x128xbf16>
      %82 = vector.shape_cast %81 : vector<1x1x128x128xbf16> to vector<128x128xbf16>
      %cst_97 = arith.constant dense<0.000000e+00> : vector<128x128xf32>
      %83 = tpu.matmul %80, %82, %cst_97 {dimension_numbers = #tpu.dot_dimension_numbers<[1], [0], [0], [1], [0, 0, 1, 1], [], []>} : vector<128x128xbf16>, vector<128x128xbf16>, vector<128x128xf32> -> vector<128x128xf32>
      %84 = arith.addf %76, %83 : vector<128x128xf32>
      %c62_i32 = arith.constant 62 : i32
      %85 = arith.addi %35, %c62_i32 : i32
      %86 = arith.index_cast %85 : i32 to index
      %c0_98 = arith.constant 0 : index
      %87 = vector.load %arg7[%86, %c0_98] : memref<1552x128xf32, #tpu.memory_space<vmem>>, vector<128x128xf32>
      %88 = arith.truncf %87 : vector<128x128xf32> to vector<128x128xbf16>
      %c1_99 = arith.constant 1 : index
      %c6 = arith.constant 6 : index
      %c0_100 = arith.constant 0 : index
      %c0_101 = arith.constant 0 : index
      %89 = vector.load %arg2[%c1_99, %c6, %c0_100, %c0_101] : memref<4x9x128x128xbf16, #tpu.memory_space<vmem>>, vector<1x1x128x128xbf16>
      %90 = vector.shape_cast %89 : vector<1x1x128x128xbf16> to vector<128x128xbf16>
      %cst_102 = arith.constant dense<0.000000e+00> : vector<128x128xf32>
      %91 = tpu.matmul %88, %90, %cst_102 {dimension_numbers = #tpu.dot_dimension_numbers<[1], [0], [0], [1], [0, 0, 1, 1], [], []>} : vector<128x128xbf16>, vector<128x128xbf16>, vector<128x128xf32> -> vector<128x128xf32>
      %92 = arith.addf %84, %91 : vector<128x128xf32>
      %c64_i32 = arith.constant 64 : i32
      %93 = arith.addi %35, %c64_i32 : i32
      %94 = arith.index_cast %93 : i32 to index
      %c0_103 = arith.constant 0 : index
      %95 = vector.load %arg7[%94, %c0_103] : memref<1552x128xf32, #tpu.memory_space<vmem>>, vector<128x128xf32>
      %96 = arith.truncf %95 : vector<128x128xf32> to vector<128x128xbf16>
      %c1_104 = arith.constant 1 : index
      %c7 = arith.constant 7 : index
      %c0_105 = arith.constant 0 : index
      %c0_106 = arith.constant 0 : index
      %97 = vector.load %arg2[%c1_104, %c7, %c0_105, %c0_106] : memref<4x9x128x128xbf16, #tpu.memory_space<vmem>>, vector<1x1x128x128xbf16>
      %98 = vector.shape_cast %97 : vector<1x1x128x128xbf16> to vector<128x128xbf16>
      %cst_107 = arith.constant dense<0.000000e+00> : vector<128x128xf32>
      %99 = tpu.matmul %96, %98, %cst_107 {dimension_numbers = #tpu.dot_dimension_numbers<[1], [0], [0], [1], [0, 0, 1, 1], [], []>} : vector<128x128xbf16>, vector<128x128xbf16>, vector<128x128xf32> -> vector<128x128xf32>
      %100 = arith.addf %92, %99 : vector<128x128xf32>
      %c66_i32 = arith.constant 66 : i32
      %101 = arith.addi %35, %c66_i32 : i32
      %102 = arith.index_cast %101 : i32 to index
      %c0_108 = arith.constant 0 : index
      %103 = vector.load %arg7[%102, %c0_108] : memref<1552x128xf32, #tpu.memory_space<vmem>>, vector<128x128xf32>
      %104 = arith.truncf %103 : vector<128x128xf32> to vector<128x128xbf16>
      %c1_109 = arith.constant 1 : index
      %c8 = arith.constant 8 : index
      %c0_110 = arith.constant 0 : index
      %c0_111 = arith.constant 0 : index
      %105 = vector.load %arg2[%c1_109, %c8, %c0_110, %c0_111] : memref<4x9x128x128xbf16, #tpu.memory_space<vmem>>, vector<1x1x128x128xbf16>
      %106 = vector.shape_cast %105 : vector<1x1x128x128xbf16> to vector<128x128xbf16>
      %cst_112 = arith.constant dense<0.000000e+00> : vector<128x128xf32>
      %107 = tpu.matmul %104, %106, %cst_112 {dimension_numbers = #tpu.dot_dimension_numbers<[1], [0], [0], [1], [0, 0, 1, 1], [], []>} : vector<128x128xbf16>, vector<128x128xbf16>, vector<128x128xf32> -> vector<128x128xf32>
      %108 = arith.addf %100, %107 : vector<128x128xf32>
      %109 = vector.broadcast %12 : vector<1x128xf32> to vector<128x128xf32>
      %110 = arith.mulf %108, %109 : vector<128x128xf32>
      %111 = vector.broadcast %14 : vector<1x128xf32> to vector<128x128xf32>
      %112 = arith.addf %110, %111 : vector<128x128xf32>
      %cst_113 = arith.constant 0.000000e+00 : f32
      %113 = vector.broadcast %cst_113 : f32 to vector<128x128xf32>
      %114 = arith.maximumf %112, %113 : vector<128x128xf32>
      %115 = arith.index_cast %35 : i32 to index
      %c0_114 = arith.constant 0 : index
      %116 = vector.load %arg8[%115, %c0_114] : memref<1552x128xf32, #tpu.memory_space<vmem>>, vector<128x128xf32>
      tpu.vector_store %arg8[%115, %c0_114], %114 {strides = array<i32>} : memref<1552x128xf32, #tpu.memory_space<vmem>>, vector<128x128xf32>,
    }
    %c8_i32_27 = arith.constant 8 : i32
    %c0_i32_28 = arith.constant 0 : i32
    %c8_i32_29 = arith.constant 8 : i32
    %16 = arith.addi %c0_i32_28, %c8_i32_29 : i32
    %c1_i32_30 = arith.constant 1 : i32
    scf.for %arg9 = %c0_i32_28 to %16 step %c1_i32_30  : i32 {
      %c128_i32 = arith.constant 128 : i32
      %33 = arith.muli %arg9, %c128_i32 : i32
      %34 = tpu.assume_multiple %33, 128 : i32
      %c264_i32 = arith.constant 264 : i32
      %35 = arith.addi %c264_i32, %34 : i32
      %36 = arith.index_cast %35 : i32 to index
      %c0_62 = arith.constant 0 : index
      %37 = vector.load %arg8[%36, %c0_62] : memref<1552x128xf32, #tpu.memory_space<vmem>>, vector<128x128xf32>
      %c2_i32 = arith.constant 2 : i32
      %38 = arith.addi %35, %c2_i32 : i32
      %39 = arith.index_cast %38 : i32 to index
      %c0_63 = arith.constant 0 : index
      %40 = vector.load %arg8[%39, %c0_63] : memref<1552x128xf32, #tpu.memory_space<vmem>>, vector<128x128xf32>
      %c64_i32 = arith.constant 64 : i32
      %41 = arith.addi %35, %c64_i32 : i32
      %42 = arith.index_cast %41 : i32 to index
      %c0_64 = arith.constant 0 : index
      %43 = vector.load %arg8[%42, %c0_64] : memref<1552x128xf32, #tpu.memory_space<vmem>>, vector<128x128xf32>
      %c64_i32_65 = arith.constant 64 : i32
      %44 = arith.addi %35, %c64_i32_65 : i32
      %c2_i32_66 = arith.constant 2 : i32
      %45 = arith.addi %44, %c2_i32_66 : i32
      %46 = arith.index_cast %45 : i32 to index
      %c0_67 = arith.constant 0 : index
      %47 = vector.load %arg8[%46, %c0_67] : memref<1552x128xf32, #tpu.memory_space<vmem>>, vector<128x128xf32>
      %48 = arith.maximumf %37, %40 : vector<128x128xf32>
      %49 = arith.maximumf %43, %47 : vector<128x128xf32>
      %50 = arith.maximumf %48, %49 : vector<128x128xf32>
      %c1_68 = arith.constant 1 : index
      %51 = arith.index_cast %34 : i32 to index
      %c0_69 = arith.constant 0 : index
      %52 = vector.load %arg5[%c1_68, %51, %c0_69] : memref<4x1024x128xf32, #tpu.memory_space<vmem>>, vector<1x128x128xf32>
      %53 = vector.shape_cast %52 : vector<1x128x128xf32> to vector<128x128xf32>
      %54 = arith.mulf %50, %53 : vector<128x128xf32>
      %55 = arith.index_cast %35 : i32 to index
      %c0_70 = arith.constant 0 : index
      %56 = vector.load %arg7[%55, %c0_70] : memref<1552x128xf32, #tpu.memory_space<vmem>>, vector<128x128xf32>
      tpu.vector_store %arg7[%55, %c0_70], %54 {strides = array<i32>} : memref<1552x128xf32, #tpu.memory_space<vmem>>, vector<128x128xf32>,
    }
    %c8_i32_31 = arith.constant 8 : i32
    %c2 = arith.constant 2 : index
    %c0_32 = arith.constant 0 : index
    %c0_33 = arith.constant 0 : index
    %17 = vector.load %arg3[%c2, %c0_32, %c0_33] : memref<4x1x128xf32, #tpu.memory_space<vmem>>, vector<1x1x128xf32>
    %18 = vector.shape_cast %17 : vector<1x1x128xf32> to vector<1x128xf32>
    %c2_34 = arith.constant 2 : index
    %c0_35 = arith.constant 0 : index
    %c0_36 = arith.constant 0 : index
    %19 = vector.load %arg4[%c2_34, %c0_35, %c0_36] : memref<4x1x128xf32, #tpu.memory_space<vmem>>, vector<1x1x128xf32>
    %20 = vector.shape_cast %19 : vector<1x1x128xf32> to vector<1x128xf32>
    %c0_i32_37 = arith.constant 0 : i32
    %c8_i32_38 = arith.constant 8 : i32
    %21 = arith.addi %c0_i32_37, %c8_i32_38 : i32
    %c1_i32_39 = arith.constant 1 : i32
    scf.for %arg9 = %c0_i32_37 to %21 step %c1_i32_39  : i32 {
      %c128_i32 = arith.constant 128 : i32
      %33 = arith.muli %arg9, %c128_i32 : i32
      %34 = tpu.assume_multiple %33, 128 : i32
      %c264_i32 = arith.constant 264 : i32
      %35 = arith.addi %c264_i32, %34 : i32
      %cst_62 = arith.constant 0.000000e+00 : f32
      %36 = vector.broadcast %cst_62 : f32 to vector<128x128xf32>
      %c-132_i32 = arith.constant -132 : i32
      %37 = arith.addi %35, %c-132_i32 : i32
      %38 = arith.index_cast %37 : i32 to index
      %c0_63 = arith.constant 0 : index
      %39 = vector.load %arg7[%38, %c0_63] : memref<1552x128xf32, #tpu.memory_space<vmem>>, vector<128x128xf32>
      %40 = arith.truncf %39 : vector<128x128xf32> to vector<128x128xbf16>
      %c2_64 = arith.constant 2 : index
      %c0_65 = arith.constant 0 : index
      %c0_66 = arith.constant 0 : index
      %c0_67 = arith.constant 0 : index
      %41 = vector.load %arg2[%c2_64, %c0_65, %c0_66, %c0_67] : memref<4x9x128x128xbf16, #tpu.memory_space<vmem>>, vector<1x1x128x128xbf16>
      %42 = vector.shape_cast %41 : vector<1x1x128x128xbf16> to vector<128x128xbf16>
      %cst_68 = arith.constant dense<0.000000e+00> : vector<128x128xf32>
      %43 = tpu.matmul %40, %42, %cst_68 {dimension_numbers = #tpu.dot_dimension_numbers<[1], [0], [0], [1], [0, 0, 1, 1], [], []>} : vector<128x128xbf16>, vector<128x128xbf16>, vector<128x128xf32> -> vector<128x128xf32>
      %44 = arith.addf %36, %43 : vector<128x128xf32>
      %c-128_i32 = arith.constant -128 : i32
      %45 = arith.addi %35, %c-128_i32 : i32
      %46 = arith.index_cast %45 : i32 to index
      %c0_69 = arith.constant 0 : index
      %47 = vector.load %arg7[%46, %c0_69] : memref<1552x128xf32, #tpu.memory_space<vmem>>, vector<128x128xf32>
      %48 = arith.truncf %47 : vector<128x128xf32> to vector<128x128xbf16>
      %c2_70 = arith.constant 2 : index
      %c1_71 = arith.constant 1 : index
      %c0_72 = arith.constant 0 : index
      %c0_73 = arith.constant 0 : index
      %49 = vector.load %arg2[%c2_70, %c1_71, %c0_72, %c0_73] : memref<4x9x128x128xbf16, #tpu.memory_space<vmem>>, vector<1x1x128x128xbf16>
      %50 = vector.shape_cast %49 : vector<1x1x128x128xbf16> to vector<128x128xbf16>
      %cst_74 = arith.constant dense<0.000000e+00> : vector<128x128xf32>
      %51 = tpu.matmul %48, %50, %cst_74 {dimension_numbers = #tpu.dot_dimension_numbers<[1], [0], [0], [1], [0, 0, 1, 1], [], []>} : vector<128x128xbf16>, vector<128x128xbf16>, vector<128x128xf32> -> vector<128x128xf32>
      %52 = arith.addf %44, %51 : vector<128x128xf32>
      %c-124_i32 = arith.constant -124 : i32
      %53 = arith.addi %35, %c-124_i32 : i32
      %54 = arith.index_cast %53 : i32 to index
      %c0_75 = arith.constant 0 : index
      %55 = vector.load %arg7[%54, %c0_75] : memref<1552x128xf32, #tpu.memory_space<vmem>>, vector<128x128xf32>
      %56 = arith.truncf %55 : vector<128x128xf32> to vector<128x128xbf16>
      %c2_76 = arith.constant 2 : index
      %c2_77 = arith.constant 2 : index
      %c0_78 = arith.constant 0 : index
      %c0_79 = arith.constant 0 : index
      %57 = vector.load %arg2[%c2_76, %c2_77, %c0_78, %c0_79] : memref<4x9x128x128xbf16, #tpu.memory_space<vmem>>, vector<1x1x128x128xbf16>
      %58 = vector.shape_cast %57 : vector<1x1x128x128xbf16> to vector<128x128xbf16>
      %cst_80 = arith.constant dense<0.000000e+00> : vector<128x128xf32>
      %59 = tpu.matmul %56, %58, %cst_80 {dimension_numbers = #tpu.dot_dimension_numbers<[1], [0], [0], [1], [0, 0, 1, 1], [], []>} : vector<128x128xbf16>, vector<128x128xbf16>, vector<128x128xf32> -> vector<128x128xf32>
      %60 = arith.addf %52, %59 : vector<128x128xf32>
      %c-4_i32 = arith.constant -4 : i32
      %61 = arith.addi %35, %c-4_i32 : i32
      %62 = arith.index_cast %61 : i32 to index
      %c0_81 = arith.constant 0 : index
      %63 = vector.load %arg7[%62, %c0_81] : memref<1552x128xf32, #tpu.memory_space<vmem>>, vector<128x128xf32>
      %64 = arith.truncf %63 : vector<128x128xf32> to vector<128x128xbf16>
      %c2_82 = arith.constant 2 : index
      %c3_83 = arith.constant 3 : index
      %c0_84 = arith.constant 0 : index
      %c0_85 = arith.constant 0 : index
      %65 = vector.load %arg2[%c2_82, %c3_83, %c0_84, %c0_85] : memref<4x9x128x128xbf16, #tpu.memory_space<vmem>>, vector<1x1x128x128xbf16>
      %66 = vector.shape_cast %65 : vector<1x1x128x128xbf16> to vector<128x128xbf16>
      %cst_86 = arith.constant dense<0.000000e+00> : vector<128x128xf32>
      %67 = tpu.matmul %64, %66, %cst_86 {dimension_numbers = #tpu.dot_dimension_numbers<[1], [0], [0], [1], [0, 0, 1, 1], [], []>} : vector<128x128xbf16>, vector<128x128xbf16>, vector<128x128xf32> -> vector<128x128xf32>
      %68 = arith.addf %60, %67 : vector<128x128xf32>
      %c0_i32_87 = arith.constant 0 : i32
      %69 = arith.addi %35, %c0_i32_87 : i32
      %70 = arith.index_cast %69 : i32 to index
      %c0_88 = arith.constant 0 : index
      %71 = vector.load %arg7[%70, %c0_88] : memref<1552x128xf32, #tpu.memory_space<vmem>>, vector<128x128xf32>
      %72 = arith.truncf %71 : vector<128x128xf32> to vector<128x128xbf16>
      %c2_89 = arith.constant 2 : index
      %c4 = arith.constant 4 : index
      %c0_90 = arith.constant 0 : index
      %c0_91 = arith.constant 0 : index
      %73 = vector.load %arg2[%c2_89, %c4, %c0_90, %c0_91] : memref<4x9x128x128xbf16, #tpu.memory_space<vmem>>, vector<1x1x128x128xbf16>
      %74 = vector.shape_cast %73 : vector<1x1x128x128xbf16> to vector<128x128xbf16>
      %cst_92 = arith.constant dense<0.000000e+00> : vector<128x128xf32>
      %75 = tpu.matmul %72, %74, %cst_92 {dimension_numbers = #tpu.dot_dimension_numbers<[1], [0], [0], [1], [0, 0, 1, 1], [], []>} : vector<128x128xbf16>, vector<128x128xbf16>, vector<128x128xf32> -> vector<128x128xf32>
      %76 = arith.addf %68, %75 : vector<128x128xf32>
      %c4_i32 = arith.constant 4 : i32
      %77 = arith.addi %35, %c4_i32 : i32
      %78 = arith.index_cast %77 : i32 to index
      %c0_93 = arith.constant 0 : index
      %79 = vector.load %arg7[%78, %c0_93] : memref<1552x128xf32, #tpu.memory_space<vmem>>, vector<128x128xf32>
      %80 = arith.truncf %79 : vector<128x128xf32> to vector<128x128xbf16>
      %c2_94 = arith.constant 2 : index
      %c5 = arith.constant 5 : index
      %c0_95 = arith.constant 0 : index
      %c0_96 = arith.constant 0 : index
      %81 = vector.load %arg2[%c2_94, %c5, %c0_95, %c0_96] : memref<4x9x128x128xbf16, #tpu.memory_space<vmem>>, vector<1x1x128x128xbf16>
      %82 = vector.shape_cast %81 : vector<1x1x128x128xbf16> to vector<128x128xbf16>
      %cst_97 = arith.constant dense<0.000000e+00> : vector<128x128xf32>
      %83 = tpu.matmul %80, %82, %cst_97 {dimension_numbers = #tpu.dot_dimension_numbers<[1], [0], [0], [1], [0, 0, 1, 1], [], []>} : vector<128x128xbf16>, vector<128x128xbf16>, vector<128x128xf32> -> vector<128x128xf32>
      %84 = arith.addf %76, %83 : vector<128x128xf32>
      %c124_i32 = arith.constant 124 : i32
      %85 = arith.addi %35, %c124_i32 : i32
      %86 = arith.index_cast %85 : i32 to index
      %c0_98 = arith.constant 0 : index
      %87 = vector.load %arg7[%86, %c0_98] : memref<1552x128xf32, #tpu.memory_space<vmem>>, vector<128x128xf32>
      %88 = arith.truncf %87 : vector<128x128xf32> to vector<128x128xbf16>
      %c2_99 = arith.constant 2 : index
      %c6 = arith.constant 6 : index
      %c0_100 = arith.constant 0 : index
      %c0_101 = arith.constant 0 : index
      %89 = vector.load %arg2[%c2_99, %c6, %c0_100, %c0_101] : memref<4x9x128x128xbf16, #tpu.memory_space<vmem>>, vector<1x1x128x128xbf16>
      %90 = vector.shape_cast %89 : vector<1x1x128x128xbf16> to vector<128x128xbf16>
      %cst_102 = arith.constant dense<0.000000e+00> : vector<128x128xf32>
      %91 = tpu.matmul %88, %90, %cst_102 {dimension_numbers = #tpu.dot_dimension_numbers<[1], [0], [0], [1], [0, 0, 1, 1], [], []>} : vector<128x128xbf16>, vector<128x128xbf16>, vector<128x128xf32> -> vector<128x128xf32>
      %92 = arith.addf %84, %91 : vector<128x128xf32>
      %c128_i32_103 = arith.constant 128 : i32
      %93 = arith.addi %35, %c128_i32_103 : i32
      %94 = arith.index_cast %93 : i32 to index
      %c0_104 = arith.constant 0 : index
      %95 = vector.load %arg7[%94, %c0_104] : memref<1552x128xf32, #tpu.memory_space<vmem>>, vector<128x128xf32>
      %96 = arith.truncf %95 : vector<128x128xf32> to vector<128x128xbf16>
      %c2_105 = arith.constant 2 : index
      %c7 = arith.constant 7 : index
      %c0_106 = arith.constant 0 : index
      %c0_107 = arith.constant 0 : index
      %97 = vector.load %arg2[%c2_105, %c7, %c0_106, %c0_107] : memref<4x9x128x128xbf16, #tpu.memory_space<vmem>>, vector<1x1x128x128xbf16>
      %98 = vector.shape_cast %97 : vector<1x1x128x128xbf16> to vector<128x128xbf16>
      %cst_108 = arith.constant dense<0.000000e+00> : vector<128x128xf32>
      %99 = tpu.matmul %96, %98, %cst_108 {dimension_numbers = #tpu.dot_dimension_numbers<[1], [0], [0], [1], [0, 0, 1, 1], [], []>} : vector<128x128xbf16>, vector<128x128xbf16>, vector<128x128xf32> -> vector<128x128xf32>
      %100 = arith.addf %92, %99 : vector<128x128xf32>
      %c132_i32 = arith.constant 132 : i32
      %101 = arith.addi %35, %c132_i32 : i32
      %102 = arith.index_cast %101 : i32 to index
      %c0_109 = arith.constant 0 : index
      %103 = vector.load %arg7[%102, %c0_109] : memref<1552x128xf32, #tpu.memory_space<vmem>>, vector<128x128xf32>
      %104 = arith.truncf %103 : vector<128x128xf32> to vector<128x128xbf16>
      %c2_110 = arith.constant 2 : index
      %c8 = arith.constant 8 : index
      %c0_111 = arith.constant 0 : index
      %c0_112 = arith.constant 0 : index
      %105 = vector.load %arg2[%c2_110, %c8, %c0_111, %c0_112] : memref<4x9x128x128xbf16, #tpu.memory_space<vmem>>, vector<1x1x128x128xbf16>
      %106 = vector.shape_cast %105 : vector<1x1x128x128xbf16> to vector<128x128xbf16>
      %cst_113 = arith.constant dense<0.000000e+00> : vector<128x128xf32>
      %107 = tpu.matmul %104, %106, %cst_113 {dimension_numbers = #tpu.dot_dimension_numbers<[1], [0], [0], [1], [0, 0, 1, 1], [], []>} : vector<128x128xbf16>, vector<128x128xbf16>, vector<128x128xf32> -> vector<128x128xf32>
      %108 = arith.addf %100, %107 : vector<128x128xf32>
      %109 = vector.broadcast %18 : vector<1x128xf32> to vector<128x128xf32>
      %110 = arith.mulf %108, %109 : vector<128x128xf32>
      %111 = vector.broadcast %20 : vector<1x128xf32> to vector<128x128xf32>
      %112 = arith.addf %110, %111 : vector<128x128xf32>
      %cst_114 = arith.constant 0.000000e+00 : f32
      %113 = vector.broadcast %cst_114 : f32 to vector<128x128xf32>
      %114 = arith.maximumf %112, %113 : vector<128x128xf32>
      %115 = arith.index_cast %35 : i32 to index
      %c0_115 = arith.constant 0 : index
      %116 = vector.load %arg8[%115, %c0_115] : memref<1552x128xf32, #tpu.memory_space<vmem>>, vector<128x128xf32>
      tpu.vector_store %arg8[%115, %c0_115], %114 {strides = array<i32>} : memref<1552x128xf32, #tpu.memory_space<vmem>>, vector<128x128xf32>,
    }
    %c8_i32_40 = arith.constant 8 : i32
    %c0_i32_41 = arith.constant 0 : i32
    %c8_i32_42 = arith.constant 8 : i32
    %22 = arith.addi %c0_i32_41, %c8_i32_42 : i32
    %c1_i32_43 = arith.constant 1 : i32
    scf.for %arg9 = %c0_i32_41 to %22 step %c1_i32_43  : i32 {
      %c128_i32 = arith.constant 128 : i32
      %33 = arith.muli %arg9, %c128_i32 : i32
      %34 = tpu.assume_multiple %33, 128 : i32
      %c264_i32 = arith.constant 264 : i32
      %35 = arith.addi %c264_i32, %34 : i32
      %36 = arith.index_cast %35 : i32 to index
      %c0_62 = arith.constant 0 : index
      %37 = vector.load %arg8[%36, %c0_62] : memref<1552x128xf32, #tpu.memory_space<vmem>>, vector<128x128xf32>
      %c4_i32 = arith.constant 4 : i32
      %38 = arith.addi %35, %c4_i32 : i32
      %39 = arith.index_cast %38 : i32 to index
      %c0_63 = arith.constant 0 : index
      %40 = vector.load %arg8[%39, %c0_63] : memref<1552x128xf32, #tpu.memory_space<vmem>>, vector<128x128xf32>
      %c128_i32_64 = arith.constant 128 : i32
      %41 = arith.addi %35, %c128_i32_64 : i32
      %42 = arith.index_cast %41 : i32 to index
      %c0_65 = arith.constant 0 : index
      %43 = vector.load %arg8[%42, %c0_65] : memref<1552x128xf32, #tpu.memory_space<vmem>>, vector<128x128xf32>
      %c128_i32_66 = arith.constant 128 : i32
      %44 = arith.addi %35, %c128_i32_66 : i32
      %c4_i32_67 = arith.constant 4 : i32
      %45 = arith.addi %44, %c4_i32_67 : i32
      %46 = arith.index_cast %45 : i32 to index
      %c0_68 = arith.constant 0 : index
      %47 = vector.load %arg8[%46, %c0_68] : memref<1552x128xf32, #tpu.memory_space<vmem>>, vector<128x128xf32>
      %48 = arith.maximumf %37, %40 : vector<128x128xf32>
      %49 = arith.maximumf %43, %47 : vector<128x128xf32>
      %50 = arith.maximumf %48, %49 : vector<128x128xf32>
      %c2_69 = arith.constant 2 : index
      %51 = arith.index_cast %34 : i32 to index
      %c0_70 = arith.constant 0 : index
      %52 = vector.load %arg5[%c2_69, %51, %c0_70] : memref<4x1024x128xf32, #tpu.memory_space<vmem>>, vector<1x128x128xf32>
      %53 = vector.shape_cast %52 : vector<1x128x128xf32> to vector<128x128xf32>
      %54 = arith.mulf %50, %53 : vector<128x128xf32>
      %55 = arith.index_cast %35 : i32 to index
      %c0_71 = arith.constant 0 : index
      %56 = vector.load %arg7[%55, %c0_71] : memref<1552x128xf32, #tpu.memory_space<vmem>>, vector<128x128xf32>
      tpu.vector_store %arg7[%55, %c0_71], %54 {strides = array<i32>} : memref<1552x128xf32, #tpu.memory_space<vmem>>, vector<128x128xf32>,
    }
    %c8_i32_44 = arith.constant 8 : i32
    %c3 = arith.constant 3 : index
    %c0_45 = arith.constant 0 : index
    %c0_46 = arith.constant 0 : index
    %23 = vector.load %arg3[%c3, %c0_45, %c0_46] : memref<4x1x128xf32, #tpu.memory_space<vmem>>, vector<1x1x128xf32>
    %24 = vector.shape_cast %23 : vector<1x1x128xf32> to vector<1x128xf32>
    %c3_47 = arith.constant 3 : index
    %c0_48 = arith.constant 0 : index
    %c0_49 = arith.constant 0 : index
    %25 = vector.load %arg4[%c3_47, %c0_48, %c0_49] : memref<4x1x128xf32, #tpu.memory_space<vmem>>, vector<1x1x128xf32>
    %26 = vector.shape_cast %25 : vector<1x1x128xf32> to vector<1x128xf32>
    %c0_i32_50 = arith.constant 0 : i32
    %c8_i32_51 = arith.constant 8 : i32
    %27 = arith.addi %c0_i32_50, %c8_i32_51 : i32
    %c1_i32_52 = arith.constant 1 : i32
    scf.for %arg9 = %c0_i32_50 to %27 step %c1_i32_52  : i32 {
      %c128_i32 = arith.constant 128 : i32
      %33 = arith.muli %arg9, %c128_i32 : i32
      %34 = tpu.assume_multiple %33, 128 : i32
      %c264_i32 = arith.constant 264 : i32
      %35 = arith.addi %c264_i32, %34 : i32
      %cst_62 = arith.constant 0.000000e+00 : f32
      %36 = vector.broadcast %cst_62 : f32 to vector<128x128xf32>
      %c-264_i32 = arith.constant -264 : i32
      %37 = arith.addi %35, %c-264_i32 : i32
      %38 = arith.index_cast %37 : i32 to index
      %c0_63 = arith.constant 0 : index
      %39 = vector.load %arg7[%38, %c0_63] : memref<1552x128xf32, #tpu.memory_space<vmem>>, vector<128x128xf32>
      %40 = arith.truncf %39 : vector<128x128xf32> to vector<128x128xbf16>
      %c3_64 = arith.constant 3 : index
      %c0_65 = arith.constant 0 : index
      %c0_66 = arith.constant 0 : index
      %c0_67 = arith.constant 0 : index
      %41 = vector.load %arg2[%c3_64, %c0_65, %c0_66, %c0_67] : memref<4x9x128x128xbf16, #tpu.memory_space<vmem>>, vector<1x1x128x128xbf16>
      %42 = vector.shape_cast %41 : vector<1x1x128x128xbf16> to vector<128x128xbf16>
      %cst_68 = arith.constant dense<0.000000e+00> : vector<128x128xf32>
      %43 = tpu.matmul %40, %42, %cst_68 {dimension_numbers = #tpu.dot_dimension_numbers<[1], [0], [0], [1], [0, 0, 1, 1], [], []>} : vector<128x128xbf16>, vector<128x128xbf16>, vector<128x128xf32> -> vector<128x128xf32>
      %44 = arith.addf %36, %43 : vector<128x128xf32>
      %c-256_i32 = arith.constant -256 : i32
      %45 = arith.addi %35, %c-256_i32 : i32
      %46 = arith.index_cast %45 : i32 to index
      %c0_69 = arith.constant 0 : index
      %47 = vector.load %arg7[%46, %c0_69] : memref<1552x128xf32, #tpu.memory_space<vmem>>, vector<128x128xf32>
      %48 = arith.truncf %47 : vector<128x128xf32> to vector<128x128xbf16>
      %c3_70 = arith.constant 3 : index
      %c1_71 = arith.constant 1 : index
      %c0_72 = arith.constant 0 : index
      %c0_73 = arith.constant 0 : index
      %49 = vector.load %arg2[%c3_70, %c1_71, %c0_72, %c0_73] : memref<4x9x128x128xbf16, #tpu.memory_space<vmem>>, vector<1x1x128x128xbf16>
      %50 = vector.shape_cast %49 : vector<1x1x128x128xbf16> to vector<128x128xbf16>
      %cst_74 = arith.constant dense<0.000000e+00> : vector<128x128xf32>
      %51 = tpu.matmul %48, %50, %cst_74 {dimension_numbers = #tpu.dot_dimension_numbers<[1], [0], [0], [1], [0, 0, 1, 1], [], []>} : vector<128x128xbf16>, vector<128x128xbf16>, vector<128x128xf32> -> vector<128x128xf32>
      %52 = arith.addf %44, %51 : vector<128x128xf32>
      %c-248_i32 = arith.constant -248 : i32
      %53 = arith.addi %35, %c-248_i32 : i32
      %54 = arith.index_cast %53 : i32 to index
      %c0_75 = arith.constant 0 : index
      %55 = vector.load %arg7[%54, %c0_75] : memref<1552x128xf32, #tpu.memory_space<vmem>>, vector<128x128xf32>
      %56 = arith.truncf %55 : vector<128x128xf32> to vector<128x128xbf16>
      %c3_76 = arith.constant 3 : index
      %c2_77 = arith.constant 2 : index
      %c0_78 = arith.constant 0 : index
      %c0_79 = arith.constant 0 : index
      %57 = vector.load %arg2[%c3_76, %c2_77, %c0_78, %c0_79] : memref<4x9x128x128xbf16, #tpu.memory_space<vmem>>, vector<1x1x128x128xbf16>
      %58 = vector.shape_cast %57 : vector<1x1x128x128xbf16> to vector<128x128xbf16>
      %cst_80 = arith.constant dense<0.000000e+00> : vector<128x128xf32>
      %59 = tpu.matmul %56, %58, %cst_80 {dimension_numbers = #tpu.dot_dimension_numbers<[1], [0], [0], [1], [0, 0, 1, 1], [], []>} : vector<128x128xbf16>, vector<128x128xbf16>, vector<128x128xf32> -> vector<128x128xf32>
      %60 = arith.addf %52, %59 : vector<128x128xf32>
      %c-8_i32 = arith.constant -8 : i32
      %61 = arith.addi %35, %c-8_i32 : i32
      %62 = arith.index_cast %61 : i32 to index
      %c0_81 = arith.constant 0 : index
      %63 = vector.load %arg7[%62, %c0_81] : memref<1552x128xf32, #tpu.memory_space<vmem>>, vector<128x128xf32>
      %64 = arith.truncf %63 : vector<128x128xf32> to vector<128x128xbf16>
      %c3_82 = arith.constant 3 : index
      %c3_83 = arith.constant 3 : index
      %c0_84 = arith.constant 0 : index
      %c0_85 = arith.constant 0 : index
      %65 = vector.load %arg2[%c3_82, %c3_83, %c0_84, %c0_85] : memref<4x9x128x128xbf16, #tpu.memory_space<vmem>>, vector<1x1x128x128xbf16>
      %66 = vector.shape_cast %65 : vector<1x1x128x128xbf16> to vector<128x128xbf16>
      %cst_86 = arith.constant dense<0.000000e+00> : vector<128x128xf32>
      %67 = tpu.matmul %64, %66, %cst_86 {dimension_numbers = #tpu.dot_dimension_numbers<[1], [0], [0], [1], [0, 0, 1, 1], [], []>} : vector<128x128xbf16>, vector<128x128xbf16>, vector<128x128xf32> -> vector<128x128xf32>
      %68 = arith.addf %60, %67 : vector<128x128xf32>
      %c0_i32_87 = arith.constant 0 : i32
      %69 = arith.addi %35, %c0_i32_87 : i32
      %70 = arith.index_cast %69 : i32 to index
      %c0_88 = arith.constant 0 : index
      %71 = vector.load %arg7[%70, %c0_88] : memref<1552x128xf32, #tpu.memory_space<vmem>>, vector<128x128xf32>
      %72 = arith.truncf %71 : vector<128x128xf32> to vector<128x128xbf16>
      %c3_89 = arith.constant 3 : index
      %c4 = arith.constant 4 : index
      %c0_90 = arith.constant 0 : index
      %c0_91 = arith.constant 0 : index
      %73 = vector.load %arg2[%c3_89, %c4, %c0_90, %c0_91] : memref<4x9x128x128xbf16, #tpu.memory_space<vmem>>, vector<1x1x128x128xbf16>
      %74 = vector.shape_cast %73 : vector<1x1x128x128xbf16> to vector<128x128xbf16>
      %cst_92 = arith.constant dense<0.000000e+00> : vector<128x128xf32>
      %75 = tpu.matmul %72, %74, %cst_92 {dimension_numbers = #tpu.dot_dimension_numbers<[1], [0], [0], [1], [0, 0, 1, 1], [], []>} : vector<128x128xbf16>, vector<128x128xbf16>, vector<128x128xf32> -> vector<128x128xf32>
      %76 = arith.addf %68, %75 : vector<128x128xf32>
      %c8_i32_93 = arith.constant 8 : i32
      %77 = arith.addi %35, %c8_i32_93 : i32
      %78 = arith.index_cast %77 : i32 to index
      %c0_94 = arith.constant 0 : index
      %79 = vector.load %arg7[%78, %c0_94] : memref<1552x128xf32, #tpu.memory_space<vmem>>, vector<128x128xf32>
      %80 = arith.truncf %79 : vector<128x128xf32> to vector<128x128xbf16>
      %c3_95 = arith.constant 3 : index
      %c5 = arith.constant 5 : index
      %c0_96 = arith.constant 0 : index
      %c0_97 = arith.constant 0 : index
      %81 = vector.load %arg2[%c3_95, %c5, %c0_96, %c0_97] : memref<4x9x128x128xbf16, #tpu.memory_space<vmem>>, vector<1x1x128x128xbf16>
      %82 = vector.shape_cast %81 : vector<1x1x128x128xbf16> to vector<128x128xbf16>
      %cst_98 = arith.constant dense<0.000000e+00> : vector<128x128xf32>
      %83 = tpu.matmul %80, %82, %cst_98 {dimension_numbers = #tpu.dot_dimension_numbers<[1], [0], [0], [1], [0, 0, 1, 1], [], []>} : vector<128x128xbf16>, vector<128x128xbf16>, vector<128x128xf32> -> vector<128x128xf32>
      %84 = arith.addf %76, %83 : vector<128x128xf32>
      %c248_i32 = arith.constant 248 : i32
      %85 = arith.addi %35, %c248_i32 : i32
      %86 = arith.index_cast %85 : i32 to index
      %c0_99 = arith.constant 0 : index
      %87 = vector.load %arg7[%86, %c0_99] : memref<1552x128xf32, #tpu.memory_space<vmem>>, vector<128x128xf32>
      %88 = arith.truncf %87 : vector<128x128xf32> to vector<128x128xbf16>
      %c3_100 = arith.constant 3 : index
      %c6 = arith.constant 6 : index
      %c0_101 = arith.constant 0 : index
      %c0_102 = arith.constant 0 : index
      %89 = vector.load %arg2[%c3_100, %c6, %c0_101, %c0_102] : memref<4x9x128x128xbf16, #tpu.memory_space<vmem>>, vector<1x1x128x128xbf16>
      %90 = vector.shape_cast %89 : vector<1x1x128x128xbf16> to vector<128x128xbf16>
      %cst_103 = arith.constant dense<0.000000e+00> : vector<128x128xf32>
      %91 = tpu.matmul %88, %90, %cst_103 {dimension_numbers = #tpu.dot_dimension_numbers<[1], [0], [0], [1], [0, 0, 1, 1], [], []>} : vector<128x128xbf16>, vector<128x128xbf16>, vector<128x128xf32> -> vector<128x128xf32>
      %92 = arith.addf %84, %91 : vector<128x128xf32>
      %c256_i32 = arith.constant 256 : i32
      %93 = arith.addi %35, %c256_i32 : i32
      %94 = arith.index_cast %93 : i32 to index
      %c0_104 = arith.constant 0 : index
      %95 = vector.load %arg7[%94, %c0_104] : memref<1552x128xf32, #tpu.memory_space<vmem>>, vector<128x128xf32>
      %96 = arith.truncf %95 : vector<128x128xf32> to vector<128x128xbf16>
      %c3_105 = arith.constant 3 : index
      %c7 = arith.constant 7 : index
      %c0_106 = arith.constant 0 : index
      %c0_107 = arith.constant 0 : index
      %97 = vector.load %arg2[%c3_105, %c7, %c0_106, %c0_107] : memref<4x9x128x128xbf16, #tpu.memory_space<vmem>>, vector<1x1x128x128xbf16>
      %98 = vector.shape_cast %97 : vector<1x1x128x128xbf16> to vector<128x128xbf16>
      %cst_108 = arith.constant dense<0.000000e+00> : vector<128x128xf32>
      %99 = tpu.matmul %96, %98, %cst_108 {dimension_numbers = #tpu.dot_dimension_numbers<[1], [0], [0], [1], [0, 0, 1, 1], [], []>} : vector<128x128xbf16>, vector<128x128xbf16>, vector<128x128xf32> -> vector<128x128xf32>
      %100 = arith.addf %92, %99 : vector<128x128xf32>
      %c264_i32_109 = arith.constant 264 : i32
      %101 = arith.addi %35, %c264_i32_109 : i32
      %102 = arith.index_cast %101 : i32 to index
      %c0_110 = arith.constant 0 : index
      %103 = vector.load %arg7[%102, %c0_110] : memref<1552x128xf32, #tpu.memory_space<vmem>>, vector<128x128xf32>
      %104 = arith.truncf %103 : vector<128x128xf32> to vector<128x128xbf16>
      %c3_111 = arith.constant 3 : index
      %c8 = arith.constant 8 : index
      %c0_112 = arith.constant 0 : index
      %c0_113 = arith.constant 0 : index
      %105 = vector.load %arg2[%c3_111, %c8, %c0_112, %c0_113] : memref<4x9x128x128xbf16, #tpu.memory_space<vmem>>, vector<1x1x128x128xbf16>
      %106 = vector.shape_cast %105 : vector<1x1x128x128xbf16> to vector<128x128xbf16>
      %cst_114 = arith.constant dense<0.000000e+00> : vector<128x128xf32>
      %107 = tpu.matmul %104, %106, %cst_114 {dimension_numbers = #tpu.dot_dimension_numbers<[1], [0], [0], [1], [0, 0, 1, 1], [], []>} : vector<128x128xbf16>, vector<128x128xbf16>, vector<128x128xf32> -> vector<128x128xf32>
      %108 = arith.addf %100, %107 : vector<128x128xf32>
      %109 = vector.broadcast %24 : vector<1x128xf32> to vector<128x128xf32>
      %110 = arith.mulf %108, %109 : vector<128x128xf32>
      %111 = vector.broadcast %26 : vector<1x128xf32> to vector<128x128xf32>
      %112 = arith.addf %110, %111 : vector<128x128xf32>
      %cst_115 = arith.constant 0.000000e+00 : f32
      %113 = vector.broadcast %cst_115 : f32 to vector<128x128xf32>
      %114 = arith.maximumf %112, %113 : vector<128x128xf32>
      %115 = arith.index_cast %35 : i32 to index
      %c0_116 = arith.constant 0 : index
      %116 = vector.load %arg8[%115, %c0_116] : memref<1552x128xf32, #tpu.memory_space<vmem>>, vector<128x128xf32>
      tpu.vector_store %arg8[%115, %c0_116], %114 {strides = array<i32>} : memref<1552x128xf32, #tpu.memory_space<vmem>>, vector<128x128xf32>,
    }
    %c8_i32_53 = arith.constant 8 : i32
    %c0_i32_54 = arith.constant 0 : i32
    %c8_i32_55 = arith.constant 8 : i32
    %28 = arith.addi %c0_i32_54, %c8_i32_55 : i32
    %c1_i32_56 = arith.constant 1 : i32
    scf.for %arg9 = %c0_i32_54 to %28 step %c1_i32_56  : i32 {
      %c128_i32 = arith.constant 128 : i32
      %33 = arith.muli %arg9, %c128_i32 : i32
      %34 = tpu.assume_multiple %33, 128 : i32
      %c264_i32 = arith.constant 264 : i32
      %35 = arith.addi %c264_i32, %34 : i32
      %36 = arith.index_cast %35 : i32 to index
      %c0_62 = arith.constant 0 : index
      %37 = vector.load %arg8[%36, %c0_62] : memref<1552x128xf32, #tpu.memory_space<vmem>>, vector<128x128xf32>
      %c8_i32_63 = arith.constant 8 : i32
      %38 = arith.addi %35, %c8_i32_63 : i32
      %39 = arith.index_cast %38 : i32 to index
      %c0_64 = arith.constant 0 : index
      %40 = vector.load %arg8[%39, %c0_64] : memref<1552x128xf32, #tpu.memory_space<vmem>>, vector<128x128xf32>
      %c256_i32 = arith.constant 256 : i32
      %41 = arith.addi %35, %c256_i32 : i32
      %42 = arith.index_cast %41 : i32 to index
      %c0_65 = arith.constant 0 : index
      %43 = vector.load %arg8[%42, %c0_65] : memref<1552x128xf32, #tpu.memory_space<vmem>>, vector<128x128xf32>
      %c256_i32_66 = arith.constant 256 : i32
      %44 = arith.addi %35, %c256_i32_66 : i32
      %c8_i32_67 = arith.constant 8 : i32
      %45 = arith.addi %44, %c8_i32_67 : i32
      %46 = arith.index_cast %45 : i32 to index
      %c0_68 = arith.constant 0 : index
      %47 = vector.load %arg8[%46, %c0_68] : memref<1552x128xf32, #tpu.memory_space<vmem>>, vector<128x128xf32>
      %48 = arith.maximumf %37, %40 : vector<128x128xf32>
      %49 = arith.maximumf %43, %47 : vector<128x128xf32>
      %50 = arith.maximumf %48, %49 : vector<128x128xf32>
      %c3_69 = arith.constant 3 : index
      %51 = arith.index_cast %34 : i32 to index
      %c0_70 = arith.constant 0 : index
      %52 = vector.load %arg5[%c3_69, %51, %c0_70] : memref<4x1024x128xf32, #tpu.memory_space<vmem>>, vector<1x128x128xf32>
      %53 = vector.shape_cast %52 : vector<1x128x128xf32> to vector<128x128xf32>
      %54 = arith.mulf %50, %53 : vector<128x128xf32>
      %55 = arith.index_cast %35 : i32 to index
      %c0_71 = arith.constant 0 : index
      %56 = vector.load %arg7[%55, %c0_71] : memref<1552x128xf32, #tpu.memory_space<vmem>>, vector<128x128xf32>
      tpu.vector_store %arg7[%55, %c0_71], %54 {strides = array<i32>} : memref<1552x128xf32, #tpu.memory_space<vmem>>, vector<128x128xf32>,
    }
    %c8_i32_57 = arith.constant 8 : i32
    %c528 = arith.constant 528 : index
    %c0_58 = arith.constant 0 : index
    %29 = vector.load %arg7[%c528, %c0_58] : memref<1552x128xf32, #tpu.memory_space<vmem>>, vector<1x128xf32>
    %c0_59 = arith.constant 0 : index
    %c0_60 = arith.constant 0 : index
    %c0_61 = arith.constant 0 : index
    %30 = vector.load %arg6[%c0_59, %c0_60, %c0_61] : memref<1x1x128xf32, #tpu.memory_space<vmem>>, vector<1x1x128xf32>
    %31 = vector.shape_cast %30 : vector<1x1x128xf32> to vector<1x128xf32>
    %32 = vector.shape_cast %29 : vector<1x128xf32> to vector<1x1x128xf32>
    tpu.vector_store %arg6[%c0_59, %c0_60, %c0_61], %32 {strides = array<i32>} : memref<1x1x128xf32, #tpu.memory_space<vmem>>, vector<1x1x128xf32>,
    return
  }
  func.func @transform_0(%arg0: i32) -> (i32, i32, i32) {
    %c0_i32 = arith.constant 0 : i32
    %c0_i32_0 = arith.constant 0 : i32
    %c0_i32_1 = arith.constant 0 : i32
    return %arg0, %c0_i32, %c0_i32_0 : i32, i32, i32
  }
  func.func @transform_1(%arg0: i32) -> (i32, i32, i32, i32) {
    %c0_i32 = arith.constant 0 : i32
    %c0_i32_0 = arith.constant 0 : i32
    %c0_i32_1 = arith.constant 0 : i32
    %c0_i32_2 = arith.constant 0 : i32
    %c0_i32_3 = arith.constant 0 : i32
    return %c0_i32, %c0_i32_0, %c0_i32_1, %c0_i32_2 : i32, i32, i32, i32
  }
  func.func @transform_2(%arg0: i32) -> (i32, i32, i32) {
    %c0_i32 = arith.constant 0 : i32
    %c0_i32_0 = arith.constant 0 : i32
    %c0_i32_1 = arith.constant 0 : i32
    %c0_i32_2 = arith.constant 0 : i32
    return %c0_i32, %c0_i32_0, %c0_i32_1 : i32, i32, i32
  }
  func.func @transform_3(%arg0: i32) -> (i32, i32, i32) {
    %c0_i32 = arith.constant 0 : i32
    %c0_i32_0 = arith.constant 0 : i32
    %c0_i32_1 = arith.constant 0 : i32
    %c0_i32_2 = arith.constant 0 : i32
    return %c0_i32, %c0_i32_0, %c0_i32_1 : i32, i32, i32
  }
  func.func @transform_4(%arg0: i32) -> (i32, i32, i32) {
    %c0_i32 = arith.constant 0 : i32
    %c0_i32_0 = arith.constant 0 : i32
    %c0_i32_1 = arith.constant 0 : i32
    %c0_i32_2 = arith.constant 0 : i32
    return %c0_i32, %c0_i32_0, %c0_i32_1 : i32, i32, i32
  }
  func.func @transform_5(%arg0: i32) -> (i32, i32, i32) {
    %c0_i32 = arith.constant 0 : i32
    %c0_i32_0 = arith.constant 0 : i32
    %c0_i32_1 = arith.constant 0 : i32
    return %arg0, %c0_i32, %c0_i32_0 : i32, i32, i32
  }
}

</mosaic_0001>

<llo_original>
// kernel: conv4_forward.1
$region0: #{conv4_forward.1}
  #allocation0 [shape = 'u32[]', space=smem, size = 0x4, offset = 0x4, fixed_abs, tag = 'smem constant byte address 0x4 - core index']
  #allocation1 [shape = 'u32[144,128]{1,0:T(1,128)}', space=vmem, size = 0x12000, scoped, tag = 'internal scratch']
  #allocation2 [shape = 'f32[1552,128]{1,0:T(8,128)}', space=vmem, size = 0xc2000, scoped, tag = 'scratch operand']
  #allocation3 [shape = 'f32[1552,128]{1,0:T(8,128)}', space=vmem, size = 0xc2000, scoped, tag = 'scratch operand']
  %s0 = inlined_call_operand.vmem [shape: f32[2,1024,128], index: 0, kind: input, shape index: {}]
  %s1 = inlined_call_operand.vmem [shape: bf16[4,9,128,128], index: 1, kind: input, shape index: {}]
  %s2 = inlined_call_operand.vmem [shape: f32[4,1,128], index: 2, kind: input, shape index: {}]
  %s3 = inlined_call_operand.vmem [shape: f32[4,1,128], index: 3, kind: input, shape index: {}]
  %s4 = inlined_call_operand.vmem [shape: f32[4,1024,128], index: 4, kind: input, shape index: {}]
  %s5 = inlined_call_operand.vmem [shape: f32[2,1,128], index: 5, kind: output, shape index: {}]
  %s6 = sld [smem:[#allocation0]]
  $region116: #{conv4_forward.1} parent=0
    _
  %s8 = ssub.s32 1, %s6
  %s9 = scalar_select 0, %s8, %s6
  loop: start=0, step=1, limit=4
  $region2: #{conv4_forward.1} parent=0 // loop_pre_header
    _
  $region3: #{conv4_forward.1} parent=0 // loop_header
    %s11 = sphi 0, %s15
    %p12 = scmp.ge.s32.totalorder %s11, 4
    %s21 = sphi 0, %s23
    %s24 = sphi 0, %s21
    %s25 = sphi 0, %s24
    %s41 = sphi 0, %s25
    %s45 = sphi 0, %s45
    %s47 = sphi 0, %s45
    %s48 = sphi 0, %s47
    %s62 = sphi 0, %s48
    %s66 = sphi 0, %s66
    %s68 = sphi 0, %s66
    %s69 = sphi 0, %s68
    %s83 = sphi 0, %s69
    %s87 = sphi 0, %s87
    %s89 = sphi 0, %s87
    %s90 = sphi 0, %s89
    %s104 = sphi 0, %s90
    %s108 = sphi 0, %s108
    %s110 = sphi 0, %s108
    %s111 = sphi 0, %s110
    %s125 = sphi 0, %s111
    %s131 = sphi 0, %s133
    %s134 = sphi 0, %s131
    %s135 = sphi 0, %s134
    %s151 = sphi 0, %s135
  $region4: #{conv4_forward.1} parent=0 // loop_header_branch
    %14 = sbr.rel (%p12) target = $region8
  $region5: #{conv4_forward.1} parent=0 // loop_body
    %s16 = ssub.s32 %s11, 1
    %s17 = ssub.s32 %s11, 2
    %s18 = sadd.s32 %s11, 1
    %s19 = ssub.s32 %s11, %s18
    %p20 = scmp.eq.s32.totalorder %s19, 0
    %s22 = sadd.s32 %s21, 1
    %s23 = scalar_select %p20, %s21, %s22
    %p26 = pneg %p20
    %p27 = scmp.eq.s32.totalorder %s11, 1
    %p28 = por %p26, %p27
    %p29 = scmp.ne.s32.totalorder %s21, %s24
    %p30 = scmp.eq.s32.totalorder %s11, 0
    %p31 = por %p29, %p30
    %p32 = scmp.ne.s32.totalorder %s21, %s24
    %p33 = scmp.eq.s32.totalorder %s16, 1
    %p34 = por %p32, %p33
    %p35 = scmp.ne.s32.totalorder %s24, %s25
    %p36 = scmp.eq.s32.totalorder %s16, 0
    %p37 = por %p35, %p36
    %p38 = scmp.ne.s32.totalorder %s24, %s25
    %p39 = scmp.eq.s32.totalorder %s17, 1
    %p40 = por %p38, %p39
    %p42 = scmp.ne.s32.totalorder %s25, %s41
    %p43 = scmp.eq.s32.totalorder %s17, 0
    %p44 = por %p42, %p43
    %s46 = sadd.s32 %s45, 1
    %p49 = scmp.eq.s32.totalorder %s11, 1
    %p50 = scmp.ne.s32.totalorder %s45, %s47
    %p51 = scmp.eq.s32.totalorder %s11, 0
    %p52 = por %p50, %p51
    %p53 = scmp.ne.s32.totalorder %s45, %s47
    %p54 = scmp.eq.s32.totalorder %s16, 1
    %p55 = por %p53, %p54
    %p56 = scmp.ne.s32.totalorder %s47, %s48
    %p57 = scmp.eq.s32.totalorder %s16, 0
    %p58 = por %p56, %p57
    %p59 = scmp.ne.s32.totalorder %s47, %s48
    %p60 = scmp.eq.s32.totalorder %s17, 1
    %p61 = por %p59, %p60
    %p63 = scmp.ne.s32.totalorder %s48, %s62
    %p64 = scmp.eq.s32.totalorder %s17, 0
    %p65 = por %p63, %p64
    %s67 = sadd.s32 %s66, 1
    %p70 = scmp.eq.s32.totalorder %s11, 1
    %p71 = scmp.ne.s32.totalorder %s66, %s68
    %p72 = scmp.eq.s32.totalorder %s11, 0
    %p73 = por %p71, %p72
    %p74 = scmp.ne.s32.totalorder %s66, %s68
    %p75 = scmp.eq.s32.totalorder %s16, 1
    %p76 = por %p74, %p75
    %p77 = scmp.ne.s32.totalorder %s68, %s69
    %p78 = scmp.eq.s32.totalorder %s16, 0
    %p79 = por %p77, %p78
    %p80 = scmp.ne.s32.totalorder %s68, %s69
    %p81 = scmp.eq.s32.totalorder %s17, 1
    %p82 = por %p80, %p81
    %p84 = scmp.ne.s32.totalorder %s69, %s83
    %p85 = scmp.eq.s32.totalorder %s17, 0
    %p86 = por %p84, %p85
    %s88 = sadd.s32 %s87, 1
    %p91 = scmp.eq.s32.totalorder %s11, 1
    %p92 = scmp.ne.s32.totalorder %s87, %s89
    %p93 = scmp.eq.s32.totalorder %s11, 0
    %p94 = por %p92, %p93
    %p95 = scmp.ne.s32.totalorder %s87, %s89
    %p96 = scmp.eq.s32.totalorder %s16, 1
    %p97 = por %p95, %p96
    %p98 = scmp.ne.s32.totalorder %s89, %s90
    %p99 = scmp.eq.s32.totalorder %s16, 0
    %p100 = por %p98, %p99
    %p101 = scmp.ne.s32.totalorder %s89, %s90
    %p102 = scmp.eq.s32.totalorder %s17, 1
    %p103 = por %p101, %p102
    %p105 = scmp.ne.s32.totalorder %s90, %s104
    %p106 = scmp.eq.s32.totalorder %s17, 0
    %p107 = por %p105, %p106
    %s109 = sadd.s32 %s108, 1
    %p112 = scmp.eq.s32.totalorder %s11, 1
    %p113 = scmp.ne.s32.totalorder %s108, %s110
    %p114 = scmp.eq.s32.totalorder %s11, 0
    %p115 = por %p113, %p114
    %p116 = scmp.ne.s32.totalorder %s108, %s110
    %p117 = scmp.eq.s32.totalorder %s16, 1
    %p118 = por %p116, %p117
    %p119 = scmp.ne.s32.totalorder %s110, %s111
    %p120 = scmp.eq.s32.totalorder %s16, 0
    %p121 = por %p119, %p120
    %p122 = scmp.ne.s32.totalorder %s110, %s111
    %p123 = scmp.eq.s32.totalorder %s17, 1
    %p124 = por %p122, %p123
    %p126 = scmp.ne.s32.totalorder %s111, %s125
    %p127 = scmp.eq.s32.totalorder %s17, 0
    %p128 = por %p126, %p127
    %s129 = ssub.s32 %s11, %s18
    %p130 = scmp.eq.s32.totalorder %s129, 0
    %s132 = sadd.s32 %s131, 1
    %s133 = scalar_select %p130, %s131, %s132
    %p136 = pneg %p130
    %p137 = scmp.eq.s32.totalorder %s11, 1
    %p138 = por %p136, %p137
    %p139 = scmp.ne.s32.totalorder %s131, %s134
    %p140 = scmp.eq.s32.totalorder %s11, 0
    %p141 = por %p139, %p140
    %p142 = scmp.ne.s32.totalorder %s131, %s134
    %p143 = scmp.eq.s32.totalorder %s16, 1
    %p144 = por %p142, %p143
    %p145 = scmp.ne.s32.totalorder %s134, %s135
    %p146 = scmp.eq.s32.totalorder %s16, 0
    %p147 = por %p145, %p146
    %p148 = scmp.ne.s32.totalorder %s134, %s135
    %p149 = scmp.eq.s32.totalorder %s17, 1
    %p150 = por %p148, %p149
    %p152 = scmp.ne.s32.totalorder %s135, %s151
    %p153 = scmp.eq.s32.totalorder %s17, 0
    %p154 = por %p152, %p153
    %p155 = scmp.le.s32.totalorder 1, %s11
    %p156 = scmp.lt.s32.totalorder %s11, 3
    %p157 = pnand %p155, %p156
    %p158 = pneg %p157
    // Predicated region
    $region9: #{conv4_forward.1} parent=5 // pred_check
      _
    $region10: #{conv4_forward.1} parent=5 // pred_check_branch
      %160 = sbr.rel (%p157) target = $region12
    $region11: #{conv4_forward.1} parent=5 // pred_region
      %s161 = ssub.s32 %s11, 1
      // Predicated region
      $region13: #{conv4_forward.1} parent=11 // pred_check
        %p162 = pneg %p58
      $region14: #{conv4_forward.1} parent=11 // pred_check_branch
        %164 = sbr.rel (%p162) target = $region16
      $region15: #{conv4_forward.1} parent=11 // pred_region
        _
      $region16: #{conv4_forward.1} parent=11 // pred_fallthru
        _
      // Predicated region
      $region17: #{conv4_forward.1} parent=11 // pred_check
        %p165 = pneg %p79
      $region18: #{conv4_forward.1} parent=11 // pred_check_branch
        %167 = sbr.rel (%p165) target = $region20
      $region19: #{conv4_forward.1} parent=11 // pred_region
        _
      $region20: #{conv4_forward.1} parent=11 // pred_fallthru
        _
      // Predicated region
      $region21: #{conv4_forward.1} parent=11 // pred_check
        %p168 = pneg %p100
      $region22: #{conv4_forward.1} parent=11 // pred_check_branch
        %170 = sbr.rel (%p168) target = $region24
      $region23: #{conv4_forward.1} parent=11 // pred_region
        _
      $region24: #{conv4_forward.1} parent=11 // pred_fallthru
        _
      // Predicated region
      $region25: #{conv4_forward.1} parent=11 // pred_check
        %p171 = pneg %p121
      $region26: #{conv4_forward.1} parent=11 // pred_check_branch
        %173 = sbr.rel (%p171) target = $region28
      $region27: #{conv4_forward.1} parent=11 // pred_region
        _
      $region28: #{conv4_forward.1} parent=11 // pred_fallthru
        _
    $region12: #{conv4_forward.1} parent=5 // pred_fallthru
      _
    %p174 = scmp.lt.s32.totalorder %s11, 2
    // Predicated region
    $region29: #{conv4_forward.1} parent=5 // pred_check
      %p175 = pneg %p174
    $region30: #{conv4_forward.1} parent=5 // pred_check_branch
      %177 = sbr.rel (%p175) target = $region32
    $region31: #{conv4_forward.1} parent=5 // pred_region
      // Predicated region
      $region33: #{conv4_forward.1} parent=31 // pred_check
        %p178 = pneg %p31
      $region34: #{conv4_forward.1} parent=31 // pred_check_branch
        %180 = sbr.rel (%p178) target = $region36
      $region35: #{conv4_forward.1} parent=31 // pred_region
        %p181 = scmp.lt.s32.totalorder %s11, 1
        %s182 = scalar_select %p181, %s11, 1
        %s183 = smul.addr %s182, 128
        %s184 = smul.addr %s183, 8
        %s185 = scalar_lea.vmem %s0, %s184
      $region36: #{conv4_forward.1} parent=31 // pred_fallthru
        _
    $region32: #{conv4_forward.1} parent=5 // pred_fallthru
      _
    %p186 = scmp.le.s32.totalorder 1, %s11
    %p187 = scmp.lt.s32.totalorder %s11, 3
    %p188 = pnand %p186, %p187
    %p189 = pneg %p188
    // Predicated region
    $region37: #{conv4_forward.1} parent=5 // pred_check
      _
    $region38: #{conv4_forward.1} parent=5 // pred_check_branch
      %191 = sbr.rel (%p188) target = $region40
    $region39: #{conv4_forward.1} parent=5 // pred_region
      %s192 = ssub.s32 %s11, 1
      %p193 = scmp.lt.s32.totalorder %s16, 1
      %s194 = scalar_select %p193, %s16, 1
      %s195 = smul.addr %s194, 128
      %s196 = smul.addr %s195, 8
      %s197 = scalar_lea.vmem %s0, %s196
      %p198 = pneg %p37
      %p199 = pneg %p34
      %p200 = pneg %p58
      %p201 = pneg %p55
      %p202 = pneg %p79
      %p203 = pneg %p76
      %p204 = pneg %p100
      %p205 = pneg %p97
      %p206 = pneg %p121
      %p207 = pneg %p118
      %p208 = pneg %p147
      %p209 = pneg %p144
      %p210 = scmp.lt.s32.totalorder %s16, 1
      %s211 = scalar_select %p210, %s16, 1
      %s212 = scalar_lea.vmem %s5, %s211
      %p213 = scmp.lt.s32.totalorder %s16, 1
      %s214 = scalar_select %p213, %s16, 1
      %s215 = smul.addr %s214, 128
      %s216 = smul.addr %s215, 8
      %s217 = scalar_lea.vmem %s0, %s216
      %p218 = scmp.lt.s32.totalorder %s16, 1
      %s219 = scalar_select %p218, %s16, 1
      %s220 = scalar_lea.vmem %s5, %s219
      %222 = vst [vmem:[#allocation2] sm:$0xff] 0.0
      %223 = vst [vmem:[#allocation2 + $0x8] sm:$0xff] 0.0
      %224 = vst [vmem:[#allocation2 + $0x10] sm:$0xff] 0.0
      %225 = vst [vmem:[#allocation2 + $0x18] sm:$0xff] 0.0
      %226 = vst [vmem:[#allocation2 + $0x20] sm:$0xff] 0.0
      %227 = vst [vmem:[#allocation2 + $0x28] sm:$0xff] 0.0
      %228 = vst [vmem:[#allocation2 + $0x30] sm:$0xff] 0.0
      %229 = vst [vmem:[#allocation2 + $0x38] sm:$0xff] 0.0
      %230 = vst [vmem:[#allocation2 + $0x40] sm:$0xff] 0.0
      %231 = vst [vmem:[#allocation2 + $0x48] sm:$0xff] 0.0
      %232 = vst [vmem:[#allocation2 + $0x50] sm:$0xff] 0.0
      %233 = vst [vmem:[#allocation2 + $0x58] sm:$0xff] 0.0
      %234 = vst [vmem:[#allocation2 + $0x60] sm:$0xff] 0.0
      %235 = vst [vmem:[#allocation2 + $0x68] sm:$0xff] 0.0
      %236 = vst [vmem:[#allocation2 + $0x70] sm:$0xff] 0.0
      %237 = vst [vmem:[#allocation2 + $0x78] sm:$0xff] 0.0
      %238 = vst [vmem:[#allocation2 + $0x80] sm:$0xff] 0.0
      %239 = vst [vmem:[#allocation2 + $0x88] sm:$0xff] 0.0
      %240 = vst [vmem:[#allocation2 + $0x90] sm:$0xff] 0.0
      %241 = vst [vmem:[#allocation2 + $0x98] sm:$0xff] 0.0
      %242 = vst [vmem:[#allocation2 + $0xa0] sm:$0xff] 0.0
      %243 = vst [vmem:[#allocation2 + $0xa8] sm:$0xff] 0.0
      %244 = vst [vmem:[#allocation2 + $0xb0] sm:$0xff] 0.0
      %245 = vst [vmem:[#allocation2 + $0xb8] sm:$0xff] 0.0
      %246 = vst [vmem:[#allocation2 + $0xc0] sm:$0xff] 0.0
      %247 = vst [vmem:[#allocation2 + $0xc8] sm:$0xff] 0.0
      %248 = vst [vmem:[#allocation2 + $0xd0] sm:$0xff] 0.0
      %249 = vst [vmem:[#allocation2 + $0xd8] sm:$0xff] 0.0
      %250 = vst [vmem:[#allocation2 + $0xe0] sm:$0xff] 0.0
      %251 = vst [vmem:[#allocation2 + $0xe8] sm:$0xff] 0.0
      %252 = vst [vmem:[#allocation2 + $0xf0] sm:$0xff] 0.0
      %253 = vst [vmem:[#allocation2 + $0xf8] sm:$0xff] 0.0
      %254 = vst [vmem:[#allocation2 + $0x100] sm:$0xff] 0.0
      %255 = vst [vmem:[#allocation2 + $0x508] sm:$0xff] 0.0
      %256 = vst [vmem:[#allocation2 + $0x510] sm:$0xff] 0.0
      %257 = vst [vmem:[#allocation2 + $0x518] sm:$0xff] 0.0
      %258 = vst [vmem:[#allocation2 + $0x520] sm:$0xff] 0.0
      %259 = vst [vmem:[#allocation2 + $0x528] sm:$0xff] 0.0
      %260 = vst [vmem:[#allocation2 + $0x530] sm:$0xff] 0.0
      %261 = vst [vmem:[#allocation2 + $0x538] sm:$0xff] 0.0
      %262 = vst [vmem:[#allocation2 + $0x540] sm:$0xff] 0.0
      %263 = vst [vmem:[#allocation2 + $0x548] sm:$0xff] 0.0
      %264 = vst [vmem:[#allocation2 + $0x550] sm:$0xff] 0.0
      %265 = vst [vmem:[#allocation2 + $0x558] sm:$0xff] 0.0
      %266 = vst [vmem:[#allocation2 + $0x560] sm:$0xff] 0.0
      %267 = vst [vmem:[#allocation2 + $0x568] sm:$0xff] 0.0
      %268 = vst [vmem:[#allocation2 + $0x570] sm:$0xff] 0.0
      %269 = vst [vmem:[#allocation2 + $0x578] sm:$0xff] 0.0
      %270 = vst [vmem:[#allocation2 + $0x580] sm:$0xff] 0.0
      %271 = vst [vmem:[#allocation2 + $0x588] sm:$0xff] 0.0
      %272 = vst [vmem:[#allocation2 + $0x590] sm:$0xff] 0.0
      %273 = vst [vmem:[#allocation2 + $0x598] sm:$0xff] 0.0
      %274 = vst [vmem:[#allocation2 + $0x5a0] sm:$0xff] 0.0
      %275 = vst [vmem:[#allocation2 + $0x5a8] sm:$0xff] 0.0
      %276 = vst [vmem:[#allocation2 + $0x5b0] sm:$0xff] 0.0
      %277 = vst [vmem:[#allocation2 + $0x5b8] sm:$0xff] 0.0
      %278 = vst [vmem:[#allocation2 + $0x5c0] sm:$0xff] 0.0
      %279 = vst [vmem:[#allocation2 + $0x5c8] sm:$0xff] 0.0
      %280 = vst [vmem:[#allocation2 + $0x5d0] sm:$0xff] 0.0
      %281 = vst [vmem:[#allocation2 + $0x5d8] sm:$0xff] 0.0
      %282 = vst [vmem:[#allocation2 + $0x5e0] sm:$0xff] 0.0
      %283 = vst [vmem:[#allocation2 + $0x5e8] sm:$0xff] 0.0
      %284 = vst [vmem:[#allocation2 + $0x5f0] sm:$0xff] 0.0
      %285 = vst [vmem:[#allocation2 + $0x5f8] sm:$0xff] 0.0
      %286 = vst [vmem:[#allocation2 + $0x600] sm:$0xff] 0.0
      %287 = vst [vmem:[#allocation2 + $0x608] sm:$0xff] 0.0
      %288 = vst [vmem:[#allocation3 + $0x508] sm:$0xff] 0.0
      %289 = vst [vmem:[#allocation3 + $0x510] sm:$0xff] 0.0
      %290 = vst [vmem:[#allocation3 + $0x518] sm:$0xff] 0.0
      %291 = vst [vmem:[#allocation3 + $0x520] sm:$0xff] 0.0
      %292 = vst [vmem:[#allocation3 + $0x528] sm:$0xff] 0.0
      %293 = vst [vmem:[#allocation3 + $0x530] sm:$0xff] 0.0
      %294 = vst [vmem:[#allocation3 + $0x538] sm:$0xff] 0.0
      %295 = vst [vmem:[#allocation3 + $0x540] sm:$0xff] 0.0
      %296 = vst [vmem:[#allocation3 + $0x548] sm:$0xff] 0.0
      %297 = vst [vmem:[#allocation3 + $0x550] sm:$0xff] 0.0
      %298 = vst [vmem:[#allocation3 + $0x558] sm:$0xff] 0.0
      %299 = vst [vmem:[#allocation3 + $0x560] sm:$0xff] 0.0
      %300 = vst [vmem:[#allocation3 + $0x568] sm:$0xff] 0.0
      %301 = vst [vmem:[#allocation3 + $0x570] sm:$0xff] 0.0
      %302 = vst [vmem:[#allocation3 + $0x578] sm:$0xff] 0.0
      %303 = vst [vmem:[#allocation3 + $0x580] sm:$0xff] 0.0
      %304 = vst [vmem:[#allocation3 + $0x588] sm:$0xff] 0.0
      %305 = vst [vmem:[#allocation3 + $0x590] sm:$0xff] 0.0
      %306 = vst [vmem:[#allocation3 + $0x598] sm:$0xff] 0.0
      %307 = vst [vmem:[#allocation3 + $0x5a0] sm:$0xff] 0.0
      %308 = vst [vmem:[#allocation3 + $0x5a8] sm:$0xff] 0.0
      %309 = vst [vmem:[#allocation3 + $0x5b0] sm:$0xff] 0.0
      %310 = vst [vmem:[#allocation3 + $0x5b8] sm:$0xff] 0.0
      %311 = vst [vmem:[#allocation3 + $0x5c0] sm:$0xff] 0.0
      %312 = vst [vmem:[#allocation3 + $0x5c8] sm:$0xff] 0.0
      %313 = vst [vmem:[#allocation3 + $0x5d0] sm:$0xff] 0.0
      %314 = vst [vmem:[#allocation3 + $0x5d8] sm:$0xff] 0.0
      %315 = vst [vmem:[#allocation3 + $0x5e0] sm:$0xff] 0.0
      %316 = vst [vmem:[#allocation3 + $0x5e8] sm:$0xff] 0.0
      %317 = vst [vmem:[#allocation3 + $0x5f0] sm:$0xff] 0.0
      %318 = vst [vmem:[#allocation3 + $0x5f8] sm:$0xff] 0.0
      %319 = vst [vmem:[#allocation3 + $0x600] sm:$0xff] 0.0
      %320 = vst [vmem:[#allocation3 + $0x608] sm:$0xff] 0.0
      loop: start=0, step=1, limit=8
      $region41: #{conv4_forward.1} parent=39 // loop_pre_header
        _
      $region42: #{conv4_forward.1} parent=39 // loop_header
        %s322 = sphi 0, %s326
        %p323 = scmp.ge.s32.totalorder %s322, 8
      $region43: #{conv4_forward.1} parent=39 // loop_header_branch
        %325 = sbr.rel (%p323) target = $region47
      $region44: #{conv4_forward.1} parent=39 // loop_body
        %s327 = smul.u32 %s322, 128
        %s328 = scalar_lea.vmem %s217, %s327
        %v329 = vld [vmem:[%s328] sm:$0xff]
        %v330 = vld [vmem:[%s328 + $0x8] sm:$0xff]
        %v331 = vld [vmem:[%s328 + $0x10] sm:$0xff]
        %v332 = vld [vmem:[%s328 + $0x18] sm:$0xff]
        %v333 = vld [vmem:[%s328 + $0x20] sm:$0xff]
        %v334 = vld [vmem:[%s328 + $0x28] sm:$0xff]
        %v335 = vld [vmem:[%s328 + $0x30] sm:$0xff]
        %v336 = vld [vmem:[%s328 + $0x38] sm:$0xff]
        %v337 = vld [vmem:[%s328 + $0x40] sm:$0xff]
        %v338 = vld [vmem:[%s328 + $0x48] sm:$0xff]
        %v339 = vld [vmem:[%s328 + $0x50] sm:$0xff]
        %v340 = vld [vmem:[%s328 + $0x58] sm:$0xff]
        %v341 = vld [vmem:[%s328 + $0x60] sm:$0xff]
        %v342 = vld [vmem:[%s328 + $0x68] sm:$0xff]
        %v343 = vld [vmem:[%s328 + $0x70] sm:$0xff]
        %v344 = vld [vmem:[%s328 + $0x78] sm:$0xff]
        %s345 = sadd.s32 %s327, 264
        %s346 = scalar_lea.vmem [#allocation2], %s345
        %347 = vst [vmem:[%s346] sm:$0xff] %v329
        %348 = vst [vmem:[%s346 + $0x8] sm:$0xff] %v330
        %349 = vst [vmem:[%s346 + $0x10] sm:$0xff] %v331
        %350 = vst [vmem:[%s346 + $0x18] sm:$0xff] %v332
        %351 = vst [vmem:[%s346 + $0x20] sm:$0xff] %v333
        %352 = vst [vmem:[%s346 + $0x28] sm:$0xff] %v334
        %353 = vst [vmem:[%s346 + $0x30] sm:$0xff] %v335
        %354 = vst [vmem:[%s346 + $0x38] sm:$0xff] %v336
        %355 = vst [vmem:[%s346 + $0x40] sm:$0xff] %v337
        %356 = vst [vmem:[%s346 + $0x48] sm:$0xff] %v338
        %357 = vst [vmem:[%s346 + $0x50] sm:$0xff] %v339
        %358 = vst [vmem:[%s346 + $0x58] sm:$0xff] %v340
        %359 = vst [vmem:[%s346 + $0x60] sm:$0xff] %v341
        %360 = vst [vmem:[%s346 + $0x68] sm:$0xff] %v342
        %361 = vst [vmem:[%s346 + $0x70] sm:$0xff] %v343
        %362 = vst [vmem:[%s346 + $0x78] sm:$0xff] %v344
      $region45: #{conv4_forward.1} parent=39 // loop_footer
        %s326 = sadd.s32 1, %s322
      $region46: #{conv4_forward.1} parent=39 // loop_footer_branch
        %321 = sbr.rel target = $region42
      $region47: #{conv4_forward.1} parent=39 // loop_exit
        _
      %v363 = vld [vmem:[%s2] sm:$0x1]
      %v364 = vld [vmem:[%s3] sm:$0x1]
      loop: start=0, step=1, limit=8
      $region48: #{conv4_forward.1} parent=39 // loop_pre_header
        _
      $region49: #{conv4_forward.1} parent=39 // loop_header
        %s366 = sphi 0, %s370
        %p367 = scmp.ge.s32.totalorder %s366, 8
      $region50: #{conv4_forward.1} parent=39 // loop_header_branch
        %369 = sbr.rel (%p367) target = $region54
      $region51: #{conv4_forward.1} parent=39 // loop_body
        %s371 = smul.u32 %s366, 128
        %s372 = sadd.s32 %s371, 264
        %s373 = sadd.s32 %s371, 231
        %s374 = scalar_lea.vmem [#allocation2], %s373
        %v375 = vld [vmem:[%s374] sm:$0xff]
        %v376 = vld [vmem:[%s374 + $0x8] sm:$0xff]
        %v377 = vld [vmem:[%s374 + $0x10] sm:$0xff]
        %v378 = vld [vmem:[%s374 + $0x18] sm:$0xff]
        %v379 = vld [vmem:[%s374 + $0x20] sm:$0xff]
        %v380 = vld [vmem:[%s374 + $0x28] sm:$0xff]
        %v381 = vld [vmem:[%s374 + $0x30] sm:$0xff]
        %v382 = vld [vmem:[%s374 + $0x38] sm:$0xff]
        %v383 = vld [vmem:[%s374 + $0x40] sm:$0xff]
        %v384 = vld [vmem:[%s374 + $0x48] sm:$0xff]
        %v385 = vld [vmem:[%s374 + $0x50] sm:$0xff]
        %v386 = vld [vmem:[%s374 + $0x58] sm:$0xff]
        %v387 = vld [vmem:[%s374 + $0x60] sm:$0xff]
        %v388 = vld [vmem:[%s374 + $0x68] sm:$0xff]
        %v389 = vld [vmem:[%s374 + $0x70] sm:$0xff]
        %v390 = vld [vmem:[%s374 + $0x78] sm:$0xff]
        %v391 = vpack.c.bf16 %v376, %v375
        %v392 = vpack.c.bf16 %v378, %v377
        %v393 = vpack.c.bf16 %v380, %v379
        %v394 = vpack.c.bf16 %v382, %v381
        %v395 = vpack.c.bf16 %v384, %v383
        %v396 = vpack.c.bf16 %v386, %v385
        %v397 = vpack.c.bf16 %v388, %v387
        %v398 = vpack.c.bf16 %v390, %v389
        %v399 = vld [vmem:[%s1] sm:$0xf]
        %v400 = vld [vmem:[%s1 + $0x4] sm:$0xf]
        %v401 = vld [vmem:[%s1 + $0x8] sm:$0xf]
        %v402 = vld [vmem:[%s1 + $0xc] sm:$0xf]
        %v403 = vld [vmem:[%s1 + $0x10] sm:$0xf]
        %v404 = vld [vmem:[%s1 + $0x14] sm:$0xf]
        %v405 = vld [vmem:[%s1 + $0x18] sm:$0xf]
        %v406 = vld [vmem:[%s1 + $0x1c] sm:$0xf]
        %v407 = vld [vmem:[%s1 + $0x20] sm:$0xf]
        %v408 = vld [vmem:[%s1 + $0x24] sm:$0xf]
        %v409 = vld [vmem:[%s1 + $0x28] sm:$0xf]
        %v410 = vld [vmem:[%s1 + $0x2c] sm:$0xf]
        %v411 = vld [vmem:[%s1 + $0x30] sm:$0xf]
        %v412 = vld [vmem:[%s1 + $0x34] sm:$0xf]
        %v413 = vld [vmem:[%s1 + $0x38] sm:$0xf]
        %v414 = vld [vmem:[%s1 + $0x3c] sm:$0xf]
        %s415 = sadd.s32 %s371, 232
        %s416 = scalar_lea.vmem [#allocation2], %s415
        %v417 = vld [vmem:[%s416] sm:$0xff]
        %v418 = vld [vmem:[%s416 + $0x8] sm:$0xff]
        %v419 = vld [vmem:[%s416 + $0x10] sm:$0xff]
        %v420 = vld [vmem:[%s416 + $0x18] sm:$0xff]
        %v421 = vld [vmem:[%s416 + $0x20] sm:$0xff]
        %v422 = vld [vmem:[%s416 + $0x28] sm:$0xff]
        %v423 = vld [vmem:[%s416 + $0x30] sm:$0xff]
        %v424 = vld [vmem:[%s416 + $0x38] sm:$0xff]
        %v425 = vld [vmem:[%s416 + $0x40] sm:$0xff]
        %v426 = vld [vmem:[%s416 + $0x48] sm:$0xff]
        %v427 = vld [vmem:[%s416 + $0x50] sm:$0xff]
        %v428 = vld [vmem:[%s416 + $0x58] sm:$0xff]
        %v429 = vld [vmem:[%s416 + $0x60] sm:$0xff]
        %v430 = vld [vmem:[%s416 + $0x68] sm:$0xff]
        %v431 = vld [vmem:[%s416 + $0x70] sm:$0xff]
        %v432 = vld [vmem:[%s416 + $0x78] sm:$0xff]
        %v433 = vpack.c.bf16 %v418, %v417
        %v434 = vpack.c.bf16 %v420, %v419
        %v435 = vpack.c.bf16 %v422, %v421
        %v436 = vpack.c.bf16 %v424, %v423
        %v437 = vpack.c.bf16 %v426, %v425
        %v438 = vpack.c.bf16 %v428, %v427
        %v439 = vpack.c.bf16 %v430, %v429
        %v440 = vpack.c.bf16 %v432, %v431
        %s441 = scalar_lea.vmem %s1, 64
        %v442 = vld [vmem:[%s441] sm:$0xf]
        %v443 = vld [vmem:[%s441 + $0x4] sm:$0xf]
        %v444 = vld [vmem:[%s441 + $0x8] sm:$0xf]
        %v445 = vld [vmem:[%s441 + $0xc] sm:$0xf]
        %v446 = vld [vmem:[%s441 + $0x10] sm:$0xf]
        %v447 = vld [vmem:[%s441 + $0x14] sm:$0xf]
        %v448 = vld [vmem:[%s441 + $0x18] sm:$0xf]
        %v449 = vld [vmem:[%s441 + $0x1c] sm:$0xf]
        %v450 = vld [vmem:[%s441 + $0x20] sm:$0xf]
        %v451 = vld [vmem:[%s441 + $0x24] sm:$0xf]
        %v452 = vld [vmem:[%s441 + $0x28] sm:$0xf]
        %v453 = vld [vmem:[%s441 + $0x2c] sm:$0xf]
        %v454 = vld [vmem:[%s441 + $0x30] sm:$0xf]
        %v455 = vld [vmem:[%s441 + $0x34] sm:$0xf]
        %v456 = vld [vmem:[%s441 + $0x38] sm:$0xf]
        %v457 = vld [vmem:[%s441 + $0x3c] sm:$0xf]
        %v474 = vunpack.c.l.b16 %v442
        %v475 = vunpack.c.l.b16 %v443
        %v476 = vunpack.c.l.b16 %v444
        %v477 = vunpack.c.l.b16 %v445
        %v478 = vunpack.c.l.b16 %v446
        %v479 = vunpack.c.l.b16 %v447
        %v480 = vunpack.c.l.b16 %v448
        %v481 = vunpack.c.l.b16 %v449
        %v482 = vunpack.c.l.b16 %v450
        %v483 = vunpack.c.l.b16 %v451
        %v484 = vunpack.c.l.b16 %v452
        %v485 = vunpack.c.l.b16 %v453
        %v486 = vunpack.c.l.b16 %v454
        %v487 = vunpack.c.l.b16 %v455
        %v488 = vunpack.c.l.b16 %v456
        %v489 = vunpack.c.l.b16 %v457
        %v490 = vpack.c.b16 %v475, %v474
        %v491 = vpack.c.b16 %v477, %v476
        %v492 = vpack.c.b16 %v479, %v478
        %v493 = vpack.c.b16 %v481, %v480
        %v494 = vpack.c.b16 %v483, %v482
        %v495 = vpack.c.b16 %v485, %v484
        %v496 = vpack.c.b16 %v487, %v486
        %v497 = vpack.c.b16 %v489, %v488
        %506 = vmatprep.subr.bf16.mxu0 0
        %507 = vmatpush1.bf16.msra.mxu0 %v490
        %508 = vmatprep.subr.bf16.mxu0 0
        %509 = vmatpush1.bf16.msra.mxu0 %v491
        %510 = vmatprep.subr.bf16.mxu0 0
        %511 = vmatpush1.bf16.msra.mxu0 %v492
        %512 = vmatprep.subr.bf16.mxu0 0
        %513 = vmatpush1.bf16.msra.mxu0 %v493
        %514 = vmatprep.subr.bf16.mxu0 0
        %515 = vmatpush1.bf16.msra.mxu0 %v494
        %516 = vmatprep.subr.bf16.mxu0 0
        %517 = vmatpush1.bf16.msra.mxu0 %v495
        %518 = vmatprep.subr.bf16.mxu0 0
        %519 = vmatpush1.bf16.msra.mxu0 %v496
        %520 = vmatprep.subr.bf16.mxu0 0
        %521 = vmatpush1.bf16.msra.mxu0 %v497
        %522 = vmatprep.subr.bf16.mxu0 0
        %523 = vmatpush1.bf16.msra.mxu0 0
        %524 = vmatprep.subr.bf16.mxu0 0
        %525 = vmatpush1.bf16.msra.mxu0 0
        %526 = vmatprep.subr.bf16.mxu0 0
        %527 = vmatpush1.bf16.msra.mxu0 0
        %528 = vmatprep.subr.bf16.mxu0 0
        %529 = vmatpush1.bf16.msra.mxu0 0
        %530 = vmatprep.subr.bf16.mxu0 0
        %531 = vmatpush1.bf16.msra.mxu0 0
        %532 = vmatprep.subr.bf16.mxu0 0
        %533 = vmatpush1.bf16.msra.mxu0 0
        %534 = vmatprep.subr.bf16.mxu0 0
        %535 = vmatpush1.bf16.msra.mxu0 0
        %536 = vmatprep.subr.bf16.mxu0 0
        %537 = vmatpush1.bf16.msra.mxu0 0
        %538 = vmatprep.mubr.bf16.mxu0 0
        %539 = vmatmul.mubr.bf16.gmra.mrb[0].mxu0 %v433
        %v540 = vpop.f32.mrb[0].mxu0
        %v541 = vadd.f32 0.0, %v540
        %v542 = vpop.f32.mrb[0].mxu0
        %v543 = vpop.f32.mrb[0].mxu0
        %v544 = vadd.f32 0.0, %v543
        %v545 = vpop.f32.mrb[0].mxu0
        %546 = vmatprep.mubr.bf16.mxu0 0
        %547 = vmatmul.mubr.bf16.gmra.mrb[0].mxu0 %v434
        %v548 = vpop.f32.mrb[0].mxu0
        %v549 = vadd.f32 0.0, %v548
        %v550 = vpop.f32.mrb[0].mxu0
        %v551 = vpop.f32.mrb[0].mxu0
        %v552 = vadd.f32 0.0, %v551
        %v553 = vpop.f32.mrb[0].mxu0
        %554 = vmatprep.mubr.bf16.mxu0 0
        %555 = vmatmul.mubr.bf16.gmra.mrb[0].mxu0 %v435
        %v556 = vpop.f32.mrb[0].mxu0
        %v557 = vadd.f32 0.0, %v556
        %v558 = vpop.f32.mrb[0].mxu0
        %v559 = vpop.f32.mrb[0].mxu0
        %v560 = vadd.f32 0.0, %v559
        %v561 = vpop.f32.mrb[0].mxu0
        %562 = vmatprep.mubr.bf16.mxu0 0
        %563 = vmatmul.mubr.bf16.gmra.mrb[0].mxu0 %v436
        %v564 = vpop.f32.mrb[0].mxu0
        %v565 = vadd.f32 0.0, %v564
        %v566 = vpop.f32.mrb[0].mxu0
        %v567 = vpop.f32.mrb[0].mxu0
        %v568 = vadd.f32 0.0, %v567
        %v569 = vpop.f32.mrb[0].mxu0
        %570 = vmatprep.mubr.bf16.mxu0 0
        %571 = vmatmul.mubr.bf16.gmra.mrb[0].mxu0 %v437
        %v572 = vpop.f32.mrb[0].mxu0
        %v573 = vadd.f32 0.0, %v572
        %v574 = vpop.f32.mrb[0].mxu0
        %v575 = vpop.f32.mrb[0].mxu0
        %v576 = vadd.f32 0.0, %v575
        %v577 = vpop.f32.mrb[0].mxu0
        %578 = vmatprep.mubr.bf16.mxu0 0
        %579 = vmatmul.mubr.bf16.gmra.mrb[0].mxu0 %v438
        %v580 = vpop.f32.mrb[0].mxu0
        %v581 = vadd.f32 0.0, %v580
        %v582 = vpop.f32.mrb[0].mxu0
        %v583 = vpop.f32.mrb[0].mxu0
        %v584 = vadd.f32 0.0, %v583
        %v585 = vpop.f32.mrb[0].mxu0
        %586 = vmatprep.mubr.bf16.mxu0 0
        %587 = vmatmul.mubr.bf16.gmra.mrb[0].mxu0 %v439
        %v588 = vpop.f32.mrb[0].mxu0
        %v589 = vadd.f32 0.0, %v588
        %v590 = vpop.f32.mrb[0].mxu0
        %v591 = vpop.f32.mrb[0].mxu0
        %v592 = vadd.f32 0.0, %v591
        %v593 = vpop.f32.mrb[0].mxu0
        %594 = vmatprep.mubr.bf16.mxu0 0
        %595 = vmatmul.mubr.bf16.gmra.mrb[0].mxu0 %v440
        %v596 = vpop.f32.mrb[0].mxu0
        %v597 = vadd.f32 0.0, %v596
        %v598 = vpop.f32.mrb[0].mxu0
        %v599 = vpop.f32.mrb[0].mxu0
        %v600 = vadd.f32 0.0, %v599
        %v601 = vpop.f32.mrb[0].mxu0
        %602 = vdwg.mxu0
        %v619 = vunpack.c.l.b16 %v399
        %v620 = vunpack.c.l.b16 %v400
        %v621 = vunpack.c.l.b16 %v401
        %v622 = vunpack.c.l.b16 %v402
        %v623 = vunpack.c.l.b16 %v403
        %v624 = vunpack.c.l.b16 %v404
        %v625 = vunpack.c.l.b16 %v405
        %v626 = vunpack.c.l.b16 %v406
        %v627 = vunpack.c.l.b16 %v407
        %v628 = vunpack.c.l.b16 %v408
        %v629 = vunpack.c.l.b16 %v409
        %v630 = vunpack.c.l.b16 %v410
        %v631 = vunpack.c.l.b16 %v411
        %v632 = vunpack.c.l.b16 %v412
        %v633 = vunpack.c.l.b16 %v413
        %v634 = vunpack.c.l.b16 %v414
        %v635 = vpack.c.b16 %v620, %v619
        %v636 = vpack.c.b16 %v622, %v621
        %v637 = vpack.c.b16 %v624, %v623
        %v638 = vpack.c.b16 %v626, %v625
        %v639 = vpack.c.b16 %v628, %v627
        %v640 = vpack.c.b16 %v630, %v629
        %v641 = vpack.c.b16 %v632, %v631
        %v642 = vpack.c.b16 %v634, %v633
        %651 = vmatprep.subr.bf16.mxu0 0
        %652 = vmatpush1.bf16.msra.mxu0 %v635
        %653 = vmatprep.subr.bf16.mxu0 0
        %654 = vmatpush1.bf16.msra.mxu0 %v636
        %655 = vmatprep.subr.bf16.mxu0 0
        %656 = vmatpush1.bf16.msra.mxu0 %v637
        %657 = vmatprep.subr.bf16.mxu0 0
        %658 = vmatpush1.bf16.msra.mxu0 %v638
        %659 = vmatprep.subr.bf16.mxu0 0
        %660 = vmatpush1.bf16.msra.mxu0 %v639
        %661 = vmatprep.subr.bf16.mxu0 0
        %662 = vmatpush1.bf16.msra.mxu0 %v640
        %663 = vmatprep.subr.bf16.mxu0 0
        %664 = vmatpush1.bf16.msra.mxu0 %v641
        %665 = vmatprep.subr.bf16.mxu0 0
        %666 = vmatpush1.bf16.msra.mxu0 %v642
        %667 = vmatprep.subr.bf16.mxu0 0
        %668 = vmatpush1.bf16.msra.mxu0 0
        %669 = vmatprep.subr.bf16.mxu0 0
        %670 = vmatpush1.bf16.msra.mxu0 0
        %671 = vmatprep.subr.bf16.mxu0 0
        %672 = vmatpush1.bf16.msra.mxu0 0
        %673 = vmatprep.subr.bf16.mxu0 0
        %674 = vmatpush1.bf16.msra.mxu0 0
        %675 = vmatprep.subr.bf16.mxu0 0
        %676 = vmatpush1.bf16.msra.mxu0 0
        %677 = vmatprep.subr.bf16.mxu0 0
        %678 = vmatpush1.bf16.msra.mxu0 0
        %679 = vmatprep.subr.bf16.mxu0 0
        %680 = vmatpush1.bf16.msra.mxu0 0
        %681 = vmatprep.subr.bf16.mxu0 0
        %682 = vmatpush1.bf16.msra.mxu0 0
        %683 = vmatprep.mubr.bf16.mxu0 0
        %684 = vmatmul.mubr.bf16.gmra.mrb[0].mxu0 %v391
        %v685 = vpop.f32.mrb[0].mxu0
        %v686 = vadd.f32 %v541, %v685
        %v687 = vpop.f32.mrb[0].mxu0
        %v688 = vpop.f32.mrb[0].mxu0
        %v689 = vadd.f32 %v544, %v688
        %v690 = vpop.f32.mrb[0].mxu0
        %691 = vmatprep.mubr.bf16.mxu0 0
        %692 = vmatmul.mubr.bf16.gmra.mrb[0].mxu0 %v392
        %v693 = vpop.f32.mrb[0].mxu0
        %v694 = vadd.f32 %v549, %v693
        %v695 = vpop.f32.mrb[0].mxu0
        %v696 = vpop.f32.mrb[0].mxu0
        %v697 = vadd.f32 %v552, %v696
        %v698 = vpop.f32.mrb[0].mxu0
        %699 = vmatprep.mubr.bf16.mxu0 0
        %700 = vmatmul.mubr.bf16.gmra.mrb[0].mxu0 %v393
        %v701 = vpop.f32.mrb[0].mxu0
        %v702 = vadd.f32 %v557, %v701
        %v703 = vpop.f32.mrb[0].mxu0
        %v704 = vpop.f32.mrb[0].mxu0
        %v705 = vadd.f32 %v560, %v704
        %v706 = vpop.f32.mrb[0].mxu0
        %707 = vmatprep.mubr.bf16.mxu0 0
        %708 = vmatmul.mubr.bf16.gmra.mrb[0].mxu0 %v394
        %v709 = vpop.f32.mrb[0].mxu0
        %v710 = vadd.f32 %v565, %v709
        %v711 = vpop.f32.mrb[0].mxu0
        %v712 = vpop.f32.mrb[0].mxu0
        %v713 = vadd.f32 %v568, %v712
        %v714 = vpop.f32.mrb[0].mxu0
        %715 = vmatprep.mubr.bf16.mxu0 0
        %716 = vmatmul.mubr.bf16.gmra.mrb[0].mxu0 %v395
        %v717 = vpop.f32.mrb[0].mxu0
        %v718 = vadd.f32 %v573, %v717
        %v719 = vpop.f32.mrb[0].mxu0
        %v720 = vpop.f32.mrb[0].mxu0
        %v721 = vadd.f32 %v576, %v720
        %v722 = vpop.f32.mrb[0].mxu0
        %723 = vmatprep.mubr.bf16.mxu0 0
        %724 = vmatmul.mubr.bf16.gmra.mrb[0].mxu0 %v396
        %v725 = vpop.f32.mrb[0].mxu0
        %v726 = vadd.f32 %v581, %v725
        %v727 = vpop.f32.mrb[0].mxu0
        %v728 = vpop.f32.mrb[0].mxu0
        %v729 = vadd.f32 %v584, %v728
        %v730 = vpop.f32.mrb[0].mxu0
        %731 = vmatprep.mubr.bf16.mxu0 0
        %732 = vmatmul.mubr.bf16.gmra.mrb[0].mxu0 %v397
        %v733 = vpop.f32.mrb[0].mxu0
        %v734 = vadd.f32 %v589, %v733
        %v735 = vpop.f32.mrb[0].mxu0
        %v736 = vpop.f32.mrb[0].mxu0
        %v737 = vadd.f32 %v592, %v736
        %v738 = vpop.f32.mrb[0].mxu0
        %739 = vmatprep.mubr.bf16.mxu0 0
        %740 = vmatmul.mubr.bf16.gmra.mrb[0].mxu0 %v398
        %v741 = vpop.f32.mrb[0].mxu0
        %v742 = vadd.f32 %v597, %v741
        %v743 = vpop.f32.mrb[0].mxu0
        %v744 = vpop.f32.mrb[0].mxu0
        %v745 = vadd.f32 %v600, %v744
        %v746 = vpop.f32.mrb[0].mxu0
        %747 = vdwg.mxu0
        %s748 = sadd.s32 %s371, 233
        %s749 = scalar_lea.vmem [#allocation2], %s748
        %v750 = vld [vmem:[%s749] sm:$0xff]
        %v751 = vld [vmem:[%s749 + $0x8] sm:$0xff]
        %v752 = vld [vmem:[%s749 + $0x10] sm:$0xff]
        %v753 = vld [vmem:[%s749 + $0x18] sm:$0xff]
        %v754 = vld [vmem:[%s749 + $0x20] sm:$0xff]
        %v755 = vld [vmem:[%s749 + $0x28] sm:$0xff]
        %v756 = vld [vmem:[%s749 + $0x30] sm:$0xff]
        %v757 = vld [vmem:[%s749 + $0x38] sm:$0xff]
        %v758 = vld [vmem:[%s749 + $0x40] sm:$0xff]
        %v759 = vld [vmem:[%s749 + $0x48] sm:$0xff]
        %v760 = vld [vmem:[%s749 + $0x50] sm:$0xff]
        %v761 = vld [vmem:[%s749 + $0x58] sm:$0xff]
        %v762 = vld [vmem:[%s749 + $0x60] sm:$0xff]
        %v763 = vld [vmem:[%s749 + $0x68] sm:$0xff]
        %v764 = vld [vmem:[%s749 + $0x70] sm:$0xff]
        %v765 = vld [vmem:[%s749 + $0x78] sm:$0xff]
        %v766 = vpack.c.bf16 %v751, %v750
        %v767 = vpack.c.bf16 %v753, %v752
        %v768 = vpack.c.bf16 %v755, %v754
        %v769 = vpack.c.bf16 %v757, %v756
        %v770 = vpack.c.bf16 %v759, %v758
        %v771 = vpack.c.bf16 %v761, %v760
        %v772 = vpack.c.bf16 %v763, %v762
        %v773 = vpack.c.bf16 %v765, %v764
        %s774 = scalar_lea.vmem %s1, 128
        %v775 = vld [vmem:[%s774] sm:$0xf]
        %v776 = vld [vmem:[%s774 + $0x4] sm:$0xf]
        %v777 = vld [vmem:[%s774 + $0x8] sm:$0xf]
        %v778 = vld [vmem:[%s774 + $0xc] sm:$0xf]
        %v779 = vld [vmem:[%s774 + $0x10] sm:$0xf]
        %v780 = vld [vmem:[%s774 + $0x14] sm:$0xf]
        %v781 = vld [vmem:[%s774 + $0x18] sm:$0xf]
        %v782 = vld [vmem:[%s774 + $0x1c] sm:$0xf]
        %v783 = vld [vmem:[%s774 + $0x20] sm:$0xf]
        %v784 = vld [vmem:[%s774 + $0x24] sm:$0xf]
        %v785 = vld [vmem:[%s774 + $0x28] sm:$0xf]
        %v786 = vld [vmem:[%s774 + $0x2c] sm:$0xf]
        %v787 = vld [vmem:[%s774 + $0x30] sm:$0xf]
        %v788 = vld [vmem:[%s774 + $0x34] sm:$0xf]
        %v789 = vld [vmem:[%s774 + $0x38] sm:$0xf]
        %v790 = vld [vmem:[%s774 + $0x3c] sm:$0xf]
        %v807 = vunpack.c.l.b16 %v775
        %v808 = vunpack.c.l.b16 %v776
        %v809 = vunpack.c.l.b16 %v777
        %v810 = vunpack.c.l.b16 %v778
        %v811 = vunpack.c.l.b16 %v779
        %v812 = vunpack.c.l.b16 %v780
        %v813 = vunpack.c.l.b16 %v781
        %v814 = vunpack.c.l.b16 %v782
        %v815 = vunpack.c.l.b16 %v783
        %v816 = vunpack.c.l.b16 %v784
        %v817 = vunpack.c.l.b16 %v785
        %v818 = vunpack.c.l.b16 %v786
        %v819 = vunpack.c.l.b16 %v787
        %v820 = vunpack.c.l.b16 %v788
        %v821 = vunpack.c.l.b16 %v789
        %v822 = vunpack.c.l.b16 %v790
        %v823 = vpack.c.b16 %v808, %v807
        %v824 = vpack.c.b16 %v810, %v809
        %v825 = vpack.c.b16 %v812, %v811
        %v826 = vpack.c.b16 %v814, %v813
        %v827 = vpack.c.b16 %v816, %v815
        %v828 = vpack.c.b16 %v818, %v817
        %v829 = vpack.c.b16 %v820, %v819
        %v830 = vpack.c.b16 %v822, %v821
        %839 = vmatprep.subr.bf16.mxu0 0
        %840 = vmatpush1.bf16.msra.mxu0 %v823
        %841 = vmatprep.subr.bf16.mxu0 0
        %842 = vmatpush1.bf16.msra.mxu0 %v824
        %843 = vmatprep.subr.bf16.mxu0 0
        %844 = vmatpush1.bf16.msra.mxu0 %v825
        %845 = vmatprep.subr.bf16.mxu0 0
        %846 = vmatpush1.bf16.msra.mxu0 %v826
        %847 = vmatprep.subr.bf16.mxu0 0
        %848 = vmatpush1.bf16.msra.mxu0 %v827
        %849 = vmatprep.subr.bf16.mxu0 0
        %850 = vmatpush1.bf16.msra.mxu0 %v828
        %851 = vmatprep.subr.bf16.mxu0 0
        %852 = vmatpush1.bf16.msra.mxu0 %v829
        %853 = vmatprep.subr.bf16.mxu0 0
        %854 = vmatpush1.bf16.msra.mxu0 %v830
        %855 = vmatprep.subr.bf16.mxu0 0
        %856 = vmatpush1.bf16.msra.mxu0 0
        %857 = vmatprep.subr.bf16.mxu0 0
        %858 = vmatpush1.bf16.msra.mxu0 0
        %859 = vmatprep.subr.bf16.mxu0 0
        %860 = vmatpush1.bf16.msra.mxu0 0
        %861 = vmatprep.subr.bf16.mxu0 0
        %862 = vmatpush1.bf16.msra.mxu0 0
        %863 = vmatprep.subr.bf16.mxu0 0
        %864 = vmatpush1.bf16.msra.mxu0 0
        %865 = vmatprep.subr.bf16.mxu0 0
        %866 = vmatpush1.bf16.msra.mxu0 0
        %867 = vmatprep.subr.bf16.mxu0 0
        %868 = vmatpush1.bf16.msra.mxu0 0
        %869 = vmatprep.subr.bf16.mxu0 0
        %870 = vmatpush1.bf16.msra.mxu0 0
        %871 = vmatprep.mubr.bf16.mxu0 0
        %872 = vmatmul.mubr.bf16.gmra.mrb[0].mxu0 %v766
        %v873 = vpop.f32.mrb[0].mxu0
        %v874 = vadd.f32 0.0, %v873
        %v875 = vpop.f32.mrb[0].mxu0
        %v876 = vpop.f32.mrb[0].mxu0
        %v877 = vadd.f32 0.0, %v876
        %v878 = vpop.f32.mrb[0].mxu0
        %879 = vmatprep.mubr.bf16.mxu0 0
        %880 = vmatmul.mubr.bf16.gmra.mrb[0].mxu0 %v767
        %v881 = vpop.f32.mrb[0].mxu0
        %v882 = vadd.f32 0.0, %v881
        %v883 = vpop.f32.mrb[0].mxu0
        %v884 = vpop.f32.mrb[0].mxu0
        %v885 = vadd.f32 0.0, %v884
        %v886 = vpop.f32.mrb[0].mxu0
        %887 = vmatprep.mubr.bf16.mxu0 0
        %888 = vmatmul.mubr.bf16.gmra.mrb[0].mxu0 %v768
        %v889 = vpop.f32.mrb[0].mxu0
        %v890 = vadd.f32 0.0, %v889
        %v891 = vpop.f32.mrb[0].mxu0
        %v892 = vpop.f32.mrb[0].mxu0
        %v893 = vadd.f32 0.0, %v892
        %v894 = vpop.f32.mrb[0].mxu0
        %895 = vmatprep.mubr.bf16.mxu0 0
        %896 = vmatmul.mubr.bf16.gmra.mrb[0].mxu0 %v769
        %v897 = vpop.f32.mrb[0].mxu0
        %v898 = vadd.f32 0.0, %v897
        %v899 = vpop.f32.mrb[0].mxu0
        %v900 = vpop.f32.mrb[0].mxu0
        %v901 = vadd.f32 0.0, %v900
        %v902 = vpop.f32.mrb[0].mxu0
        %903 = vmatprep.mubr.bf16.mxu0 0
        %904 = vmatmul.mubr.bf16.gmra.mrb[0].mxu0 %v770
        %v905 = vpop.f32.mrb[0].mxu0
        %v906 = vadd.f32 0.0, %v905
        %v907 = vpop.f32.mrb[0].mxu0
        %v908 = vpop.f32.mrb[0].mxu0
        %v909 = vadd.f32 0.0, %v908
        %v910 = vpop.f32.mrb[0].mxu0
        %911 = vmatprep.mubr.bf16.mxu0 0
        %912 = vmatmul.mubr.bf16.gmra.mrb[0].mxu0 %v771
        %v913 = vpop.f32.mrb[0].mxu0
        %v914 = vadd.f32 0.0, %v913
        %v915 = vpop.f32.mrb[0].mxu0
        %v916 = vpop.f32.mrb[0].mxu0
        %v917 = vadd.f32 0.0, %v916
        %v918 = vpop.f32.mrb[0].mxu0
        %919 = vmatprep.mubr.bf16.mxu0 0
        %920 = vmatmul.mubr.bf16.gmra.mrb[0].mxu0 %v772
        %v921 = vpop.f32.mrb[0].mxu0
        %v922 = vadd.f32 0.0, %v921
        %v923 = vpop.f32.mrb[0].mxu0
        %v924 = vpop.f32.mrb[0].mxu0
        %v925 = vadd.f32 0.0, %v924
        %v926 = vpop.f32.mrb[0].mxu0
        %927 = vmatprep.mubr.bf16.mxu0 0
        %928 = vmatmul.mubr.bf16.gmra.mrb[0].mxu0 %v773
        %v929 = vpop.f32.mrb[0].mxu0
        %v930 = vadd.f32 0.0, %v929
        %v931 = vpop.f32.mrb[0].mxu0
        %v932 = vpop.f32.mrb[0].mxu0
        %v933 = vadd.f32 0.0, %v932
        %v934 = vpop.f32.mrb[0].mxu0
        %935 = vdwg.mxu0
        %v936 = vadd.f32 %v686, %v874
        %v937 = vadd.f32 %v689, %v877
        %v938 = vadd.f32 %v694, %v882
        %v939 = vadd.f32 %v697, %v885
        %v940 = vadd.f32 %v702, %v890
        %v941 = vadd.f32 %v705, %v893
        %v942 = vadd.f32 %v710, %v898
        %v943 = vadd.f32 %v713, %v901
        %v944 = vadd.f32 %v718, %v906
        %v945 = vadd.f32 %v721, %v909
        %v946 = vadd.f32 %v726, %v914
        %v947 = vadd.f32 %v729, %v917
        %v948 = vadd.f32 %v734, %v922
        %v949 = vadd.f32 %v737, %v925
        %v950 = vadd.f32 %v742, %v930
        %v951 = vadd.f32 %v745, %v933
        %s952 = sadd.s32 %s371, 263
        %s953 = scalar_lea.vmem [#allocation2], %s952
        %v954 = vld [vmem:[%s953] sm:$0xff]
        %v955 = vld [vmem:[%s953 + $0x8] sm:$0xff]
        %v956 = vld [vmem:[%s953 + $0x10] sm:$0xff]
        %v957 = vld [vmem:[%s953 + $0x18] sm:$0xff]
        %v958 = vld [vmem:[%s953 + $0x20] sm:$0xff]
        %v959 = vld [vmem:[%s953 + $0x28] sm:$0xff]
        %v960 = vld [vmem:[%s953 + $0x30] sm:$0xff]
        %v961 = vld [vmem:[%s953 + $0x38] sm:$0xff]
        %v962 = vld [vmem:[%s953 + $0x40] sm:$0xff]
        %v963 = vld [vmem:[%s953 + $0x48] sm:$0xff]
        %v964 = vld [vmem:[%s953 + $0x50] sm:$0xff]
        %v965 = vld [vmem:[%s953 + $0x58] sm:$0xff]
        %v966 = vld [vmem:[%s953 + $0x60] sm:$0xff]
        %v967 = vld [vmem:[%s953 + $0x68] sm:$0xff]
        %v968 = vld [vmem:[%s953 + $0x70] sm:$0xff]
        %v969 = vld [vmem:[%s953 + $0x78] sm:$0xff]
        %v970 = vpack.c.bf16 %v955, %v954
        %v971 = vpack.c.bf16 %v957, %v956
        %v972 = vpack.c.bf16 %v959, %v958
        %v973 = vpack.c.bf16 %v961, %v960
        %v974 = vpack.c.bf16 %v963, %v962
        %v975 = vpack.c.bf16 %v965, %v964
        %v976 = vpack.c.bf16 %v967, %v966
        %v977 = vpack.c.bf16 %v969, %v968
        %s978 = scalar_lea.vmem %s1, 192
        %v979 = vld [vmem:[%s978] sm:$0xf]
        %v980 = vld [vmem:[%s978 + $0x4] sm:$0xf]
        %v981 = vld [vmem:[%s978 + $0x8] sm:$0xf]
        %v982 = vld [vmem:[%s978 + $0xc] sm:$0xf]
        %v983 = vld [vmem:[%s978 + $0x10] sm:$0xf]
        %v984 = vld [vmem:[%s978 + $0x14] sm:$0xf]
        %v985 = vld [vmem:[%s978 + $0x18] sm:$0xf]
        %v986 = vld [vmem:[%s978 + $0x1c] sm:$0xf]
        %v987 = vld [vmem:[%s978 + $0x20] sm:$0xf]
        %v988 = vld [vmem:[%s978 + $0x24] sm:$0xf]
        %v989 = vld [vmem:[%s978 + $0x28] sm:$0xf]
        %v990 = vld [vmem:[%s978 + $0x2c] sm:$0xf]
        %v991 = vld [vmem:[%s978 + $0x30] sm:$0xf]
        %v992 = vld [vmem:[%s978 + $0x34] sm:$0xf]
        %v993 = vld [vmem:[%s978 + $0x38] sm:$0xf]
        %v994 = vld [vmem:[%s978 + $0x3c] sm:$0xf]
        %v1011 = vunpack.c.l.b16 %v979
        %v1012 = vunpack.c.l.b16 %v980
        %v1013 = vunpack.c.l.b16 %v981
        %v1014 = vunpack.c.l.b16 %v982
        %v1015 = vunpack.c.l.b16 %v983
        %v1016 = vunpack.c.l.b16 %v984
        %v1017 = vunpack.c.l.b16 %v985
        %v1018 = vunpack.c.l.b16 %v986
        %v1019 = vunpack.c.l.b16 %v987
        %v1020 = vunpack.c.l.b16 %v988
        %v1021 = vunpack.c.l.b16 %v989
        %v1022 = vunpack.c.l.b16 %v990
        %v1023 = vunpack.c.l.b16 %v991
        %v1024 = vunpack.c.l.b16 %v992
        %v1025 = vunpack.c.l.b16 %v993
        %v1026 = vunpack.c.l.b16 %v994
        %v1027 = vpack.c.b16 %v1012, %v1011
        %v1028 = vpack.c.b16 %v1014, %v1013
        %v1029 = vpack.c.b16 %v1016, %v1015
        %v1030 = vpack.c.b16 %v1018, %v1017
        %v1031 = vpack.c.b16 %v1020, %v1019
        %v1032 = vpack.c.b16 %v1022, %v1021
        %v1033 = vpack.c.b16 %v1024, %v1023
        %v1034 = vpack.c.b16 %v1026, %v1025
        %1043 = vmatprep.subr.bf16.mxu0 0
        %1044 = vmatpush1.bf16.msra.mxu0 %v1027
        %1045 = vmatprep.subr.bf16.mxu0 0
        %1046 = vmatpush1.bf16.msra.mxu0 %v1028
        %1047 = vmatprep.subr.bf16.mxu0 0
        %1048 = vmatpush1.bf16.msra.mxu0 %v1029
        %1049 = vmatprep.subr.bf16.mxu0 0
        %1050 = vmatpush1.bf16.msra.mxu0 %v1030
        %1051 = vmatprep.subr.bf16.mxu0 0
        %1052 = vmatpush1.bf16.msra.mxu0 %v1031
        %1053 = vmatprep.subr.bf16.mxu0 0
        %1054 = vmatpush1.bf16.msra.mxu0 %v1032
        %1055 = vmatprep.subr.bf16.mxu0 0
        %1056 = vmatpush1.bf16.msra.mxu0 %v1033
        %1057 = vmatprep.subr.bf16.mxu0 0
        %1058 = vmatpush1.bf16.msra.mxu0 %v1034
        %1059 = vmatprep.subr.bf16.mxu0 0
        %1060 = vmatpush1.bf16.msra.mxu0 0
        %1061 = vmatprep.subr.bf16.mxu0 0
        %1062 = vmatpush1.bf16.msra.mxu0 0
        %1063 = vmatprep.subr.bf16.mxu0 0
        %1064 = vmatpush1.bf16.msra.mxu0 0
        %1065 = vmatprep.subr.bf16.mxu0 0
        %1066 = vmatpush1.bf16.msra.mxu0 0
        %1067 = vmatprep.subr.bf16.mxu0 0
        %1068 = vmatpush1.bf16.msra.mxu0 0
        %1069 = vmatprep.subr.bf16.mxu0 0
        %1070 = vmatpush1.bf16.msra.mxu0 0
        %1071 = vmatprep.subr.bf16.mxu0 0
        %1072 = vmatpush1.bf16.msra.mxu0 0
        %1073 = vmatprep.subr.bf16.mxu0 0
        %1074 = vmatpush1.bf16.msra.mxu0 0
        %1075 = vmatprep.mubr.bf16.mxu0 0
        %1076 = vmatmul.mubr.bf16.gmra.mrb[0].mxu0 %v970
        %v1077 = vpop.f32.mrb[0].mxu0
        %v1078 = vadd.f32 0.0, %v1077
        %v1079 = vpop.f32.mrb[0].mxu0
        %v1080 = vpop.f32.mrb[0].mxu0
        %v1081 = vadd.f32 0.0, %v1080
        %v1082 = vpop.f32.mrb[0].mxu0
        %1083 = vmatprep.mubr.bf16.mxu0 0
        %1084 = vmatmul.mubr.bf16.gmra.mrb[0].mxu0 %v971
        %v1085 = vpop.f32.mrb[0].mxu0
        %v1086 = vadd.f32 0.0, %v1085
        %v1087 = vpop.f32.mrb[0].mxu0
        %v1088 = vpop.f32.mrb[0].mxu0
        %v1089 = vadd.f32 0.0, %v1088
        %v1090 = vpop.f32.mrb[0].mxu0
        %1091 = vmatprep.mubr.bf16.mxu0 0
        %1092 = vmatmul.mubr.bf16.gmra.mrb[0].mxu0 %v972
        %v1093 = vpop.f32.mrb[0].mxu0
        %v1094 = vadd.f32 0.0, %v1093
        %v1095 = vpop.f32.mrb[0].mxu0
        %v1096 = vpop.f32.mrb[0].mxu0
        %v1097 = vadd.f32 0.0, %v1096
        %v1098 = vpop.f32.mrb[0].mxu0
        %1099 = vmatprep.mubr.bf16.mxu0 0
        %1100 = vmatmul.mubr.bf16.gmra.mrb[0].mxu0 %v973
        %v1101 = vpop.f32.mrb[0].mxu0
        %v1102 = vadd.f32 0.0, %v1101
        %v1103 = vpop.f32.mrb[0].mxu0
        %v1104 = vpop.f32.mrb[0].mxu0
        %v1105 = vadd.f32 0.0, %v1104
        %v1106 = vpop.f32.mrb[0].mxu0
        %1107 = vmatprep.mubr.bf16.mxu0 0
        %1108 = vmatmul.mubr.bf16.gmra.mrb[0].mxu0 %v974
        %v1109 = vpop.f32.mrb[0].mxu0
        %v1110 = vadd.f32 0.0, %v1109
        %v1111 = vpop.f32.mrb[0].mxu0
        %v1112 = vpop.f32.mrb[0].mxu0
        %v1113 = vadd.f32 0.0, %v1112
        %v1114 = vpop.f32.mrb[0].mxu0
        %1115 = vmatprep.mubr.bf16.mxu0 0
        %1116 = vmatmul.mubr.bf16.gmra.mrb[0].mxu0 %v975
        %v1117 = vpop.f32.mrb[0].mxu0
        %v1118 = vadd.f32 0.0, %v1117
        %v1119 = vpop.f32.mrb[0].mxu0
        %v1120 = vpop.f32.mrb[0].mxu0
        %v1121 = vadd.f32 0.0, %v1120
        %v1122 = vpop.f32.mrb[0].mxu0
        %1123 = vmatprep.mubr.bf16.mxu0 0
        %1124 = vmatmul.mubr.bf16.gmra.mrb[0].mxu0 %v976
        %v1125 = vpop.f32.mrb[0].mxu0
        %v1126 = vadd.f32 0.0, %v1125
        %v1127 = vpop.f32.mrb[0].mxu0
        %v1128 = vpop.f32.mrb[0].mxu0
        %v1129 = vadd.f32 0.0, %v1128
        %v1130 = vpop.f32.mrb[0].mxu0
        %1131 = vmatprep.mubr.bf16.mxu0 0
        %1132 = vmatmul.mubr.bf16.gmra.mrb[0].mxu0 %v977
        %v1133 = vpop.f32.mrb[0].mxu0
        %v1134 = vadd.f32 0.0, %v1133
        %v1135 = vpop.f32.mrb[0].mxu0
        %v1136 = vpop.f32.mrb[0].mxu0
        %v1137 = vadd.f32 0.0, %v1136
        %v1138 = vpop.f32.mrb[0].mxu0
        %1139 = vdwg.mxu0
        %v1140 = vadd.f32 %v936, %v1078
        %v1141 = vadd.f32 %v937, %v1081
        %v1142 = vadd.f32 %v938, %v1086
        %v1143 = vadd.f32 %v939, %v1089
        %v1144 = vadd.f32 %v940, %v1094
        %v1145 = vadd.f32 %v941, %v1097
        %v1146 = vadd.f32 %v942, %v1102
        %v1147 = vadd.f32 %v943, %v1105
        %v1148 = vadd.f32 %v944, %v1110
        %v1149 = vadd.f32 %v945, %v1113
        %v1150 = vadd.f32 %v946, %v1118
        %v1151 = vadd.f32 %v947, %v1121
        %v1152 = vadd.f32 %v948, %v1126
        %v1153 = vadd.f32 %v949, %v1129
        %v1154 = vadd.f32 %v950, %v1134
        %v1155 = vadd.f32 %v951, %v1137
        %s1156 = scalar_lea.vmem [#allocation2], %s372
        %v1157 = vld [vmem:[%s1156] sm:$0xff]
        %v1158 = vld [vmem:[%s1156 + $0x8] sm:$0xff]
        %v1159 = vld [vmem:[%s1156 + $0x10] sm:$0xff]
        %v1160 = vld [vmem:[%s1156 + $0x18] sm:$0xff]
        %v1161 = vld [vmem:[%s1156 + $0x20] sm:$0xff]
        %v1162 = vld [vmem:[%s1156 + $0x28] sm:$0xff]
        %v1163 = vld [vmem:[%s1156 + $0x30] sm:$0xff]
        %v1164 = vld [vmem:[%s1156 + $0x38] sm:$0xff]
        %v1165 = vld [vmem:[%s1156 + $0x40] sm:$0xff]
        %v1166 = vld [vmem:[%s1156 + $0x48] sm:$0xff]
        %v1167 = vld [vmem:[%s1156 + $0x50] sm:$0xff]
        %v1168 = vld [vmem:[%s1156 + $0x58] sm:$0xff]
        %v1169 = vld [vmem:[%s1156 + $0x60] sm:$0xff]
        %v1170 = vld [vmem:[%s1156 + $0x68] sm:$0xff]
        %v1171 = vld [vmem:[%s1156 + $0x70] sm:$0xff]
        %v1172 = vld [vmem:[%s1156 + $0x78] sm:$0xff]
        %v1173 = vpack.c.bf16 %v1158, %v1157
        %v1174 = vpack.c.bf16 %v1160, %v1159
        %v1175 = vpack.c.bf16 %v1162, %v1161
        %v1176 = vpack.c.bf16 %v1164, %v1163
        %v1177 = vpack.c.bf16 %v1166, %v1165
        %v1178 = vpack.c.bf16 %v1168, %v1167
        %v1179 = vpack.c.bf16 %v1170, %v1169
        %v1180 = vpack.c.bf16 %v1172, %v1171
        %s1181 = scalar_lea.vmem %s1, 256
        %v1182 = vld [vmem:[%s1181] sm:$0xf]
        %v1183 = vld [vmem:[%s1181 + $0x4] sm:$0xf]
        %v1184 = vld [vmem:[%s1181 + $0x8] sm:$0xf]
        %v1185 = vld [vmem:[%s1181 + $0xc] sm:$0xf]
        %v1186 = vld [vmem:[%s1181 + $0x10] sm:$0xf]
        %v1187 = vld [vmem:[%s1181 + $0x14] sm:$0xf]
        %v1188 = vld [vmem:[%s1181 + $0x18] sm:$0xf]
        %v1189 = vld [vmem:[%s1181 + $0x1c] sm:$0xf]
        %v1190 = vld [vmem:[%s1181 + $0x20] sm:$0xf]
        %v1191 = vld [vmem:[%s1181 + $0x24] sm:$0xf]
        %v1192 = vld [vmem:[%s1181 + $0x28] sm:$0xf]
        %v1193 = vld [vmem:[%s1181 + $0x2c] sm:$0xf]
        %v1194 = vld [vmem:[%s1181 + $0x30] sm:$0xf]
        %v1195 = vld [vmem:[%s1181 + $0x34] sm:$0xf]
        %v1196 = vld [vmem:[%s1181 + $0x38] sm:$0xf]
        %v1197 = vld [vmem:[%s1181 + $0x3c] sm:$0xf]
        %v1214 = vunpack.c.l.b16 %v1182
        %v1215 = vunpack.c.l.b16 %v1183
        %v1216 = vunpack.c.l.b16 %v1184
        %v1217 = vunpack.c.l.b16 %v1185
        %v1218 = vunpack.c.l.b16 %v1186
        %v1219 = vunpack.c.l.b16 %v1187
        %v1220 = vunpack.c.l.b16 %v1188
        %v1221 = vunpack.c.l.b16 %v1189
        %v1222 = vunpack.c.l.b16 %v1190
        %v1223 = vunpack.c.l.b16 %v1191
        %v1224 = vunpack.c.l.b16 %v1192
        %v1225 = vunpack.c.l.b16 %v1193
        %v1226 = vunpack.c.l.b16 %v1194
        %v1227 = vunpack.c.l.b16 %v1195
        %v1228 = vunpack.c.l.b16 %v1196
        %v1229 = vunpack.c.l.b16 %v1197
        %v1230 = vpack.c.b16 %v1215, %v1214
        %v1231 = vpack.c.b16 %v1217, %v1216
        %v1232 = vpack.c.b16 %v1219, %v1218
        %v1233 = vpack.c.b16 %v1221, %v1220
        %v1234 = vpack.c.b16 %v1223, %v1222
        %v1235 = vpack.c.b16 %v1225, %v1224
        %v1236 = vpack.c.b16 %v1227, %v1226
        %v1237 = vpack.c.b16 %v1229, %v1228
        %1246 = vmatprep.subr.bf16.mxu0 0
        %1247 = vmatpush1.bf16.msra.mxu0 %v1230
        %1248 = vmatprep.subr.bf16.mxu0 0
        %1249 = vmatpush1.bf16.msra.mxu0 %v1231
        %1250 = vmatprep.subr.bf16.mxu0 0
        %1251 = vmatpush1.bf16.msra.mxu0 %v1232
        %1252 = vmatprep.subr.bf16.mxu0 0
        %1253 = vmatpush1.bf16.msra.mxu0 %v1233
        %1254 = vmatprep.subr.bf16.mxu0 0
        %1255 = vmatpush1.bf16.msra.mxu0 %v1234
        %1256 = vmatprep.subr.bf16.mxu0 0
        %1257 = vmatpush1.bf16.msra.mxu0 %v1235
        %1258 = vmatprep.subr.bf16.mxu0 0
        %1259 = vmatpush1.bf16.msra.mxu0 %v1236
        %1260 = vmatprep.subr.bf16.mxu0 0
        %1261 = vmatpush1.bf16.msra.mxu0 %v1237
        %1262 = vmatprep.subr.bf16.mxu0 0
        %1263 = vmatpush1.bf16.msra.mxu0 0
        %1264 = vmatprep.subr.bf16.mxu0 0
        %1265 = vmatpush1.bf16.msra.mxu0 0
        %1266 = vmatprep.subr.bf16.mxu0 0
        %1267 = vmatpush1.bf16.msra.mxu0 0
        %1268 = vmatprep.subr.bf16.mxu0 0
        %1269 = vmatpush1.bf16.msra.mxu0 0
        %1270 = vmatprep.subr.bf16.mxu0 0
        %1271 = vmatpush1.bf16.msra.mxu0 0
        %1272 = vmatprep.subr.bf16.mxu0 0
        %1273 = vmatpush1.bf16.msra.mxu0 0
        %1274 = vmatprep.subr.bf16.mxu0 0
        %1275 = vmatpush1.bf16.msra.mxu0 0
        %1276 = vmatprep.subr.bf16.mxu0 0
        %1277 = vmatpush1.bf16.msra.mxu0 0
        %1278 = vmatprep.mubr.bf16.mxu0 0
        %1279 = vmatmul.mubr.bf16.gmra.mrb[0].mxu0 %v1173
        %v1280 = vpop.f32.mrb[0].mxu0
        %v1281 = vadd.f32 0.0, %v1280
        %v1282 = vpop.f32.mrb[0].mxu0
        %v1283 = vpop.f32.mrb[0].mxu0
        %v1284 = vadd.f32 0.0, %v1283
        %v1285 = vpop.f32.mrb[0].mxu0
        %1286 = vmatprep.mubr.bf16.mxu0 0
        %1287 = vmatmul.mubr.bf16.gmra.mrb[0].mxu0 %v1174
        %v1288 = vpop.f32.mrb[0].mxu0
        %v1289 = vadd.f32 0.0, %v1288
        %v1290 = vpop.f32.mrb[0].mxu0
        %v1291 = vpop.f32.mrb[0].mxu0
        %v1292 = vadd.f32 0.0, %v1291
        %v1293 = vpop.f32.mrb[0].mxu0
        %1294 = vmatprep.mubr.bf16.mxu0 0
        %1295 = vmatmul.mubr.bf16.gmra.mrb[0].mxu0 %v1175
        %v1296 = vpop.f32.mrb[0].mxu0
        %v1297 = vadd.f32 0.0, %v1296
        %v1298 = vpop.f32.mrb[0].mxu0
        %v1299 = vpop.f32.mrb[0].mxu0
        %v1300 = vadd.f32 0.0, %v1299
        %v1301 = vpop.f32.mrb[0].mxu0
        %1302 = vmatprep.mubr.bf16.mxu0 0
        %1303 = vmatmul.mubr.bf16.gmra.mrb[0].mxu0 %v1176
        %v1304 = vpop.f32.mrb[0].mxu0
        %v1305 = vadd.f32 0.0, %v1304
        %v1306 = vpop.f32.mrb[0].mxu0
        %v1307 = vpop.f32.mrb[0].mxu0
        %v1308 = vadd.f32 0.0, %v1307
        %v1309 = vpop.f32.mrb[0].mxu0
        %1310 = vmatprep.mubr.bf16.mxu0 0
        %1311 = vmatmul.mubr.bf16.gmra.mrb[0].mxu0 %v1177
        %v1312 = vpop.f32.mrb[0].mxu0
        %v1313 = vadd.f32 0.0, %v1312
        %v1314 = vpop.f32.mrb[0].mxu0
        %v1315 = vpop.f32.mrb[0].mxu0
        %v1316 = vadd.f32 0.0, %v1315
        %v1317 = vpop.f32.mrb[0].mxu0
        %1318 = vmatprep.mubr.bf16.mxu0 0
        %1319 = vmatmul.mubr.bf16.gmra.mrb[0].mxu0 %v1178
        %v1320 = vpop.f32.mrb[0].mxu0
        %v1321 = vadd.f32 0.0, %v1320
        %v1322 = vpop.f32.mrb[0].mxu0
        %v1323 = vpop.f32.mrb[0].mxu0
        %v1324 = vadd.f32 0.0, %v1323
        %v1325 = vpop.f32.mrb[0].mxu0
        %1326 = vmatprep.mubr.bf16.mxu0 0
        %1327 = vmatmul.mubr.bf16.gmra.mrb[0].mxu0 %v1179
        %v1328 = vpop.f32.mrb[0].mxu0
        %v1329 = vadd.f32 0.0, %v1328
        %v1330 = vpop.f32.mrb[0].mxu0
        %v1331 = vpop.f32.mrb[0].mxu0
        %v1332 = vadd.f32 0.0, %v1331
        %v1333 = vpop.f32.mrb[0].mxu0
        %1334 = vmatprep.mubr.bf16.mxu0 0
        %1335 = vmatmul.mubr.bf16.gmra.mrb[0].mxu0 %v1180
        %v1336 = vpop.f32.mrb[0].mxu0
        %v1337 = vadd.f32 0.0, %v1336
        %v1338 = vpop.f32.mrb[0].mxu0
        %v1339 = vpop.f32.mrb[0].mxu0
        %v1340 = vadd.f32 0.0, %v1339
        %v1341 = vpop.f32.mrb[0].mxu0
        %1342 = vdwg.mxu0
        %v1343 = vadd.f32 %v1140, %v1281
        %v1344 = vadd.f32 %v1141, %v1284
        %v1345 = vadd.f32 %v1142, %v1289
        %v1346 = vadd.f32 %v1143, %v1292
        %v1347 = vadd.f32 %v1144, %v1297
        %v1348 = vadd.f32 %v1145, %v1300
        %v1349 = vadd.f32 %v1146, %v1305
        %v1350 = vadd.f32 %v1147, %v1308
        %v1351 = vadd.f32 %v1148, %v1313
        %v1352 = vadd.f32 %v1149, %v1316
        %v1353 = vadd.f32 %v1150, %v1321
        %v1354 = vadd.f32 %v1151, %v1324
        %v1355 = vadd.f32 %v1152, %v1329
        %v1356 = vadd.f32 %v1153, %v1332
        %v1357 = vadd.f32 %v1154, %v1337
        %v1358 = vadd.f32 %v1155, %v1340
        %s1359 = sadd.s32 %s371, 265
        %s1360 = scalar_lea.vmem [#allocation2], %s1359
        %v1361 = vld [vmem:[%s1360] sm:$0xff]
        %v1362 = vld [vmem:[%s1360 + $0x8] sm:$0xff]
        %v1363 = vld [vmem:[%s1360 + $0x10] sm:$0xff]
        %v1364 = vld [vmem:[%s1360 + $0x18] sm:$0xff]
        %v1365 = vld [vmem:[%s1360 + $0x20] sm:$0xff]
        %v1366 = vld [vmem:[%s1360 + $0x28] sm:$0xff]
        %v1367 = vld [vmem:[%s1360 + $0x30] sm:$0xff]
        %v1368 = vld [vmem:[%s1360 + $0x38] sm:$0xff]
        %v1369 = vld [vmem:[%s1360 + $0x40] sm:$0xff]
        %v1370 = vld [vmem:[%s1360 + $0x48] sm:$0xff]
        %v1371 = vld [vmem:[%s1360 + $0x50] sm:$0xff]
        %v1372 = vld [vmem:[%s1360 + $0x58] sm:$0xff]
        %v1373 = vld [vmem:[%s1360 + $0x60] sm:$0xff]
        %v1374 = vld [vmem:[%s1360 + $0x68] sm:$0xff]
        %v1375 = vld [vmem:[%s1360 + $0x70] sm:$0xff]
        %v1376 = vld [vmem:[%s1360 + $0x78] sm:$0xff]
        %v1377 = vpack.c.bf16 %v1362, %v1361
        %v1378 = vpack.c.bf16 %v1364, %v1363
        %v1379 = vpack.c.bf16 %v1366, %v1365
        %v1380 = vpack.c.bf16 %v1368, %v1367
        %v1381 = vpack.c.bf16 %v1370, %v1369
        %v1382 = vpack.c.bf16 %v1372, %v1371
        %v1383 = vpack.c.bf16 %v1374, %v1373
        %v1384 = vpack.c.bf16 %v1376, %v1375
        %s1385 = scalar_lea.vmem %s1, 320
        %v1386 = vld [vmem:[%s1385] sm:$0xf]
        %v1387 = vld [vmem:[%s1385 + $0x4] sm:$0xf]
        %v1388 = vld [vmem:[%s1385 + $0x8] sm:$0xf]
        %v1389 = vld [vmem:[%s1385 + $0xc] sm:$0xf]
        %v1390 = vld [vmem:[%s1385 + $0x10] sm:$0xf]
        %v1391 = vld [vmem:[%s1385 + $0x14] sm:$0xf]
        %v1392 = vld [vmem:[%s1385 + $0x18] sm:$0xf]
        %v1393 = vld [vmem:[%s1385 + $0x1c] sm:$0xf]
        %v1394 = vld [vmem:[%s1385 + $0x20] sm:$0xf]
        %v1395 = vld [vmem:[%s1385 + $0x24] sm:$0xf]
        %v1396 = vld [vmem:[%s1385 + $0x28] sm:$0xf]
        %v1397 = vld [vmem:[%s1385 + $0x2c] sm:$0xf]
        %v1398 = vld [vmem:[%s1385 + $0x30] sm:$0xf]
        %v1399 = vld [vmem:[%s1385 + $0x34] sm:$0xf]
        %v1400 = vld [vmem:[%s1385 + $0x38] sm:$0xf]
        %v1401 = vld [vmem:[%s1385 + $0x3c] sm:$0xf]
        %v1418 = vunpack.c.l.b16 %v1386
        %v1419 = vunpack.c.l.b16 %v1387
        %v1420 = vunpack.c.l.b16 %v1388
        %v1421 = vunpack.c.l.b16 %v1389
        %v1422 = vunpack.c.l.b16 %v1390
        %v1423 = vunpack.c.l.b16 %v1391
        %v1424 = vunpack.c.l.b16 %v1392
        %v1425 = vunpack.c.l.b16 %v1393
        %v1426 = vunpack.c.l.b16 %v1394
        %v1427 = vunpack.c.l.b16 %v1395
        %v1428 = vunpack.c.l.b16 %v1396
        %v1429 = vunpack.c.l.b16 %v1397
        %v1430 = vunpack.c.l.b16 %v1398
        %v1431 = vunpack.c.l.b16 %v1399
        %v1432 = vunpack.c.l.b16 %v1400
        %v1433 = vunpack.c.l.b16 %v1401
        %v1434 = vpack.c.b16 %v1419, %v1418
        %v1435 = vpack.c.b16 %v1421, %v1420
        %v1436 = vpack.c.b16 %v1423, %v1422
        %v1437 = vpack.c.b16 %v1425, %v1424
        %v1438 = vpack.c.b16 %v1427, %v1426
        %v1439 = vpack.c.b16 %v1429, %v1428
        %v1440 = vpack.c.b16 %v1431, %v1430
        %v1441 = vpack.c.b16 %v1433, %v1432
        %1450 = vmatprep.subr.bf16.mxu0 0
        %1451 = vmatpush1.bf16.msra.mxu0 %v1434
        %1452 = vmatprep.subr.bf16.mxu0 0
        %1453 = vmatpush1.bf16.msra.mxu0 %v1435
        %1454 = vmatprep.subr.bf16.mxu0 0
        %1455 = vmatpush1.bf16.msra.mxu0 %v1436
        %1456 = vmatprep.subr.bf16.mxu0 0
        %1457 = vmatpush1.bf16.msra.mxu0 %v1437
        %1458 = vmatprep.subr.bf16.mxu0 0
        %1459 = vmatpush1.bf16.msra.mxu0 %v1438
        %1460 = vmatprep.subr.bf16.mxu0 0
        %1461 = vmatpush1.bf16.msra.mxu0 %v1439
        %1462 = vmatprep.subr.bf16.mxu0 0
        %1463 = vmatpush1.bf16.msra.mxu0 %v1440
        %1464 = vmatprep.subr.bf16.mxu0 0
        %1465 = vmatpush1.bf16.msra.mxu0 %v1441
        %1466 = vmatprep.subr.bf16.mxu0 0
        %1467 = vmatpush1.bf16.msra.mxu0 0
        %1468 = vmatprep.subr.bf16.mxu0 0
        %1469 = vmatpush1.bf16.msra.mxu0 0
        %1470 = vmatprep.subr.bf16.mxu0 0
        %1471 = vmatpush1.bf16.msra.mxu0 0
        %1472 = vmatprep.subr.bf16.mxu0 0
        %1473 = vmatpush1.bf16.msra.mxu0 0
        %1474 = vmatprep.subr.bf16.mxu0 0
        %1475 = vmatpush1.bf16.msra.mxu0 0
        %1476 = vmatprep.subr.bf16.mxu0 0
        %1477 = vmatpush1.bf16.msra.mxu0 0
        %1478 = vmatprep.subr.bf16.mxu0 0
        %1479 = vmatpush1.bf16.msra.mxu0 0
        %1480 = vmatprep.subr.bf16.mxu0 0
        %1481 = vmatpush1.bf16.msra.mxu0 0
        %1482 = vmatprep.mubr.bf16.mxu0 0
        %1483 = vmatmul.mubr.bf16.gmra.mrb[0].mxu0 %v1377
        %v1484 = vpop.f32.mrb[0].mxu0
        %v1485 = vadd.f32 0.0, %v1484
        %v1486 = vpop.f32.mrb[0].mxu0
        %v1487 = vpop.f32.mrb[0].mxu0
        %v1488 = vadd.f32 0.0, %v1487
        %v1489 = vpop.f32.mrb[0].mxu0
        %1490 = vmatprep.mubr.bf16.mxu0 0
        %1491 = vmatmul.mubr.bf16.gmra.mrb[0].mxu0 %v1378
        %v1492 = vpop.f32.mrb[0].mxu0
        %v1493 = vadd.f32 0.0, %v1492
        %v1494 = vpop.f32.mrb[0].mxu0
        %v1495 = vpop.f32.mrb[0].mxu0
        %v1496 = vadd.f32 0.0, %v1495
        %v1497 = vpop.f32.mrb[0].mxu0
        %1498 = vmatprep.mubr.bf16.mxu0 0
        %1499 = vmatmul.mubr.bf16.gmra.mrb[0].mxu0 %v1379
        %v1500 = vpop.f32.mrb[0].mxu0
        %v1501 = vadd.f32 0.0, %v1500
        %v1502 = vpop.f32.mrb[0].mxu0
        %v1503 = vpop.f32.mrb[0].mxu0
        %v1504 = vadd.f32 0.0, %v1503
        %v1505 = vpop.f32.mrb[0].mxu0
        %1506 = vmatprep.mubr.bf16.mxu0 0
        %1507 = vmatmul.mubr.bf16.gmra.mrb[0].mxu0 %v1380
        %v1508 = vpop.f32.mrb[0].mxu0
        %v1509 = vadd.f32 0.0, %v1508
        %v1510 = vpop.f32.mrb[0].mxu0
        %v1511 = vpop.f32.mrb[0].mxu0
        %v1512 = vadd.f32 0.0, %v1511
        %v1513 = vpop.f32.mrb[0].mxu0
        %1514 = vmatprep.mubr.bf16.mxu0 0
        %1515 = vmatmul.mubr.bf16.gmra.mrb[0].mxu0 %v1381
        %v1516 = vpop.f32.mrb[0].mxu0
        %v1517 = vadd.f32 0.0, %v1516
        %v1518 = vpop.f32.mrb[0].mxu0
        %v1519 = vpop.f32.mrb[0].mxu0
        %v1520 = vadd.f32 0.0, %v1519
        %v1521 = vpop.f32.mrb[0].mxu0
        %1522 = vmatprep.mubr.bf16.mxu0 0
        %1523 = vmatmul.mubr.bf16.gmra.mrb[0].mxu0 %v1382
        %v1524 = vpop.f32.mrb[0].mxu0
        %v1525 = vadd.f32 0.0, %v1524
        %v1526 = vpop.f32.mrb[0].mxu0
        %v1527 = vpop.f32.mrb[0].mxu0
        %v1528 = vadd.f32 0.0, %v1527
        %v1529 = vpop.f32.mrb[0].mxu0
        %1530 = vmatprep.mubr.bf16.mxu0 0
        %1531 = vmatmul.mubr.bf16.gmra.mrb[0].mxu0 %v1383
        %v1532 = vpop.f32.mrb[0].mxu0
        %v1533 = vadd.f32 0.0, %v1532
        %v1534 = vpop.f32.mrb[0].mxu0
        %v1535 = vpop.f32.mrb[0].mxu0
        %v1536 = vadd.f32 0.0, %v1535
        %v1537 = vpop.f32.mrb[0].mxu0
        %1538 = vmatprep.mubr.bf16.mxu0 0
        %1539 = vmatmul.mubr.bf16.gmra.mrb[0].mxu0 %v1384
        %v1540 = vpop.f32.mrb[0].mxu0
        %v1541 = vadd.f32 0.0, %v1540
        %v1542 = vpop.f32.mrb[0].mxu0
        %v1543 = vpop.f32.mrb[0].mxu0
        %v1544 = vadd.f32 0.0, %v1543
        %v1545 = vpop.f32.mrb[0].mxu0
        %1546 = vdwg.mxu0
        %v1547 = vadd.f32 %v1343, %v1485
        %v1548 = vadd.f32 %v1344, %v1488
        %v1549 = vadd.f32 %v1345, %v1493
        %v1550 = vadd.f32 %v1346, %v1496
        %v1551 = vadd.f32 %v1347, %v1501
        %v1552 = vadd.f32 %v1348, %v1504
        %v1553 = vadd.f32 %v1349, %v1509
        %v1554 = vadd.f32 %v1350, %v1512
        %v1555 = vadd.f32 %v1351, %v1517
        %v1556 = vadd.f32 %v1352, %v1520
        %v1557 = vadd.f32 %v1353, %v1525
        %v1558 = vadd.f32 %v1354, %v1528
        %v1559 = vadd.f32 %v1355, %v1533
        %v1560 = vadd.f32 %v1356, %v1536
        %v1561 = vadd.f32 %v1357, %v1541
        %v1562 = vadd.f32 %v1358, %v1544
        %s1563 = sadd.s32 %s371, 295
        %s1564 = scalar_lea.vmem [#allocation2], %s1563
        %v1565 = vld [vmem:[%s1564] sm:$0xff]
        %v1566 = vld [vmem:[%s1564 + $0x8] sm:$0xff]
        %v1567 = vld [vmem:[%s1564 + $0x10] sm:$0xff]
        %v1568 = vld [vmem:[%s1564 + $0x18] sm:$0xff]
        %v1569 = vld [vmem:[%s1564 + $0x20] sm:$0xff]
        %v1570 = vld [vmem:[%s1564 + $0x28] sm:$0xff]
        %v1571 = vld [vmem:[%s1564 + $0x30] sm:$0xff]
        %v1572 = vld [vmem:[%s1564 + $0x38] sm:$0xff]
        %v1573 = vld [vmem:[%s1564 + $0x40] sm:$0xff]
        %v1574 = vld [vmem:[%s1564 + $0x48] sm:$0xff]
        %v1575 = vld [vmem:[%s1564 + $0x50] sm:$0xff]
        %v1576 = vld [vmem:[%s1564 + $0x58] sm:$0xff]
        %v1577 = vld [vmem:[%s1564 + $0x60] sm:$0xff]
        %v1578 = vld [vmem:[%s1564 + $0x68] sm:$0xff]
        %v1579 = vld [vmem:[%s1564 + $0x70] sm:$0xff]
        %v1580 = vld [vmem:[%s1564 + $0x78] sm:$0xff]
        %v1581 = vpack.c.bf16 %v1566, %v1565
        %v1582 = vpack.c.bf16 %v1568, %v1567
        %v1583 = vpack.c.bf16 %v1570, %v1569
        %v1584 = vpack.c.bf16 %v1572, %v1571
        %v1585 = vpack.c.bf16 %v1574, %v1573
        %v1586 = vpack.c.bf16 %v1576, %v1575
        %v1587 = vpack.c.bf16 %v1578, %v1577
        %v1588 = vpack.c.bf16 %v1580, %v1579
        %s1589 = scalar_lea.vmem %s1, 384
        %v1590 = vld [vmem:[%s1589] sm:$0xf]
        %v1591 = vld [vmem:[%s1589 + $0x4] sm:$0xf]
        %v1592 = vld [vmem:[%s1589 + $0x8] sm:$0xf]
        %v1593 = vld [vmem:[%s1589 + $0xc] sm:$0xf]
        %v1594 = vld [vmem:[%s1589 + $0x10] sm:$0xf]
        %v1595 = vld [vmem:[%s1589 + $0x14] sm:$0xf]
        %v1596 = vld [vmem:[%s1589 + $0x18] sm:$0xf]
        %v1597 = vld [vmem:[%s1589 + $0x1c] sm:$0xf]
        %v1598 = vld [vmem:[%s1589 + $0x20] sm:$0xf]
        %v1599 = vld [vmem:[%s1589 + $0x24] sm:$0xf]
        %v1600 = vld [vmem:[%s1589 + $0x28] sm:$0xf]
        %v1601 = vld [vmem:[%s1589 + $0x2c] sm:$0xf]
        %v1602 = vld [vmem:[%s1589 + $0x30] sm:$0xf]
        %v1603 = vld [vmem:[%s1589 + $0x34] sm:$0xf]
        %v1604 = vld [vmem:[%s1589 + $0x38] sm:$0xf]
        %v1605 = vld [vmem:[%s1589 + $0x3c] sm:$0xf]
        %v1622 = vunpack.c.l.b16 %v1590
        %v1623 = vunpack.c.l.b16 %v1591
        %v1624 = vunpack.c.l.b16 %v1592
        %v1625 = vunpack.c.l.b16 %v1593
        %v1626 = vunpack.c.l.b16 %v1594
        %v1627 = vunpack.c.l.b16 %v1595
        %v1628 = vunpack.c.l.b16 %v1596
        %v1629 = vunpack.c.l.b16 %v1597
        %v1630 = vunpack.c.l.b16 %v1598
        %v1631 = vunpack.c.l.b16 %v1599
        %v1632 = vunpack.c.l.b16 %v1600
        %v1633 = vunpack.c.l.b16 %v1601
        %v1634 = vunpack.c.l.b16 %v1602
        %v1635 = vunpack.c.l.b16 %v1603
        %v1636 = vunpack.c.l.b16 %v1604
        %v1637 = vunpack.c.l.b16 %v1605
        %v1638 = vpack.c.b16 %v1623, %v1622
        %v1639 = vpack.c.b16 %v1625, %v1624
        %v1640 = vpack.c.b16 %v1627, %v1626
        %v1641 = vpack.c.b16 %v1629, %v1628
        %v1642 = vpack.c.b16 %v1631, %v1630
        %v1643 = vpack.c.b16 %v1633, %v1632
        %v1644 = vpack.c.b16 %v1635, %v1634
        %v1645 = vpack.c.b16 %v1637, %v1636
        %1654 = vmatprep.subr.bf16.mxu0 0
        %1655 = vmatpush1.bf16.msra.mxu0 %v1638
        %1656 = vmatprep.subr.bf16.mxu0 0
        %1657 = vmatpush1.bf16.msra.mxu0 %v1639
        %1658 = vmatprep.subr.bf16.mxu0 0
        %1659 = vmatpush1.bf16.msra.mxu0 %v1640
        %1660 = vmatprep.subr.bf16.mxu0 0
        %1661 = vmatpush1.bf16.msra.mxu0 %v1641
        %1662 = vmatprep.subr.bf16.mxu0 0
        %1663 = vmatpush1.bf16.msra.mxu0 %v1642
        %1664 = vmatprep.subr.bf16.mxu0 0
        %1665 = vmatpush1.bf16.msra.mxu0 %v1643
        %1666 = vmatprep.subr.bf16.mxu0 0
        %1667 = vmatpush1.bf16.msra.mxu0 %v1644
        %1668 = vmatprep.subr.bf16.mxu0 0
        %1669 = vmatpush1.bf16.msra.mxu0 %v1645
        %1670 = vmatprep.subr.bf16.mxu0 0
        %1671 = vmatpush1.bf16.msra.mxu0 0
        %1672 = vmatprep.subr.bf16.mxu0 0
        %1673 = vmatpush1.bf16.msra.mxu0 0
        %1674 = vmatprep.subr.bf16.mxu0 0
        %1675 = vmatpush1.bf16.msra.mxu0 0
        %1676 = vmatprep.subr.bf16.mxu0 0
        %1677 = vmatpush1.bf16.msra.mxu0 0
        %1678 = vmatprep.subr.bf16.mxu0 0
        %1679 = vmatpush1.bf16.msra.mxu0 0
        %1680 = vmatprep.subr.bf16.mxu0 0
        %1681 = vmatpush1.bf16.msra.mxu0 0
        %1682 = vmatprep.subr.bf16.mxu0 0
        %1683 = vmatpush1.bf16.msra.mxu0 0
        %1684 = vmatprep.subr.bf16.mxu0 0
        %1685 = vmatpush1.bf16.msra.mxu0 0
        %1686 = vmatprep.mubr.bf16.mxu0 0
        %1687 = vmatmul.mubr.bf16.gmra.mrb[0].mxu0 %v1581
        %v1688 = vpop.f32.mrb[0].mxu0
        %v1689 = vadd.f32 0.0, %v1688
        %v1690 = vpop.f32.mrb[0].mxu0
        %v1691 = vpop.f32.mrb[0].mxu0
        %v1692 = vadd.f32 0.0, %v1691
        %v1693 = vpop.f32.mrb[0].mxu0
        %1694 = vmatprep.mubr.bf16.mxu0 0
        %1695 = vmatmul.mubr.bf16.gmra.mrb[0].mxu0 %v1582
        %v1696 = vpop.f32.mrb[0].mxu0
        %v1697 = vadd.f32 0.0, %v1696
        %v1698 = vpop.f32.mrb[0].mxu0
        %v1699 = vpop.f32.mrb[0].mxu0
        %v1700 = vadd.f32 0.0, %v1699
        %v1701 = vpop.f32.mrb[0].mxu0
        %1702 = vmatprep.mubr.bf16.mxu0 0
        %1703 = vmatmul.mubr.bf16.gmra.mrb[0].mxu0 %v1583
        %v1704 = vpop.f32.mrb[0].mxu0
        %v1705 = vadd.f32 0.0, %v1704
        %v1706 = vpop.f32.mrb[0].mxu0
        %v1707 = vpop.f32.mrb[0].mxu0
        %v1708 = vadd.f32 0.0, %v1707
        %v1709 = vpop.f32.mrb[0].mxu0
        %1710 = vmatprep.mubr.bf16.mxu0 0
        %1711 = vmatmul.mubr.bf16.gmra.mrb[0].mxu0 %v1584
        %v1712 = vpop.f32.mrb[0].mxu0
        %v1713 = vadd.f32 0.0, %v1712
        %v1714 = vpop.f32.mrb[0].mxu0
        %v1715 = vpop.f32.mrb[0].mxu0
        %v1716 = vadd.f32 0.0, %v1715
        %v1717 = vpop.f32.mrb[0].mxu0
        %1718 = vmatprep.mubr.bf16.mxu0 0
        %1719 = vmatmul.mubr.bf16.gmra.mrb[0].mxu0 %v1585
        %v1720 = vpop.f32.mrb[0].mxu0
        %v1721 = vadd.f32 0.0, %v1720
        %v1722 = vpop.f32.mrb[0].mxu0
        %v1723 = vpop.f32.mrb[0].mxu0
        %v1724 = vadd.f32 0.0, %v1723
        %v1725 = vpop.f32.mrb[0].mxu0
        %1726 = vmatprep.mubr.bf16.mxu0 0
        %1727 = vmatmul.mubr.bf16.gmra.mrb[0].mxu0 %v1586
        %v1728 = vpop.f32.mrb[0].mxu0
        %v1729 = vadd.f32 0.0, %v1728
        %v1730 = vpop.f32.mrb[0].mxu0
        %v1731 = vpop.f32.mrb[0].mxu0
        %v1732 = vadd.f32 0.0, %v1731
        %v1733 = vpop.f32.mrb[0].mxu0
        %1734 = vmatprep.mubr.bf16.mxu0 0
        %1735 = vmatmul.mubr.bf16.gmra.mrb[0].mxu0 %v1587
        %v1736 = vpop.f32.mrb[0].mxu0
        %v1737 = vadd.f32 0.0, %v1736
        %v1738 = vpop.f32.mrb[0].mxu0
        %v1739 = vpop.f32.mrb[0].mxu0
        %v1740 = vadd.f32 0.0, %v1739
        %v1741 = vpop.f32.mrb[0].mxu0
        %1742 = vmatprep.mubr.bf16.mxu0 0
        %1743 = vmatmul.mubr.bf16.gmra.mrb[0].mxu0 %v1588
        %v1744 = vpop.f32.mrb[0].mxu0
        %v1745 = vadd.f32 0.0, %v1744
        %v1746 = vpop.f32.mrb[0].mxu0
        %v1747 = vpop.f32.mrb[0].mxu0
        %v1748 = vadd.f32 0.0, %v1747
        %v1749 = vpop.f32.mrb[0].mxu0
        %1750 = vdwg.mxu0
        %v1751 = vadd.f32 %v1547, %v1689
        %v1752 = vadd.f32 %v1548, %v1692
        %v1753 = vadd.f32 %v1549, %v1697
        %v1754 = vadd.f32 %v1550, %v1700
        %v1755 = vadd.f32 %v1551, %v1705
        %v1756 = vadd.f32 %v1552, %v1708
        %v1757 = vadd.f32 %v1553, %v1713
        %v1758 = vadd.f32 %v1554, %v1716
        %v1759 = vadd.f32 %v1555, %v1721
        %v1760 = vadd.f32 %v1556, %v1724
        %v1761 = vadd.f32 %v1557, %v1729
        %v1762 = vadd.f32 %v1558, %v1732
        %v1763 = vadd.f32 %v1559, %v1737
        %v1764 = vadd.f32 %v1560, %v1740
        %v1765 = vadd.f32 %v1561, %v1745
        %v1766 = vadd.f32 %v1562, %v1748
        %s1767 = sadd.s32 %s371, 296
        %s1768 = scalar_lea.vmem [#allocation2], %s1767
        %v1769 = vld [vmem:[%s1768] sm:$0xff]
        %v1770 = vld [vmem:[%s1768 + $0x8] sm:$0xff]
        %v1771 = vld [vmem:[%s1768 + $0x10] sm:$0xff]
        %v1772 = vld [vmem:[%s1768 + $0x18] sm:$0xff]
        %v1773 = vld [vmem:[%s1768 + $0x20] sm:$0xff]
        %v1774 = vld [vmem:[%s1768 + $0x28] sm:$0xff]
        %v1775 = vld [vmem:[%s1768 + $0x30] sm:$0xff]
        %v1776 = vld [vmem:[%s1768 + $0x38] sm:$0xff]
        %v1777 = vld [vmem:[%s1768 + $0x40] sm:$0xff]
        %v1778 = vld [vmem:[%s1768 + $0x48] sm:$0xff]
        %v1779 = vld [vmem:[%s1768 + $0x50] sm:$0xff]
        %v1780 = vld [vmem:[%s1768 + $0x58] sm:$0xff]
        %v1781 = vld [vmem:[%s1768 + $0x60] sm:$0xff]
        %v1782 = vld [vmem:[%s1768 + $0x68] sm:$0xff]
        %v1783 = vld [vmem:[%s1768 + $0x70] sm:$0xff]
        %v1784 = vld [vmem:[%s1768 + $0x78] sm:$0xff]
        %v1785 = vpack.c.bf16 %v1770, %v1769
        %v1786 = vpack.c.bf16 %v1772, %v1771
        %v1787 = vpack.c.bf16 %v1774, %v1773
        %v1788 = vpack.c.bf16 %v1776, %v1775
        %v1789 = vpack.c.bf16 %v1778, %v1777
        %v1790 = vpack.c.bf16 %v1780, %v1779
        %v1791 = vpack.c.bf16 %v1782, %v1781
        %v1792 = vpack.c.bf16 %v1784, %v1783
        %s1793 = scalar_lea.vmem %s1, 448
        %v1794 = vld [vmem:[%s1793] sm:$0xf]
        %v1795 = vld [vmem:[%s1793 + $0x4] sm:$0xf]
        %v1796 = vld [vmem:[%s1793 + $0x8] sm:$0xf]
        %v1797 = vld [vmem:[%s1793 + $0xc] sm:$0xf]
        %v1798 = vld [vmem:[%s1793 + $0x10] sm:$0xf]
        %v1799 = vld [vmem:[%s1793 + $0x14] sm:$0xf]
        %v1800 = vld [vmem:[%s1793 + $0x18] sm:$0xf]
        %v1801 = vld [vmem:[%s1793 + $0x1c] sm:$0xf]
        %v1802 = vld [vmem:[%s1793 + $0x20] sm:$0xf]
        %v1803 = vld [vmem:[%s1793 + $0x24] sm:$0xf]
        %v1804 = vld [vmem:[%s1793 + $0x28] sm:$0xf]
        %v1805 = vld [vmem:[%s1793 + $0x2c] sm:$0xf]
        %v1806 = vld [vmem:[%s1793 + $0x30] sm:$0xf]
        %v1807 = vld [vmem:[%s1793 + $0x34] sm:$0xf]
        %v1808 = vld [vmem:[%s1793 + $0x38] sm:$0xf]
        %v1809 = vld [vmem:[%s1793 + $0x3c] sm:$0xf]
        %v1826 = vunpack.c.l.b16 %v1794
        %v1827 = vunpack.c.l.b16 %v1795
        %v1828 = vunpack.c.l.b16 %v1796
        %v1829 = vunpack.c.l.b16 %v1797
        %v1830 = vunpack.c.l.b16 %v1798
        %v1831 = vunpack.c.l.b16 %v1799
        %v1832 = vunpack.c.l.b16 %v1800
        %v1833 = vunpack.c.l.b16 %v1801
        %v1834 = vunpack.c.l.b16 %v1802
        %v1835 = vunpack.c.l.b16 %v1803
        %v1836 = vunpack.c.l.b16 %v1804
        %v1837 = vunpack.c.l.b16 %v1805
        %v1838 = vunpack.c.l.b16 %v1806
        %v1839 = vunpack.c.l.b16 %v1807
        %v1840 = vunpack.c.l.b16 %v1808
        %v1841 = vunpack.c.l.b16 %v1809
        %v1842 = vpack.c.b16 %v1827, %v1826
        %v1843 = vpack.c.b16 %v1829, %v1828
        %v1844 = vpack.c.b16 %v1831, %v1830
        %v1845 = vpack.c.b16 %v1833, %v1832
        %v1846 = vpack.c.b16 %v1835, %v1834
        %v1847 = vpack.c.b16 %v1837, %v1836
        %v1848 = vpack.c.b16 %v1839, %v1838
        %v1849 = vpack.c.b16 %v1841, %v1840
        %1858 = vmatprep.subr.bf16.mxu0 0
        %1859 = vmatpush1.bf16.msra.mxu0 %v1842
        %1860 = vmatprep.subr.bf16.mxu0 0
        %1861 = vmatpush1.bf16.msra.mxu0 %v1843
        %1862 = vmatprep.subr.bf16.mxu0 0
        %1863 = vmatpush1.bf16.msra.mxu0 %v1844
        %1864 = vmatprep.subr.bf16.mxu0 0
        %1865 = vmatpush1.bf16.msra.mxu0 %v1845
        %1866 = vmatprep.subr.bf16.mxu0 0
        %1867 = vmatpush1.bf16.msra.mxu0 %v1846
        %1868 = vmatprep.subr.bf16.mxu0 0
        %1869 = vmatpush1.bf16.msra.mxu0 %v1847
        %1870 = vmatprep.subr.bf16.mxu0 0
        %1871 = vmatpush1.bf16.msra.mxu0 %v1848
        %1872 = vmatprep.subr.bf16.mxu0 0
        %1873 = vmatpush1.bf16.msra.mxu0 %v1849
        %1874 = vmatprep.subr.bf16.mxu0 0
        %1875 = vmatpush1.bf16.msra.mxu0 0
        %1876 = vmatprep.subr.bf16.mxu0 0
        %1877 = vmatpush1.bf16.msra.mxu0 0
        %1878 = vmatprep.subr.bf16.mxu0 0
        %1879 = vmatpush1.bf16.msra.mxu0 0
        %1880 = vmatprep.subr.bf16.mxu0 0
        %1881 = vmatpush1.bf16.msra.mxu0 0
        %1882 = vmatprep.subr.bf16.mxu0 0
        %1883 = vmatpush1.bf16.msra.mxu0 0
        %1884 = vmatprep.subr.bf16.mxu0 0
        %1885 = vmatpush1.bf16.msra.mxu0 0
        %1886 = vmatprep.subr.bf16.mxu0 0
        %1887 = vmatpush1.bf16.msra.mxu0 0
        %1888 = vmatprep.subr.bf16.mxu0 0
        %1889 = vmatpush1.bf16.msra.mxu0 0
        %1890 = vmatprep.mubr.bf16.mxu0 0
        %1891 = vmatmul.mubr.bf16.gmra.mrb[0].mxu0 %v1785
        %v1892 = vpop.f32.mrb[0].mxu0
        %v1893 = vadd.f32 0.0, %v1892
        %v1894 = vpop.f32.mrb[0].mxu0
        %v1895 = vpop.f32.mrb[0].mxu0
        %v1896 = vadd.f32 0.0, %v1895
        %v1897 = vpop.f32.mrb[0].mxu0
        %1898 = vmatprep.mubr.bf16.mxu0 0
        %1899 = vmatmul.mubr.bf16.gmra.mrb[0].mxu0 %v1786
        %v1900 = vpop.f32.mrb[0].mxu0
        %v1901 = vadd.f32 0.0, %v1900
        %v1902 = vpop.f32.mrb[0].mxu0
        %v1903 = vpop.f32.mrb[0].mxu0
        %v1904 = vadd.f32 0.0, %v1903
        %v1905 = vpop.f32.mrb[0].mxu0
        %1906 = vmatprep.mubr.bf16.mxu0 0
        %1907 = vmatmul.mubr.bf16.gmra.mrb[0].mxu0 %v1787
        %v1908 = vpop.f32.mrb[0].mxu0
        %v1909 = vadd.f32 0.0, %v1908
        %v1910 = vpop.f32.mrb[0].mxu0
        %v1911 = vpop.f32.mrb[0].mxu0
        %v1912 = vadd.f32 0.0, %v1911
        %v1913 = vpop.f32.mrb[0].mxu0
        %1914 = vmatprep.mubr.bf16.mxu0 0
        %1915 = vmatmul.mubr.bf16.gmra.mrb[0].mxu0 %v1788
        %v1916 = vpop.f32.mrb[0].mxu0
        %v1917 = vadd.f32 0.0, %v1916
        %v1918 = vpop.f32.mrb[0].mxu0
        %v1919 = vpop.f32.mrb[0].mxu0
        %v1920 = vadd.f32 0.0, %v1919
        %v1921 = vpop.f32.mrb[0].mxu0
        %1922 = vmatprep.mubr.bf16.mxu0 0
        %1923 = vmatmul.mubr.bf16.gmra.mrb[0].mxu0 %v1789
        %v1924 = vpop.f32.mrb[0].mxu0
        %v1925 = vadd.f32 0.0, %v1924
        %v1926 = vpop.f32.mrb[0].mxu0
        %v1927 = vpop.f32.mrb[0].mxu0
        %v1928 = vadd.f32 0.0, %v1927
        %v1929 = vpop.f32.mrb[0].mxu0
        %1930 = vmatprep.mubr.bf16.mxu0 0
        %1931 = vmatmul.mubr.bf16.gmra.mrb[0].mxu0 %v1790
        %v1932 = vpop.f32.mrb[0].mxu0
        %v1933 = vadd.f32 0.0, %v1932
        %v1934 = vpop.f32.mrb[0].mxu0
        %v1935 = vpop.f32.mrb[0].mxu0
        %v1936 = vadd.f32 0.0, %v1935
        %v1937 = vpop.f32.mrb[0].mxu0
        %1938 = vmatprep.mubr.bf16.mxu0 0
        %1939 = vmatmul.mubr.bf16.gmra.mrb[0].mxu0 %v1791
        %v1940 = vpop.f32.mrb[0].mxu0
        %v1941 = vadd.f32 0.0, %v1940
        %v1942 = vpop.f32.mrb[0].mxu0
        %v1943 = vpop.f32.mrb[0].mxu0
        %v1944 = vadd.f32 0.0, %v1943
        %v1945 = vpop.f32.mrb[0].mxu0
        %1946 = vmatprep.mubr.bf16.mxu0 0
        %1947 = vmatmul.mubr.bf16.gmra.mrb[0].mxu0 %v1792
        %v1948 = vpop.f32.mrb[0].mxu0
        %v1949 = vadd.f32 0.0, %v1948
        %v1950 = vpop.f32.mrb[0].mxu0
        %v1951 = vpop.f32.mrb[0].mxu0
        %v1952 = vadd.f32 0.0, %v1951
        %v1953 = vpop.f32.mrb[0].mxu0
        %1954 = vdwg.mxu0
        %v1955 = vadd.f32 %v1751, %v1893
        %v1956 = vadd.f32 %v1752, %v1896
        %v1957 = vadd.f32 %v1753, %v1901
        %v1958 = vadd.f32 %v1754, %v1904
        %v1959 = vadd.f32 %v1755, %v1909
        %v1960 = vadd.f32 %v1756, %v1912
        %v1961 = vadd.f32 %v1757, %v1917
        %v1962 = vadd.f32 %v1758, %v1920
        %v1963 = vadd.f32 %v1759, %v1925
        %v1964 = vadd.f32 %v1760, %v1928
        %v1965 = vadd.f32 %v1761, %v1933
        %v1966 = vadd.f32 %v1762, %v1936
        %v1967 = vadd.f32 %v1763, %v1941
        %v1968 = vadd.f32 %v1764, %v1944
        %v1969 = vadd.f32 %v1765, %v1949
        %v1970 = vadd.f32 %v1766, %v1952
        %s1971 = sadd.s32 %s371, 297
        %s1972 = scalar_lea.vmem [#allocation2], %s1971
        %v1973 = vld [vmem:[%s1972] sm:$0xff]
        %v1974 = vld [vmem:[%s1972 + $0x8] sm:$0xff]
        %v1975 = vld [vmem:[%s1972 + $0x10] sm:$0xff]
        %v1976 = vld [vmem:[%s1972 + $0x18] sm:$0xff]
        %v1977 = vld [vmem:[%s1972 + $0x20] sm:$0xff]
        %v1978 = vld [vmem:[%s1972 + $0x28] sm:$0xff]
        %v1979 = vld [vmem:[%s1972 + $0x30] sm:$0xff]
        %v1980 = vld [vmem:[%s1972 + $0x38] sm:$0xff]
        %v1981 = vld [vmem:[%s1972 + $0x40] sm:$0xff]
        %v1982 = vld [vmem:[%s1972 + $0x48] sm:$0xff]
        %v1983 = vld [vmem:[%s1972 + $0x50] sm:$0xff]
        %v1984 = vld [vmem:[%s1972 + $0x58] sm:$0xff]
        %v1985 = vld [vmem:[%s1972 + $0x60] sm:$0xff]
        %v1986 = vld [vmem:[%s1972 + $0x68] sm:$0xff]
        %v1987 = vld [vmem:[%s1972 + $0x70] sm:$0xff]
        %v1988 = vld [vmem:[%s1972 + $0x78] sm:$0xff]
        %v1989 = vpack.c.bf16 %v1974, %v1973
        %v1990 = vpack.c.bf16 %v1976, %v1975
        %v1991 = vpack.c.bf16 %v1978, %v1977
        %v1992 = vpack.c.bf16 %v1980, %v1979
        %v1993 = vpack.c.bf16 %v1982, %v1981
        %v1994 = vpack.c.bf16 %v1984, %v1983
        %v1995 = vpack.c.bf16 %v1986, %v1985
        %v1996 = vpack.c.bf16 %v1988, %v1987
        %s1997 = scalar_lea.vmem %s1, 512
        %v1998 = vld [vmem:[%s1997] sm:$0xf]
        %v1999 = vld [vmem:[%s1997 + $0x4] sm:$0xf]
        %v2000 = vld [vmem:[%s1997 + $0x8] sm:$0xf]
        %v2001 = vld [vmem:[%s1997 + $0xc] sm:$0xf]
        %v2002 = vld [vmem:[%s1997 + $0x10] sm:$0xf]
        %v2003 = vld [vmem:[%s1997 + $0x14] sm:$0xf]
        %v2004 = vld [vmem:[%s1997 + $0x18] sm:$0xf]
        %v2005 = vld [vmem:[%s1997 + $0x1c] sm:$0xf]
        %v2006 = vld [vmem:[%s1997 + $0x20] sm:$0xf]
        %v2007 = vld [vmem:[%s1997 + $0x24] sm:$0xf]
        %v2008 = vld [vmem:[%s1997 + $0x28] sm:$0xf]
        %v2009 = vld [vmem:[%s1997 + $0x2c] sm:$0xf]
        %v2010 = vld [vmem:[%s1997 + $0x30] sm:$0xf]
        %v2011 = vld [vmem:[%s1997 + $0x34] sm:$0xf]
        %v2012 = vld [vmem:[%s1997 + $0x38] sm:$0xf]
        %v2013 = vld [vmem:[%s1997 + $0x3c] sm:$0xf]
        %v2030 = vunpack.c.l.b16 %v1998
        %v2031 = vunpack.c.l.b16 %v1999
        %v2032 = vunpack.c.l.b16 %v2000
        %v2033 = vunpack.c.l.b16 %v2001
        %v2034 = vunpack.c.l.b16 %v2002
        %v2035 = vunpack.c.l.b16 %v2003
        %v2036 = vunpack.c.l.b16 %v2004
        %v2037 = vunpack.c.l.b16 %v2005
        %v2038 = vunpack.c.l.b16 %v2006
        %v2039 = vunpack.c.l.b16 %v2007
        %v2040 = vunpack.c.l.b16 %v2008
        %v2041 = vunpack.c.l.b16 %v2009
        %v2042 = vunpack.c.l.b16 %v2010
        %v2043 = vunpack.c.l.b16 %v2011
        %v2044 = vunpack.c.l.b16 %v2012
        %v2045 = vunpack.c.l.b16 %v2013
        %v2046 = vpack.c.b16 %v2031, %v2030
        %v2047 = vpack.c.b16 %v2033, %v2032
        %v2048 = vpack.c.b16 %v2035, %v2034
        %v2049 = vpack.c.b16 %v2037, %v2036
        %v2050 = vpack.c.b16 %v2039, %v2038
        %v2051 = vpack.c.b16 %v2041, %v2040
        %v2052 = vpack.c.b16 %v2043, %v2042
        %v2053 = vpack.c.b16 %v2045, %v2044
        %2062 = vmatprep.subr.bf16.mxu0 0
        %2063 = vmatpush1.bf16.msra.mxu0 %v2046
        %2064 = vmatprep.subr.bf16.mxu0 0
        %2065 = vmatpush1.bf16.msra.mxu0 %v2047
        %2066 = vmatprep.subr.bf16.mxu0 0
        %2067 = vmatpush1.bf16.msra.mxu0 %v2048
        %2068 = vmatprep.subr.bf16.mxu0 0
        %2069 = vmatpush1.bf16.msra.mxu0 %v2049
        %2070 = vmatprep.subr.bf16.mxu0 0
        %2071 = vmatpush1.bf16.msra.mxu0 %v2050
        %2072 = vmatprep.subr.bf16.mxu0 0
        %2073 = vmatpush1.bf16.msra.mxu0 %v2051
        %2074 = vmatprep.subr.bf16.mxu0 0
        %2075 = vmatpush1.bf16.msra.mxu0 %v2052
        %2076 = vmatprep.subr.bf16.mxu0 0
        %2077 = vmatpush1.bf16.msra.mxu0 %v2053
        %2078 = vmatprep.subr.bf16.mxu0 0
        %2079 = vmatpush1.bf16.msra.mxu0 0
        %2080 = vmatprep.subr.bf16.mxu0 0
        %2081 = vmatpush1.bf16.msra.mxu0 0
        %2082 = vmatprep.subr.bf16.mxu0 0
        %2083 = vmatpush1.bf16.msra.mxu0 0
        %2084 = vmatprep.subr.bf16.mxu0 0
        %2085 = vmatpush1.bf16.msra.mxu0 0
        %2086 = vmatprep.subr.bf16.mxu0 0
        %2087 = vmatpush1.bf16.msra.mxu0 0
        %2088 = vmatprep.subr.bf16.mxu0 0
        %2089 = vmatpush1.bf16.msra.mxu0 0
        %2090 = vmatprep.subr.bf16.mxu0 0
        %2091 = vmatpush1.bf16.msra.mxu0 0
        %2092 = vmatprep.subr.bf16.mxu0 0
        %2093 = vmatpush1.bf16.msra.mxu0 0
        %2094 = vmatprep.mubr.bf16.mxu0 0
        %2095 = vmatmul.mubr.bf16.gmra.mrb[0].mxu0 %v1989
        %v2096 = vpop.f32.mrb[0].mxu0
        %v2097 = vadd.f32 0.0, %v2096
        %v2098 = vpop.f32.mrb[0].mxu0
        %v2099 = vpop.f32.mrb[0].mxu0
        %v2100 = vadd.f32 0.0, %v2099
        %v2101 = vpop.f32.mrb[0].mxu0
        %2102 = vmatprep.mubr.bf16.mxu0 0
        %2103 = vmatmul.mubr.bf16.gmra.mrb[0].mxu0 %v1990
        %v2104 = vpop.f32.mrb[0].mxu0
        %v2105 = vadd.f32 0.0, %v2104
        %v2106 = vpop.f32.mrb[0].mxu0
        %v2107 = vpop.f32.mrb[0].mxu0
        %v2108 = vadd.f32 0.0, %v2107
        %v2109 = vpop.f32.mrb[0].mxu0
        %2110 = vmatprep.mubr.bf16.mxu0 0
        %2111 = vmatmul.mubr.bf16.gmra.mrb[0].mxu0 %v1991
        %v2112 = vpop.f32.mrb[0].mxu0
        %v2113 = vadd.f32 0.0, %v2112
        %v2114 = vpop.f32.mrb[0].mxu0
        %v2115 = vpop.f32.mrb[0].mxu0
        %v2116 = vadd.f32 0.0, %v2115
        %v2117 = vpop.f32.mrb[0].mxu0
        %2118 = vmatprep.mubr.bf16.mxu0 0
        %2119 = vmatmul.mubr.bf16.gmra.mrb[0].mxu0 %v1992
        %v2120 = vpop.f32.mrb[0].mxu0
        %v2121 = vadd.f32 0.0, %v2120
        %v2122 = vpop.f32.mrb[0].mxu0
        %v2123 = vpop.f32.mrb[0].mxu0
        %v2124 = vadd.f32 0.0, %v2123
        %v2125 = vpop.f32.mrb[0].mxu0
        %2126 = vmatprep.mubr.bf16.mxu0 0
        %2127 = vmatmul.mubr.bf16.gmra.mrb[0].mxu0 %v1993
        %v2128 = vpop.f32.mrb[0].mxu0
        %v2129 = vadd.f32 0.0, %v2128
        %v2130 = vpop.f32.mrb[0].mxu0
        %v2131 = vpop.f32.mrb[0].mxu0
        %v2132 = vadd.f32 0.0, %v2131
        %v2133 = vpop.f32.mrb[0].mxu0
        %2134 = vmatprep.mubr.bf16.mxu0 0
        %2135 = vmatmul.mubr.bf16.gmra.mrb[0].mxu0 %v1994
        %v2136 = vpop.f32.mrb[0].mxu0
        %v2137 = vadd.f32 0.0, %v2136
        %v2138 = vpop.f32.mrb[0].mxu0
        %v2139 = vpop.f32.mrb[0].mxu0
        %v2140 = vadd.f32 0.0, %v2139
        %v2141 = vpop.f32.mrb[0].mxu0
        %2142 = vmatprep.mubr.bf16.mxu0 0
        %2143 = vmatmul.mubr.bf16.gmra.mrb[0].mxu0 %v1995
        %v2144 = vpop.f32.mrb[0].mxu0
        %v2145 = vadd.f32 0.0, %v2144
        %v2146 = vpop.f32.mrb[0].mxu0
        %v2147 = vpop.f32.mrb[0].mxu0
        %v2148 = vadd.f32 0.0, %v2147
        %v2149 = vpop.f32.mrb[0].mxu0
        %2150 = vmatprep.mubr.bf16.mxu0 0
        %2151 = vmatmul.mubr.bf16.gmra.mrb[0].mxu0 %v1996
        %v2152 = vpop.f32.mrb[0].mxu0
        %v2153 = vadd.f32 0.0, %v2152
        %v2154 = vpop.f32.mrb[0].mxu0
        %v2155 = vpop.f32.mrb[0].mxu0
        %v2156 = vadd.f32 0.0, %v2155
        %v2157 = vpop.f32.mrb[0].mxu0
        %2158 = vdwg.mxu0
        %v2159 = vadd.f32 %v1955, %v2097
        %v2160 = vadd.f32 %v1956, %v2100
        %v2161 = vadd.f32 %v1957, %v2105
        %v2162 = vadd.f32 %v1958, %v2108
        %v2163 = vadd.f32 %v1959, %v2113
        %v2164 = vadd.f32 %v1960, %v2116
        %v2165 = vadd.f32 %v1961, %v2121
        %v2166 = vadd.f32 %v1962, %v2124
        %v2167 = vadd.f32 %v1963, %v2129
        %v2168 = vadd.f32 %v1964, %v2132
        %v2169 = vadd.f32 %v1965, %v2137
        %v2170 = vadd.f32 %v1966, %v2140
        %v2171 = vadd.f32 %v1967, %v2145
        %v2172 = vadd.f32 %v1968, %v2148
        %v2173 = vadd.f32 %v1969, %v2153
        %v2174 = vadd.f32 %v1970, %v2156
        %v2176 = vlaneseq
        %v2177 = vshrl.u32 %v2176, 7
        %v2178 = vsub.s32 0, %v2177
        %v2179 = vrot.slane %v363, %v2178
        %v2181 = vmul.f32 %v2159, %v2179
        %v2182 = vmul.f32 %v2160, %v2179
        %v2183 = vmul.f32 %v2161, %v2179
        %v2184 = vmul.f32 %v2162, %v2179
        %v2185 = vmul.f32 %v2163, %v2179
        %v2186 = vmul.f32 %v2164, %v2179
        %v2187 = vmul.f32 %v2165, %v2179
        %v2188 = vmul.f32 %v2166, %v2179
        %v2189 = vmul.f32 %v2167, %v2179
        %v2190 = vmul.f32 %v2168, %v2179
        %v2191 = vmul.f32 %v2169, %v2179
        %v2192 = vmul.f32 %v2170, %v2179
        %v2193 = vmul.f32 %v2171, %v2179
        %v2194 = vmul.f32 %v2172, %v2179
        %v2195 = vmul.f32 %v2173, %v2179
        %v2196 = vmul.f32 %v2174, %v2179
        %v2198 = vlaneseq
        %v2199 = vshrl.u32 %v2198, 7
        %v2200 = vsub.s32 0, %v2199
        %v2201 = vrot.slane %v364, %v2200
        %v2203 = vadd.f32 %v2181, %v2201
        %v2204 = vadd.f32 %v2182, %v2201
        %v2205 = vadd.f32 %v2183, %v2201
        %v2206 = vadd.f32 %v2184, %v2201
        %v2207 = vadd.f32 %v2185, %v2201
        %v2208 = vadd.f32 %v2186, %v2201
        %v2209 = vadd.f32 %v2187, %v2201
        %v2210 = vadd.f32 %v2188, %v2201
        %v2211 = vadd.f32 %v2189, %v2201
        %v2212 = vadd.f32 %v2190, %v2201
        %v2213 = vadd.f32 %v2191, %v2201
        %v2214 = vadd.f32 %v2192, %v2201
        %v2215 = vadd.f32 %v2193, %v2201
        %v2216 = vadd.f32 %v2194, %v2201
        %v2217 = vadd.f32 %v2195, %v2201
        %v2218 = vadd.f32 %v2196, %v2201
        %v2219 = vmax.f32 %v2203, 0.0
        %v2220 = vmax.f32 %v2204, 0.0
        %v2221 = vmax.f32 %v2205, 0.0
        %v2222 = vmax.f32 %v2206, 0.0
        %v2223 = vmax.f32 %v2207, 0.0
        %v2224 = vmax.f32 %v2208, 0.0
        %v2225 = vmax.f32 %v2209, 0.0
        %v2226 = vmax.f32 %v2210, 0.0
        %v2227 = vmax.f32 %v2211, 0.0
        %v2228 = vmax.f32 %v2212, 0.0
        %v2229 = vmax.f32 %v2213, 0.0
        %v2230 = vmax.f32 %v2214, 0.0
        %v2231 = vmax.f32 %v2215, 0.0
        %v2232 = vmax.f32 %v2216, 0.0
        %v2233 = vmax.f32 %v2217, 0.0
        %v2234 = vmax.f32 %v2218, 0.0
        %s2235 = scalar_lea.vmem [#allocation3], %s372
        %2236 = vst [vmem:[%s2235] sm:$0xff] %v2219
        %2237 = vst [vmem:[%s2235 + $0x8] sm:$0xff] %v2220
        %2238 = vst [vmem:[%s2235 + $0x10] sm:$0xff] %v2221
        %2239 = vst [vmem:[%s2235 + $0x18] sm:$0xff] %v2222
        %2240 = vst [vmem:[%s2235 + $0x20] sm:$0xff] %v2223
        %2241 = vst [vmem:[%s2235 + $0x28] sm:$0xff] %v2224
        %2242 = vst [vmem:[%s2235 + $0x30] sm:$0xff] %v2225
        %2243 = vst [vmem:[%s2235 + $0x38] sm:$0xff] %v2226
        %2244 = vst [vmem:[%s2235 + $0x40] sm:$0xff] %v2227
        %2245 = vst [vmem:[%s2235 + $0x48] sm:$0xff] %v2228
        %2246 = vst [vmem:[%s2235 + $0x50] sm:$0xff] %v2229
        %2247 = vst [vmem:[%s2235 + $0x58] sm:$0xff] %v2230
        %2248 = vst [vmem:[%s2235 + $0x60] sm:$0xff] %v2231
        %2249 = vst [vmem:[%s2235 + $0x68] sm:$0xff] %v2232
        %2250 = vst [vmem:[%s2235 + $0x70] sm:$0xff] %v2233
        %2251 = vst [vmem:[%s2235 + $0x78] sm:$0xff] %v2234
      $region52: #{conv4_forward.1} parent=39 // loop_footer
        %s370 = sadd.s32 1, %s366
      $region53: #{conv4_forward.1} parent=39 // loop_footer_branch
        %365 = sbr.rel target = $region49
      $region54: #{conv4_forward.1} parent=39 // loop_exit
        _
      loop: start=0, step=1, limit=8
      $region55: #{conv4_forward.1} parent=39 // loop_pre_header
        _
      $region56: #{conv4_forward.1} parent=39 // loop_header
        %s2253 = sphi 0, %s2257
        %p2254 = scmp.ge.s32.totalorder %s2253, 8
      $region57: #{conv4_forward.1} parent=39 // loop_header_branch
        %2256 = sbr.rel (%p2254) target = $region61
      $region58: #{conv4_forward.1} parent=39 // loop_body
        %s2258 = smul.u32 %s2253, 128
        %s2259 = sadd.s32 %s2258, 264
        %s2260 = scalar_lea.vmem [#allocation3], %s2259
        %v2261 = vld [vmem:[%s2260] sm:$0xff]
        %v2262 = vld [vmem:[%s2260 + $0x8] sm:$0xff]
        %v2263 = vld [vmem:[%s2260 + $0x10] sm:$0xff]
        %v2264 = vld [vmem:[%s2260 + $0x18] sm:$0xff]
        %v2265 = vld [vmem:[%s2260 + $0x20] sm:$0xff]
        %v2266 = vld [vmem:[%s2260 + $0x28] sm:$0xff]
        %v2267 = vld [vmem:[%s2260 + $0x30] sm:$0xff]
        %v2268 = vld [vmem:[%s2260 + $0x38] sm:$0xff]
        %v2269 = vld [vmem:[%s2260 + $0x40] sm:$0xff]
        %v2270 = vld [vmem:[%s2260 + $0x48] sm:$0xff]
        %v2271 = vld [vmem:[%s2260 + $0x50] sm:$0xff]
        %v2272 = vld [vmem:[%s2260 + $0x58] sm:$0xff]
        %v2273 = vld [vmem:[%s2260 + $0x60] sm:$0xff]
        %v2274 = vld [vmem:[%s2260 + $0x68] sm:$0xff]
        %v2275 = vld [vmem:[%s2260 + $0x70] sm:$0xff]
        %v2276 = vld [vmem:[%s2260 + $0x78] sm:$0xff]
        %s2277 = sadd.s32 %s2258, 265
        %s2278 = scalar_lea.vmem [#allocation3], %s2277
        %v2279 = vld [vmem:[%s2278] sm:$0xff]
        %v2280 = vld [vmem:[%s2278 + $0x8] sm:$0xff]
        %v2281 = vld [vmem:[%s2278 + $0x10] sm:$0xff]
        %v2282 = vld [vmem:[%s2278 + $0x18] sm:$0xff]
        %v2283 = vld [vmem:[%s2278 + $0x20] sm:$0xff]
        %v2284 = vld [vmem:[%s2278 + $0x28] sm:$0xff]
        %v2285 = vld [vmem:[%s2278 + $0x30] sm:$0xff]
        %v2286 = vld [vmem:[%s2278 + $0x38] sm:$0xff]
        %v2287 = vld [vmem:[%s2278 + $0x40] sm:$0xff]
        %v2288 = vld [vmem:[%s2278 + $0x48] sm:$0xff]
        %v2289 = vld [vmem:[%s2278 + $0x50] sm:$0xff]
        %v2290 = vld [vmem:[%s2278 + $0x58] sm:$0xff]
        %v2291 = vld [vmem:[%s2278 + $0x60] sm:$0xff]
        %v2292 = vld [vmem:[%s2278 + $0x68] sm:$0xff]
        %v2293 = vld [vmem:[%s2278 + $0x70] sm:$0xff]
        %v2294 = vld [vmem:[%s2278 + $0x78] sm:$0xff]
        %s2295 = sadd.s32 %s2258, 296
        %s2296 = scalar_lea.vmem [#allocation3], %s2295
        %v2297 = vld [vmem:[%s2296] sm:$0xff]
        %v2298 = vld [vmem:[%s2296 + $0x8] sm:$0xff]
        %v2299 = vld [vmem:[%s2296 + $0x10] sm:$0xff]
        %v2300 = vld [vmem:[%s2296 + $0x18] sm:$0xff]
        %v2301 = vld [vmem:[%s2296 + $0x20] sm:$0xff]
        %v2302 = vld [vmem:[%s2296 + $0x28] sm:$0xff]
        %v2303 = vld [vmem:[%s2296 + $0x30] sm:$0xff]
        %v2304 = vld [vmem:[%s2296 + $0x38] sm:$0xff]
        %v2305 = vld [vmem:[%s2296 + $0x40] sm:$0xff]
        %v2306 = vld [vmem:[%s2296 + $0x48] sm:$0xff]
        %v2307 = vld [vmem:[%s2296 + $0x50] sm:$0xff]
        %v2308 = vld [vmem:[%s2296 + $0x58] sm:$0xff]
        %v2309 = vld [vmem:[%s2296 + $0x60] sm:$0xff]
        %v2310 = vld [vmem:[%s2296 + $0x68] sm:$0xff]
        %v2311 = vld [vmem:[%s2296 + $0x70] sm:$0xff]
        %v2312 = vld [vmem:[%s2296 + $0x78] sm:$0xff]
        %s2313 = sadd.s32 %s2258, 297
        %s2314 = scalar_lea.vmem [#allocation3], %s2313
        %v2315 = vld [vmem:[%s2314] sm:$0xff]
        %v2316 = vld [vmem:[%s2314 + $0x8] sm:$0xff]
        %v2317 = vld [vmem:[%s2314 + $0x10] sm:$0xff]
        %v2318 = vld [vmem:[%s2314 + $0x18] sm:$0xff]
        %v2319 = vld [vmem:[%s2314 + $0x20] sm:$0xff]
        %v2320 = vld [vmem:[%s2314 + $0x28] sm:$0xff]
        %v2321 = vld [vmem:[%s2314 + $0x30] sm:$0xff]
        %v2322 = vld [vmem:[%s2314 + $0x38] sm:$0xff]
        %v2323 = vld [vmem:[%s2314 + $0x40] sm:$0xff]
        %v2324 = vld [vmem:[%s2314 + $0x48] sm:$0xff]
        %v2325 = vld [vmem:[%s2314 + $0x50] sm:$0xff]
        %v2326 = vld [vmem:[%s2314 + $0x58] sm:$0xff]
        %v2327 = vld [vmem:[%s2314 + $0x60] sm:$0xff]
        %v2328 = vld [vmem:[%s2314 + $0x68] sm:$0xff]
        %v2329 = vld [vmem:[%s2314 + $0x70] sm:$0xff]
        %v2330 = vld [vmem:[%s2314 + $0x78] sm:$0xff]
        %v2331 = vmax.f32 %v2261, %v2279
        %v2332 = vmax.f32 %v2262, %v2280
        %v2333 = vmax.f32 %v2263, %v2281
        %v2334 = vmax.f32 %v2264, %v2282
        %v2335 = vmax.f32 %v2265, %v2283
        %v2336 = vmax.f32 %v2266, %v2284
        %v2337 = vmax.f32 %v2267, %v2285
        %v2338 = vmax.f32 %v2268, %v2286
        %v2339 = vmax.f32 %v2269, %v2287
        %v2340 = vmax.f32 %v2270, %v2288
        %v2341 = vmax.f32 %v2271, %v2289
        %v2342 = vmax.f32 %v2272, %v2290
        %v2343 = vmax.f32 %v2273, %v2291
        %v2344 = vmax.f32 %v2274, %v2292
        %v2345 = vmax.f32 %v2275, %v2293
        %v2346 = vmax.f32 %v2276, %v2294
        %v2347 = vmax.f32 %v2297, %v2315
        %v2348 = vmax.f32 %v2298, %v2316
        %v2349 = vmax.f32 %v2299, %v2317
        %v2350 = vmax.f32 %v2300, %v2318
        %v2351 = vmax.f32 %v2301, %v2319
        %v2352 = vmax.f32 %v2302, %v2320
        %v2353 = vmax.f32 %v2303, %v2321
        %v2354 = vmax.f32 %v2304, %v2322
        %v2355 = vmax.f32 %v2305, %v2323
        %v2356 = vmax.f32 %v2306, %v2324
        %v2357 = vmax.f32 %v2307, %v2325
        %v2358 = vmax.f32 %v2308, %v2326
        %v2359 = vmax.f32 %v2309, %v2327
        %v2360 = vmax.f32 %v2310, %v2328
        %v2361 = vmax.f32 %v2311, %v2329
        %v2362 = vmax.f32 %v2312, %v2330
        %v2363 = vmax.f32 %v2331, %v2347
        %v2364 = vmax.f32 %v2332, %v2348
        %v2365 = vmax.f32 %v2333, %v2349
        %v2366 = vmax.f32 %v2334, %v2350
        %v2367 = vmax.f32 %v2335, %v2351
        %v2368 = vmax.f32 %v2336, %v2352
        %v2369 = vmax.f32 %v2337, %v2353
        %v2370 = vmax.f32 %v2338, %v2354
        %v2371 = vmax.f32 %v2339, %v2355
        %v2372 = vmax.f32 %v2340, %v2356
        %v2373 = vmax.f32 %v2341, %v2357
        %v2374 = vmax.f32 %v2342, %v2358
        %v2375 = vmax.f32 %v2343, %v2359
        %v2376 = vmax.f32 %v2344, %v2360
        %v2377 = vmax.f32 %v2345, %v2361
        %v2378 = vmax.f32 %v2346, %v2362
        %s2379 = scalar_lea.vmem %s4, %s2258
        %v2380 = vld [vmem:[%s2379] sm:$0xff]
        %v2381 = vld [vmem:[%s2379 + $0x8] sm:$0xff]
        %v2382 = vld [vmem:[%s2379 + $0x10] sm:$0xff]
        %v2383 = vld [vmem:[%s2379 + $0x18] sm:$0xff]
        %v2384 = vld [vmem:[%s2379 + $0x20] sm:$0xff]
        %v2385 = vld [vmem:[%s2379 + $0x28] sm:$0xff]
        %v2386 = vld [vmem:[%s2379 + $0x30] sm:$0xff]
        %v2387 = vld [vmem:[%s2379 + $0x38] sm:$0xff]
        %v2388 = vld [vmem:[%s2379 + $0x40] sm:$0xff]
        %v2389 = vld [vmem:[%s2379 + $0x48] sm:$0xff]
        %v2390 = vld [vmem:[%s2379 + $0x50] sm:$0xff]
        %v2391 = vld [vmem:[%s2379 + $0x58] sm:$0xff]
        %v2392 = vld [vmem:[%s2379 + $0x60] sm:$0xff]
        %v2393 = vld [vmem:[%s2379 + $0x68] sm:$0xff]
        %v2394 = vld [vmem:[%s2379 + $0x70] sm:$0xff]
        %v2395 = vld [vmem:[%s2379 + $0x78] sm:$0xff]
        %v2396 = vmul.f32 %v2363, %v2380
        %v2397 = vmul.f32 %v2364, %v2381
        %v2398 = vmul.f32 %v2365, %v2382
        %v2399 = vmul.f32 %v2366, %v2383
        %v2400 = vmul.f32 %v2367, %v2384
        %v2401 = vmul.f32 %v2368, %v2385
        %v2402 = vmul.f32 %v2369, %v2386
        %v2403 = vmul.f32 %v2370, %v2387
        %v2404 = vmul.f32 %v2371, %v2388
        %v2405 = vmul.f32 %v2372, %v2389
        %v2406 = vmul.f32 %v2373, %v2390
        %v2407 = vmul.f32 %v2374, %v2391
        %v2408 = vmul.f32 %v2375, %v2392
        %v2409 = vmul.f32 %v2376, %v2393
        %v2410 = vmul.f32 %v2377, %v2394
        %v2411 = vmul.f32 %v2378, %v2395
        %s2412 = scalar_lea.vmem [#allocation2], %s2259
        %2413 = vst [vmem:[%s2412] sm:$0xff] %v2396
        %2414 = vst [vmem:[%s2412 + $0x8] sm:$0xff] %v2397
        %2415 = vst [vmem:[%s2412 + $0x10] sm:$0xff] %v2398
        %2416 = vst [vmem:[%s2412 + $0x18] sm:$0xff] %v2399
        %2417 = vst [vmem:[%s2412 + $0x20] sm:$0xff] %v2400
        %2418 = vst [vmem:[%s2412 + $0x28] sm:$0xff] %v2401
        %2419 = vst [vmem:[%s2412 + $0x30] sm:$0xff] %v2402
        %2420 = vst [vmem:[%s2412 + $0x38] sm:$0xff] %v2403
        %2421 = vst [vmem:[%s2412 + $0x40] sm:$0xff] %v2404
        %2422 = vst [vmem:[%s2412 + $0x48] sm:$0xff] %v2405
        %2423 = vst [vmem:[%s2412 + $0x50] sm:$0xff] %v2406
        %2424 = vst [vmem:[%s2412 + $0x58] sm:$0xff] %v2407
        %2425 = vst [vmem:[%s2412 + $0x60] sm:$0xff] %v2408
        %2426 = vst [vmem:[%s2412 + $0x68] sm:$0xff] %v2409
        %2427 = vst [vmem:[%s2412 + $0x70] sm:$0xff] %v2410
        %2428 = vst [vmem:[%s2412 + $0x78] sm:$0xff] %v2411
      $region59: #{conv4_forward.1} parent=39 // loop_footer
        %s2257 = sadd.s32 1, %s2253
      $region60: #{conv4_forward.1} parent=39 // loop_footer_branch
        %2252 = sbr.rel target = $region56
      $region61: #{conv4_forward.1} parent=39 // loop_exit
        _
      %s2429 = scalar_lea.vmem %s2, 1
      %v2430 = vld [vmem:[%s2429] sm:$0x1]
      %s2431 = scalar_lea.vmem %s3, 1
      %v2432 = vld [vmem:[%s2431] sm:$0x1]
      loop: start=0, step=1, limit=8
      $region62: #{conv4_forward.1} parent=39 // loop_pre_header
        _
      $region63: #{conv4_forward.1} parent=39 // loop_header
        %s2434 = sphi 0, %s2438
        %p2435 = scmp.ge.s32.totalorder %s2434, 8
      $region64: #{conv4_forward.1} parent=39 // loop_header_branch
        %2437 = sbr.rel (%p2435) target = $region68
      $region65: #{conv4_forward.1} parent=39 // loop_body
        %s2439 = smul.u32 %s2434, 128
        %s2440 = sadd.s32 %s2439, 264
        %s2441 = sadd.s32 %s2439, 198
        %s2442 = scalar_lea.vmem [#allocation2], %s2441
        %v2443 = vld [vmem:[%s2442] sm:$0xff]
        %v2444 = vld [vmem:[%s2442 + $0x8] sm:$0xff]
        %v2445 = vld [vmem:[%s2442 + $0x10] sm:$0xff]
        %v2446 = vld [vmem:[%s2442 + $0x18] sm:$0xff]
        %v2447 = vld [vmem:[%s2442 + $0x20] sm:$0xff]
        %v2448 = vld [vmem:[%s2442 + $0x28] sm:$0xff]
        %v2449 = vld [vmem:[%s2442 + $0x30] sm:$0xff]
        %v2450 = vld [vmem:[%s2442 + $0x38] sm:$0xff]
        %v2451 = vld [vmem:[%s2442 + $0x40] sm:$0xff]
        %v2452 = vld [vmem:[%s2442 + $0x48] sm:$0xff]
        %v2453 = vld [vmem:[%s2442 + $0x50] sm:$0xff]
        %v2454 = vld [vmem:[%s2442 + $0x58] sm:$0xff]
        %v2455 = vld [vmem:[%s2442 + $0x60] sm:$0xff]
        %v2456 = vld [vmem:[%s2442 + $0x68] sm:$0xff]
        %v2457 = vld [vmem:[%s2442 + $0x70] sm:$0xff]
        %v2458 = vld [vmem:[%s2442 + $0x78] sm:$0xff]
        %v2459 = vpack.c.bf16 %v2444, %v2443
        %v2460 = vpack.c.bf16 %v2446, %v2445
        %v2461 = vpack.c.bf16 %v2448, %v2447
        %v2462 = vpack.c.bf16 %v2450, %v2449
        %v2463 = vpack.c.bf16 %v2452, %v2451
        %v2464 = vpack.c.bf16 %v2454, %v2453
        %v2465 = vpack.c.bf16 %v2456, %v2455
        %v2466 = vpack.c.bf16 %v2458, %v2457
        %s2467 = scalar_lea.vmem %s1, 576
        %v2468 = vld [vmem:[%s2467] sm:$0xf]
        %v2469 = vld [vmem:[%s2467 + $0x4] sm:$0xf]
        %v2470 = vld [vmem:[%s2467 + $0x8] sm:$0xf]
        %v2471 = vld [vmem:[%s2467 + $0xc] sm:$0xf]
        %v2472 = vld [vmem:[%s2467 + $0x10] sm:$0xf]
        %v2473 = vld [vmem:[%s2467 + $0x14] sm:$0xf]
        %v2474 = vld [vmem:[%s2467 + $0x18] sm:$0xf]
        %v2475 = vld [vmem:[%s2467 + $0x1c] sm:$0xf]
        %v2476 = vld [vmem:[%s2467 + $0x20] sm:$0xf]
        %v2477 = vld [vmem:[%s2467 + $0x24] sm:$0xf]
        %v2478 = vld [vmem:[%s2467 + $0x28] sm:$0xf]
        %v2479 = vld [vmem:[%s2467 + $0x2c] sm:$0xf]
        %v2480 = vld [vmem:[%s2467 + $0x30] sm:$0xf]
        %v2481 = vld [vmem:[%s2467 + $0x34] sm:$0xf]
        %v2482 = vld [vmem:[%s2467 + $0x38] sm:$0xf]
        %v2483 = vld [vmem:[%s2467 + $0x3c] sm:$0xf]
        %s2484 = sadd.s32 %s2439, 200
        %s2485 = scalar_lea.vmem [#allocation2], %s2484
        %v2486 = vld [vmem:[%s2485] sm:$0xff]
        %v2487 = vld [vmem:[%s2485 + $0x8] sm:$0xff]
        %v2488 = vld [vmem:[%s2485 + $0x10] sm:$0xff]
        %v2489 = vld [vmem:[%s2485 + $0x18] sm:$0xff]
        %v2490 = vld [vmem:[%s2485 + $0x20] sm:$0xff]
        %v2491 = vld [vmem:[%s2485 + $0x28] sm:$0xff]
        %v2492 = vld [vmem:[%s2485 + $0x30] sm:$0xff]
        %v2493 = vld [vmem:[%s2485 + $0x38] sm:$0xff]
        %v2494 = vld [vmem:[%s2485 + $0x40] sm:$0xff]
        %v2495 = vld [vmem:[%s2485 + $0x48] sm:$0xff]
        %v2496 = vld [vmem:[%s2485 + $0x50] sm:$0xff]
        %v2497 = vld [vmem:[%s2485 + $0x58] sm:$0xff]
        %v2498 = vld [vmem:[%s2485 + $0x60] sm:$0xff]
        %v2499 = vld [vmem:[%s2485 + $0x68] sm:$0xff]
        %v2500 = vld [vmem:[%s2485 + $0x70] sm:$0xff]
        %v2501 = vld [vmem:[%s2485 + $0x78] sm:$0xff]
        %v2502 = vpack.c.bf16 %v2487, %v2486
        %v2503 = vpack.c.bf16 %v2489, %v2488
        %v2504 = vpack.c.bf16 %v2491, %v2490
        %v2505 = vpack.c.bf16 %v2493, %v2492
        %v2506 = vpack.c.bf16 %v2495, %v2494
        %v2507 = vpack.c.bf16 %v2497, %v2496
        %v2508 = vpack.c.bf16 %v2499, %v2498
        %v2509 = vpack.c.bf16 %v2501, %v2500
        %s2510 = scalar_lea.vmem %s1, 640
        %v2511 = vld [vmem:[%s2510] sm:$0xf]
        %v2512 = vld [vmem:[%s2510 + $0x4] sm:$0xf]
        %v2513 = vld [vmem:[%s2510 + $0x8] sm:$0xf]
        %v2514 = vld [vmem:[%s2510 + $0xc] sm:$0xf]
        %v2515 = vld [vmem:[%s2510 + $0x10] sm:$0xf]
        %v2516 = vld [vmem:[%s2510 + $0x14] sm:$0xf]
        %v2517 = vld [vmem:[%s2510 + $0x18] sm:$0xf]
        %v2518 = vld [vmem:[%s2510 + $0x1c] sm:$0xf]
        %v2519 = vld [vmem:[%s2510 + $0x20] sm:$0xf]
        %v2520 = vld [vmem:[%s2510 + $0x24] sm:$0xf]
        %v2521 = vld [vmem:[%s2510 + $0x28] sm:$0xf]
        %v2522 = vld [vmem:[%s2510 + $0x2c] sm:$0xf]
        %v2523 = vld [vmem:[%s2510 + $0x30] sm:$0xf]
        %v2524 = vld [vmem:[%s2510 + $0x34] sm:$0xf]
        %v2525 = vld [vmem:[%s2510 + $0x38] sm:$0xf]
        %v2526 = vld [vmem:[%s2510 + $0x3c] sm:$0xf]
        %v2543 = vunpack.c.l.b16 %v2511
        %v2544 = vunpack.c.l.b16 %v2512
        %v2545 = vunpack.c.l.b16 %v2513
        %v2546 = vunpack.c.l.b16 %v2514
        %v2547 = vunpack.c.l.b16 %v2515
        %v2548 = vunpack.c.l.b16 %v2516
        %v2549 = vunpack.c.l.b16 %v2517
        %v2550 = vunpack.c.l.b16 %v2518
        %v2551 = vunpack.c.l.b16 %v2519
        %v2552 = vunpack.c.l.b16 %v2520
        %v2553 = vunpack.c.l.b16 %v2521
        %v2554 = vunpack.c.l.b16 %v2522
        %v2555 = vunpack.c.l.b16 %v2523
        %v2556 = vunpack.c.l.b16 %v2524
        %v2557 = vunpack.c.l.b16 %v2525
        %v2558 = vunpack.c.l.b16 %v2526
        %v2559 = vpack.c.b16 %v2544, %v2543
        %v2560 = vpack.c.b16 %v2546, %v2545
        %v2561 = vpack.c.b16 %v2548, %v2547
        %v2562 = vpack.c.b16 %v2550, %v2549
        %v2563 = vpack.c.b16 %v2552, %v2551
        %v2564 = vpack.c.b16 %v2554, %v2553
        %v2565 = vpack.c.b16 %v2556, %v2555
        %v2566 = vpack.c.b16 %v2558, %v2557
        %2575 = vmatprep.subr.bf16.mxu0 0
        %2576 = vmatpush1.bf16.msra.mxu0 %v2559
        %2577 = vmatprep.subr.bf16.mxu0 0
        %2578 = vmatpush1.bf16.msra.mxu0 %v2560
        %2579 = vmatprep.subr.bf16.mxu0 0
        %2580 = vmatpush1.bf16.msra.mxu0 %v2561
        %2581 = vmatprep.subr.bf16.mxu0 0
        %2582 = vmatpush1.bf16.msra.mxu0 %v2562
        %2583 = vmatprep.subr.bf16.mxu0 0
        %2584 = vmatpush1.bf16.msra.mxu0 %v2563
        %2585 = vmatprep.subr.bf16.mxu0 0
        %2586 = vmatpush1.bf16.msra.mxu0 %v2564
        %2587 = vmatprep.subr.bf16.mxu0 0
        %2588 = vmatpush1.bf16.msra.mxu0 %v2565
        %2589 = vmatprep.subr.bf16.mxu0 0
        %2590 = vmatpush1.bf16.msra.mxu0 %v2566
        %2591 = vmatprep.subr.bf16.mxu0 0
        %2592 = vmatpush1.bf16.msra.mxu0 0
        %2593 = vmatprep.subr.bf16.mxu0 0
        %2594 = vmatpush1.bf16.msra.mxu0 0
        %2595 = vmatprep.subr.bf16.mxu0 0
        %2596 = vmatpush1.bf16.msra.mxu0 0
        %2597 = vmatprep.subr.bf16.mxu0 0
        %2598 = vmatpush1.bf16.msra.mxu0 0
        %2599 = vmatprep.subr.bf16.mxu0 0
        %2600 = vmatpush1.bf16.msra.mxu0 0
        %2601 = vmatprep.subr.bf16.mxu0 0
        %2602 = vmatpush1.bf16.msra.mxu0 0
        %2603 = vmatprep.subr.bf16.mxu0 0
        %2604 = vmatpush1.bf16.msra.mxu0 0
        %2605 = vmatprep.subr.bf16.mxu0 0
        %2606 = vmatpush1.bf16.msra.mxu0 0
        %2607 = vmatprep.mubr.bf16.mxu0 0
        %2608 = vmatmul.mubr.bf16.gmra.mrb[0].mxu0 %v2502
        %v2609 = vpop.f32.mrb[0].mxu0
        %v2610 = vadd.f32 0.0, %v2609
        %v2611 = vpop.f32.mrb[0].mxu0
        %v2612 = vpop.f32.mrb[0].mxu0
        %v2613 = vadd.f32 0.0, %v2612
        %v2614 = vpop.f32.mrb[0].mxu0
        %2615 = vmatprep.mubr.bf16.mxu0 0
        %2616 = vmatmul.mubr.bf16.gmra.mrb[0].mxu0 %v2503
        %v2617 = vpop.f32.mrb[0].mxu0
        %v2618 = vadd.f32 0.0, %v2617
        %v2619 = vpop.f32.mrb[0].mxu0
        %v2620 = vpop.f32.mrb[0].mxu0
        %v2621 = vadd.f32 0.0, %v2620
        %v2622 = vpop.f32.mrb[0].mxu0
        %2623 = vmatprep.mubr.bf16.mxu0 0
        %2624 = vmatmul.mubr.bf16.gmra.mrb[0].mxu0 %v2504
        %v2625 = vpop.f32.mrb[0].mxu0
        %v2626 = vadd.f32 0.0, %v2625
        %v2627 = vpop.f32.mrb[0].mxu0
        %v2628 = vpop.f32.mrb[0].mxu0
        %v2629 = vadd.f32 0.0, %v2628
        %v2630 = vpop.f32.mrb[0].mxu0
        %2631 = vmatprep.mubr.bf16.mxu0 0
        %2632 = vmatmul.mubr.bf16.gmra.mrb[0].mxu0 %v2505
        %v2633 = vpop.f32.mrb[0].mxu0
        %v2634 = vadd.f32 0.0, %v2633
        %v2635 = vpop.f32.mrb[0].mxu0
        %v2636 = vpop.f32.mrb[0].mxu0
        %v2637 = vadd.f32 0.0, %v2636
        %v2638 = vpop.f32.mrb[0].mxu0
        %2639 = vmatprep.mubr.bf16.mxu0 0
        %2640 = vmatmul.mubr.bf16.gmra.mrb[0].mxu0 %v2506
        %v2641 = vpop.f32.mrb[0].mxu0
        %v2642 = vadd.f32 0.0, %v2641
        %v2643 = vpop.f32.mrb[0].mxu0
        %v2644 = vpop.f32.mrb[0].mxu0
        %v2645 = vadd.f32 0.0, %v2644
        %v2646 = vpop.f32.mrb[0].mxu0
        %2647 = vmatprep.mubr.bf16.mxu0 0
        %2648 = vmatmul.mubr.bf16.gmra.mrb[0].mxu0 %v2507
        %v2649 = vpop.f32.mrb[0].mxu0
        %v2650 = vadd.f32 0.0, %v2649
        %v2651 = vpop.f32.mrb[0].mxu0
        %v2652 = vpop.f32.mrb[0].mxu0
        %v2653 = vadd.f32 0.0, %v2652
        %v2654 = vpop.f32.mrb[0].mxu0
        %2655 = vmatprep.mubr.bf16.mxu0 0
        %2656 = vmatmul.mubr.bf16.gmra.mrb[0].mxu0 %v2508
        %v2657 = vpop.f32.mrb[0].mxu0
        %v2658 = vadd.f32 0.0, %v2657
        %v2659 = vpop.f32.mrb[0].mxu0
        %v2660 = vpop.f32.mrb[0].mxu0
        %v2661 = vadd.f32 0.0, %v2660
        %v2662 = vpop.f32.mrb[0].mxu0
        %2663 = vmatprep.mubr.bf16.mxu0 0
        %2664 = vmatmul.mubr.bf16.gmra.mrb[0].mxu0 %v2509
        %v2665 = vpop.f32.mrb[0].mxu0
        %v2666 = vadd.f32 0.0, %v2665
        %v2667 = vpop.f32.mrb[0].mxu0
        %v2668 = vpop.f32.mrb[0].mxu0
        %v2669 = vadd.f32 0.0, %v2668
        %v2670 = vpop.f32.mrb[0].mxu0
        %2671 = vdwg.mxu0
        %v2688 = vunpack.c.l.b16 %v2468
        %v2689 = vunpack.c.l.b16 %v2469
        %v2690 = vunpack.c.l.b16 %v2470
        %v2691 = vunpack.c.l.b16 %v2471
        %v2692 = vunpack.c.l.b16 %v2472
        %v2693 = vunpack.c.l.b16 %v2473
        %v2694 = vunpack.c.l.b16 %v2474
        %v2695 = vunpack.c.l.b16 %v2475
        %v2696 = vunpack.c.l.b16 %v2476
        %v2697 = vunpack.c.l.b16 %v2477
        %v2698 = vunpack.c.l.b16 %v2478
        %v2699 = vunpack.c.l.b16 %v2479
        %v2700 = vunpack.c.l.b16 %v2480
        %v2701 = vunpack.c.l.b16 %v2481
        %v2702 = vunpack.c.l.b16 %v2482
        %v2703 = vunpack.c.l.b16 %v2483
        %v2704 = vpack.c.b16 %v2689, %v2688
        %v2705 = vpack.c.b16 %v2691, %v2690
        %v2706 = vpack.c.b16 %v2693, %v2692
        %v2707 = vpack.c.b16 %v2695, %v2694
        %v2708 = vpack.c.b16 %v2697, %v2696
        %v2709 = vpack.c.b16 %v2699, %v2698
        %v2710 = vpack.c.b16 %v2701, %v2700
        %v2711 = vpack.c.b16 %v2703, %v2702
        %2720 = vmatprep.subr.bf16.mxu0 0
        %2721 = vmatpush1.bf16.msra.mxu0 %v2704
        %2722 = vmatprep.subr.bf16.mxu0 0
        %2723 = vmatpush1.bf16.msra.mxu0 %v2705
        %2724 = vmatprep.subr.bf16.mxu0 0
        %2725 = vmatpush1.bf16.msra.mxu0 %v2706
        %2726 = vmatprep.subr.bf16.mxu0 0
        %2727 = vmatpush1.bf16.msra.mxu0 %v2707
        %2728 = vmatprep.subr.bf16.mxu0 0
        %2729 = vmatpush1.bf16.msra.mxu0 %v2708
        %2730 = vmatprep.subr.bf16.mxu0 0
        %2731 = vmatpush1.bf16.msra.mxu0 %v2709
        %2732 = vmatprep.subr.bf16.mxu0 0
        %2733 = vmatpush1.bf16.msra.mxu0 %v2710
        %2734 = vmatprep.subr.bf16.mxu0 0
        %2735 = vmatpush1.bf16.msra.mxu0 %v2711
        %2736 = vmatprep.subr.bf16.mxu0 0
        %2737 = vmatpush1.bf16.msra.mxu0 0
        %2738 = vmatprep.subr.bf16.mxu0 0
        %2739 = vmatpush1.bf16.msra.mxu0 0
        %2740 = vmatprep.subr.bf16.mxu0 0
        %2741 = vmatpush1.bf16.msra.mxu0 0
        %2742 = vmatprep.subr.bf16.mxu0 0
        %2743 = vmatpush1.bf16.msra.mxu0 0
        %2744 = vmatprep.subr.bf16.mxu0 0
        %2745 = vmatpush1.bf16.msra.mxu0 0
        %2746 = vmatprep.subr.bf16.mxu0 0
        %2747 = vmatpush1.bf16.msra.mxu0 0
        %2748 = vmatprep.subr.bf16.mxu0 0
        %2749 = vmatpush1.bf16.msra.mxu0 0
        %2750 = vmatprep.subr.bf16.mxu0 0
        %2751 = vmatpush1.bf16.msra.mxu0 0
        %2752 = vmatprep.mubr.bf16.mxu0 0
        %2753 = vmatmul.mubr.bf16.gmra.mrb[0].mxu0 %v2459
        %v2754 = vpop.f32.mrb[0].mxu0
        %v2755 = vadd.f32 %v2610, %v2754
        %v2756 = vpop.f32.mrb[0].mxu0
        %v2757 = vpop.f32.mrb[0].mxu0
        %v2758 = vadd.f32 %v2613, %v2757
        %v2759 = vpop.f32.mrb[0].mxu0
        %2760 = vmatprep.mubr.bf16.mxu0 0
        %2761 = vmatmul.mubr.bf16.gmra.mrb[0].mxu0 %v2460
        %v2762 = vpop.f32.mrb[0].mxu0
        %v2763 = vadd.f32 %v2618, %v2762
        %v2764 = vpop.f32.mrb[0].mxu0
        %v2765 = vpop.f32.mrb[0].mxu0
        %v2766 = vadd.f32 %v2621, %v2765
        %v2767 = vpop.f32.mrb[0].mxu0
        %2768 = vmatprep.mubr.bf16.mxu0 0
        %2769 = vmatmul.mubr.bf16.gmra.mrb[0].mxu0 %v2461
        %v2770 = vpop.f32.mrb[0].mxu0
        %v2771 = vadd.f32 %v2626, %v2770
        %v2772 = vpop.f32.mrb[0].mxu0
        %v2773 = vpop.f32.mrb[0].mxu0
        %v2774 = vadd.f32 %v2629, %v2773
        %v2775 = vpop.f32.mrb[0].mxu0
        %2776 = vmatprep.mubr.bf16.mxu0 0
        %2777 = vmatmul.mubr.bf16.gmra.mrb[0].mxu0 %v2462
        %v2778 = vpop.f32.mrb[0].mxu0
        %v2779 = vadd.f32 %v2634, %v2778
        %v2780 = vpop.f32.mrb[0].mxu0
        %v2781 = vpop.f32.mrb[0].mxu0
        %v2782 = vadd.f32 %v2637, %v2781
        %v2783 = vpop.f32.mrb[0].mxu0
        %2784 = vmatprep.mubr.bf16.mxu0 0
        %2785 = vmatmul.mubr.bf16.gmra.mrb[0].mxu0 %v2463
        %v2786 = vpop.f32.mrb[0].mxu0
        %v2787 = vadd.f32 %v2642, %v2786
        %v2788 = vpop.f32.mrb[0].mxu0
        %v2789 = vpop.f32.mrb[0].mxu0
        %v2790 = vadd.f32 %v2645, %v2789
        %v2791 = vpop.f32.mrb[0].mxu0
        %2792 = vmatprep.mubr.bf16.mxu0 0
        %2793 = vmatmul.mubr.bf16.gmra.mrb[0].mxu0 %v2464
        %v2794 = vpop.f32.mrb[0].mxu0
        %v2795 = vadd.f32 %v2650, %v2794
        %v2796 = vpop.f32.mrb[0].mxu0
        %v2797 = vpop.f32.mrb[0].mxu0
        %v2798 = vadd.f32 %v2653, %v2797
        %v2799 = vpop.f32.mrb[0].mxu0
        %2800 = vmatprep.mubr.bf16.mxu0 0
        %2801 = vmatmul.mubr.bf16.gmra.mrb[0].mxu0 %v2465
        %v2802 = vpop.f32.mrb[0].mxu0
        %v2803 = vadd.f32 %v2658, %v2802
        %v2804 = vpop.f32.mrb[0].mxu0
        %v2805 = vpop.f32.mrb[0].mxu0
        %v2806 = vadd.f32 %v2661, %v2805
        %v2807 = vpop.f32.mrb[0].mxu0
        %2808 = vmatprep.mubr.bf16.mxu0 0
        %2809 = vmatmul.mubr.bf16.gmra.mrb[0].mxu0 %v2466
        %v2810 = vpop.f32.mrb[0].mxu0
        %v2811 = vadd.f32 %v2666, %v2810
        %v2812 = vpop.f32.mrb[0].mxu0
        %v2813 = vpop.f32.mrb[0].mxu0
        %v2814 = vadd.f32 %v2669, %v2813
        %v2815 = vpop.f32.mrb[0].mxu0
        %2816 = vdwg.mxu0
        %s2817 = sadd.s32 %s2439, 202
        %s2818 = scalar_lea.vmem [#allocation2], %s2817
        %v2819 = vld [vmem:[%s2818] sm:$0xff]
        %v2820 = vld [vmem:[%s2818 + $0x8] sm:$0xff]
        %v2821 = vld [vmem:[%s2818 + $0x10] sm:$0xff]
        %v2822 = vld [vmem:[%s2818 + $0x18] sm:$0xff]
        %v2823 = vld [vmem:[%s2818 + $0x20] sm:$0xff]
        %v2824 = vld [vmem:[%s2818 + $0x28] sm:$0xff]
        %v2825 = vld [vmem:[%s2818 + $0x30] sm:$0xff]
        %v2826 = vld [vmem:[%s2818 + $0x38] sm:$0xff]
        %v2827 = vld [vmem:[%s2818 + $0x40] sm:$0xff]
        %v2828 = vld [vmem:[%s2818 + $0x48] sm:$0xff]
        %v2829 = vld [vmem:[%s2818 + $0x50] sm:$0xff]
        %v2830 = vld [vmem:[%s2818 + $0x58] sm:$0xff]
        %v2831 = vld [vmem:[%s2818 + $0x60] sm:$0xff]
        %v2832 = vld [vmem:[%s2818 + $0x68] sm:$0xff]
        %v2833 = vld [vmem:[%s2818 + $0x70] sm:$0xff]
        %v2834 = vld [vmem:[%s2818 + $0x78] sm:$0xff]
        %v2835 = vpack.c.bf16 %v2820, %v2819
        %v2836 = vpack.c.bf16 %v2822, %v2821
        %v2837 = vpack.c.bf16 %v2824, %v2823
        %v2838 = vpack.c.bf16 %v2826, %v2825
        %v2839 = vpack.c.bf16 %v2828, %v2827
        %v2840 = vpack.c.bf16 %v2830, %v2829
        %v2841 = vpack.c.bf16 %v2832, %v2831
        %v2842 = vpack.c.bf16 %v2834, %v2833
        %s2843 = scalar_lea.vmem %s1, 704
        %v2844 = vld [vmem:[%s2843] sm:$0xf]
        %v2845 = vld [vmem:[%s2843 + $0x4] sm:$0xf]
        %v2846 = vld [vmem:[%s2843 + $0x8] sm:$0xf]
        %v2847 = vld [vmem:[%s2843 + $0xc] sm:$0xf]
        %v2848 = vld [vmem:[%s2843 + $0x10] sm:$0xf]
        %v2849 = vld [vmem:[%s2843 + $0x14] sm:$0xf]
        %v2850 = vld [vmem:[%s2843 + $0x18] sm:$0xf]
        %v2851 = vld [vmem:[%s2843 + $0x1c] sm:$0xf]
        %v2852 = vld [vmem:[%s2843 + $0x20] sm:$0xf]
        %v2853 = vld [vmem:[%s2843 + $0x24] sm:$0xf]
        %v2854 = vld [vmem:[%s2843 + $0x28] sm:$0xf]
        %v2855 = vld [vmem:[%s2843 + $0x2c] sm:$0xf]
        %v2856 = vld [vmem:[%s2843 + $0x30] sm:$0xf]
        %v2857 = vld [vmem:[%s2843 + $0x34] sm:$0xf]
        %v2858 = vld [vmem:[%s2843 + $0x38] sm:$0xf]
        %v2859 = vld [vmem:[%s2843 + $0x3c] sm:$0xf]
        %v2876 = vunpack.c.l.b16 %v2844
        %v2877 = vunpack.c.l.b16 %v2845
        %v2878 = vunpack.c.l.b16 %v2846
        %v2879 = vunpack.c.l.b16 %v2847
        %v2880 = vunpack.c.l.b16 %v2848
        %v2881 = vunpack.c.l.b16 %v2849
        %v2882 = vunpack.c.l.b16 %v2850
        %v2883 = vunpack.c.l.b16 %v2851
        %v2884 = vunpack.c.l.b16 %v2852
        %v2885 = vunpack.c.l.b16 %v2853
        %v2886 = vunpack.c.l.b16 %v2854
        %v2887 = vunpack.c.l.b16 %v2855
        %v2888 = vunpack.c.l.b16 %v2856
        %v2889 = vunpack.c.l.b16 %v2857
        %v2890 = vunpack.c.l.b16 %v2858
        %v2891 = vunpack.c.l.b16 %v2859
        %v2892 = vpack.c.b16 %v2877, %v2876
        %v2893 = vpack.c.b16 %v2879, %v2878
        %v2894 = vpack.c.b16 %v2881, %v2880
        %v2895 = vpack.c.b16 %v2883, %v2882
        %v2896 = vpack.c.b16 %v2885, %v2884
        %v2897 = vpack.c.b16 %v2887, %v2886
        %v2898 = vpack.c.b16 %v2889, %v2888
        %v2899 = vpack.c.b16 %v2891, %v2890
        %2908 = vmatprep.subr.bf16.mxu0 0
        %2909 = vmatpush1.bf16.msra.mxu0 %v2892
        %2910 = vmatprep.subr.bf16.mxu0 0
        %2911 = vmatpush1.bf16.msra.mxu0 %v2893
        %2912 = vmatprep.subr.bf16.mxu0 0
        %2913 = vmatpush1.bf16.msra.mxu0 %v2894
        %2914 = vmatprep.subr.bf16.mxu0 0
        %2915 = vmatpush1.bf16.msra.mxu0 %v2895
        %2916 = vmatprep.subr.bf16.mxu0 0
        %2917 = vmatpush1.bf16.msra.mxu0 %v2896
        %2918 = vmatprep.subr.bf16.mxu0 0
        %2919 = vmatpush1.bf16.msra.mxu0 %v2897
        %2920 = vmatprep.subr.bf16.mxu0 0
        %2921 = vmatpush1.bf16.msra.mxu0 %v2898
        %2922 = vmatprep.subr.bf16.mxu0 0
        %2923 = vmatpush1.bf16.msra.mxu0 %v2899
        %2924 = vmatprep.subr.bf16.mxu0 0
        %2925 = vmatpush1.bf16.msra.mxu0 0
        %2926 = vmatprep.subr.bf16.mxu0 0
        %2927 = vmatpush1.bf16.msra.mxu0 0
        %2928 = vmatprep.subr.bf16.mxu0 0
        %2929 = vmatpush1.bf16.msra.mxu0 0
        %2930 = vmatprep.subr.bf16.mxu0 0
        %2931 = vmatpush1.bf16.msra.mxu0 0
        %2932 = vmatprep.subr.bf16.mxu0 0
        %2933 = vmatpush1.bf16.msra.mxu0 0
        %2934 = vmatprep.subr.bf16.mxu0 0
        %2935 = vmatpush1.bf16.msra.mxu0 0
        %2936 = vmatprep.subr.bf16.mxu0 0
        %2937 = vmatpush1.bf16.msra.mxu0 0
        %2938 = vmatprep.subr.bf16.mxu0 0
        %2939 = vmatpush1.bf16.msra.mxu0 0
        %2940 = vmatprep.mubr.bf16.mxu0 0
        %2941 = vmatmul.mubr.bf16.gmra.mrb[0].mxu0 %v2835
        %v2942 = vpop.f32.mrb[0].mxu0
        %v2943 = vadd.f32 0.0, %v2942
        %v2944 = vpop.f32.mrb[0].mxu0
        %v2945 = vpop.f32.mrb[0].mxu0
        %v2946 = vadd.f32 0.0, %v2945
        %v2947 = vpop.f32.mrb[0].mxu0
        %2948 = vmatprep.mubr.bf16.mxu0 0
        %2949 = vmatmul.mubr.bf16.gmra.mrb[0].mxu0 %v2836
        %v2950 = vpop.f32.mrb[0].mxu0
        %v2951 = vadd.f32 0.0, %v2950
        %v2952 = vpop.f32.mrb[0].mxu0
        %v2953 = vpop.f32.mrb[0].mxu0
        %v2954 = vadd.f32 0.0, %v2953
        %v2955 = vpop.f32.mrb[0].mxu0
        %2956 = vmatprep.mubr.bf16.mxu0 0
        %2957 = vmatmul.mubr.bf16.gmra.mrb[0].mxu0 %v2837
        %v2958 = vpop.f32.mrb[0].mxu0
        %v2959 = vadd.f32 0.0, %v2958
        %v2960 = vpop.f32.mrb[0].mxu0
        %v2961 = vpop.f32.mrb[0].mxu0
        %v2962 = vadd.f32 0.0, %v2961
        %v2963 = vpop.f32.mrb[0].mxu0
        %2964 = vmatprep.mubr.bf16.mxu0 0
        %2965 = vmatmul.mubr.bf16.gmra.mrb[0].mxu0 %v2838
        %v2966 = vpop.f32.mrb[0].mxu0
        %v2967 = vadd.f32 0.0, %v2966
        %v2968 = vpop.f32.mrb[0].mxu0
        %v2969 = vpop.f32.mrb[0].mxu0
        %v2970 = vadd.f32 0.0, %v2969
        %v2971 = vpop.f32.mrb[0].mxu0
        %2972 = vmatprep.mubr.bf16.mxu0 0
        %2973 = vmatmul.mubr.bf16.gmra.mrb[0].mxu0 %v2839
        %v2974 = vpop.f32.mrb[0].mxu0
        %v2975 = vadd.f32 0.0, %v2974
        %v2976 = vpop.f32.mrb[0].mxu0
        %v2977 = vpop.f32.mrb[0].mxu0
        %v2978 = vadd.f32 0.0, %v2977
        %v2979 = vpop.f32.mrb[0].mxu0
        %2980 = vmatprep.mubr.bf16.mxu0 0
        %2981 = vmatmul.mubr.bf16.gmra.mrb[0].mxu0 %v2840
        %v2982 = vpop.f32.mrb[0].mxu0
        %v2983 = vadd.f32 0.0, %v2982
        %v2984 = vpop.f32.mrb[0].mxu0
        %v2985 = vpop.f32.mrb[0].mxu0
        %v2986 = vadd.f32 0.0, %v2985
        %v2987 = vpop.f32.mrb[0].mxu0
        %2988 = vmatprep.mubr.bf16.mxu0 0
        %2989 = vmatmul.mubr.bf16.gmra.mrb[0].mxu0 %v2841
        %v2990 = vpop.f32.mrb[0].mxu0
        %v2991 = vadd.f32 0.0, %v2990
        %v2992 = vpop.f32.mrb[0].mxu0
        %v2993 = vpop.f32.mrb[0].mxu0
        %v2994 = vadd.f32 0.0, %v2993
        %v2995 = vpop.f32.mrb[0].mxu0
        %2996 = vmatprep.mubr.bf16.mxu0 0
        %2997 = vmatmul.mubr.bf16.gmra.mrb[0].mxu0 %v2842
        %v2998 = vpop.f32.mrb[0].mxu0
        %v2999 = vadd.f32 0.0, %v2998
        %v3000 = vpop.f32.mrb[0].mxu0
        %v3001 = vpop.f32.mrb[0].mxu0
        %v3002 = vadd.f32 0.0, %v3001
        %v3003 = vpop.f32.mrb[0].mxu0
        %3004 = vdwg.mxu0
        %v3005 = vadd.f32 %v2755, %v2943
        %v3006 = vadd.f32 %v2758, %v2946
        %v3007 = vadd.f32 %v2763, %v2951
        %v3008 = vadd.f32 %v2766, %v2954
        %v3009 = vadd.f32 %v2771, %v2959
        %v3010 = vadd.f32 %v2774, %v2962
        %v3011 = vadd.f32 %v2779, %v2967
        %v3012 = vadd.f32 %v2782, %v2970
        %v3013 = vadd.f32 %v2787, %v2975
        %v3014 = vadd.f32 %v2790, %v2978
        %v3015 = vadd.f32 %v2795, %v2983
        %v3016 = vadd.f32 %v2798, %v2986
        %v3017 = vadd.f32 %v2803, %v2991
        %v3018 = vadd.f32 %v2806, %v2994
        %v3019 = vadd.f32 %v2811, %v2999
        %v3020 = vadd.f32 %v2814, %v3002
        %s3021 = sadd.s32 %s2439, 262
        %s3022 = scalar_lea.vmem [#allocation2], %s3021
        %v3023 = vld [vmem:[%s3022] sm:$0xff]
        %v3024 = vld [vmem:[%s3022 + $0x8] sm:$0xff]
        %v3025 = vld [vmem:[%s3022 + $0x10] sm:$0xff]
        %v3026 = vld [vmem:[%s3022 + $0x18] sm:$0xff]
        %v3027 = vld [vmem:[%s3022 + $0x20] sm:$0xff]
        %v3028 = vld [vmem:[%s3022 + $0x28] sm:$0xff]
        %v3029 = vld [vmem:[%s3022 + $0x30] sm:$0xff]
        %v3030 = vld [vmem:[%s3022 + $0x38] sm:$0xff]
        %v3031 = vld [vmem:[%s3022 + $0x40] sm:$0xff]
        %v3032 = vld [vmem:[%s3022 + $0x48] sm:$0xff]
        %v3033 = vld [vmem:[%s3022 + $0x50] sm:$0xff]
        %v3034 = vld [vmem:[%s3022 + $0x58] sm:$0xff]
        %v3035 = vld [vmem:[%s3022 + $0x60] sm:$0xff]
        %v3036 = vld [vmem:[%s3022 + $0x68] sm:$0xff]
        %v3037 = vld [vmem:[%s3022 + $0x70] sm:$0xff]
        %v3038 = vld [vmem:[%s3022 + $0x78] sm:$0xff]
        %v3039 = vpack.c.bf16 %v3024, %v3023
        %v3040 = vpack.c.bf16 %v3026, %v3025
        %v3041 = vpack.c.bf16 %v3028, %v3027
        %v3042 = vpack.c.bf16 %v3030, %v3029
        %v3043 = vpack.c.bf16 %v3032, %v3031
        %v3044 = vpack.c.bf16 %v3034, %v3033
        %v3045 = vpack.c.bf16 %v3036, %v3035
        %v3046 = vpack.c.bf16 %v3038, %v3037
        %s3047 = scalar_lea.vmem %s1, 768
        %v3048 = vld [vmem:[%s3047] sm:$0xf]
        %v3049 = vld [vmem:[%s3047 + $0x4] sm:$0xf]
        %v3050 = vld [vmem:[%s3047 + $0x8] sm:$0xf]
        %v3051 = vld [vmem:[%s3047 + $0xc] sm:$0xf]
        %v3052 = vld [vmem:[%s3047 + $0x10] sm:$0xf]
        %v3053 = vld [vmem:[%s3047 + $0x14] sm:$0xf]
        %v3054 = vld [vmem:[%s3047 + $0x18] sm:$0xf]
        %v3055 = vld [vmem:[%s3047 + $0x1c] sm:$0xf]
        %v3056 = vld [vmem:[%s3047 + $0x20] sm:$0xf]
        %v3057 = vld [vmem:[%s3047 + $0x24] sm:$0xf]
        %v3058 = vld [vmem:[%s3047 + $0x28] sm:$0xf]
        %v3059 = vld [vmem:[%s3047 + $0x2c] sm:$0xf]
        %v3060 = vld [vmem:[%s3047 + $0x30] sm:$0xf]
        %v3061 = vld [vmem:[%s3047 + $0x34] sm:$0xf]
        %v3062 = vld [vmem:[%s3047 + $0x38] sm:$0xf]
        %v3063 = vld [vmem:[%s3047 + $0x3c] sm:$0xf]
        %v3080 = vunpack.c.l.b16 %v3048
        %v3081 = vunpack.c.l.b16 %v3049
        %v3082 = vunpack.c.l.b16 %v3050
        %v3083 = vunpack.c.l.b16 %v3051
        %v3084 = vunpack.c.l.b16 %v3052
        %v3085 = vunpack.c.l.b16 %v3053
        %v3086 = vunpack.c.l.b16 %v3054
        %v3087 = vunpack.c.l.b16 %v3055
        %v3088 = vunpack.c.l.b16 %v3056
        %v3089 = vunpack.c.l.b16 %v3057
        %v3090 = vunpack.c.l.b16 %v3058
        %v3091 = vunpack.c.l.b16 %v3059
        %v3092 = vunpack.c.l.b16 %v3060
        %v3093 = vunpack.c.l.b16 %v3061
        %v3094 = vunpack.c.l.b16 %v3062
        %v3095 = vunpack.c.l.b16 %v3063
        %v3096 = vpack.c.b16 %v3081, %v3080
        %v3097 = vpack.c.b16 %v3083, %v3082
        %v3098 = vpack.c.b16 %v3085, %v3084
        %v3099 = vpack.c.b16 %v3087, %v3086
        %v3100 = vpack.c.b16 %v3089, %v3088
        %v3101 = vpack.c.b16 %v3091, %v3090
        %v3102 = vpack.c.b16 %v3093, %v3092
        %v3103 = vpack.c.b16 %v3095, %v3094
        %3112 = vmatprep.subr.bf16.mxu0 0
        %3113 = vmatpush1.bf16.msra.mxu0 %v3096
        %3114 = vmatprep.subr.bf16.mxu0 0
        %3115 = vmatpush1.bf16.msra.mxu0 %v3097
        %3116 = vmatprep.subr.bf16.mxu0 0
        %3117 = vmatpush1.bf16.msra.mxu0 %v3098
        %3118 = vmatprep.subr.bf16.mxu0 0
        %3119 = vmatpush1.bf16.msra.mxu0 %v3099
        %3120 = vmatprep.subr.bf16.mxu0 0
        %3121 = vmatpush1.bf16.msra.mxu0 %v3100
        %3122 = vmatprep.subr.bf16.mxu0 0
        %3123 = vmatpush1.bf16.msra.mxu0 %v3101
        %3124 = vmatprep.subr.bf16.mxu0 0
        %3125 = vmatpush1.bf16.msra.mxu0 %v3102
        %3126 = vmatprep.subr.bf16.mxu0 0
        %3127 = vmatpush1.bf16.msra.mxu0 %v3103
        %3128 = vmatprep.subr.bf16.mxu0 0
        %3129 = vmatpush1.bf16.msra.mxu0 0
        %3130 = vmatprep.subr.bf16.mxu0 0
        %3131 = vmatpush1.bf16.msra.mxu0 0
        %3132 = vmatprep.subr.bf16.mxu0 0
        %3133 = vmatpush1.bf16.msra.mxu0 0
        %3134 = vmatprep.subr.bf16.mxu0 0
        %3135 = vmatpush1.bf16.msra.mxu0 0
        %3136 = vmatprep.subr.bf16.mxu0 0
        %3137 = vmatpush1.bf16.msra.mxu0 0
        %3138 = vmatprep.subr.bf16.mxu0 0
        %3139 = vmatpush1.bf16.msra.mxu0 0
        %3140 = vmatprep.subr.bf16.mxu0 0
        %3141 = vmatpush1.bf16.msra.mxu0 0
        %3142 = vmatprep.subr.bf16.mxu0 0
        %3143 = vmatpush1.bf16.msra.mxu0 0
        %3144 = vmatprep.mubr.bf16.mxu0 0
        %3145 = vmatmul.mubr.bf16.gmra.mrb[0].mxu0 %v3039
        %v3146 = vpop.f32.mrb[0].mxu0
        %v3147 = vadd.f32 0.0, %v3146
        %v3148 = vpop.f32.mrb[0].mxu0
        %v3149 = vpop.f32.mrb[0].mxu0
        %v3150 = vadd.f32 0.0, %v3149
        %v3151 = vpop.f32.mrb[0].mxu0
        %3152 = vmatprep.mubr.bf16.mxu0 0
        %3153 = vmatmul.mubr.bf16.gmra.mrb[0].mxu0 %v3040
        %v3154 = vpop.f32.mrb[0].mxu0
        %v3155 = vadd.f32 0.0, %v3154
        %v3156 = vpop.f32.mrb[0].mxu0
        %v3157 = vpop.f32.mrb[0].mxu0
        %v3158 = vadd.f32 0.0, %v3157
        %v3159 = vpop.f32.mrb[0].mxu0
        %3160 = vmatprep.mubr.bf16.mxu0 0
        %3161 = vmatmul.mubr.bf16.gmra.mrb[0].mxu0 %v3041
        %v3162 = vpop.f32.mrb[0].mxu0
        %v3163 = vadd.f32 0.0, %v3162
        %v3164 = vpop.f32.mrb[0].mxu0
        %v3165 = vpop.f32.mrb[0].mxu0
        %v3166 = vadd.f32 0.0, %v3165
        %v3167 = vpop.f32.mrb[0].mxu0
        %3168 = vmatprep.mubr.bf16.mxu0 0
        %3169 = vmatmul.mubr.bf16.gmra.mrb[0].mxu0 %v3042
        %v3170 = vpop.f32.mrb[0].mxu0
        %v3171 = vadd.f32 0.0, %v3170
        %v3172 = vpop.f32.mrb[0].mxu0
        %v3173 = vpop.f32.mrb[0].mxu0
        %v3174 = vadd.f32 0.0, %v3173
        %v3175 = vpop.f32.mrb[0].mxu0
        %3176 = vmatprep.mubr.bf16.mxu0 0
        %3177 = vmatmul.mubr.bf16.gmra.mrb[0].mxu0 %v3043
        %v3178 = vpop.f32.mrb[0].mxu0
        %v3179 = vadd.f32 0.0, %v3178
        %v3180 = vpop.f32.mrb[0].mxu0
        %v3181 = vpop.f32.mrb[0].mxu0
        %v3182 = vadd.f32 0.0, %v3181
        %v3183 = vpop.f32.mrb[0].mxu0
        %3184 = vmatprep.mubr.bf16.mxu0 0
        %3185 = vmatmul.mubr.bf16.gmra.mrb[0].mxu0 %v3044
        %v3186 = vpop.f32.mrb[0].mxu0
        %v3187 = vadd.f32 0.0, %v3186
        %v3188 = vpop.f32.mrb[0].mxu0
        %v3189 = vpop.f32.mrb[0].mxu0
        %v3190 = vadd.f32 0.0, %v3189
        %v3191 = vpop.f32.mrb[0].mxu0
        %3192 = vmatprep.mubr.bf16.mxu0 0
        %3193 = vmatmul.mubr.bf16.gmra.mrb[0].mxu0 %v3045
        %v3194 = vpop.f32.mrb[0].mxu0
        %v3195 = vadd.f32 0.0, %v3194
        %v3196 = vpop.f32.mrb[0].mxu0
        %v3197 = vpop.f32.mrb[0].mxu0
        %v3198 = vadd.f32 0.0, %v3197
        %v3199 = vpop.f32.mrb[0].mxu0
        %3200 = vmatprep.mubr.bf16.mxu0 0
        %3201 = vmatmul.mubr.bf16.gmra.mrb[0].mxu0 %v3046
        %v3202 = vpop.f32.mrb[0].mxu0
        %v3203 = vadd.f32 0.0, %v3202
        %v3204 = vpop.f32.mrb[0].mxu0
        %v3205 = vpop.f32.mrb[0].mxu0
        %v3206 = vadd.f32 0.0, %v3205
        %v3207 = vpop.f32.mrb[0].mxu0
        %3208 = vdwg.mxu0
        %v3209 = vadd.f32 %v3005, %v3147
        %v3210 = vadd.f32 %v3006, %v3150
        %v3211 = vadd.f32 %v3007, %v3155
        %v3212 = vadd.f32 %v3008, %v3158
        %v3213 = vadd.f32 %v3009, %v3163
        %v3214 = vadd.f32 %v3010, %v3166
        %v3215 = vadd.f32 %v3011, %v3171
        %v3216 = vadd.f32 %v3012, %v3174
        %v3217 = vadd.f32 %v3013, %v3179
        %v3218 = vadd.f32 %v3014, %v3182
        %v3219 = vadd.f32 %v3015, %v3187
        %v3220 = vadd.f32 %v3016, %v3190
        %v3221 = vadd.f32 %v3017, %v3195
        %v3222 = vadd.f32 %v3018, %v3198
        %v3223 = vadd.f32 %v3019, %v3203
        %v3224 = vadd.f32 %v3020, %v3206
        %s3225 = scalar_lea.vmem [#allocation2], %s2440
        %v3226 = vld [vmem:[%s3225] sm:$0xff]
        %v3227 = vld [vmem:[%s3225 + $0x8] sm:$0xff]
        %v3228 = vld [vmem:[%s3225 + $0x10] sm:$0xff]
        %v3229 = vld [vmem:[%s3225 + $0x18] sm:$0xff]
        %v3230 = vld [vmem:[%s3225 + $0x20] sm:$0xff]
        %v3231 = vld [vmem:[%s3225 + $0x28] sm:$0xff]
        %v3232 = vld [vmem:[%s3225 + $0x30] sm:$0xff]
        %v3233 = vld [vmem:[%s3225 + $0x38] sm:$0xff]
        %v3234 = vld [vmem:[%s3225 + $0x40] sm:$0xff]
        %v3235 = vld [vmem:[%s3225 + $0x48] sm:$0xff]
        %v3236 = vld [vmem:[%s3225 + $0x50] sm:$0xff]
        %v3237 = vld [vmem:[%s3225 + $0x58] sm:$0xff]
        %v3238 = vld [vmem:[%s3225 + $0x60] sm:$0xff]
        %v3239 = vld [vmem:[%s3225 + $0x68] sm:$0xff]
        %v3240 = vld [vmem:[%s3225 + $0x70] sm:$0xff]
        %v3241 = vld [vmem:[%s3225 + $0x78] sm:$0xff]
        %v3242 = vpack.c.bf16 %v3227, %v3226
        %v3243 = vpack.c.bf16 %v3229, %v3228
        %v3244 = vpack.c.bf16 %v3231, %v3230
        %v3245 = vpack.c.bf16 %v3233, %v3232
        %v3246 = vpack.c.bf16 %v3235, %v3234
        %v3247 = vpack.c.bf16 %v3237, %v3236
        %v3248 = vpack.c.bf16 %v3239, %v3238
        %v3249 = vpack.c.bf16 %v3241, %v3240
        %s3250 = scalar_lea.vmem %s1, 832
        %v3251 = vld [vmem:[%s3250] sm:$0xf]
        %v3252 = vld [vmem:[%s3250 + $0x4] sm:$0xf]
        %v3253 = vld [vmem:[%s3250 + $0x8] sm:$0xf]
        %v3254 = vld [vmem:[%s3250 + $0xc] sm:$0xf]
        %v3255 = vld [vmem:[%s3250 + $0x10] sm:$0xf]
        %v3256 = vld [vmem:[%s3250 + $0x14] sm:$0xf]
        %v3257 = vld [vmem:[%s3250 + $0x18] sm:$0xf]
        %v3258 = vld [vmem:[%s3250 + $0x1c] sm:$0xf]
        %v3259 = vld [vmem:[%s3250 + $0x20] sm:$0xf]
        %v3260 = vld [vmem:[%s3250 + $0x24] sm:$0xf]
        %v3261 = vld [vmem:[%s3250 + $0x28] sm:$0xf]
        %v3262 = vld [vmem:[%s3250 + $0x2c] sm:$0xf]
        %v3263 = vld [vmem:[%s3250 + $0x30] sm:$0xf]
        %v3264 = vld [vmem:[%s3250 + $0x34] sm:$0xf]
        %v3265 = vld [vmem:[%s3250 + $0x38] sm:$0xf]
        %v3266 = vld [vmem:[%s3250 + $0x3c] sm:$0xf]
        %v3283 = vunpack.c.l.b16 %v3251
        %v3284 = vunpack.c.l.b16 %v3252
        %v3285 = vunpack.c.l.b16 %v3253
        %v3286 = vunpack.c.l.b16 %v3254
        %v3287 = vunpack.c.l.b16 %v3255
        %v3288 = vunpack.c.l.b16 %v3256
        %v3289 = vunpack.c.l.b16 %v3257
        %v3290 = vunpack.c.l.b16 %v3258
        %v3291 = vunpack.c.l.b16 %v3259
        %v3292 = vunpack.c.l.b16 %v3260
        %v3293 = vunpack.c.l.b16 %v3261
        %v3294 = vunpack.c.l.b16 %v3262
        %v3295 = vunpack.c.l.b16 %v3263
        %v3296 = vunpack.c.l.b16 %v3264
        %v3297 = vunpack.c.l.b16 %v3265
        %v3298 = vunpack.c.l.b16 %v3266
        %v3299 = vpack.c.b16 %v3284, %v3283
        %v3300 = vpack.c.b16 %v3286, %v3285
        %v3301 = vpack.c.b16 %v3288, %v3287
        %v3302 = vpack.c.b16 %v3290, %v3289
        %v3303 = vpack.c.b16 %v3292, %v3291
        %v3304 = vpack.c.b16 %v3294, %v3293
        %v3305 = vpack.c.b16 %v3296, %v3295
        %v3306 = vpack.c.b16 %v3298, %v3297
        %3315 = vmatprep.subr.bf16.mxu0 0
        %3316 = vmatpush1.bf16.msra.mxu0 %v3299
        %3317 = vmatprep.subr.bf16.mxu0 0
        %3318 = vmatpush1.bf16.msra.mxu0 %v3300
        %3319 = vmatprep.subr.bf16.mxu0 0
        %3320 = vmatpush1.bf16.msra.mxu0 %v3301
        %3321 = vmatprep.subr.bf16.mxu0 0
        %3322 = vmatpush1.bf16.msra.mxu0 %v3302
        %3323 = vmatprep.subr.bf16.mxu0 0
        %3324 = vmatpush1.bf16.msra.mxu0 %v3303
        %3325 = vmatprep.subr.bf16.mxu0 0
        %3326 = vmatpush1.bf16.msra.mxu0 %v3304
        %3327 = vmatprep.subr.bf16.mxu0 0
        %3328 = vmatpush1.bf16.msra.mxu0 %v3305
        %3329 = vmatprep.subr.bf16.mxu0 0
        %3330 = vmatpush1.bf16.msra.mxu0 %v3306
        %3331 = vmatprep.subr.bf16.mxu0 0
        %3332 = vmatpush1.bf16.msra.mxu0 0
        %3333 = vmatprep.subr.bf16.mxu0 0
        %3334 = vmatpush1.bf16.msra.mxu0 0
        %3335 = vmatprep.subr.bf16.mxu0 0
        %3336 = vmatpush1.bf16.msra.mxu0 0
        %3337 = vmatprep.subr.bf16.mxu0 0
        %3338 = vmatpush1.bf16.msra.mxu0 0
        %3339 = vmatprep.subr.bf16.mxu0 0
        %3340 = vmatpush1.bf16.msra.mxu0 0
        %3341 = vmatprep.subr.bf16.mxu0 0
        %3342 = vmatpush1.bf16.msra.mxu0 0
        %3343 = vmatprep.subr.bf16.mxu0 0
        %3344 = vmatpush1.bf16.msra.mxu0 0
        %3345 = vmatprep.subr.bf16.mxu0 0
        %3346 = vmatpush1.bf16.msra.mxu0 0
        %3347 = vmatprep.mubr.bf16.mxu0 0
        %3348 = vmatmul.mubr.bf16.gmra.mrb[0].mxu0 %v3242
        %v3349 = vpop.f32.mrb[0].mxu0
        %v3350 = vadd.f32 0.0, %v3349
        %v3351 = vpop.f32.mrb[0].mxu0
        %v3352 = vpop.f32.mrb[0].mxu0
        %v3353 = vadd.f32 0.0, %v3352
        %v3354 = vpop.f32.mrb[0].mxu0
        %3355 = vmatprep.mubr.bf16.mxu0 0
        %3356 = vmatmul.mubr.bf16.gmra.mrb[0].mxu0 %v3243
        %v3357 = vpop.f32.mrb[0].mxu0
        %v3358 = vadd.f32 0.0, %v3357
        %v3359 = vpop.f32.mrb[0].mxu0
        %v3360 = vpop.f32.mrb[0].mxu0
        %v3361 = vadd.f32 0.0, %v3360
        %v3362 = vpop.f32.mrb[0].mxu0
        %3363 = vmatprep.mubr.bf16.mxu0 0
        %3364 = vmatmul.mubr.bf16.gmra.mrb[0].mxu0 %v3244
        %v3365 = vpop.f32.mrb[0].mxu0
        %v3366 = vadd.f32 0.0, %v3365
        %v3367 = vpop.f32.mrb[0].mxu0
        %v3368 = vpop.f32.mrb[0].mxu0
        %v3369 = vadd.f32 0.0, %v3368
        %v3370 = vpop.f32.mrb[0].mxu0
        %3371 = vmatprep.mubr.bf16.mxu0 0
        %3372 = vmatmul.mubr.bf16.gmra.mrb[0].mxu0 %v3245
        %v3373 = vpop.f32.mrb[0].mxu0
        %v3374 = vadd.f32 0.0, %v3373
        %v3375 = vpop.f32.mrb[0].mxu0
        %v3376 = vpop.f32.mrb[0].mxu0
        %v3377 = vadd.f32 0.0, %v3376
        %v3378 = vpop.f32.mrb[0].mxu0
        %3379 = vmatprep.mubr.bf16.mxu0 0
        %3380 = vmatmul.mubr.bf16.gmra.mrb[0].mxu0 %v3246
        %v3381 = vpop.f32.mrb[0].mxu0
        %v3382 = vadd.f32 0.0, %v3381
        %v3383 = vpop.f32.mrb[0].mxu0
        %v3384 = vpop.f32.mrb[0].mxu0
        %v3385 = vadd.f32 0.0, %v3384
        %v3386 = vpop.f32.mrb[0].mxu0
        %3387 = vmatprep.mubr.bf16.mxu0 0
        %3388 = vmatmul.mubr.bf16.gmra.mrb[0].mxu0 %v3247
        %v3389 = vpop.f32.mrb[0].mxu0
        %v3390 = vadd.f32 0.0, %v3389
        %v3391 = vpop.f32.mrb[0].mxu0
        %v3392 = vpop.f32.mrb[0].mxu0
        %v3393 = vadd.f32 0.0, %v3392
        %v3394 = vpop.f32.mrb[0].mxu0
        %3395 = vmatprep.mubr.bf16.mxu0 0
        %3396 = vmatmul.mubr.bf16.gmra.mrb[0].mxu0 %v3248
        %v3397 = vpop.f32.mrb[0].mxu0
        %v3398 = vadd.f32 0.0, %v3397
        %v3399 = vpop.f32.mrb[0].mxu0
        %v3400 = vpop.f32.mrb[0].mxu0
        %v3401 = vadd.f32 0.0, %v3400
        %v3402 = vpop.f32.mrb[0].mxu0
        %3403 = vmatprep.mubr.bf16.mxu0 0
        %3404 = vmatmul.mubr.bf16.gmra.mrb[0].mxu0 %v3249
        %v3405 = vpop.f32.mrb[0].mxu0
        %v3406 = vadd.f32 0.0, %v3405
        %v3407 = vpop.f32.mrb[0].mxu0
        %v3408 = vpop.f32.mrb[0].mxu0
        %v3409 = vadd.f32 0.0, %v3408
        %v3410 = vpop.f32.mrb[0].mxu0
        %3411 = vdwg.mxu0
        %v3412 = vadd.f32 %v3209, %v3350
        %v3413 = vadd.f32 %v3210, %v3353
        %v3414 = vadd.f32 %v3211, %v3358
        %v3415 = vadd.f32 %v3212, %v3361
        %v3416 = vadd.f32 %v3213, %v3366
        %v3417 = vadd.f32 %v3214, %v3369
        %v3418 = vadd.f32 %v3215, %v3374
        %v3419 = vadd.f32 %v3216, %v3377
        %v3420 = vadd.f32 %v3217, %v3382
        %v3421 = vadd.f32 %v3218, %v3385
        %v3422 = vadd.f32 %v3219, %v3390
        %v3423 = vadd.f32 %v3220, %v3393
        %v3424 = vadd.f32 %v3221, %v3398
        %v3425 = vadd.f32 %v3222, %v3401
        %v3426 = vadd.f32 %v3223, %v3406
        %v3427 = vadd.f32 %v3224, %v3409
        %s3428 = sadd.s32 %s2439, 266
        %s3429 = scalar_lea.vmem [#allocation2], %s3428
        %v3430 = vld [vmem:[%s3429] sm:$0xff]
        %v3431 = vld [vmem:[%s3429 + $0x8] sm:$0xff]
        %v3432 = vld [vmem:[%s3429 + $0x10] sm:$0xff]
        %v3433 = vld [vmem:[%s3429 + $0x18] sm:$0xff]
        %v3434 = vld [vmem:[%s3429 + $0x20] sm:$0xff]
        %v3435 = vld [vmem:[%s3429 + $0x28] sm:$0xff]
        %v3436 = vld [vmem:[%s3429 + $0x30] sm:$0xff]
        %v3437 = vld [vmem:[%s3429 + $0x38] sm:$0xff]
        %v3438 = vld [vmem:[%s3429 + $0x40] sm:$0xff]
        %v3439 = vld [vmem:[%s3429 + $0x48] sm:$0xff]
        %v3440 = vld [vmem:[%s3429 + $0x50] sm:$0xff]
        %v3441 = vld [vmem:[%s3429 + $0x58] sm:$0xff]
        %v3442 = vld [vmem:[%s3429 + $0x60] sm:$0xff]
        %v3443 = vld [vmem:[%s3429 + $0x68] sm:$0xff]
        %v3444 = vld [vmem:[%s3429 + $0x70] sm:$0xff]
        %v3445 = vld [vmem:[%s3429 + $0x78] sm:$0xff]
        %v3446 = vpack.c.bf16 %v3431, %v3430
        %v3447 = vpack.c.bf16 %v3433, %v3432
        %v3448 = vpack.c.bf16 %v3435, %v3434
        %v3449 = vpack.c.bf16 %v3437, %v3436
        %v3450 = vpack.c.bf16 %v3439, %v3438
        %v3451 = vpack.c.bf16 %v3441, %v3440
        %v3452 = vpack.c.bf16 %v3443, %v3442
        %v3453 = vpack.c.bf16 %v3445, %v3444
        %s3454 = scalar_lea.vmem %s1, 896
        %v3455 = vld [vmem:[%s3454] sm:$0xf]
        %v3456 = vld [vmem:[%s3454 + $0x4] sm:$0xf]
        %v3457 = vld [vmem:[%s3454 + $0x8] sm:$0xf]
        %v3458 = vld [vmem:[%s3454 + $0xc] sm:$0xf]
        %v3459 = vld [vmem:[%s3454 + $0x10] sm:$0xf]
        %v3460 = vld [vmem:[%s3454 + $0x14] sm:$0xf]
        %v3461 = vld [vmem:[%s3454 + $0x18] sm:$0xf]
        %v3462 = vld [vmem:[%s3454 + $0x1c] sm:$0xf]
        %v3463 = vld [vmem:[%s3454 + $0x20] sm:$0xf]
        %v3464 = vld [vmem:[%s3454 + $0x24] sm:$0xf]
        %v3465 = vld [vmem:[%s3454 + $0x28] sm:$0xf]
        %v3466 = vld [vmem:[%s3454 + $0x2c] sm:$0xf]
        %v3467 = vld [vmem:[%s3454 + $0x30] sm:$0xf]
        %v3468 = vld [vmem:[%s3454 + $0x34] sm:$0xf]
        %v3469 = vld [vmem:[%s3454 + $0x38] sm:$0xf]
        %v3470 = vld [vmem:[%s3454 + $0x3c] sm:$0xf]
        %v3487 = vunpack.c.l.b16 %v3455
        %v3488 = vunpack.c.l.b16 %v3456
        %v3489 = vunpack.c.l.b16 %v3457
        %v3490 = vunpack.c.l.b16 %v3458
        %v3491 = vunpack.c.l.b16 %v3459
        %v3492 = vunpack.c.l.b16 %v3460
        %v3493 = vunpack.c.l.b16 %v3461
        %v3494 = vunpack.c.l.b16 %v3462
        %v3495 = vunpack.c.l.b16 %v3463
        %v3496 = vunpack.c.l.b16 %v3464
        %v3497 = vunpack.c.l.b16 %v3465
        %v3498 = vunpack.c.l.b16 %v3466
        %v3499 = vunpack.c.l.b16 %v3467
        %v3500 = vunpack.c.l.b16 %v3468
        %v3501 = vunpack.c.l.b16 %v3469
        %v3502 = vunpack.c.l.b16 %v3470
        %v3503 = vpack.c.b16 %v3488, %v3487
        %v3504 = vpack.c.b16 %v3490, %v3489
        %v3505 = vpack.c.b16 %v3492, %v3491
        %v3506 = vpack.c.b16 %v3494, %v3493
        %v3507 = vpack.c.b16 %v3496, %v3495
        %v3508 = vpack.c.b16 %v3498, %v3497
        %v3509 = vpack.c.b16 %v3500, %v3499
        %v3510 = vpack.c.b16 %v3502, %v3501
        %3519 = vmatprep.subr.bf16.mxu0 0
        %3520 = vmatpush1.bf16.msra.mxu0 %v3503
        %3521 = vmatprep.subr.bf16.mxu0 0
        %3522 = vmatpush1.bf16.msra.mxu0 %v3504
        %3523 = vmatprep.subr.bf16.mxu0 0
        %3524 = vmatpush1.bf16.msra.mxu0 %v3505
        %3525 = vmatprep.subr.bf16.mxu0 0
        %3526 = vmatpush1.bf16.msra.mxu0 %v3506
        %3527 = vmatprep.subr.bf16.mxu0 0
        %3528 = vmatpush1.bf16.msra.mxu0 %v3507
        %3529 = vmatprep.subr.bf16.mxu0 0
        %3530 = vmatpush1.bf16.msra.mxu0 %v3508
        %3531 = vmatprep.subr.bf16.mxu0 0
        %3532 = vmatpush1.bf16.msra.mxu0 %v3509
        %3533 = vmatprep.subr.bf16.mxu0 0
        %3534 = vmatpush1.bf16.msra.mxu0 %v3510
        %3535 = vmatprep.subr.bf16.mxu0 0
        %3536 = vmatpush1.bf16.msra.mxu0 0
        %3537 = vmatprep.subr.bf16.mxu0 0
        %3538 = vmatpush1.bf16.msra.mxu0 0
        %3539 = vmatprep.subr.bf16.mxu0 0
        %3540 = vmatpush1.bf16.msra.mxu0 0
        %3541 = vmatprep.subr.bf16.mxu0 0
        %3542 = vmatpush1.bf16.msra.mxu0 0
        %3543 = vmatprep.subr.bf16.mxu0 0
        %3544 = vmatpush1.bf16.msra.mxu0 0
        %3545 = vmatprep.subr.bf16.mxu0 0
        %3546 = vmatpush1.bf16.msra.mxu0 0
        %3547 = vmatprep.subr.bf16.mxu0 0
        %3548 = vmatpush1.bf16.msra.mxu0 0
        %3549 = vmatprep.subr.bf16.mxu0 0
        %3550 = vmatpush1.bf16.msra.mxu0 0
        %3551 = vmatprep.mubr.bf16.mxu0 0
        %3552 = vmatmul.mubr.bf16.gmra.mrb[0].mxu0 %v3446
        %v3553 = vpop.f32.mrb[0].mxu0
        %v3554 = vadd.f32 0.0, %v3553
        %v3555 = vpop.f32.mrb[0].mxu0
        %v3556 = vpop.f32.mrb[0].mxu0
        %v3557 = vadd.f32 0.0, %v3556
        %v3558 = vpop.f32.mrb[0].mxu0
        %3559 = vmatprep.mubr.bf16.mxu0 0
        %3560 = vmatmul.mubr.bf16.gmra.mrb[0].mxu0 %v3447
        %v3561 = vpop.f32.mrb[0].mxu0
        %v3562 = vadd.f32 0.0, %v3561
        %v3563 = vpop.f32.mrb[0].mxu0
        %v3564 = vpop.f32.mrb[0].mxu0
        %v3565 = vadd.f32 0.0, %v3564
        %v3566 = vpop.f32.mrb[0].mxu0
        %3567 = vmatprep.mubr.bf16.mxu0 0
        %3568 = vmatmul.mubr.bf16.gmra.mrb[0].mxu0 %v3448
        %v3569 = vpop.f32.mrb[0].mxu0
        %v3570 = vadd.f32 0.0, %v3569
        %v3571 = vpop.f32.mrb[0].mxu0
        %v3572 = vpop.f32.mrb[0].mxu0
        %v3573 = vadd.f32 0.0, %v3572
        %v3574 = vpop.f32.mrb[0].mxu0
        %3575 = vmatprep.mubr.bf16.mxu0 0
        %3576 = vmatmul.mubr.bf16.gmra.mrb[0].mxu0 %v3449
        %v3577 = vpop.f32.mrb[0].mxu0
        %v3578 = vadd.f32 0.0, %v3577
        %v3579 = vpop.f32.mrb[0].mxu0
        %v3580 = vpop.f32.mrb[0].mxu0
        %v3581 = vadd.f32 0.0, %v3580
        %v3582 = vpop.f32.mrb[0].mxu0
        %3583 = vmatprep.mubr.bf16.mxu0 0
        %3584 = vmatmul.mubr.bf16.gmra.mrb[0].mxu0 %v3450
        %v3585 = vpop.f32.mrb[0].mxu0
        %v3586 = vadd.f32 0.0, %v3585
        %v3587 = vpop.f32.mrb[0].mxu0
        %v3588 = vpop.f32.mrb[0].mxu0
        %v3589 = vadd.f32 0.0, %v3588
        %v3590 = vpop.f32.mrb[0].mxu0
        %3591 = vmatprep.mubr.bf16.mxu0 0
        %3592 = vmatmul.mubr.bf16.gmra.mrb[0].mxu0 %v3451
        %v3593 = vpop.f32.mrb[0].mxu0
        %v3594 = vadd.f32 0.0, %v3593
        %v3595 = vpop.f32.mrb[0].mxu0
        %v3596 = vpop.f32.mrb[0].mxu0
        %v3597 = vadd.f32 0.0, %v3596
        %v3598 = vpop.f32.mrb[0].mxu0
        %3599 = vmatprep.mubr.bf16.mxu0 0
        %3600 = vmatmul.mubr.bf16.gmra.mrb[0].mxu0 %v3452
        %v3601 = vpop.f32.mrb[0].mxu0
        %v3602 = vadd.f32 0.0, %v3601
        %v3603 = vpop.f32.mrb[0].mxu0
        %v3604 = vpop.f32.mrb[0].mxu0
        %v3605 = vadd.f32 0.0, %v3604
        %v3606 = vpop.f32.mrb[0].mxu0
        %3607 = vmatprep.mubr.bf16.mxu0 0
        %3608 = vmatmul.mubr.bf16.gmra.mrb[0].mxu0 %v3453
        %v3609 = vpop.f32.mrb[0].mxu0
        %v3610 = vadd.f32 0.0, %v3609
        %v3611 = vpop.f32.mrb[0].mxu0
        %v3612 = vpop.f32.mrb[0].mxu0
        %v3613 = vadd.f32 0.0, %v3612
        %v3614 = vpop.f32.mrb[0].mxu0
        %3615 = vdwg.mxu0
        %v3616 = vadd.f32 %v3412, %v3554
        %v3617 = vadd.f32 %v3413, %v3557
        %v3618 = vadd.f32 %v3414, %v3562
        %v3619 = vadd.f32 %v3415, %v3565
        %v3620 = vadd.f32 %v3416, %v3570
        %v3621 = vadd.f32 %v3417, %v3573
        %v3622 = vadd.f32 %v3418, %v3578
        %v3623 = vadd.f32 %v3419, %v3581
        %v3624 = vadd.f32 %v3420, %v3586
        %v3625 = vadd.f32 %v3421, %v3589
        %v3626 = vadd.f32 %v3422, %v3594
        %v3627 = vadd.f32 %v3423, %v3597
        %v3628 = vadd.f32 %v3424, %v3602
        %v3629 = vadd.f32 %v3425, %v3605
        %v3630 = vadd.f32 %v3426, %v3610
        %v3631 = vadd.f32 %v3427, %v3613
        %s3632 = sadd.s32 %s2439, 326
        %s3633 = scalar_lea.vmem [#allocation2], %s3632
        %v3634 = vld [vmem:[%s3633] sm:$0xff]
        %v3635 = vld [vmem:[%s3633 + $0x8] sm:$0xff]
        %v3636 = vld [vmem:[%s3633 + $0x10] sm:$0xff]
        %v3637 = vld [vmem:[%s3633 + $0x18] sm:$0xff]
        %v3638 = vld [vmem:[%s3633 + $0x20] sm:$0xff]
        %v3639 = vld [vmem:[%s3633 + $0x28] sm:$0xff]
        %v3640 = vld [vmem:[%s3633 + $0x30] sm:$0xff]
        %v3641 = vld [vmem:[%s3633 + $0x38] sm:$0xff]
        %v3642 = vld [vmem:[%s3633 + $0x40] sm:$0xff]
        %v3643 = vld [vmem:[%s3633 + $0x48] sm:$0xff]
        %v3644 = vld [vmem:[%s3633 + $0x50] sm:$0xff]
        %v3645 = vld [vmem:[%s3633 + $0x58] sm:$0xff]
        %v3646 = vld [vmem:[%s3633 + $0x60] sm:$0xff]
        %v3647 = vld [vmem:[%s3633 + $0x68] sm:$0xff]
        %v3648 = vld [vmem:[%s3633 + $0x70] sm:$0xff]
        %v3649 = vld [vmem:[%s3633 + $0x78] sm:$0xff]
        %v3650 = vpack.c.bf16 %v3635, %v3634
        %v3651 = vpack.c.bf16 %v3637, %v3636
        %v3652 = vpack.c.bf16 %v3639, %v3638
        %v3653 = vpack.c.bf16 %v3641, %v3640
        %v3654 = vpack.c.bf16 %v3643, %v3642
        %v3655 = vpack.c.bf16 %v3645, %v3644
        %v3656 = vpack.c.bf16 %v3647, %v3646
        %v3657 = vpack.c.bf16 %v3649, %v3648
        %s3658 = scalar_lea.vmem %s1, 960
        %v3659 = vld [vmem:[%s3658] sm:$0xf]
        %v3660 = vld [vmem:[%s3658 + $0x4] sm:$0xf]
        %v3661 = vld [vmem:[%s3658 + $0x8] sm:$0xf]
        %v3662 = vld [vmem:[%s3658 + $0xc] sm:$0xf]
        %v3663 = vld [vmem:[%s3658 + $0x10] sm:$0xf]
        %v3664 = vld [vmem:[%s3658 + $0x14] sm:$0xf]
        %v3665 = vld [vmem:[%s3658 + $0x18] sm:$0xf]
        %v3666 = vld [vmem:[%s3658 + $0x1c] sm:$0xf]
        %v3667 = vld [vmem:[%s3658 + $0x20] sm:$0xf]
        %v3668 = vld [vmem:[%s3658 + $0x24] sm:$0xf]
        %v3669 = vld [vmem:[%s3658 + $0x28] sm:$0xf]
        %v3670 = vld [vmem:[%s3658 + $0x2c] sm:$0xf]
        %v3671 = vld [vmem:[%s3658 + $0x30] sm:$0xf]
        %v3672 = vld [vmem:[%s3658 + $0x34] sm:$0xf]
        %v3673 = vld [vmem:[%s3658 + $0x38] sm:$0xf]
        %v3674 = vld [vmem:[%s3658 + $0x3c] sm:$0xf]
        %v3691 = vunpack.c.l.b16 %v3659
        %v3692 = vunpack.c.l.b16 %v3660
        %v3693 = vunpack.c.l.b16 %v3661
        %v3694 = vunpack.c.l.b16 %v3662
        %v3695 = vunpack.c.l.b16 %v3663
        %v3696 = vunpack.c.l.b16 %v3664
        %v3697 = vunpack.c.l.b16 %v3665
        %v3698 = vunpack.c.l.b16 %v3666
        %v3699 = vunpack.c.l.b16 %v3667
        %v3700 = vunpack.c.l.b16 %v3668
        %v3701 = vunpack.c.l.b16 %v3669
        %v3702 = vunpack.c.l.b16 %v3670
        %v3703 = vunpack.c.l.b16 %v3671
        %v3704 = vunpack.c.l.b16 %v3672
        %v3705 = vunpack.c.l.b16 %v3673
        %v3706 = vunpack.c.l.b16 %v3674
        %v3707 = vpack.c.b16 %v3692, %v3691
        %v3708 = vpack.c.b16 %v3694, %v3693
        %v3709 = vpack.c.b16 %v3696, %v3695
        %v3710 = vpack.c.b16 %v3698, %v3697
        %v3711 = vpack.c.b16 %v3700, %v3699
        %v3712 = vpack.c.b16 %v3702, %v3701
        %v3713 = vpack.c.b16 %v3704, %v3703
        %v3714 = vpack.c.b16 %v3706, %v3705
        %3723 = vmatprep.subr.bf16.mxu0 0
        %3724 = vmatpush1.bf16.msra.mxu0 %v3707
        %3725 = vmatprep.subr.bf16.mxu0 0
        %3726 = vmatpush1.bf16.msra.mxu0 %v3708
        %3727 = vmatprep.subr.bf16.mxu0 0
        %3728 = vmatpush1.bf16.msra.mxu0 %v3709
        %3729 = vmatprep.subr.bf16.mxu0 0
        %3730 = vmatpush1.bf16.msra.mxu0 %v3710
        %3731 = vmatprep.subr.bf16.mxu0 0
        %3732 = vmatpush1.bf16.msra.mxu0 %v3711
        %3733 = vmatprep.subr.bf16.mxu0 0
        %3734 = vmatpush1.bf16.msra.mxu0 %v3712
        %3735 = vmatprep.subr.bf16.mxu0 0
        %3736 = vmatpush1.bf16.msra.mxu0 %v3713
        %3737 = vmatprep.subr.bf16.mxu0 0
        %3738 = vmatpush1.bf16.msra.mxu0 %v3714
        %3739 = vmatprep.subr.bf16.mxu0 0
        %3740 = vmatpush1.bf16.msra.mxu0 0
        %3741 = vmatprep.subr.bf16.mxu0 0
        %3742 = vmatpush1.bf16.msra.mxu0 0
        %3743 = vmatprep.subr.bf16.mxu0 0
        %3744 = vmatpush1.bf16.msra.mxu0 0
        %3745 = vmatprep.subr.bf16.mxu0 0
        %3746 = vmatpush1.bf16.msra.mxu0 0
        %3747 = vmatprep.subr.bf16.mxu0 0
        %3748 = vmatpush1.bf16.msra.mxu0 0
        %3749 = vmatprep.subr.bf16.mxu0 0
        %3750 = vmatpush1.bf16.msra.mxu0 0
        %3751 = vmatprep.subr.bf16.mxu0 0
        %3752 = vmatpush1.bf16.msra.mxu0 0
        %3753 = vmatprep.subr.bf16.mxu0 0
        %3754 = vmatpush1.bf16.msra.mxu0 0
        %3755 = vmatprep.mubr.bf16.mxu0 0
        %3756 = vmatmul.mubr.bf16.gmra.mrb[0].mxu0 %v3650
        %v3757 = vpop.f32.mrb[0].mxu0
        %v3758 = vadd.f32 0.0, %v3757
        %v3759 = vpop.f32.mrb[0].mxu0
        %v3760 = vpop.f32.mrb[0].mxu0
        %v3761 = vadd.f32 0.0, %v3760
        %v3762 = vpop.f32.mrb[0].mxu0
        %3763 = vmatprep.mubr.bf16.mxu0 0
        %3764 = vmatmul.mubr.bf16.gmra.mrb[0].mxu0 %v3651
        %v3765 = vpop.f32.mrb[0].mxu0
        %v3766 = vadd.f32 0.0, %v3765
        %v3767 = vpop.f32.mrb[0].mxu0
        %v3768 = vpop.f32.mrb[0].mxu0
        %v3769 = vadd.f32 0.0, %v3768
        %v3770 = vpop.f32.mrb[0].mxu0
        %3771 = vmatprep.mubr.bf16.mxu0 0
        %3772 = vmatmul.mubr.bf16.gmra.mrb[0].mxu0 %v3652
        %v3773 = vpop.f32.mrb[0].mxu0
        %v3774 = vadd.f32 0.0, %v3773
        %v3775 = vpop.f32.mrb[0].mxu0
        %v3776 = vpop.f32.mrb[0].mxu0
        %v3777 = vadd.f32 0.0, %v3776
        %v3778 = vpop.f32.mrb[0].mxu0
        %3779 = vmatprep.mubr.bf16.mxu0 0
        %3780 = vmatmul.mubr.bf16.gmra.mrb[0].mxu0 %v3653
        %v3781 = vpop.f32.mrb[0].mxu0
        %v3782 = vadd.f32 0.0, %v3781
        %v3783 = vpop.f32.mrb[0].mxu0
        %v3784 = vpop.f32.mrb[0].mxu0
        %v3785 = vadd.f32 0.0, %v3784
        %v3786 = vpop.f32.mrb[0].mxu0
        %3787 = vmatprep.mubr.bf16.mxu0 0
        %3788 = vmatmul.mubr.bf16.gmra.mrb[0].mxu0 %v3654
        %v3789 = vpop.f32.mrb[0].mxu0
        %v3790 = vadd.f32 0.0, %v3789
        %v3791 = vpop.f32.mrb[0].mxu0
        %v3792 = vpop.f32.mrb[0].mxu0
        %v3793 = vadd.f32 0.0, %v3792
        %v3794 = vpop.f32.mrb[0].mxu0
        %3795 = vmatprep.mubr.bf16.mxu0 0
        %3796 = vmatmul.mubr.bf16.gmra.mrb[0].mxu0 %v3655
        %v3797 = vpop.f32.mrb[0].mxu0
        %v3798 = vadd.f32 0.0, %v3797
        %v3799 = vpop.f32.mrb[0].mxu0
        %v3800 = vpop.f32.mrb[0].mxu0
        %v3801 = vadd.f32 0.0, %v3800
        %v3802 = vpop.f32.mrb[0].mxu0
        %3803 = vmatprep.mubr.bf16.mxu0 0
        %3804 = vmatmul.mubr.bf16.gmra.mrb[0].mxu0 %v3656
        %v3805 = vpop.f32.mrb[0].mxu0
        %v3806 = vadd.f32 0.0, %v3805
        %v3807 = vpop.f32.mrb[0].mxu0
        %v3808 = vpop.f32.mrb[0].mxu0
        %v3809 = vadd.f32 0.0, %v3808
        %v3810 = vpop.f32.mrb[0].mxu0
        %3811 = vmatprep.mubr.bf16.mxu0 0
        %3812 = vmatmul.mubr.bf16.gmra.mrb[0].mxu0 %v3657
        %v3813 = vpop.f32.mrb[0].mxu0
        %v3814 = vadd.f32 0.0, %v3813
        %v3815 = vpop.f32.mrb[0].mxu0
        %v3816 = vpop.f32.mrb[0].mxu0
        %v3817 = vadd.f32 0.0, %v3816
        %v3818 = vpop.f32.mrb[0].mxu0
        %3819 = vdwg.mxu0
        %v3820 = vadd.f32 %v3616, %v3758
        %v3821 = vadd.f32 %v3617, %v3761
        %v3822 = vadd.f32 %v3618, %v3766
        %v3823 = vadd.f32 %v3619, %v3769
        %v3824 = vadd.f32 %v3620, %v3774
        %v3825 = vadd.f32 %v3621, %v3777
        %v3826 = vadd.f32 %v3622, %v3782
        %v3827 = vadd.f32 %v3623, %v3785
        %v3828 = vadd.f32 %v3624, %v3790
        %v3829 = vadd.f32 %v3625, %v3793
        %v3830 = vadd.f32 %v3626, %v3798
        %v3831 = vadd.f32 %v3627, %v3801
        %v3832 = vadd.f32 %v3628, %v3806
        %v3833 = vadd.f32 %v3629, %v3809
        %v3834 = vadd.f32 %v3630, %v3814
        %v3835 = vadd.f32 %v3631, %v3817
        %s3836 = sadd.s32 %s2439, 328
        %s3837 = scalar_lea.vmem [#allocation2], %s3836
        %v3838 = vld [vmem:[%s3837] sm:$0xff]
        %v3839 = vld [vmem:[%s3837 + $0x8] sm:$0xff]
        %v3840 = vld [vmem:[%s3837 + $0x10] sm:$0xff]
        %v3841 = vld [vmem:[%s3837 + $0x18] sm:$0xff]
        %v3842 = vld [vmem:[%s3837 + $0x20] sm:$0xff]
        %v3843 = vld [vmem:[%s3837 + $0x28] sm:$0xff]
        %v3844 = vld [vmem:[%s3837 + $0x30] sm:$0xff]
        %v3845 = vld [vmem:[%s3837 + $0x38] sm:$0xff]
        %v3846 = vld [vmem:[%s3837 + $0x40] sm:$0xff]
        %v3847 = vld [vmem:[%s3837 + $0x48] sm:$0xff]
        %v3848 = vld [vmem:[%s3837 + $0x50] sm:$0xff]
        %v3849 = vld [vmem:[%s3837 + $0x58] sm:$0xff]
        %v3850 = vld [vmem:[%s3837 + $0x60] sm:$0xff]
        %v3851 = vld [vmem:[%s3837 + $0x68] sm:$0xff]
        %v3852 = vld [vmem:[%s3837 + $0x70] sm:$0xff]
        %v3853 = vld [vmem:[%s3837 + $0x78] sm:$0xff]
        %v3854 = vpack.c.bf16 %v3839, %v3838
        %v3855 = vpack.c.bf16 %v3841, %v3840
        %v3856 = vpack.c.bf16 %v3843, %v3842
        %v3857 = vpack.c.bf16 %v3845, %v3844
        %v3858 = vpack.c.bf16 %v3847, %v3846
        %v3859 = vpack.c.bf16 %v3849, %v3848
        %v3860 = vpack.c.bf16 %v3851, %v3850
        %v3861 = vpack.c.bf16 %v3853, %v3852
        %s3862 = scalar_lea.vmem %s1, 1024
        %v3863 = vld [vmem:[%s3862] sm:$0xf]
        %v3864 = vld [vmem:[%s3862 + $0x4] sm:$0xf]
        %v3865 = vld [vmem:[%s3862 + $0x8] sm:$0xf]
        %v3866 = vld [vmem:[%s3862 + $0xc] sm:$0xf]
        %v3867 = vld [vmem:[%s3862 + $0x10] sm:$0xf]
        %v3868 = vld [vmem:[%s3862 + $0x14] sm:$0xf]
        %v3869 = vld [vmem:[%s3862 + $0x18] sm:$0xf]
        %v3870 = vld [vmem:[%s3862 + $0x1c] sm:$0xf]
        %v3871 = vld [vmem:[%s3862 + $0x20] sm:$0xf]
        %v3872 = vld [vmem:[%s3862 + $0x24] sm:$0xf]
        %v3873 = vld [vmem:[%s3862 + $0x28] sm:$0xf]
        %v3874 = vld [vmem:[%s3862 + $0x2c] sm:$0xf]
        %v3875 = vld [vmem:[%s3862 + $0x30] sm:$0xf]
        %v3876 = vld [vmem:[%s3862 + $0x34] sm:$0xf]
        %v3877 = vld [vmem:[%s3862 + $0x38] sm:$0xf]
        %v3878 = vld [vmem:[%s3862 + $0x3c] sm:$0xf]
        %v3895 = vunpack.c.l.b16 %v3863
        %v3896 = vunpack.c.l.b16 %v3864
        %v3897 = vunpack.c.l.b16 %v3865
        %v3898 = vunpack.c.l.b16 %v3866
        %v3899 = vunpack.c.l.b16 %v3867
        %v3900 = vunpack.c.l.b16 %v3868
        %v3901 = vunpack.c.l.b16 %v3869
        %v3902 = vunpack.c.l.b16 %v3870
        %v3903 = vunpack.c.l.b16 %v3871
        %v3904 = vunpack.c.l.b16 %v3872
        %v3905 = vunpack.c.l.b16 %v3873
        %v3906 = vunpack.c.l.b16 %v3874
        %v3907 = vunpack.c.l.b16 %v3875
        %v3908 = vunpack.c.l.b16 %v3876
        %v3909 = vunpack.c.l.b16 %v3877
        %v3910 = vunpack.c.l.b16 %v3878
        %v3911 = vpack.c.b16 %v3896, %v3895
        %v3912 = vpack.c.b16 %v3898, %v3897
        %v3913 = vpack.c.b16 %v3900, %v3899
        %v3914 = vpack.c.b16 %v3902, %v3901
        %v3915 = vpack.c.b16 %v3904, %v3903
        %v3916 = vpack.c.b16 %v3906, %v3905
        %v3917 = vpack.c.b16 %v3908, %v3907
        %v3918 = vpack.c.b16 %v3910, %v3909
        %3927 = vmatprep.subr.bf16.mxu0 0
        %3928 = vmatpush1.bf16.msra.mxu0 %v3911
        %3929 = vmatprep.subr.bf16.mxu0 0
        %3930 = vmatpush1.bf16.msra.mxu0 %v3912
        %3931 = vmatprep.subr.bf16.mxu0 0
        %3932 = vmatpush1.bf16.msra.mxu0 %v3913
        %3933 = vmatprep.subr.bf16.mxu0 0
        %3934 = vmatpush1.bf16.msra.mxu0 %v3914
        %3935 = vmatprep.subr.bf16.mxu0 0
        %3936 = vmatpush1.bf16.msra.mxu0 %v3915
        %3937 = vmatprep.subr.bf16.mxu0 0
        %3938 = vmatpush1.bf16.msra.mxu0 %v3916
        %3939 = vmatprep.subr.bf16.mxu0 0
        %3940 = vmatpush1.bf16.msra.mxu0 %v3917
        %3941 = vmatprep.subr.bf16.mxu0 0
        %3942 = vmatpush1.bf16.msra.mxu0 %v3918
        %3943 = vmatprep.subr.bf16.mxu0 0
        %3944 = vmatpush1.bf16.msra.mxu0 0
        %3945 = vmatprep.subr.bf16.mxu0 0
        %3946 = vmatpush1.bf16.msra.mxu0 0
        %3947 = vmatprep.subr.bf16.mxu0 0
        %3948 = vmatpush1.bf16.msra.mxu0 0
        %3949 = vmatprep.subr.bf16.mxu0 0
        %3950 = vmatpush1.bf16.msra.mxu0 0
        %3951 = vmatprep.subr.bf16.mxu0 0
        %3952 = vmatpush1.bf16.msra.mxu0 0
        %3953 = vmatprep.subr.bf16.mxu0 0
        %3954 = vmatpush1.bf16.msra.mxu0 0
        %3955 = vmatprep.subr.bf16.mxu0 0
        %3956 = vmatpush1.bf16.msra.mxu0 0
        %3957 = vmatprep.subr.bf16.mxu0 0
        %3958 = vmatpush1.bf16.msra.mxu0 0
        %3959 = vmatprep.mubr.bf16.mxu0 0
        %3960 = vmatmul.mubr.bf16.gmra.mrb[0].mxu0 %v3854
        %v3961 = vpop.f32.mrb[0].mxu0
        %v3962 = vadd.f32 0.0, %v3961
        %v3963 = vpop.f32.mrb[0].mxu0
        %v3964 = vpop.f32.mrb[0].mxu0
        %v3965 = vadd.f32 0.0, %v3964
        %v3966 = vpop.f32.mrb[0].mxu0
        %3967 = vmatprep.mubr.bf16.mxu0 0
        %3968 = vmatmul.mubr.bf16.gmra.mrb[0].mxu0 %v3855
        %v3969 = vpop.f32.mrb[0].mxu0
        %v3970 = vadd.f32 0.0, %v3969
        %v3971 = vpop.f32.mrb[0].mxu0
        %v3972 = vpop.f32.mrb[0].mxu0
        %v3973 = vadd.f32 0.0, %v3972
        %v3974 = vpop.f32.mrb[0].mxu0
        %3975 = vmatprep.mubr.bf16.mxu0 0
        %3976 = vmatmul.mubr.bf16.gmra.mrb[0].mxu0 %v3856
        %v3977 = vpop.f32.mrb[0].mxu0
        %v3978 = vadd.f32 0.0, %v3977
        %v3979 = vpop.f32.mrb[0].mxu0
        %v3980 = vpop.f32.mrb[0].mxu0
        %v3981 = vadd.f32 0.0, %v3980
        %v3982 = vpop.f32.mrb[0].mxu0
        %3983 = vmatprep.mubr.bf16.mxu0 0
        %3984 = vmatmul.mubr.bf16.gmra.mrb[0].mxu0 %v3857
        %v3985 = vpop.f32.mrb[0].mxu0
        %v3986 = vadd.f32 0.0, %v3985
        %v3987 = vpop.f32.mrb[0].mxu0
        %v3988 = vpop.f32.mrb[0].mxu0
        %v3989 = vadd.f32 0.0, %v3988
        %v3990 = vpop.f32.mrb[0].mxu0
        %3991 = vmatprep.mubr.bf16.mxu0 0
        %3992 = vmatmul.mubr.bf16.gmra.mrb[0].mxu0 %v3858
        %v3993 = vpop.f32.mrb[0].mxu0
        %v3994 = vadd.f32 0.0, %v3993
        %v3995 = vpop.f32.mrb[0].mxu0
        %v3996 = vpop.f32.mrb[0].mxu0
        %v3997 = vadd.f32 0.0, %v3996
        %v3998 = vpop.f32.mrb[0].mxu0
        %3999 = vmatprep.mubr.bf16.mxu0 0
        %4000 = vmatmul.mubr.bf16.gmra.mrb[0].mxu0 %v3859
        %v4001 = vpop.f32.mrb[0].mxu0
        %v4002 = vadd.f32 0.0, %v4001
        %v4003 = vpop.f32.mrb[0].mxu0
        %v4004 = vpop.f32.mrb[0].mxu0
        %v4005 = vadd.f32 0.0, %v4004
        %v4006 = vpop.f32.mrb[0].mxu0
        %4007 = vmatprep.mubr.bf16.mxu0 0
        %4008 = vmatmul.mubr.bf16.gmra.mrb[0].mxu0 %v3860
        %v4009 = vpop.f32.mrb[0].mxu0
        %v4010 = vadd.f32 0.0, %v4009
        %v4011 = vpop.f32.mrb[0].mxu0
        %v4012 = vpop.f32.mrb[0].mxu0
        %v4013 = vadd.f32 0.0, %v4012
        %v4014 = vpop.f32.mrb[0].mxu0
        %4015 = vmatprep.mubr.bf16.mxu0 0
        %4016 = vmatmul.mubr.bf16.gmra.mrb[0].mxu0 %v3861
        %v4017 = vpop.f32.mrb[0].mxu0
        %v4018 = vadd.f32 0.0, %v4017
        %v4019 = vpop.f32.mrb[0].mxu0
        %v4020 = vpop.f32.mrb[0].mxu0
        %v4021 = vadd.f32 0.0, %v4020
        %v4022 = vpop.f32.mrb[0].mxu0
        %4023 = vdwg.mxu0
        %v4024 = vadd.f32 %v3820, %v3962
        %v4025 = vadd.f32 %v3821, %v3965
        %v4026 = vadd.f32 %v3822, %v3970
        %v4027 = vadd.f32 %v3823, %v3973
        %v4028 = vadd.f32 %v3824, %v3978
        %v4029 = vadd.f32 %v3825, %v3981
        %v4030 = vadd.f32 %v3826, %v3986
        %v4031 = vadd.f32 %v3827, %v3989
        %v4032 = vadd.f32 %v3828, %v3994
        %v4033 = vadd.f32 %v3829, %v3997
        %v4034 = vadd.f32 %v3830, %v4002
        %v4035 = vadd.f32 %v3831, %v4005
        %v4036 = vadd.f32 %v3832, %v4010
        %v4037 = vadd.f32 %v3833, %v4013
        %v4038 = vadd.f32 %v3834, %v4018
        %v4039 = vadd.f32 %v3835, %v4021
        %s4040 = sadd.s32 %s2439, 330
        %s4041 = scalar_lea.vmem [#allocation2], %s4040
        %v4042 = vld [vmem:[%s4041] sm:$0xff]
        %v4043 = vld [vmem:[%s4041 + $0x8] sm:$0xff]
        %v4044 = vld [vmem:[%s4041 + $0x10] sm:$0xff]
        %v4045 = vld [vmem:[%s4041 + $0x18] sm:$0xff]
        %v4046 = vld [vmem:[%s4041 + $0x20] sm:$0xff]
        %v4047 = vld [vmem:[%s4041 + $0x28] sm:$0xff]
        %v4048 = vld [vmem:[%s4041 + $0x30] sm:$0xff]
        %v4049 = vld [vmem:[%s4041 + $0x38] sm:$0xff]
        %v4050 = vld [vmem:[%s4041 + $0x40] sm:$0xff]
        %v4051 = vld [vmem:[%s4041 + $0x48] sm:$0xff]
        %v4052 = vld [vmem:[%s4041 + $0x50] sm:$0xff]
        %v4053 = vld [vmem:[%s4041 + $0x58] sm:$0xff]
        %v4054 = vld [vmem:[%s4041 + $0x60] sm:$0xff]
        %v4055 = vld [vmem:[%s4041 + $0x68] sm:$0xff]
        %v4056 = vld [vmem:[%s4041 + $0x70] sm:$0xff]
        %v4057 = vld [vmem:[%s4041 + $0x78] sm:$0xff]
        %v4058 = vpack.c.bf16 %v4043, %v4042
        %v4059 = vpack.c.bf16 %v4045, %v4044
        %v4060 = vpack.c.bf16 %v4047, %v4046
        %v4061 = vpack.c.bf16 %v4049, %v4048
        %v4062 = vpack.c.bf16 %v4051, %v4050
        %v4063 = vpack.c.bf16 %v4053, %v4052
        %v4064 = vpack.c.bf16 %v4055, %v4054
        %v4065 = vpack.c.bf16 %v4057, %v4056
        %s4066 = scalar_lea.vmem %s1, 1088
        %v4067 = vld [vmem:[%s4066] sm:$0xf]
        %v4068 = vld [vmem:[%s4066 + $0x4] sm:$0xf]
        %v4069 = vld [vmem:[%s4066 + $0x8] sm:$0xf]
        %v4070 = vld [vmem:[%s4066 + $0xc] sm:$0xf]
        %v4071 = vld [vmem:[%s4066 + $0x10] sm:$0xf]
        %v4072 = vld [vmem:[%s4066 + $0x14] sm:$0xf]
        %v4073 = vld [vmem:[%s4066 + $0x18] sm:$0xf]
        %v4074 = vld [vmem:[%s4066 + $0x1c] sm:$0xf]
        %v4075 = vld [vmem:[%s4066 + $0x20] sm:$0xf]
        %v4076 = vld [vmem:[%s4066 + $0x24] sm:$0xf]
        %v4077 = vld [vmem:[%s4066 + $0x28] sm:$0xf]
        %v4078 = vld [vmem:[%s4066 + $0x2c] sm:$0xf]
        %v4079 = vld [vmem:[%s4066 + $0x30] sm:$0xf]
        %v4080 = vld [vmem:[%s4066 + $0x34] sm:$0xf]
        %v4081 = vld [vmem:[%s4066 + $0x38] sm:$0xf]
        %v4082 = vld [vmem:[%s4066 + $0x3c] sm:$0xf]
        %v4099 = vunpack.c.l.b16 %v4067
        %v4100 = vunpack.c.l.b16 %v4068
        %v4101 = vunpack.c.l.b16 %v4069
        %v4102 = vunpack.c.l.b16 %v4070
        %v4103 = vunpack.c.l.b16 %v4071
        %v4104 = vunpack.c.l.b16 %v4072
        %v4105 = vunpack.c.l.b16 %v4073
        %v4106 = vunpack.c.l.b16 %v4074
        %v4107 = vunpack.c.l.b16 %v4075
        %v4108 = vunpack.c.l.b16 %v4076
        %v4109 = vunpack.c.l.b16 %v4077
        %v4110 = vunpack.c.l.b16 %v4078
        %v4111 = vunpack.c.l.b16 %v4079
        %v4112 = vunpack.c.l.b16 %v4080
        %v4113 = vunpack.c.l.b16 %v4081
        %v4114 = vunpack.c.l.b16 %v4082
        %v4115 = vpack.c.b16 %v4100, %v4099
        %v4116 = vpack.c.b16 %v4102, %v4101
        %v4117 = vpack.c.b16 %v4104, %v4103
        %v4118 = vpack.c.b16 %v4106, %v4105
        %v4119 = vpack.c.b16 %v4108, %v4107
        %v4120 = vpack.c.b16 %v4110, %v4109
        %v4121 = vpack.c.b16 %v4112, %v4111
        %v4122 = vpack.c.b16 %v4114, %v4113
        %4131 = vmatprep.subr.bf16.mxu0 0
        %4132 = vmatpush1.bf16.msra.mxu0 %v4115
        %4133 = vmatprep.subr.bf16.mxu0 0
        %4134 = vmatpush1.bf16.msra.mxu0 %v4116
        %4135 = vmatprep.subr.bf16.mxu0 0
        %4136 = vmatpush1.bf16.msra.mxu0 %v4117
        %4137 = vmatprep.subr.bf16.mxu0 0
        %4138 = vmatpush1.bf16.msra.mxu0 %v4118
        %4139 = vmatprep.subr.bf16.mxu0 0
        %4140 = vmatpush1.bf16.msra.mxu0 %v4119
        %4141 = vmatprep.subr.bf16.mxu0 0
        %4142 = vmatpush1.bf16.msra.mxu0 %v4120
        %4143 = vmatprep.subr.bf16.mxu0 0
        %4144 = vmatpush1.bf16.msra.mxu0 %v4121
        %4145 = vmatprep.subr.bf16.mxu0 0
        %4146 = vmatpush1.bf16.msra.mxu0 %v4122
        %4147 = vmatprep.subr.bf16.mxu0 0
        %4148 = vmatpush1.bf16.msra.mxu0 0
        %4149 = vmatprep.subr.bf16.mxu0 0
        %4150 = vmatpush1.bf16.msra.mxu0 0
        %4151 = vmatprep.subr.bf16.mxu0 0
        %4152 = vmatpush1.bf16.msra.mxu0 0
        %4153 = vmatprep.subr.bf16.mxu0 0
        %4154 = vmatpush1.bf16.msra.mxu0 0
        %4155 = vmatprep.subr.bf16.mxu0 0
        %4156 = vmatpush1.bf16.msra.mxu0 0
        %4157 = vmatprep.subr.bf16.mxu0 0
        %4158 = vmatpush1.bf16.msra.mxu0 0
        %4159 = vmatprep.subr.bf16.mxu0 0
        %4160 = vmatpush1.bf16.msra.mxu0 0
        %4161 = vmatprep.subr.bf16.mxu0 0
        %4162 = vmatpush1.bf16.msra.mxu0 0
        %4163 = vmatprep.mubr.bf16.mxu0 0
        %4164 = vmatmul.mubr.bf16.gmra.mrb[0].mxu0 %v4058
        %v4165 = vpop.f32.mrb[0].mxu0
        %v4166 = vadd.f32 0.0, %v4165
        %v4167 = vpop.f32.mrb[0].mxu0
        %v4168 = vpop.f32.mrb[0].mxu0
        %v4169 = vadd.f32 0.0, %v4168
        %v4170 = vpop.f32.mrb[0].mxu0
        %4171 = vmatprep.mubr.bf16.mxu0 0
        %4172 = vmatmul.mubr.bf16.gmra.mrb[0].mxu0 %v4059
        %v4173 = vpop.f32.mrb[0].mxu0
        %v4174 = vadd.f32 0.0, %v4173
        %v4175 = vpop.f32.mrb[0].mxu0
        %v4176 = vpop.f32.mrb[0].mxu0
        %v4177 = vadd.f32 0.0, %v4176
        %v4178 = vpop.f32.mrb[0].mxu0
        %4179 = vmatprep.mubr.bf16.mxu0 0
        %4180 = vmatmul.mubr.bf16.gmra.mrb[0].mxu0 %v4060
        %v4181 = vpop.f32.mrb[0].mxu0
        %v4182 = vadd.f32 0.0, %v4181
        %v4183 = vpop.f32.mrb[0].mxu0
        %v4184 = vpop.f32.mrb[0].mxu0
        %v4185 = vadd.f32 0.0, %v4184
        %v4186 = vpop.f32.mrb[0].mxu0
        %4187 = vmatprep.mubr.bf16.mxu0 0
        %4188 = vmatmul.mubr.bf16.gmra.mrb[0].mxu0 %v4061
        %v4189 = vpop.f32.mrb[0].mxu0
        %v4190 = vadd.f32 0.0, %v4189
        %v4191 = vpop.f32.mrb[0].mxu0
        %v4192 = vpop.f32.mrb[0].mxu0
        %v4193 = vadd.f32 0.0, %v4192
        %v4194 = vpop.f32.mrb[0].mxu0
        %4195 = vmatprep.mubr.bf16.mxu0 0
        %4196 = vmatmul.mubr.bf16.gmra.mrb[0].mxu0 %v4062
        %v4197 = vpop.f32.mrb[0].mxu0
        %v4198 = vadd.f32 0.0, %v4197
        %v4199 = vpop.f32.mrb[0].mxu0
        %v4200 = vpop.f32.mrb[0].mxu0
        %v4201 = vadd.f32 0.0, %v4200
        %v4202 = vpop.f32.mrb[0].mxu0
        %4203 = vmatprep.mubr.bf16.mxu0 0
        %4204 = vmatmul.mubr.bf16.gmra.mrb[0].mxu0 %v4063
        %v4205 = vpop.f32.mrb[0].mxu0
        %v4206 = vadd.f32 0.0, %v4205
        %v4207 = vpop.f32.mrb[0].mxu0
        %v4208 = vpop.f32.mrb[0].mxu0
        %v4209 = vadd.f32 0.0, %v4208
        %v4210 = vpop.f32.mrb[0].mxu0
        %4211 = vmatprep.mubr.bf16.mxu0 0
        %4212 = vmatmul.mubr.bf16.gmra.mrb[0].mxu0 %v4064
        %v4213 = vpop.f32.mrb[0].mxu0
        %v4214 = vadd.f32 0.0, %v4213
        %v4215 = vpop.f32.mrb[0].mxu0
        %v4216 = vpop.f32.mrb[0].mxu0
        %v4217 = vadd.f32 0.0, %v4216
        %v4218 = vpop.f32.mrb[0].mxu0
        %4219 = vmatprep.mubr.bf16.mxu0 0
        %4220 = vmatmul.mubr.bf16.gmra.mrb[0].mxu0 %v4065
        %v4221 = vpop.f32.mrb[0].mxu0
        %v4222 = vadd.f32 0.0, %v4221
        %v4223 = vpop.f32.mrb[0].mxu0
        %v4224 = vpop.f32.mrb[0].mxu0
        %v4225 = vadd.f32 0.0, %v4224
        %v4226 = vpop.f32.mrb[0].mxu0
        %4227 = vdwg.mxu0
        %v4228 = vadd.f32 %v4024, %v4166
        %v4229 = vadd.f32 %v4025, %v4169
        %v4230 = vadd.f32 %v4026, %v4174
        %v4231 = vadd.f32 %v4027, %v4177
        %v4232 = vadd.f32 %v4028, %v4182
        %v4233 = vadd.f32 %v4029, %v4185
        %v4234 = vadd.f32 %v4030, %v4190
        %v4235 = vadd.f32 %v4031, %v4193
        %v4236 = vadd.f32 %v4032, %v4198
        %v4237 = vadd.f32 %v4033, %v4201
        %v4238 = vadd.f32 %v4034, %v4206
        %v4239 = vadd.f32 %v4035, %v4209
        %v4240 = vadd.f32 %v4036, %v4214
        %v4241 = vadd.f32 %v4037, %v4217
        %v4242 = vadd.f32 %v4038, %v4222
        %v4243 = vadd.f32 %v4039, %v4225
        %v4245 = vlaneseq
        %v4246 = vshrl.u32 %v4245, 7
        %v4247 = vsub.s32 0, %v4246
        %v4248 = vrot.slane %v2430, %v4247
        %v4250 = vmul.f32 %v4228, %v4248
        %v4251 = vmul.f32 %v4229, %v4248
        %v4252 = vmul.f32 %v4230, %v4248
        %v4253 = vmul.f32 %v4231, %v4248
        %v4254 = vmul.f32 %v4232, %v4248
        %v4255 = vmul.f32 %v4233, %v4248
        %v4256 = vmul.f32 %v4234, %v4248
        %v4257 = vmul.f32 %v4235, %v4248
        %v4258 = vmul.f32 %v4236, %v4248
        %v4259 = vmul.f32 %v4237, %v4248
        %v4260 = vmul.f32 %v4238, %v4248
        %v4261 = vmul.f32 %v4239, %v4248
        %v4262 = vmul.f32 %v4240, %v4248
        %v4263 = vmul.f32 %v4241, %v4248
        %v4264 = vmul.f32 %v4242, %v4248
        %v4265 = vmul.f32 %v4243, %v4248
        %v4267 = vlaneseq
        %v4268 = vshrl.u32 %v4267, 7
        %v4269 = vsub.s32 0, %v4268
        %v4270 = vrot.slane %v2432, %v4269
        %v4272 = vadd.f32 %v4250, %v4270
        %v4273 = vadd.f32 %v4251, %v4270
        %v4274 = vadd.f32 %v4252, %v4270
        %v4275 = vadd.f32 %v4253, %v4270
        %v4276 = vadd.f32 %v4254, %v4270
        %v4277 = vadd.f32 %v4255, %v4270
        %v4278 = vadd.f32 %v4256, %v4270
        %v4279 = vadd.f32 %v4257, %v4270
        %v4280 = vadd.f32 %v4258, %v4270
        %v4281 = vadd.f32 %v4259, %v4270
        %v4282 = vadd.f32 %v4260, %v4270
        %v4283 = vadd.f32 %v4261, %v4270
        %v4284 = vadd.f32 %v4262, %v4270
        %v4285 = vadd.f32 %v4263, %v4270
        %v4286 = vadd.f32 %v4264, %v4270
        %v4287 = vadd.f32 %v4265, %v4270
        %v4288 = vmax.f32 %v4272, 0.0
        %v4289 = vmax.f32 %v4273, 0.0
        %v4290 = vmax.f32 %v4274, 0.0
        %v4291 = vmax.f32 %v4275, 0.0
        %v4292 = vmax.f32 %v4276, 0.0
        %v4293 = vmax.f32 %v4277, 0.0
        %v4294 = vmax.f32 %v4278, 0.0
        %v4295 = vmax.f32 %v4279, 0.0
        %v4296 = vmax.f32 %v4280, 0.0
        %v4297 = vmax.f32 %v4281, 0.0
        %v4298 = vmax.f32 %v4282, 0.0
        %v4299 = vmax.f32 %v4283, 0.0
        %v4300 = vmax.f32 %v4284, 0.0
        %v4301 = vmax.f32 %v4285, 0.0
        %v4302 = vmax.f32 %v4286, 0.0
        %v4303 = vmax.f32 %v4287, 0.0
        %s4304 = scalar_lea.vmem [#allocation3], %s2440
        %4305 = vst [vmem:[%s4304] sm:$0xff] %v4288
        %4306 = vst [vmem:[%s4304 + $0x8] sm:$0xff] %v4289
        %4307 = vst [vmem:[%s4304 + $0x10] sm:$0xff] %v4290
        %4308 = vst [vmem:[%s4304 + $0x18] sm:$0xff] %v4291
        %4309 = vst [vmem:[%s4304 + $0x20] sm:$0xff] %v4292
        %4310 = vst [vmem:[%s4304 + $0x28] sm:$0xff] %v4293
        %4311 = vst [vmem:[%s4304 + $0x30] sm:$0xff] %v4294
        %4312 = vst [vmem:[%s4304 + $0x38] sm:$0xff] %v4295
        %4313 = vst [vmem:[%s4304 + $0x40] sm:$0xff] %v4296
        %4314 = vst [vmem:[%s4304 + $0x48] sm:$0xff] %v4297
        %4315 = vst [vmem:[%s4304 + $0x50] sm:$0xff] %v4298
        %4316 = vst [vmem:[%s4304 + $0x58] sm:$0xff] %v4299
        %4317 = vst [vmem:[%s4304 + $0x60] sm:$0xff] %v4300
        %4318 = vst [vmem:[%s4304 + $0x68] sm:$0xff] %v4301
        %4319 = vst [vmem:[%s4304 + $0x70] sm:$0xff] %v4302
        %4320 = vst [vmem:[%s4304 + $0x78] sm:$0xff] %v4303
      $region66: #{conv4_forward.1} parent=39 // loop_footer
        %s2438 = sadd.s32 1, %s2434
      $region67: #{conv4_forward.1} parent=39 // loop_footer_branch
        %2433 = sbr.rel target = $region63
      $region68: #{conv4_forward.1} parent=39 // loop_exit
        _
      loop: start=0, step=1, limit=8
      $region69: #{conv4_forward.1} parent=39 // loop_pre_header
        _
      $region70: #{conv4_forward.1} parent=39 // loop_header
        %s4322 = sphi 0, %s4326
        %p4323 = scmp.ge.s32.totalorder %s4322, 8
      $region71: #{conv4_forward.1} parent=39 // loop_header_branch
        %4325 = sbr.rel (%p4323) target = $region75
      $region72: #{conv4_forward.1} parent=39 // loop_body
        %s4327 = smul.u32 %s4322, 128
        %s4328 = sadd.s32 %s4327, 264
        %s4329 = scalar_lea.vmem [#allocation3], %s4328
        %v4330 = vld [vmem:[%s4329] sm:$0xff]
        %v4331 = vld [vmem:[%s4329 + $0x8] sm:$0xff]
        %v4332 = vld [vmem:[%s4329 + $0x10] sm:$0xff]
        %v4333 = vld [vmem:[%s4329 + $0x18] sm:$0xff]
        %v4334 = vld [vmem:[%s4329 + $0x20] sm:$0xff]
        %v4335 = vld [vmem:[%s4329 + $0x28] sm:$0xff]
        %v4336 = vld [vmem:[%s4329 + $0x30] sm:$0xff]
        %v4337 = vld [vmem:[%s4329 + $0x38] sm:$0xff]
        %v4338 = vld [vmem:[%s4329 + $0x40] sm:$0xff]
        %v4339 = vld [vmem:[%s4329 + $0x48] sm:$0xff]
        %v4340 = vld [vmem:[%s4329 + $0x50] sm:$0xff]
        %v4341 = vld [vmem:[%s4329 + $0x58] sm:$0xff]
        %v4342 = vld [vmem:[%s4329 + $0x60] sm:$0xff]
        %v4343 = vld [vmem:[%s4329 + $0x68] sm:$0xff]
        %v4344 = vld [vmem:[%s4329 + $0x70] sm:$0xff]
        %v4345 = vld [vmem:[%s4329 + $0x78] sm:$0xff]
        %s4346 = sadd.s32 %s4327, 266
        %s4347 = scalar_lea.vmem [#allocation3], %s4346
        %v4348 = vld [vmem:[%s4347] sm:$0xff]
        %v4349 = vld [vmem:[%s4347 + $0x8] sm:$0xff]
        %v4350 = vld [vmem:[%s4347 + $0x10] sm:$0xff]
        %v4351 = vld [vmem:[%s4347 + $0x18] sm:$0xff]
        %v4352 = vld [vmem:[%s4347 + $0x20] sm:$0xff]
        %v4353 = vld [vmem:[%s4347 + $0x28] sm:$0xff]
        %v4354 = vld [vmem:[%s4347 + $0x30] sm:$0xff]
        %v4355 = vld [vmem:[%s4347 + $0x38] sm:$0xff]
        %v4356 = vld [vmem:[%s4347 + $0x40] sm:$0xff]
        %v4357 = vld [vmem:[%s4347 + $0x48] sm:$0xff]
        %v4358 = vld [vmem:[%s4347 + $0x50] sm:$0xff]
        %v4359 = vld [vmem:[%s4347 + $0x58] sm:$0xff]
        %v4360 = vld [vmem:[%s4347 + $0x60] sm:$0xff]
        %v4361 = vld [vmem:[%s4347 + $0x68] sm:$0xff]
        %v4362 = vld [vmem:[%s4347 + $0x70] sm:$0xff]
        %v4363 = vld [vmem:[%s4347 + $0x78] sm:$0xff]
        %s4364 = sadd.s32 %s4327, 328
        %s4365 = scalar_lea.vmem [#allocation3], %s4364
        %v4366 = vld [vmem:[%s4365] sm:$0xff]
        %v4367 = vld [vmem:[%s4365 + $0x8] sm:$0xff]
        %v4368 = vld [vmem:[%s4365 + $0x10] sm:$0xff]
        %v4369 = vld [vmem:[%s4365 + $0x18] sm:$0xff]
        %v4370 = vld [vmem:[%s4365 + $0x20] sm:$0xff]
        %v4371 = vld [vmem:[%s4365 + $0x28] sm:$0xff]
        %v4372 = vld [vmem:[%s4365 + $0x30] sm:$0xff]
        %v4373 = vld [vmem:[%s4365 + $0x38] sm:$0xff]
        %v4374 = vld [vmem:[%s4365 + $0x40] sm:$0xff]
        %v4375 = vld [vmem:[%s4365 + $0x48] sm:$0xff]
        %v4376 = vld [vmem:[%s4365 + $0x50] sm:$0xff]
        %v4377 = vld [vmem:[%s4365 + $0x58] sm:$0xff]
        %v4378 = vld [vmem:[%s4365 + $0x60] sm:$0xff]
        %v4379 = vld [vmem:[%s4365 + $0x68] sm:$0xff]
        %v4380 = vld [vmem:[%s4365 + $0x70] sm:$0xff]
        %v4381 = vld [vmem:[%s4365 + $0x78] sm:$0xff]
        %s4382 = sadd.s32 %s4327, 330
        %s4383 = scalar_lea.vmem [#allocation3], %s4382
        %v4384 = vld [vmem:[%s4383] sm:$0xff]
        %v4385 = vld [vmem:[%s4383 + $0x8] sm:$0xff]
        %v4386 = vld [vmem:[%s4383 + $0x10] sm:$0xff]
        %v4387 = vld [vmem:[%s4383 + $0x18] sm:$0xff]
        %v4388 = vld [vmem:[%s4383 + $0x20] sm:$0xff]
        %v4389 = vld [vmem:[%s4383 + $0x28] sm:$0xff]
        %v4390 = vld [vmem:[%s4383 + $0x30] sm:$0xff]
        %v4391 = vld [vmem:[%s4383 + $0x38] sm:$0xff]
        %v4392 = vld [vmem:[%s4383 + $0x40] sm:$0xff]
        %v4393 = vld [vmem:[%s4383 + $0x48] sm:$0xff]
        %v4394 = vld [vmem:[%s4383 + $0x50] sm:$0xff]
        %v4395 = vld [vmem:[%s4383 + $0x58] sm:$0xff]
        %v4396 = vld [vmem:[%s4383 + $0x60] sm:$0xff]
        %v4397 = vld [vmem:[%s4383 + $0x68] sm:$0xff]
        %v4398 = vld [vmem:[%s4383 + $0x70] sm:$0xff]
        %v4399 = vld [vmem:[%s4383 + $0x78] sm:$0xff]
        %v4400 = vmax.f32 %v4330, %v4348
        %v4401 = vmax.f32 %v4331, %v4349
        %v4402 = vmax.f32 %v4332, %v4350
        %v4403 = vmax.f32 %v4333, %v4351
        %v4404 = vmax.f32 %v4334, %v4352
        %v4405 = vmax.f32 %v4335, %v4353
        %v4406 = vmax.f32 %v4336, %v4354
        %v4407 = vmax.f32 %v4337, %v4355
        %v4408 = vmax.f32 %v4338, %v4356
        %v4409 = vmax.f32 %v4339, %v4357
        %v4410 = vmax.f32 %v4340, %v4358
        %v4411 = vmax.f32 %v4341, %v4359
        %v4412 = vmax.f32 %v4342, %v4360
        %v4413 = vmax.f32 %v4343, %v4361
        %v4414 = vmax.f32 %v4344, %v4362
        %v4415 = vmax.f32 %v4345, %v4363
        %v4416 = vmax.f32 %v4366, %v4384
        %v4417 = vmax.f32 %v4367, %v4385
        %v4418 = vmax.f32 %v4368, %v4386
        %v4419 = vmax.f32 %v4369, %v4387
        %v4420 = vmax.f32 %v4370, %v4388
        %v4421 = vmax.f32 %v4371, %v4389
        %v4422 = vmax.f32 %v4372, %v4390
        %v4423 = vmax.f32 %v4373, %v4391
        %v4424 = vmax.f32 %v4374, %v4392
        %v4425 = vmax.f32 %v4375, %v4393
        %v4426 = vmax.f32 %v4376, %v4394
        %v4427 = vmax.f32 %v4377, %v4395
        %v4428 = vmax.f32 %v4378, %v4396
        %v4429 = vmax.f32 %v4379, %v4397
        %v4430 = vmax.f32 %v4380, %v4398
        %v4431 = vmax.f32 %v4381, %v4399
        %v4432 = vmax.f32 %v4400, %v4416
        %v4433 = vmax.f32 %v4401, %v4417
        %v4434 = vmax.f32 %v4402, %v4418
        %v4435 = vmax.f32 %v4403, %v4419
        %v4436 = vmax.f32 %v4404, %v4420
        %v4437 = vmax.f32 %v4405, %v4421
        %v4438 = vmax.f32 %v4406, %v4422
        %v4439 = vmax.f32 %v4407, %v4423
        %v4440 = vmax.f32 %v4408, %v4424
        %v4441 = vmax.f32 %v4409, %v4425
        %v4442 = vmax.f32 %v4410, %v4426
        %v4443 = vmax.f32 %v4411, %v4427
        %v4444 = vmax.f32 %v4412, %v4428
        %v4445 = vmax.f32 %v4413, %v4429
        %v4446 = vmax.f32 %v4414, %v4430
        %v4447 = vmax.f32 %v4415, %v4431
        %s4448 = sadd.s32 %s4327, 1024
        %s4449 = scalar_lea.vmem %s4, %s4448
        %v4450 = vld [vmem:[%s4449] sm:$0xff]
        %v4451 = vld [vmem:[%s4449 + $0x8] sm:$0xff]
        %v4452 = vld [vmem:[%s4449 + $0x10] sm:$0xff]
        %v4453 = vld [vmem:[%s4449 + $0x18] sm:$0xff]
        %v4454 = vld [vmem:[%s4449 + $0x20] sm:$0xff]
        %v4455 = vld [vmem:[%s4449 + $0x28] sm:$0xff]
        %v4456 = vld [vmem:[%s4449 + $0x30] sm:$0xff]
        %v4457 = vld [vmem:[%s4449 + $0x38] sm:$0xff]
        %v4458 = vld [vmem:[%s4449 + $0x40] sm:$0xff]
        %v4459 = vld [vmem:[%s4449 + $0x48] sm:$0xff]
        %v4460 = vld [vmem:[%s4449 + $0x50] sm:$0xff]
        %v4461 = vld [vmem:[%s4449 + $0x58] sm:$0xff]
        %v4462 = vld [vmem:[%s4449 + $0x60] sm:$0xff]
        %v4463 = vld [vmem:[%s4449 + $0x68] sm:$0xff]
        %v4464 = vld [vmem:[%s4449 + $0x70] sm:$0xff]
        %v4465 = vld [vmem:[%s4449 + $0x78] sm:$0xff]
        %v4466 = vmul.f32 %v4432, %v4450
        %v4467 = vmul.f32 %v4433, %v4451
        %v4468 = vmul.f32 %v4434, %v4452
        %v4469 = vmul.f32 %v4435, %v4453
        %v4470 = vmul.f32 %v4436, %v4454
        %v4471 = vmul.f32 %v4437, %v4455
        %v4472 = vmul.f32 %v4438, %v4456
        %v4473 = vmul.f32 %v4439, %v4457
        %v4474 = vmul.f32 %v4440, %v4458
        %v4475 = vmul.f32 %v4441, %v4459
        %v4476 = vmul.f32 %v4442, %v4460
        %v4477 = vmul.f32 %v4443, %v4461
        %v4478 = vmul.f32 %v4444, %v4462
        %v4479 = vmul.f32 %v4445, %v4463
        %v4480 = vmul.f32 %v4446, %v4464
        %v4481 = vmul.f32 %v4447, %v4465
        %s4482 = scalar_lea.vmem [#allocation2], %s4328
        %4483 = vst [vmem:[%s4482] sm:$0xff] %v4466
        %4484 = vst [vmem:[%s4482 + $0x8] sm:$0xff] %v4467
        %4485 = vst [vmem:[%s4482 + $0x10] sm:$0xff] %v4468
        %4486 = vst [vmem:[%s4482 + $0x18] sm:$0xff] %v4469
        %4487 = vst [vmem:[%s4482 + $0x20] sm:$0xff] %v4470
        %4488 = vst [vmem:[%s4482 + $0x28] sm:$0xff] %v4471
        %4489 = vst [vmem:[%s4482 + $0x30] sm:$0xff] %v4472
        %4490 = vst [vmem:[%s4482 + $0x38] sm:$0xff] %v4473
        %4491 = vst [vmem:[%s4482 + $0x40] sm:$0xff] %v4474
        %4492 = vst [vmem:[%s4482 + $0x48] sm:$0xff] %v4475
        %4493 = vst [vmem:[%s4482 + $0x50] sm:$0xff] %v4476
        %4494 = vst [vmem:[%s4482 + $0x58] sm:$0xff] %v4477
        %4495 = vst [vmem:[%s4482 + $0x60] sm:$0xff] %v4478
        %4496 = vst [vmem:[%s4482 + $0x68] sm:$0xff] %v4479
        %4497 = vst [vmem:[%s4482 + $0x70] sm:$0xff] %v4480
        %4498 = vst [vmem:[%s4482 + $0x78] sm:$0xff] %v4481
      $region73: #{conv4_forward.1} parent=39 // loop_footer
        %s4326 = sadd.s32 1, %s4322
      $region74: #{conv4_forward.1} parent=39 // loop_footer_branch
        %4321 = sbr.rel target = $region70
      $region75: #{conv4_forward.1} parent=39 // loop_exit
        _
      %s4499 = scalar_lea.vmem %s2, 2
      %v4500 = vld [vmem:[%s4499] sm:$0x1]
      %s4501 = scalar_lea.vmem %s3, 2
      %v4502 = vld [vmem:[%s4501] sm:$0x1]
      loop: start=0, step=1, limit=8
      $region76: #{conv4_forward.1} parent=39 // loop_pre_header
        _
      $region77: #{conv4_forward.1} parent=39 // loop_header
        %s4504 = sphi 0, %s4508
        %p4505 = scmp.ge.s32.totalorder %s4504, 8
      $region78: #{conv4_forward.1} parent=39 // loop_header_branch
        %4507 = sbr.rel (%p4505) target = $region82
      $region79: #{conv4_forward.1} parent=39 // loop_body
        %s4509 = smul.u32 %s4504, 128
        %s4510 = sadd.s32 %s4509, 264
        %s4511 = sadd.s32 %s4509, 132
        %s4512 = scalar_lea.vmem [#allocation2], %s4511
        %v4513 = vld [vmem:[%s4512] sm:$0xff]
        %v4514 = vld [vmem:[%s4512 + $0x8] sm:$0xff]
        %v4515 = vld [vmem:[%s4512 + $0x10] sm:$0xff]
        %v4516 = vld [vmem:[%s4512 + $0x18] sm:$0xff]
        %v4517 = vld [vmem:[%s4512 + $0x20] sm:$0xff]
        %v4518 = vld [vmem:[%s4512 + $0x28] sm:$0xff]
        %v4519 = vld [vmem:[%s4512 + $0x30] sm:$0xff]
        %v4520 = vld [vmem:[%s4512 + $0x38] sm:$0xff]
        %v4521 = vld [vmem:[%s4512 + $0x40] sm:$0xff]
        %v4522 = vld [vmem:[%s4512 + $0x48] sm:$0xff]
        %v4523 = vld [vmem:[%s4512 + $0x50] sm:$0xff]
        %v4524 = vld [vmem:[%s4512 + $0x58] sm:$0xff]
        %v4525 = vld [vmem:[%s4512 + $0x60] sm:$0xff]
        %v4526 = vld [vmem:[%s4512 + $0x68] sm:$0xff]
        %v4527 = vld [vmem:[%s4512 + $0x70] sm:$0xff]
        %v4528 = vld [vmem:[%s4512 + $0x78] sm:$0xff]
        %v4529 = vpack.c.bf16 %v4514, %v4513
        %v4530 = vpack.c.bf16 %v4516, %v4515
        %v4531 = vpack.c.bf16 %v4518, %v4517
        %v4532 = vpack.c.bf16 %v4520, %v4519
        %v4533 = vpack.c.bf16 %v4522, %v4521
        %v4534 = vpack.c.bf16 %v4524, %v4523
        %v4535 = vpack.c.bf16 %v4526, %v4525
        %v4536 = vpack.c.bf16 %v4528, %v4527
        %s4537 = scalar_lea.vmem %s1, 1152
        %v4538 = vld [vmem:[%s4537] sm:$0xf]
        %v4539 = vld [vmem:[%s4537 + $0x4] sm:$0xf]
        %v4540 = vld [vmem:[%s4537 + $0x8] sm:$0xf]
        %v4541 = vld [vmem:[%s4537 + $0xc] sm:$0xf]
        %v4542 = vld [vmem:[%s4537 + $0x10] sm:$0xf]
        %v4543 = vld [vmem:[%s4537 + $0x14] sm:$0xf]
        %v4544 = vld [vmem:[%s4537 + $0x18] sm:$0xf]
        %v4545 = vld [vmem:[%s4537 + $0x1c] sm:$0xf]
        %v4546 = vld [vmem:[%s4537 + $0x20] sm:$0xf]
        %v4547 = vld [vmem:[%s4537 + $0x24] sm:$0xf]
        %v4548 = vld [vmem:[%s4537 + $0x28] sm:$0xf]
        %v4549 = vld [vmem:[%s4537 + $0x2c] sm:$0xf]
        %v4550 = vld [vmem:[%s4537 + $0x30] sm:$0xf]
        %v4551 = vld [vmem:[%s4537 + $0x34] sm:$0xf]
        %v4552 = vld [vmem:[%s4537 + $0x38] sm:$0xf]
        %v4553 = vld [vmem:[%s4537 + $0x3c] sm:$0xf]
        %s4554 = sadd.s32 %s4509, 136
        %s4555 = scalar_lea.vmem [#allocation2], %s4554
        %v4556 = vld [vmem:[%s4555] sm:$0xff]
        %v4557 = vld [vmem:[%s4555 + $0x8] sm:$0xff]
        %v4558 = vld [vmem:[%s4555 + $0x10] sm:$0xff]
        %v4559 = vld [vmem:[%s4555 + $0x18] sm:$0xff]
        %v4560 = vld [vmem:[%s4555 + $0x20] sm:$0xff]
        %v4561 = vld [vmem:[%s4555 + $0x28] sm:$0xff]
        %v4562 = vld [vmem:[%s4555 + $0x30] sm:$0xff]
        %v4563 = vld [vmem:[%s4555 + $0x38] sm:$0xff]
        %v4564 = vld [vmem:[%s4555 + $0x40] sm:$0xff]
        %v4565 = vld [vmem:[%s4555 + $0x48] sm:$0xff]
        %v4566 = vld [vmem:[%s4555 + $0x50] sm:$0xff]
        %v4567 = vld [vmem:[%s4555 + $0x58] sm:$0xff]
        %v4568 = vld [vmem:[%s4555 + $0x60] sm:$0xff]
        %v4569 = vld [vmem:[%s4555 + $0x68] sm:$0xff]
        %v4570 = vld [vmem:[%s4555 + $0x70] sm:$0xff]
        %v4571 = vld [vmem:[%s4555 + $0x78] sm:$0xff]
        %v4572 = vpack.c.bf16 %v4557, %v4556
        %v4573 = vpack.c.bf16 %v4559, %v4558
        %v4574 = vpack.c.bf16 %v4561, %v4560
        %v4575 = vpack.c.bf16 %v4563, %v4562
        %v4576 = vpack.c.bf16 %v4565, %v4564
        %v4577 = vpack.c.bf16 %v4567, %v4566
        %v4578 = vpack.c.bf16 %v4569, %v4568
        %v4579 = vpack.c.bf16 %v4571, %v4570
        %s4580 = scalar_lea.vmem %s1, 1216
        %v4581 = vld [vmem:[%s4580] sm:$0xf]
        %v4582 = vld [vmem:[%s4580 + $0x4] sm:$0xf]
        %v4583 = vld [vmem:[%s4580 + $0x8] sm:$0xf]
        %v4584 = vld [vmem:[%s4580 + $0xc] sm:$0xf]
        %v4585 = vld [vmem:[%s4580 + $0x10] sm:$0xf]
        %v4586 = vld [vmem:[%s4580 + $0x14] sm:$0xf]
        %v4587 = vld [vmem:[%s4580 + $0x18] sm:$0xf]
        %v4588 = vld [vmem:[%s4580 + $0x1c] sm:$0xf]
        %v4589 = vld [vmem:[%s4580 + $0x20] sm:$0xf]
        %v4590 = vld [vmem:[%s4580 + $0x24] sm:$0xf]
        %v4591 = vld [vmem:[%s4580 + $0x28] sm:$0xf]
        %v4592 = vld [vmem:[%s4580 + $0x2c] sm:$0xf]
        %v4593 = vld [vmem:[%s4580 + $0x30] sm:$0xf]
        %v4594 = vld [vmem:[%s4580 + $0x34] sm:$0xf]
        %v4595 = vld [vmem:[%s4580 + $0x38] sm:$0xf]
        %v4596 = vld [vmem:[%s4580 + $0x3c] sm:$0xf]
        %v4613 = vunpack.c.l.b16 %v4581
        %v4614 = vunpack.c.l.b16 %v4582
        %v4615 = vunpack.c.l.b16 %v4583
        %v4616 = vunpack.c.l.b16 %v4584
        %v4617 = vunpack.c.l.b16 %v4585
        %v4618 = vunpack.c.l.b16 %v4586
        %v4619 = vunpack.c.l.b16 %v4587
        %v4620 = vunpack.c.l.b16 %v4588
        %v4621 = vunpack.c.l.b16 %v4589
        %v4622 = vunpack.c.l.b16 %v4590
        %v4623 = vunpack.c.l.b16 %v4591
        %v4624 = vunpack.c.l.b16 %v4592
        %v4625 = vunpack.c.l.b16 %v4593
        %v4626 = vunpack.c.l.b16 %v4594
        %v4627 = vunpack.c.l.b16 %v4595
        %v4628 = vunpack.c.l.b16 %v4596
        %v4629 = vpack.c.b16 %v4614, %v4613
        %v4630 = vpack.c.b16 %v4616, %v4615
        %v4631 = vpack.c.b16 %v4618, %v4617
        %v4632 = vpack.c.b16 %v4620, %v4619
        %v4633 = vpack.c.b16 %v4622, %v4621
        %v4634 = vpack.c.b16 %v4624, %v4623
        %v4635 = vpack.c.b16 %v4626, %v4625
        %v4636 = vpack.c.b16 %v4628, %v4627
        %4645 = vmatprep.subr.bf16.mxu0 0
        %4646 = vmatpush1.bf16.msra.mxu0 %v4629
        %4647 = vmatprep.subr.bf16.mxu0 0
        %4648 = vmatpush1.bf16.msra.mxu0 %v4630
        %4649 = vmatprep.subr.bf16.mxu0 0
        %4650 = vmatpush1.bf16.msra.mxu0 %v4631
        %4651 = vmatprep.subr.bf16.mxu0 0
        %4652 = vmatpush1.bf16.msra.mxu0 %v4632
        %4653 = vmatprep.subr.bf16.mxu0 0
        %4654 = vmatpush1.bf16.msra.mxu0 %v4633
        %4655 = vmatprep.subr.bf16.mxu0 0
        %4656 = vmatpush1.bf16.msra.mxu0 %v4634
        %4657 = vmatprep.subr.bf16.mxu0 0
        %4658 = vmatpush1.bf16.msra.mxu0 %v4635
        %4659 = vmatprep.subr.bf16.mxu0 0
        %4660 = vmatpush1.bf16.msra.mxu0 %v4636
        %4661 = vmatprep.subr.bf16.mxu0 0
        %4662 = vmatpush1.bf16.msra.mxu0 0
        %4663 = vmatprep.subr.bf16.mxu0 0
        %4664 = vmatpush1.bf16.msra.mxu0 0
        %4665 = vmatprep.subr.bf16.mxu0 0
        %4666 = vmatpush1.bf16.msra.mxu0 0
        %4667 = vmatprep.subr.bf16.mxu0 0
        %4668 = vmatpush1.bf16.msra.mxu0 0
        %4669 = vmatprep.subr.bf16.mxu0 0
        %4670 = vmatpush1.bf16.msra.mxu0 0
        %4671 = vmatprep.subr.bf16.mxu0 0
        %4672 = vmatpush1.bf16.msra.mxu0 0
        %4673 = vmatprep.subr.bf16.mxu0 0
        %4674 = vmatpush1.bf16.msra.mxu0 0
        %4675 = vmatprep.subr.bf16.mxu0 0
        %4676 = vmatpush1.bf16.msra.mxu0 0
        %4677 = vmatprep.mubr.bf16.mxu0 0
        %4678 = vmatmul.mubr.bf16.gmra.mrb[0].mxu0 %v4572
        %v4679 = vpop.f32.mrb[0].mxu0
        %v4680 = vadd.f32 0.0, %v4679
        %v4681 = vpop.f32.mrb[0].mxu0
        %v4682 = vpop.f32.mrb[0].mxu0
        %v4683 = vadd.f32 0.0, %v4682
        %v4684 = vpop.f32.mrb[0].mxu0
        %4685 = vmatprep.mubr.bf16.mxu0 0
        %4686 = vmatmul.mubr.bf16.gmra.mrb[0].mxu0 %v4573
        %v4687 = vpop.f32.mrb[0].mxu0
        %v4688 = vadd.f32 0.0, %v4687
        %v4689 = vpop.f32.mrb[0].mxu0
        %v4690 = vpop.f32.mrb[0].mxu0
        %v4691 = vadd.f32 0.0, %v4690
        %v4692 = vpop.f32.mrb[0].mxu0
        %4693 = vmatprep.mubr.bf16.mxu0 0
        %4694 = vmatmul.mubr.bf16.gmra.mrb[0].mxu0 %v4574
        %v4695 = vpop.f32.mrb[0].mxu0
        %v4696 = vadd.f32 0.0, %v4695
        %v4697 = vpop.f32.mrb[0].mxu0
        %v4698 = vpop.f32.mrb[0].mxu0
        %v4699 = vadd.f32 0.0, %v4698
        %v4700 = vpop.f32.mrb[0].mxu0
        %4701 = vmatprep.mubr.bf16.mxu0 0
        %4702 = vmatmul.mubr.bf16.gmra.mrb[0].mxu0 %v4575
        %v4703 = vpop.f32.mrb[0].mxu0
        %v4704 = vadd.f32 0.0, %v4703
        %v4705 = vpop.f32.mrb[0].mxu0
        %v4706 = vpop.f32.mrb[0].mxu0
        %v4707 = vadd.f32 0.0, %v4706
        %v4708 = vpop.f32.mrb[0].mxu0
        %4709 = vmatprep.mubr.bf16.mxu0 0
        %4710 = vmatmul.mubr.bf16.gmra.mrb[0].mxu0 %v4576
        %v4711 = vpop.f32.mrb[0].mxu0
        %v4712 = vadd.f32 0.0, %v4711
        %v4713 = vpop.f32.mrb[0].mxu0
        %v4714 = vpop.f32.mrb[0].mxu0
        %v4715 = vadd.f32 0.0, %v4714
        %v4716 = vpop.f32.mrb[0].mxu0
        %4717 = vmatprep.mubr.bf16.mxu0 0
        %4718 = vmatmul.mubr.bf16.gmra.mrb[0].mxu0 %v4577
        %v4719 = vpop.f32.mrb[0].mxu0
        %v4720 = vadd.f32 0.0, %v4719
        %v4721 = vpop.f32.mrb[0].mxu0
        %v4722 = vpop.f32.mrb[0].mxu0
        %v4723 = vadd.f32 0.0, %v4722
        %v4724 = vpop.f32.mrb[0].mxu0
        %4725 = vmatprep.mubr.bf16.mxu0 0
        %4726 = vmatmul.mubr.bf16.gmra.mrb[0].mxu0 %v4578
        %v4727 = vpop.f32.mrb[0].mxu0
        %v4728 = vadd.f32 0.0, %v4727
        %v4729 = vpop.f32.mrb[0].mxu0
        %v4730 = vpop.f32.mrb[0].mxu0
        %v4731 = vadd.f32 0.0, %v4730
        %v4732 = vpop.f32.mrb[0].mxu0
        %4733 = vmatprep.mubr.bf16.mxu0 0
        %4734 = vmatmul.mubr.bf16.gmra.mrb[0].mxu0 %v4579
        %v4735 = vpop.f32.mrb[0].mxu0
        %v4736 = vadd.f32 0.0, %v4735
        %v4737 = vpop.f32.mrb[0].mxu0
        %v4738 = vpop.f32.mrb[0].mxu0
        %v4739 = vadd.f32 0.0, %v4738
        %v4740 = vpop.f32.mrb[0].mxu0
        %4741 = vdwg.mxu0
        %v4758 = vunpack.c.l.b16 %v4538
        %v4759 = vunpack.c.l.b16 %v4539
        %v4760 = vunpack.c.l.b16 %v4540
        %v4761 = vunpack.c.l.b16 %v4541
        %v4762 = vunpack.c.l.b16 %v4542
        %v4763 = vunpack.c.l.b16 %v4543
        %v4764 = vunpack.c.l.b16 %v4544
        %v4765 = vunpack.c.l.b16 %v4545
        %v4766 = vunpack.c.l.b16 %v4546
        %v4767 = vunpack.c.l.b16 %v4547
        %v4768 = vunpack.c.l.b16 %v4548
        %v4769 = vunpack.c.l.b16 %v4549
        %v4770 = vunpack.c.l.b16 %v4550
        %v4771 = vunpack.c.l.b16 %v4551
        %v4772 = vunpack.c.l.b16 %v4552
        %v4773 = vunpack.c.l.b16 %v4553
        %v4774 = vpack.c.b16 %v4759, %v4758
        %v4775 = vpack.c.b16 %v4761, %v4760
        %v4776 = vpack.c.b16 %v4763, %v4762
        %v4777 = vpack.c.b16 %v4765, %v4764
        %v4778 = vpack.c.b16 %v4767, %v4766
        %v4779 = vpack.c.b16 %v4769, %v4768
        %v4780 = vpack.c.b16 %v4771, %v4770
        %v4781 = vpack.c.b16 %v4773, %v4772
        %4790 = vmatprep.subr.bf16.mxu0 0
        %4791 = vmatpush1.bf16.msra.mxu0 %v4774
        %4792 = vmatprep.subr.bf16.mxu0 0
        %4793 = vmatpush1.bf16.msra.mxu0 %v4775
        %4794 = vmatprep.subr.bf16.mxu0 0
        %4795 = vmatpush1.bf16.msra.mxu0 %v4776
        %4796 = vmatprep.subr.bf16.mxu0 0
        %4797 = vmatpush1.bf16.msra.mxu0 %v4777
        %4798 = vmatprep.subr.bf16.mxu0 0
        %4799 = vmatpush1.bf16.msra.mxu0 %v4778
        %4800 = vmatprep.subr.bf16.mxu0 0
        %4801 = vmatpush1.bf16.msra.mxu0 %v4779
        %4802 = vmatprep.subr.bf16.mxu0 0
        %4803 = vmatpush1.bf16.msra.mxu0 %v4780
        %4804 = vmatprep.subr.bf16.mxu0 0
        %4805 = vmatpush1.bf16.msra.mxu0 %v4781
        %4806 = vmatprep.subr.bf16.mxu0 0
        %4807 = vmatpush1.bf16.msra.mxu0 0
        %4808 = vmatprep.subr.bf16.mxu0 0
        %4809 = vmatpush1.bf16.msra.mxu0 0
        %4810 = vmatprep.subr.bf16.mxu0 0
        %4811 = vmatpush1.bf16.msra.mxu0 0
        %4812 = vmatprep.subr.bf16.mxu0 0
        %4813 = vmatpush1.bf16.msra.mxu0 0
        %4814 = vmatprep.subr.bf16.mxu0 0
        %4815 = vmatpush1.bf16.msra.mxu0 0
        %4816 = vmatprep.subr.bf16.mxu0 0
        %4817 = vmatpush1.bf16.msra.mxu0 0
        %4818 = vmatprep.subr.bf16.mxu0 0
        %4819 = vmatpush1.bf16.msra.mxu0 0
        %4820 = vmatprep.subr.bf16.mxu0 0
        %4821 = vmatpush1.bf16.msra.mxu0 0
        %4822 = vmatprep.mubr.bf16.mxu0 0
        %4823 = vmatmul.mubr.bf16.gmra.mrb[0].mxu0 %v4529
        %v4824 = vpop.f32.mrb[0].mxu0
        %v4825 = vadd.f32 %v4680, %v4824
        %v4826 = vpop.f32.mrb[0].mxu0
        %v4827 = vpop.f32.mrb[0].mxu0
        %v4828 = vadd.f32 %v4683, %v4827
        %v4829 = vpop.f32.mrb[0].mxu0
        %4830 = vmatprep.mubr.bf16.mxu0 0
        %4831 = vmatmul.mubr.bf16.gmra.mrb[0].mxu0 %v4530
        %v4832 = vpop.f32.mrb[0].mxu0
        %v4833 = vadd.f32 %v4688, %v4832
        %v4834 = vpop.f32.mrb[0].mxu0
        %v4835 = vpop.f32.mrb[0].mxu0
        %v4836 = vadd.f32 %v4691, %v4835
        %v4837 = vpop.f32.mrb[0].mxu0
        %4838 = vmatprep.mubr.bf16.mxu0 0
        %4839 = vmatmul.mubr.bf16.gmra.mrb[0].mxu0 %v4531
        %v4840 = vpop.f32.mrb[0].mxu0
        %v4841 = vadd.f32 %v4696, %v4840
        %v4842 = vpop.f32.mrb[0].mxu0
        %v4843 = vpop.f32.mrb[0].mxu0
        %v4844 = vadd.f32 %v4699, %v4843
        %v4845 = vpop.f32.mrb[0].mxu0
        %4846 = vmatprep.mubr.bf16.mxu0 0
        %4847 = vmatmul.mubr.bf16.gmra.mrb[0].mxu0 %v4532
        %v4848 = vpop.f32.mrb[0].mxu0
        %v4849 = vadd.f32 %v4704, %v4848
        %v4850 = vpop.f32.mrb[0].mxu0
        %v4851 = vpop.f32.mrb[0].mxu0
        %v4852 = vadd.f32 %v4707, %v4851
        %v4853 = vpop.f32.mrb[0].mxu0
        %4854 = vmatprep.mubr.bf16.mxu0 0
        %4855 = vmatmul.mubr.bf16.gmra.mrb[0].mxu0 %v4533
        %v4856 = vpop.f32.mrb[0].mxu0
        %v4857 = vadd.f32 %v4712, %v4856
        %v4858 = vpop.f32.mrb[0].mxu0
        %v4859 = vpop.f32.mrb[0].mxu0
        %v4860 = vadd.f32 %v4715, %v4859
        %v4861 = vpop.f32.mrb[0].mxu0
        %4862 = vmatprep.mubr.bf16.mxu0 0
        %4863 = vmatmul.mubr.bf16.gmra.mrb[0].mxu0 %v4534
        %v4864 = vpop.f32.mrb[0].mxu0
        %v4865 = vadd.f32 %v4720, %v4864
        %v4866 = vpop.f32.mrb[0].mxu0
        %v4867 = vpop.f32.mrb[0].mxu0
        %v4868 = vadd.f32 %v4723, %v4867
        %v4869 = vpop.f32.mrb[0].mxu0
        %4870 = vmatprep.mubr.bf16.mxu0 0
        %4871 = vmatmul.mubr.bf16.gmra.mrb[0].mxu0 %v4535
        %v4872 = vpop.f32.mrb[0].mxu0
        %v4873 = vadd.f32 %v4728, %v4872
        %v4874 = vpop.f32.mrb[0].mxu0
        %v4875 = vpop.f32.mrb[0].mxu0
        %v4876 = vadd.f32 %v4731, %v4875
        %v4877 = vpop.f32.mrb[0].mxu0
        %4878 = vmatprep.mubr.bf16.mxu0 0
        %4879 = vmatmul.mubr.bf16.gmra.mrb[0].mxu0 %v4536
        %v4880 = vpop.f32.mrb[0].mxu0
        %v4881 = vadd.f32 %v4736, %v4880
        %v4882 = vpop.f32.mrb[0].mxu0
        %v4883 = vpop.f32.mrb[0].mxu0
        %v4884 = vadd.f32 %v4739, %v4883
        %v4885 = vpop.f32.mrb[0].mxu0
        %4886 = vdwg.mxu0
        %s4887 = sadd.s32 %s4509, 140
        %s4888 = scalar_lea.vmem [#allocation2], %s4887
        %v4889 = vld [vmem:[%s4888] sm:$0xff]
        %v4890 = vld [vmem:[%s4888 + $0x8] sm:$0xff]
        %v4891 = vld [vmem:[%s4888 + $0x10] sm:$0xff]
        %v4892 = vld [vmem:[%s4888 + $0x18] sm:$0xff]
        %v4893 = vld [vmem:[%s4888 + $0x20] sm:$0xff]
        %v4894 = vld [vmem:[%s4888 + $0x28] sm:$0xff]
        %v4895 = vld [vmem:[%s4888 + $0x30] sm:$0xff]
        %v4896 = vld [vmem:[%s4888 + $0x38] sm:$0xff]
        %v4897 = vld [vmem:[%s4888 + $0x40] sm:$0xff]
        %v4898 = vld [vmem:[%s4888 + $0x48] sm:$0xff]
        %v4899 = vld [vmem:[%s4888 + $0x50] sm:$0xff]
        %v4900 = vld [vmem:[%s4888 + $0x58] sm:$0xff]
        %v4901 = vld [vmem:[%s4888 + $0x60] sm:$0xff]
        %v4902 = vld [vmem:[%s4888 + $0x68] sm:$0xff]
        %v4903 = vld [vmem:[%s4888 + $0x70] sm:$0xff]
        %v4904 = vld [vmem:[%s4888 + $0x78] sm:$0xff]
        %v4905 = vpack.c.bf16 %v4890, %v4889
        %v4906 = vpack.c.bf16 %v4892, %v4891
        %v4907 = vpack.c.bf16 %v4894, %v4893
        %v4908 = vpack.c.bf16 %v4896, %v4895
        %v4909 = vpack.c.bf16 %v4898, %v4897
        %v4910 = vpack.c.bf16 %v4900, %v4899
        %v4911 = vpack.c.bf16 %v4902, %v4901
        %v4912 = vpack.c.bf16 %v4904, %v4903
        %s4913 = scalar_lea.vmem %s1, 1280
        %v4914 = vld [vmem:[%s4913] sm:$0xf]
        %v4915 = vld [vmem:[%s4913 + $0x4] sm:$0xf]
        %v4916 = vld [vmem:[%s4913 + $0x8] sm:$0xf]
        %v4917 = vld [vmem:[%s4913 + $0xc] sm:$0xf]
        %v4918 = vld [vmem:[%s4913 + $0x10] sm:$0xf]
        %v4919 = vld [vmem:[%s4913 + $0x14] sm:$0xf]
        %v4920 = vld [vmem:[%s4913 + $0x18] sm:$0xf]
        %v4921 = vld [vmem:[%s4913 + $0x1c] sm:$0xf]
        %v4922 = vld [vmem:[%s4913 + $0x20] sm:$0xf]
        %v4923 = vld [vmem:[%s4913 + $0x24] sm:$0xf]
        %v4924 = vld [vmem:[%s4913 + $0x28] sm:$0xf]
        %v4925 = vld [vmem:[%s4913 + $0x2c] sm:$0xf]
        %v4926 = vld [vmem:[%s4913 + $0x30] sm:$0xf]
        %v4927 = vld [vmem:[%s4913 + $0x34] sm:$0xf]
        %v4928 = vld [vmem:[%s4913 + $0x38] sm:$0xf]
        %v4929 = vld [vmem:[%s4913 + $0x3c] sm:$0xf]
        %v4946 = vunpack.c.l.b16 %v4914
        %v4947 = vunpack.c.l.b16 %v4915
        %v4948 = vunpack.c.l.b16 %v4916
        %v4949 = vunpack.c.l.b16 %v4917
        %v4950 = vunpack.c.l.b16 %v4918
        %v4951 = vunpack.c.l.b16 %v4919
        %v4952 = vunpack.c.l.b16 %v4920
        %v4953 = vunpack.c.l.b16 %v4921
        %v4954 = vunpack.c.l.b16 %v4922
        %v4955 = vunpack.c.l.b16 %v4923
        %v4956 = vunpack.c.l.b16 %v4924
        %v4957 = vunpack.c.l.b16 %v4925
        %v4958 = vunpack.c.l.b16 %v4926
        %v4959 = vunpack.c.l.b16 %v4927
        %v4960 = vunpack.c.l.b16 %v4928
        %v4961 = vunpack.c.l.b16 %v4929
        %v4962 = vpack.c.b16 %v4947, %v4946
        %v4963 = vpack.c.b16 %v4949, %v4948
        %v4964 = vpack.c.b16 %v4951, %v4950
        %v4965 = vpack.c.b16 %v4953, %v4952
        %v4966 = vpack.c.b16 %v4955, %v4954
        %v4967 = vpack.c.b16 %v4957, %v4956
        %v4968 = vpack.c.b16 %v4959, %v4958
        %v4969 = vpack.c.b16 %v4961, %v4960
        %4978 = vmatprep.subr.bf16.mxu0 0
        %4979 = vmatpush1.bf16.msra.mxu0 %v4962
        %4980 = vmatprep.subr.bf16.mxu0 0
        %4981 = vmatpush1.bf16.msra.mxu0 %v4963
        %4982 = vmatprep.subr.bf16.mxu0 0
        %4983 = vmatpush1.bf16.msra.mxu0 %v4964
        %4984 = vmatprep.subr.bf16.mxu0 0
        %4985 = vmatpush1.bf16.msra.mxu0 %v4965
        %4986 = vmatprep.subr.bf16.mxu0 0
        %4987 = vmatpush1.bf16.msra.mxu0 %v4966
        %4988 = vmatprep.subr.bf16.mxu0 0
        %4989 = vmatpush1.bf16.msra.mxu0 %v4967
        %4990 = vmatprep.subr.bf16.mxu0 0
        %4991 = vmatpush1.bf16.msra.mxu0 %v4968
        %4992 = vmatprep.subr.bf16.mxu0 0
        %4993 = vmatpush1.bf16.msra.mxu0 %v4969
        %4994 = vmatprep.subr.bf16.mxu0 0
        %4995 = vmatpush1.bf16.msra.mxu0 0
        %4996 = vmatprep.subr.bf16.mxu0 0
        %4997 = vmatpush1.bf16.msra.mxu0 0
        %4998 = vmatprep.subr.bf16.mxu0 0
        %4999 = vmatpush1.bf16.msra.mxu0 0
        %5000 = vmatprep.subr.bf16.mxu0 0
        %5001 = vmatpush1.bf16.msra.mxu0 0
        %5002 = vmatprep.subr.bf16.mxu0 0
        %5003 = vmatpush1.bf16.msra.mxu0 0
        %5004 = vmatprep.subr.bf16.mxu0 0
        %5005 = vmatpush1.bf16.msra.mxu0 0
        %5006 = vmatprep.subr.bf16.mxu0 0
        %5007 = vmatpush1.bf16.msra.mxu0 0
        %5008 = vmatprep.subr.bf16.mxu0 0
        %5009 = vmatpush1.bf16.msra.mxu0 0
        %5010 = vmatprep.mubr.bf16.mxu0 0
        %5011 = vmatmul.mubr.bf16.gmra.mrb[0].mxu0 %v4905
        %v5012 = vpop.f32.mrb[0].mxu0
        %v5013 = vadd.f32 0.0, %v5012
        %v5014 = vpop.f32.mrb[0].mxu0
        %v5015 = vpop.f32.mrb[0].mxu0
        %v5016 = vadd.f32 0.0, %v5015
        %v5017 = vpop.f32.mrb[0].mxu0
        %5018 = vmatprep.mubr.bf16.mxu0 0
        %5019 = vmatmul.mubr.bf16.gmra.mrb[0].mxu0 %v4906
        %v5020 = vpop.f32.mrb[0].mxu0
        %v5021 = vadd.f32 0.0, %v5020
        %v5022 = vpop.f32.mrb[0].mxu0
        %v5023 = vpop.f32.mrb[0].mxu0
        %v5024 = vadd.f32 0.0, %v5023
        %v5025 = vpop.f32.mrb[0].mxu0
        %5026 = vmatprep.mubr.bf16.mxu0 0
        %5027 = vmatmul.mubr.bf16.gmra.mrb[0].mxu0 %v4907
        %v5028 = vpop.f32.mrb[0].mxu0
        %v5029 = vadd.f32 0.0, %v5028
        %v5030 = vpop.f32.mrb[0].mxu0
        %v5031 = vpop.f32.mrb[0].mxu0
        %v5032 = vadd.f32 0.0, %v5031
        %v5033 = vpop.f32.mrb[0].mxu0
        %5034 = vmatprep.mubr.bf16.mxu0 0
        %5035 = vmatmul.mubr.bf16.gmra.mrb[0].mxu0 %v4908
        %v5036 = vpop.f32.mrb[0].mxu0
        %v5037 = vadd.f32 0.0, %v5036
        %v5038 = vpop.f32.mrb[0].mxu0
        %v5039 = vpop.f32.mrb[0].mxu0
        %v5040 = vadd.f32 0.0, %v5039
        %v5041 = vpop.f32.mrb[0].mxu0
        %5042 = vmatprep.mubr.bf16.mxu0 0
        %5043 = vmatmul.mubr.bf16.gmra.mrb[0].mxu0 %v4909
        %v5044 = vpop.f32.mrb[0].mxu0
        %v5045 = vadd.f32 0.0, %v5044
        %v5046 = vpop.f32.mrb[0].mxu0
        %v5047 = vpop.f32.mrb[0].mxu0
        %v5048 = vadd.f32 0.0, %v5047
        %v5049 = vpop.f32.mrb[0].mxu0
        %5050 = vmatprep.mubr.bf16.mxu0 0
        %5051 = vmatmul.mubr.bf16.gmra.mrb[0].mxu0 %v4910
        %v5052 = vpop.f32.mrb[0].mxu0
        %v5053 = vadd.f32 0.0, %v5052
        %v5054 = vpop.f32.mrb[0].mxu0
        %v5055 = vpop.f32.mrb[0].mxu0
        %v5056 = vadd.f32 0.0, %v5055
        %v5057 = vpop.f32.mrb[0].mxu0
        %5058 = vmatprep.mubr.bf16.mxu0 0
        %5059 = vmatmul.mubr.bf16.gmra.mrb[0].mxu0 %v4911
        %v5060 = vpop.f32.mrb[0].mxu0
        %v5061 = vadd.f32 0.0, %v5060
        %v5062 = vpop.f32.mrb[0].mxu0
        %v5063 = vpop.f32.mrb[0].mxu0
        %v5064 = vadd.f32 0.0, %v5063
        %v5065 = vpop.f32.mrb[0].mxu0
        %5066 = vmatprep.mubr.bf16.mxu0 0
        %5067 = vmatmul.mubr.bf16.gmra.mrb[0].mxu0 %v4912
        %v5068 = vpop.f32.mrb[0].mxu0
        %v5069 = vadd.f32 0.0, %v5068
        %v5070 = vpop.f32.mrb[0].mxu0
        %v5071 = vpop.f32.mrb[0].mxu0
        %v5072 = vadd.f32 0.0, %v5071
        %v5073 = vpop.f32.mrb[0].mxu0
        %5074 = vdwg.mxu0
        %v5075 = vadd.f32 %v4825, %v5013
        %v5076 = vadd.f32 %v4828, %v5016
        %v5077 = vadd.f32 %v4833, %v5021
        %v5078 = vadd.f32 %v4836, %v5024
        %v5079 = vadd.f32 %v4841, %v5029
        %v5080 = vadd.f32 %v4844, %v5032
        %v5081 = vadd.f32 %v4849, %v5037
        %v5082 = vadd.f32 %v4852, %v5040
        %v5083 = vadd.f32 %v4857, %v5045
        %v5084 = vadd.f32 %v4860, %v5048
        %v5085 = vadd.f32 %v4865, %v5053
        %v5086 = vadd.f32 %v4868, %v5056
        %v5087 = vadd.f32 %v4873, %v5061
        %v5088 = vadd.f32 %v4876, %v5064
        %v5089 = vadd.f32 %v4881, %v5069
        %v5090 = vadd.f32 %v4884, %v5072
        %s5091 = sadd.s32 %s4509, 260
        %s5092 = scalar_lea.vmem [#allocation2], %s5091
        %v5093 = vld [vmem:[%s5092] sm:$0xff]
        %v5094 = vld [vmem:[%s5092 + $0x8] sm:$0xff]
        %v5095 = vld [vmem:[%s5092 + $0x10] sm:$0xff]
        %v5096 = vld [vmem:[%s5092 + $0x18] sm:$0xff]
        %v5097 = vld [vmem:[%s5092 + $0x20] sm:$0xff]
        %v5098 = vld [vmem:[%s5092 + $0x28] sm:$0xff]
        %v5099 = vld [vmem:[%s5092 + $0x30] sm:$0xff]
        %v5100 = vld [vmem:[%s5092 + $0x38] sm:$0xff]
        %v5101 = vld [vmem:[%s5092 + $0x40] sm:$0xff]
        %v5102 = vld [vmem:[%s5092 + $0x48] sm:$0xff]
        %v5103 = vld [vmem:[%s5092 + $0x50] sm:$0xff]
        %v5104 = vld [vmem:[%s5092 + $0x58] sm:$0xff]
        %v5105 = vld [vmem:[%s5092 + $0x60] sm:$0xff]
        %v5106 = vld [vmem:[%s5092 + $0x68] sm:$0xff]
        %v5107 = vld [vmem:[%s5092 + $0x70] sm:$0xff]
        %v5108 = vld [vmem:[%s5092 + $0x78] sm:$0xff]
        %v5109 = vpack.c.bf16 %v5094, %v5093
        %v5110 = vpack.c.bf16 %v5096, %v5095
        %v5111 = vpack.c.bf16 %v5098, %v5097
        %v5112 = vpack.c.bf16 %v5100, %v5099
        %v5113 = vpack.c.bf16 %v5102, %v5101
        %v5114 = vpack.c.bf16 %v5104, %v5103
        %v5115 = vpack.c.bf16 %v5106, %v5105
        %v5116 = vpack.c.bf16 %v5108, %v5107
        %s5117 = scalar_lea.vmem %s1, 1344
        %v5118 = vld [vmem:[%s5117] sm:$0xf]
        %v5119 = vld [vmem:[%s5117 + $0x4] sm:$0xf]
        %v5120 = vld [vmem:[%s5117 + $0x8] sm:$0xf]
        %v5121 = vld [vmem:[%s5117 + $0xc] sm:$0xf]
        %v5122 = vld [vmem:[%s5117 + $0x10] sm:$0xf]
        %v5123 = vld [vmem:[%s5117 + $0x14] sm:$0xf]
        %v5124 = vld [vmem:[%s5117 + $0x18] sm:$0xf]
        %v5125 = vld [vmem:[%s5117 + $0x1c] sm:$0xf]
        %v5126 = vld [vmem:[%s5117 + $0x20] sm:$0xf]
        %v5127 = vld [vmem:[%s5117 + $0x24] sm:$0xf]
        %v5128 = vld [vmem:[%s5117 + $0x28] sm:$0xf]
        %v5129 = vld [vmem:[%s5117 + $0x2c] sm:$0xf]
        %v5130 = vld [vmem:[%s5117 + $0x30] sm:$0xf]
        %v5131 = vld [vmem:[%s5117 + $0x34] sm:$0xf]
        %v5132 = vld [vmem:[%s5117 + $0x38] sm:$0xf]
        %v5133 = vld [vmem:[%s5117 + $0x3c] sm:$0xf]
        %v5150 = vunpack.c.l.b16 %v5118
        %v5151 = vunpack.c.l.b16 %v5119
        %v5152 = vunpack.c.l.b16 %v5120
        %v5153 = vunpack.c.l.b16 %v5121
        %v5154 = vunpack.c.l.b16 %v5122
        %v5155 = vunpack.c.l.b16 %v5123
        %v5156 = vunpack.c.l.b16 %v5124
        %v5157 = vunpack.c.l.b16 %v5125
        %v5158 = vunpack.c.l.b16 %v5126
        %v5159 = vunpack.c.l.b16 %v5127
        %v5160 = vunpack.c.l.b16 %v5128
        %v5161 = vunpack.c.l.b16 %v5129
        %v5162 = vunpack.c.l.b16 %v5130
        %v5163 = vunpack.c.l.b16 %v5131
        %v5164 = vunpack.c.l.b16 %v5132
        %v5165 = vunpack.c.l.b16 %v5133
        %v5166 = vpack.c.b16 %v5151, %v5150
        %v5167 = vpack.c.b16 %v5153, %v5152
        %v5168 = vpack.c.b16 %v5155, %v5154
        %v5169 = vpack.c.b16 %v5157, %v5156
        %v5170 = vpack.c.b16 %v5159, %v5158
        %v5171 = vpack.c.b16 %v5161, %v5160
        %v5172 = vpack.c.b16 %v5163, %v5162
        %v5173 = vpack.c.b16 %v5165, %v5164
        %5182 = vmatprep.subr.bf16.mxu0 0
        %5183 = vmatpush1.bf16.msra.mxu0 %v5166
        %5184 = vmatprep.subr.bf16.mxu0 0
        %5185 = vmatpush1.bf16.msra.mxu0 %v5167
        %5186 = vmatprep.subr.bf16.mxu0 0
        %5187 = vmatpush1.bf16.msra.mxu0 %v5168
        %5188 = vmatprep.subr.bf16.mxu0 0
        %5189 = vmatpush1.bf16.msra.mxu0 %v5169
        %5190 = vmatprep.subr.bf16.mxu0 0
        %5191 = vmatpush1.bf16.msra.mxu0 %v5170
        %5192 = vmatprep.subr.bf16.mxu0 0
        %5193 = vmatpush1.bf16.msra.mxu0 %v5171
        %5194 = vmatprep.subr.bf16.mxu0 0
        %5195 = vmatpush1.bf16.msra.mxu0 %v5172
        %5196 = vmatprep.subr.bf16.mxu0 0
        %5197 = vmatpush1.bf16.msra.mxu0 %v5173
        %5198 = vmatprep.subr.bf16.mxu0 0
        %5199 = vmatpush1.bf16.msra.mxu0 0
        %5200 = vmatprep.subr.bf16.mxu0 0
        %5201 = vmatpush1.bf16.msra.mxu0 0
        %5202 = vmatprep.subr.bf16.mxu0 0
        %5203 = vmatpush1.bf16.msra.mxu0 0
        %5204 = vmatprep.subr.bf16.mxu0 0
        %5205 = vmatpush1.bf16.msra.mxu0 0
        %5206 = vmatprep.subr.bf16.mxu0 0
        %5207 = vmatpush1.bf16.msra.mxu0 0
        %5208 = vmatprep.subr.bf16.mxu0 0
        %5209 = vmatpush1.bf16.msra.mxu0 0
        %5210 = vmatprep.subr.bf16.mxu0 0
        %5211 = vmatpush1.bf16.msra.mxu0 0
        %5212 = vmatprep.subr.bf16.mxu0 0
        %5213 = vmatpush1.bf16.msra.mxu0 0
        %5214 = vmatprep.mubr.bf16.mxu0 0
        %5215 = vmatmul.mubr.bf16.gmra.mrb[0].mxu0 %v5109
        %v5216 = vpop.f32.mrb[0].mxu0
        %v5217 = vadd.f32 0.0, %v5216
        %v5218 = vpop.f32.mrb[0].mxu0
        %v5219 = vpop.f32.mrb[0].mxu0
        %v5220 = vadd.f32 0.0, %v5219
        %v5221 = vpop.f32.mrb[0].mxu0
        %5222 = vmatprep.mubr.bf16.mxu0 0
        %5223 = vmatmul.mubr.bf16.gmra.mrb[0].mxu0 %v5110
        %v5224 = vpop.f32.mrb[0].mxu0
        %v5225 = vadd.f32 0.0, %v5224
        %v5226 = vpop.f32.mrb[0].mxu0
        %v5227 = vpop.f32.mrb[0].mxu0
        %v5228 = vadd.f32 0.0, %v5227
        %v5229 = vpop.f32.mrb[0].mxu0
        %5230 = vmatprep.mubr.bf16.mxu0 0
        %5231 = vmatmul.mubr.bf16.gmra.mrb[0].mxu0 %v5111
        %v5232 = vpop.f32.mrb[0].mxu0
        %v5233 = vadd.f32 0.0, %v5232
        %v5234 = vpop.f32.mrb[0].mxu0
        %v5235 = vpop.f32.mrb[0].mxu0
        %v5236 = vadd.f32 0.0, %v5235
        %v5237 = vpop.f32.mrb[0].mxu0
        %5238 = vmatprep.mubr.bf16.mxu0 0
        %5239 = vmatmul.mubr.bf16.gmra.mrb[0].mxu0 %v5112
        %v5240 = vpop.f32.mrb[0].mxu0
        %v5241 = vadd.f32 0.0, %v5240
        %v5242 = vpop.f32.mrb[0].mxu0
        %v5243 = vpop.f32.mrb[0].mxu0
        %v5244 = vadd.f32 0.0, %v5243
        %v5245 = vpop.f32.mrb[0].mxu0
        %5246 = vmatprep.mubr.bf16.mxu0 0
        %5247 = vmatmul.mubr.bf16.gmra.mrb[0].mxu0 %v5113
        %v5248 = vpop.f32.mrb[0].mxu0
        %v5249 = vadd.f32 0.0, %v5248
        %v5250 = vpop.f32.mrb[0].mxu0
        %v5251 = vpop.f32.mrb[0].mxu0
        %v5252 = vadd.f32 0.0, %v5251
        %v5253 = vpop.f32.mrb[0].mxu0
        %5254 = vmatprep.mubr.bf16.mxu0 0
        %5255 = vmatmul.mubr.bf16.gmra.mrb[0].mxu0 %v5114
        %v5256 = vpop.f32.mrb[0].mxu0
        %v5257 = vadd.f32 0.0, %v5256
        %v5258 = vpop.f32.mrb[0].mxu0
        %v5259 = vpop.f32.mrb[0].mxu0
        %v5260 = vadd.f32 0.0, %v5259
        %v5261 = vpop.f32.mrb[0].mxu0
        %5262 = vmatprep.mubr.bf16.mxu0 0
        %5263 = vmatmul.mubr.bf16.gmra.mrb[0].mxu0 %v5115
        %v5264 = vpop.f32.mrb[0].mxu0
        %v5265 = vadd.f32 0.0, %v5264
        %v5266 = vpop.f32.mrb[0].mxu0
        %v5267 = vpop.f32.mrb[0].mxu0
        %v5268 = vadd.f32 0.0, %v5267
        %v5269 = vpop.f32.mrb[0].mxu0
        %5270 = vmatprep.mubr.bf16.mxu0 0
        %5271 = vmatmul.mubr.bf16.gmra.mrb[0].mxu0 %v5116
        %v5272 = vpop.f32.mrb[0].mxu0
        %v5273 = vadd.f32 0.0, %v5272
        %v5274 = vpop.f32.mrb[0].mxu0
        %v5275 = vpop.f32.mrb[0].mxu0
        %v5276 = vadd.f32 0.0, %v5275
        %v5277 = vpop.f32.mrb[0].mxu0
        %5278 = vdwg.mxu0
        %v5279 = vadd.f32 %v5075, %v5217
        %v5280 = vadd.f32 %v5076, %v5220
        %v5281 = vadd.f32 %v5077, %v5225
        %v5282 = vadd.f32 %v5078, %v5228
        %v5283 = vadd.f32 %v5079, %v5233
        %v5284 = vadd.f32 %v5080, %v5236
        %v5285 = vadd.f32 %v5081, %v5241
        %v5286 = vadd.f32 %v5082, %v5244
        %v5287 = vadd.f32 %v5083, %v5249
        %v5288 = vadd.f32 %v5084, %v5252
        %v5289 = vadd.f32 %v5085, %v5257
        %v5290 = vadd.f32 %v5086, %v5260
        %v5291 = vadd.f32 %v5087, %v5265
        %v5292 = vadd.f32 %v5088, %v5268
        %v5293 = vadd.f32 %v5089, %v5273
        %v5294 = vadd.f32 %v5090, %v5276
        %s5295 = scalar_lea.vmem [#allocation2], %s4510
        %v5296 = vld [vmem:[%s5295] sm:$0xff]
        %v5297 = vld [vmem:[%s5295 + $0x8] sm:$0xff]
        %v5298 = vld [vmem:[%s5295 + $0x10] sm:$0xff]
        %v5299 = vld [vmem:[%s5295 + $0x18] sm:$0xff]
        %v5300 = vld [vmem:[%s5295 + $0x20] sm:$0xff]
        %v5301 = vld [vmem:[%s5295 + $0x28] sm:$0xff]
        %v5302 = vld [vmem:[%s5295 + $0x30] sm:$0xff]
        %v5303 = vld [vmem:[%s5295 + $0x38] sm:$0xff]
        %v5304 = vld [vmem:[%s5295 + $0x40] sm:$0xff]
        %v5305 = vld [vmem:[%s5295 + $0x48] sm:$0xff]
        %v5306 = vld [vmem:[%s5295 + $0x50] sm:$0xff]
        %v5307 = vld [vmem:[%s5295 + $0x58] sm:$0xff]
        %v5308 = vld [vmem:[%s5295 + $0x60] sm:$0xff]
        %v5309 = vld [vmem:[%s5295 + $0x68] sm:$0xff]
        %v5310 = vld [vmem:[%s5295 + $0x70] sm:$0xff]
        %v5311 = vld [vmem:[%s5295 + $0x78] sm:$0xff]
        %v5312 = vpack.c.bf16 %v5297, %v5296
        %v5313 = vpack.c.bf16 %v5299, %v5298
        %v5314 = vpack.c.bf16 %v5301, %v5300
        %v5315 = vpack.c.bf16 %v5303, %v5302
        %v5316 = vpack.c.bf16 %v5305, %v5304
        %v5317 = vpack.c.bf16 %v5307, %v5306
        %v5318 = vpack.c.bf16 %v5309, %v5308
        %v5319 = vpack.c.bf16 %v5311, %v5310
        %s5320 = scalar_lea.vmem %s1, 1408
        %v5321 = vld [vmem:[%s5320] sm:$0xf]
        %v5322 = vld [vmem:[%s5320 + $0x4] sm:$0xf]
        %v5323 = vld [vmem:[%s5320 + $0x8] sm:$0xf]
        %v5324 = vld [vmem:[%s5320 + $0xc] sm:$0xf]
        %v5325 = vld [vmem:[%s5320 + $0x10] sm:$0xf]
        %v5326 = vld [vmem:[%s5320 + $0x14] sm:$0xf]
        %v5327 = vld [vmem:[%s5320 + $0x18] sm:$0xf]
        %v5328 = vld [vmem:[%s5320 + $0x1c] sm:$0xf]
        %v5329 = vld [vmem:[%s5320 + $0x20] sm:$0xf]
        %v5330 = vld [vmem:[%s5320 + $0x24] sm:$0xf]
        %v5331 = vld [vmem:[%s5320 + $0x28] sm:$0xf]
        %v5332 = vld [vmem:[%s5320 + $0x2c] sm:$0xf]
        %v5333 = vld [vmem:[%s5320 + $0x30] sm:$0xf]
        %v5334 = vld [vmem:[%s5320 + $0x34] sm:$0xf]
        %v5335 = vld [vmem:[%s5320 + $0x38] sm:$0xf]
        %v5336 = vld [vmem:[%s5320 + $0x3c] sm:$0xf]
        %v5353 = vunpack.c.l.b16 %v5321
        %v5354 = vunpack.c.l.b16 %v5322
        %v5355 = vunpack.c.l.b16 %v5323
        %v5356 = vunpack.c.l.b16 %v5324
        %v5357 = vunpack.c.l.b16 %v5325
        %v5358 = vunpack.c.l.b16 %v5326
        %v5359 = vunpack.c.l.b16 %v5327
        %v5360 = vunpack.c.l.b16 %v5328
        %v5361 = vunpack.c.l.b16 %v5329
        %v5362 = vunpack.c.l.b16 %v5330
        %v5363 = vunpack.c.l.b16 %v5331
        %v5364 = vunpack.c.l.b16 %v5332
        %v5365 = vunpack.c.l.b16 %v5333
        %v5366 = vunpack.c.l.b16 %v5334
        %v5367 = vunpack.c.l.b16 %v5335
        %v5368 = vunpack.c.l.b16 %v5336
        %v5369 = vpack.c.b16 %v5354, %v5353
        %v5370 = vpack.c.b16 %v5356, %v5355
        %v5371 = vpack.c.b16 %v5358, %v5357
        %v5372 = vpack.c.b16 %v5360, %v5359
        %v5373 = vpack.c.b16 %v5362, %v5361
        %v5374 = vpack.c.b16 %v5364, %v5363
        %v5375 = vpack.c.b16 %v5366, %v5365
        %v5376 = vpack.c.b16 %v5368, %v5367
        %5385 = vmatprep.subr.bf16.mxu0 0
        %5386 = vmatpush1.bf16.msra.mxu0 %v5369
        %5387 = vmatprep.subr.bf16.mxu0 0
        %5388 = vmatpush1.bf16.msra.mxu0 %v5370
        %5389 = vmatprep.subr.bf16.mxu0 0
        %5390 = vmatpush1.bf16.msra.mxu0 %v5371
        %5391 = vmatprep.subr.bf16.mxu0 0
        %5392 = vmatpush1.bf16.msra.mxu0 %v5372
        %5393 = vmatprep.subr.bf16.mxu0 0
        %5394 = vmatpush1.bf16.msra.mxu0 %v5373
        %5395 = vmatprep.subr.bf16.mxu0 0
        %5396 = vmatpush1.bf16.msra.mxu0 %v5374
        %5397 = vmatprep.subr.bf16.mxu0 0
        %5398 = vmatpush1.bf16.msra.mxu0 %v5375
        %5399 = vmatprep.subr.bf16.mxu0 0
        %5400 = vmatpush1.bf16.msra.mxu0 %v5376
        %5401 = vmatprep.subr.bf16.mxu0 0
        %5402 = vmatpush1.bf16.msra.mxu0 0
        %5403 = vmatprep.subr.bf16.mxu0 0
        %5404 = vmatpush1.bf16.msra.mxu0 0
        %5405 = vmatprep.subr.bf16.mxu0 0
        %5406 = vmatpush1.bf16.msra.mxu0 0
        %5407 = vmatprep.subr.bf16.mxu0 0
        %5408 = vmatpush1.bf16.msra.mxu0 0
        %5409 = vmatprep.subr.bf16.mxu0 0
        %5410 = vmatpush1.bf16.msra.mxu0 0
        %5411 = vmatprep.subr.bf16.mxu0 0
        %5412 = vmatpush1.bf16.msra.mxu0 0
        %5413 = vmatprep.subr.bf16.mxu0 0
        %5414 = vmatpush1.bf16.msra.mxu0 0
        %5415 = vmatprep.subr.bf16.mxu0 0
        %5416 = vmatpush1.bf16.msra.mxu0 0
        %5417 = vmatprep.mubr.bf16.mxu0 0
        %5418 = vmatmul.mubr.bf16.gmra.mrb[0].mxu0 %v5312
        %v5419 = vpop.f32.mrb[0].mxu0
        %v5420 = vadd.f32 0.0, %v5419
        %v5421 = vpop.f32.mrb[0].mxu0
        %v5422 = vpop.f32.mrb[0].mxu0
        %v5423 = vadd.f32 0.0, %v5422
        %v5424 = vpop.f32.mrb[0].mxu0
        %5425 = vmatprep.mubr.bf16.mxu0 0
        %5426 = vmatmul.mubr.bf16.gmra.mrb[0].mxu0 %v5313
        %v5427 = vpop.f32.mrb[0].mxu0
        %v5428 = vadd.f32 0.0, %v5427
        %v5429 = vpop.f32.mrb[0].mxu0
        %v5430 = vpop.f32.mrb[0].mxu0
        %v5431 = vadd.f32 0.0, %v5430
        %v5432 = vpop.f32.mrb[0].mxu0
        %5433 = vmatprep.mubr.bf16.mxu0 0
        %5434 = vmatmul.mubr.bf16.gmra.mrb[0].mxu0 %v5314
        %v5435 = vpop.f32.mrb[0].mxu0
        %v5436 = vadd.f32 0.0, %v5435
        %v5437 = vpop.f32.mrb[0].mxu0
        %v5438 = vpop.f32.mrb[0].mxu0
        %v5439 = vadd.f32 0.0, %v5438
        %v5440 = vpop.f32.mrb[0].mxu0
        %5441 = vmatprep.mubr.bf16.mxu0 0
        %5442 = vmatmul.mubr.bf16.gmra.mrb[0].mxu0 %v5315
        %v5443 = vpop.f32.mrb[0].mxu0
        %v5444 = vadd.f32 0.0, %v5443
        %v5445 = vpop.f32.mrb[0].mxu0
        %v5446 = vpop.f32.mrb[0].mxu0
        %v5447 = vadd.f32 0.0, %v5446
        %v5448 = vpop.f32.mrb[0].mxu0
        %5449 = vmatprep.mubr.bf16.mxu0 0
        %5450 = vmatmul.mubr.bf16.gmra.mrb[0].mxu0 %v5316
        %v5451 = vpop.f32.mrb[0].mxu0
        %v5452 = vadd.f32 0.0, %v5451
        %v5453 = vpop.f32.mrb[0].mxu0
        %v5454 = vpop.f32.mrb[0].mxu0
        %v5455 = vadd.f32 0.0, %v5454
        %v5456 = vpop.f32.mrb[0].mxu0
        %5457 = vmatprep.mubr.bf16.mxu0 0
        %5458 = vmatmul.mubr.bf16.gmra.mrb[0].mxu0 %v5317
        %v5459 = vpop.f32.mrb[0].mxu0
        %v5460 = vadd.f32 0.0, %v5459
        %v5461 = vpop.f32.mrb[0].mxu0
        %v5462 = vpop.f32.mrb[0].mxu0
        %v5463 = vadd.f32 0.0, %v5462
        %v5464 = vpop.f32.mrb[0].mxu0
        %5465 = vmatprep.mubr.bf16.mxu0 0
        %5466 = vmatmul.mubr.bf16.gmra.mrb[0].mxu0 %v5318
        %v5467 = vpop.f32.mrb[0].mxu0
        %v5468 = vadd.f32 0.0, %v5467
        %v5469 = vpop.f32.mrb[0].mxu0
        %v5470 = vpop.f32.mrb[0].mxu0
        %v5471 = vadd.f32 0.0, %v5470
        %v5472 = vpop.f32.mrb[0].mxu0
        %5473 = vmatprep.mubr.bf16.mxu0 0
        %5474 = vmatmul.mubr.bf16.gmra.mrb[0].mxu0 %v5319
        %v5475 = vpop.f32.mrb[0].mxu0
        %v5476 = vadd.f32 0.0, %v5475
        %v5477 = vpop.f32.mrb[0].mxu0
        %v5478 = vpop.f32.mrb[0].mxu0
        %v5479 = vadd.f32 0.0, %v5478
        %v5480 = vpop.f32.mrb[0].mxu0
        %5481 = vdwg.mxu0
        %v5482 = vadd.f32 %v5279, %v5420
        %v5483 = vadd.f32 %v5280, %v5423
        %v5484 = vadd.f32 %v5281, %v5428
        %v5485 = vadd.f32 %v5282, %v5431
        %v5486 = vadd.f32 %v5283, %v5436
        %v5487 = vadd.f32 %v5284, %v5439
        %v5488 = vadd.f32 %v5285, %v5444
        %v5489 = vadd.f32 %v5286, %v5447
        %v5490 = vadd.f32 %v5287, %v5452
        %v5491 = vadd.f32 %v5288, %v5455
        %v5492 = vadd.f32 %v5289, %v5460
        %v5493 = vadd.f32 %v5290, %v5463
        %v5494 = vadd.f32 %v5291, %v5468
        %v5495 = vadd.f32 %v5292, %v5471
        %v5496 = vadd.f32 %v5293, %v5476
        %v5497 = vadd.f32 %v5294, %v5479
        %s5498 = sadd.s32 %s4509, 268
        %s5499 = scalar_lea.vmem [#allocation2], %s5498
        %v5500 = vld [vmem:[%s5499] sm:$0xff]
        %v5501 = vld [vmem:[%s5499 + $0x8] sm:$0xff]
        %v5502 = vld [vmem:[%s5499 + $0x10] sm:$0xff]
        %v5503 = vld [vmem:[%s5499 + $0x18] sm:$0xff]
        %v5504 = vld [vmem:[%s5499 + $0x20] sm:$0xff]
        %v5505 = vld [vmem:[%s5499 + $0x28] sm:$0xff]
        %v5506 = vld [vmem:[%s5499 + $0x30] sm:$0xff]
        %v5507 = vld [vmem:[%s5499 + $0x38] sm:$0xff]
        %v5508 = vld [vmem:[%s5499 + $0x40] sm:$0xff]
        %v5509 = vld [vmem:[%s5499 + $0x48] sm:$0xff]
        %v5510 = vld [vmem:[%s5499 + $0x50] sm:$0xff]
        %v5511 = vld [vmem:[%s5499 + $0x58] sm:$0xff]
        %v5512 = vld [vmem:[%s5499 + $0x60] sm:$0xff]
        %v5513 = vld [vmem:[%s5499 + $0x68] sm:$0xff]
        %v5514 = vld [vmem:[%s5499 + $0x70] sm:$0xff]
        %v5515 = vld [vmem:[%s5499 + $0x78] sm:$0xff]
        %v5516 = vpack.c.bf16 %v5501, %v5500
        %v5517 = vpack.c.bf16 %v5503, %v5502
        %v5518 = vpack.c.bf16 %v5505, %v5504
        %v5519 = vpack.c.bf16 %v5507, %v5506
        %v5520 = vpack.c.bf16 %v5509, %v5508
        %v5521 = vpack.c.bf16 %v5511, %v5510
        %v5522 = vpack.c.bf16 %v5513, %v5512
        %v5523 = vpack.c.bf16 %v5515, %v5514
        %s5524 = scalar_lea.vmem %s1, 1472
        %v5525 = vld [vmem:[%s5524] sm:$0xf]
        %v5526 = vld [vmem:[%s5524 + $0x4] sm:$0xf]
        %v5527 = vld [vmem:[%s5524 + $0x8] sm:$0xf]
        %v5528 = vld [vmem:[%s5524 + $0xc] sm:$0xf]
        %v5529 = vld [vmem:[%s5524 + $0x10] sm:$0xf]
        %v5530 = vld [vmem:[%s5524 + $0x14] sm:$0xf]
        %v5531 = vld [vmem:[%s5524 + $0x18] sm:$0xf]
        %v5532 = vld [vmem:[%s5524 + $0x1c] sm:$0xf]
        %v5533 = vld [vmem:[%s5524 + $0x20] sm:$0xf]
        %v5534 = vld [vmem:[%s5524 + $0x24] sm:$0xf]
        %v5535 = vld [vmem:[%s5524 + $0x28] sm:$0xf]
        %v5536 = vld [vmem:[%s5524 + $0x2c] sm:$0xf]
        %v5537 = vld [vmem:[%s5524 + $0x30] sm:$0xf]
        %v5538 = vld [vmem:[%s5524 + $0x34] sm:$0xf]
        %v5539 = vld [vmem:[%s5524 + $0x38] sm:$0xf]
        %v5540 = vld [vmem:[%s5524 + $0x3c] sm:$0xf]
        %v5557 = vunpack.c.l.b16 %v5525
        %v5558 = vunpack.c.l.b16 %v5526
        %v5559 = vunpack.c.l.b16 %v5527
        %v5560 = vunpack.c.l.b16 %v5528
        %v5561 = vunpack.c.l.b16 %v5529
        %v5562 = vunpack.c.l.b16 %v5530
        %v5563 = vunpack.c.l.b16 %v5531
        %v5564 = vunpack.c.l.b16 %v5532
        %v5565 = vunpack.c.l.b16 %v5533
        %v5566 = vunpack.c.l.b16 %v5534
        %v5567 = vunpack.c.l.b16 %v5535
        %v5568 = vunpack.c.l.b16 %v5536
        %v5569 = vunpack.c.l.b16 %v5537
        %v5570 = vunpack.c.l.b16 %v5538
        %v5571 = vunpack.c.l.b16 %v5539
        %v5572 = vunpack.c.l.b16 %v5540
        %v5573 = vpack.c.b16 %v5558, %v5557
        %v5574 = vpack.c.b16 %v5560, %v5559
        %v5575 = vpack.c.b16 %v5562, %v5561
        %v5576 = vpack.c.b16 %v5564, %v5563
        %v5577 = vpack.c.b16 %v5566, %v5565
        %v5578 = vpack.c.b16 %v5568, %v5567
        %v5579 = vpack.c.b16 %v5570, %v5569
        %v5580 = vpack.c.b16 %v5572, %v5571
        %5589 = vmatprep.subr.bf16.mxu0 0
        %5590 = vmatpush1.bf16.msra.mxu0 %v5573
        %5591 = vmatprep.subr.bf16.mxu0 0
        %5592 = vmatpush1.bf16.msra.mxu0 %v5574
        %5593 = vmatprep.subr.bf16.mxu0 0
        %5594 = vmatpush1.bf16.msra.mxu0 %v5575
        %5595 = vmatprep.subr.bf16.mxu0 0
        %5596 = vmatpush1.bf16.msra.mxu0 %v5576
        %5597 = vmatprep.subr.bf16.mxu0 0
        %5598 = vmatpush1.bf16.msra.mxu0 %v5577
        %5599 = vmatprep.subr.bf16.mxu0 0
        %5600 = vmatpush1.bf16.msra.mxu0 %v5578
        %5601 = vmatprep.subr.bf16.mxu0 0
        %5602 = vmatpush1.bf16.msra.mxu0 %v5579
        %5603 = vmatprep.subr.bf16.mxu0 0
        %5604 = vmatpush1.bf16.msra.mxu0 %v5580
        %5605 = vmatprep.subr.bf16.mxu0 0
        %5606 = vmatpush1.bf16.msra.mxu0 0
        %5607 = vmatprep.subr.bf16.mxu0 0
        %5608 = vmatpush1.bf16.msra.mxu0 0
        %5609 = vmatprep.subr.bf16.mxu0 0
        %5610 = vmatpush1.bf16.msra.mxu0 0
        %5611 = vmatprep.subr.bf16.mxu0 0
        %5612 = vmatpush1.bf16.msra.mxu0 0
        %5613 = vmatprep.subr.bf16.mxu0 0
        %5614 = vmatpush1.bf16.msra.mxu0 0
        %5615 = vmatprep.subr.bf16.mxu0 0
        %5616 = vmatpush1.bf16.msra.mxu0 0
        %5617 = vmatprep.subr.bf16.mxu0 0
        %5618 = vmatpush1.bf16.msra.mxu0 0
        %5619 = vmatprep.subr.bf16.mxu0 0
        %5620 = vmatpush1.bf16.msra.mxu0 0
        %5621 = vmatprep.mubr.bf16.mxu0 0
        %5622 = vmatmul.mubr.bf16.gmra.mrb[0].mxu0 %v5516
        %v5623 = vpop.f32.mrb[0].mxu0
        %v5624 = vadd.f32 0.0, %v5623
        %v5625 = vpop.f32.mrb[0].mxu0
        %v5626 = vpop.f32.mrb[0].mxu0
        %v5627 = vadd.f32 0.0, %v5626
        %v5628 = vpop.f32.mrb[0].mxu0
        %5629 = vmatprep.mubr.bf16.mxu0 0
        %5630 = vmatmul.mubr.bf16.gmra.mrb[0].mxu0 %v5517
        %v5631 = vpop.f32.mrb[0].mxu0
        %v5632 = vadd.f32 0.0, %v5631
        %v5633 = vpop.f32.mrb[0].mxu0
        %v5634 = vpop.f32.mrb[0].mxu0
        %v5635 = vadd.f32 0.0, %v5634
        %v5636 = vpop.f32.mrb[0].mxu0
        %5637 = vmatprep.mubr.bf16.mxu0 0
        %5638 = vmatmul.mubr.bf16.gmra.mrb[0].mxu0 %v5518
        %v5639 = vpop.f32.mrb[0].mxu0
        %v5640 = vadd.f32 0.0, %v5639
        %v5641 = vpop.f32.mrb[0].mxu0
        %v5642 = vpop.f32.mrb[0].mxu0
        %v5643 = vadd.f32 0.0, %v5642
        %v5644 = vpop.f32.mrb[0].mxu0
        %5645 = vmatprep.mubr.bf16.mxu0 0
        %5646 = vmatmul.mubr.bf16.gmra.mrb[0].mxu0 %v5519
        %v5647 = vpop.f32.mrb[0].mxu0
        %v5648 = vadd.f32 0.0, %v5647
        %v5649 = vpop.f32.mrb[0].mxu0
        %v5650 = vpop.f32.mrb[0].mxu0
        %v5651 = vadd.f32 0.0, %v5650
        %v5652 = vpop.f32.mrb[0].mxu0
        %5653 = vmatprep.mubr.bf16.mxu0 0
        %5654 = vmatmul.mubr.bf16.gmra.mrb[0].mxu0 %v5520
        %v5655 = vpop.f32.mrb[0].mxu0
        %v5656 = vadd.f32 0.0, %v5655
        %v5657 = vpop.f32.mrb[0].mxu0
        %v5658 = vpop.f32.mrb[0].mxu0
        %v5659 = vadd.f32 0.0, %v5658
        %v5660 = vpop.f32.mrb[0].mxu0
        %5661 = vmatprep.mubr.bf16.mxu0 0
        %5662 = vmatmul.mubr.bf16.gmra.mrb[0].mxu0 %v5521
        %v5663 = vpop.f32.mrb[0].mxu0
        %v5664 = vadd.f32 0.0, %v5663
        %v5665 = vpop.f32.mrb[0].mxu0
        %v5666 = vpop.f32.mrb[0].mxu0
        %v5667 = vadd.f32 0.0, %v5666
        %v5668 = vpop.f32.mrb[0].mxu0
        %5669 = vmatprep.mubr.bf16.mxu0 0
        %5670 = vmatmul.mubr.bf16.gmra.mrb[0].mxu0 %v5522
        %v5671 = vpop.f32.mrb[0].mxu0
        %v5672 = vadd.f32 0.0, %v5671
        %v5673 = vpop.f32.mrb[0].mxu0
        %v5674 = vpop.f32.mrb[0].mxu0
        %v5675 = vadd.f32 0.0, %v5674
        %v5676 = vpop.f32.mrb[0].mxu0
        %5677 = vmatprep.mubr.bf16.mxu0 0
        %5678 = vmatmul.mubr.bf16.gmra.mrb[0].mxu0 %v5523
        %v5679 = vpop.f32.mrb[0].mxu0
        %v5680 = vadd.f32 0.0, %v5679
        %v5681 = vpop.f32.mrb[0].mxu0
        %v5682 = vpop.f32.mrb[0].mxu0
        %v5683 = vadd.f32 0.0, %v5682
        %v5684 = vpop.f32.mrb[0].mxu0
        %5685 = vdwg.mxu0
        %v5686 = vadd.f32 %v5482, %v5624
        %v5687 = vadd.f32 %v5483, %v5627
        %v5688 = vadd.f32 %v5484, %v5632
        %v5689 = vadd.f32 %v5485, %v5635
        %v5690 = vadd.f32 %v5486, %v5640
        %v5691 = vadd.f32 %v5487, %v5643
        %v5692 = vadd.f32 %v5488, %v5648
        %v5693 = vadd.f32 %v5489, %v5651
        %v5694 = vadd.f32 %v5490, %v5656
        %v5695 = vadd.f32 %v5491, %v5659
        %v5696 = vadd.f32 %v5492, %v5664
        %v5697 = vadd.f32 %v5493, %v5667
        %v5698 = vadd.f32 %v5494, %v5672
        %v5699 = vadd.f32 %v5495, %v5675
        %v5700 = vadd.f32 %v5496, %v5680
        %v5701 = vadd.f32 %v5497, %v5683
        %s5702 = sadd.s32 %s4509, 388
        %s5703 = scalar_lea.vmem [#allocation2], %s5702
        %v5704 = vld [vmem:[%s5703] sm:$0xff]
        %v5705 = vld [vmem:[%s5703 + $0x8] sm:$0xff]
        %v5706 = vld [vmem:[%s5703 + $0x10] sm:$0xff]
        %v5707 = vld [vmem:[%s5703 + $0x18] sm:$0xff]
        %v5708 = vld [vmem:[%s5703 + $0x20] sm:$0xff]
        %v5709 = vld [vmem:[%s5703 + $0x28] sm:$0xff]
        %v5710 = vld [vmem:[%s5703 + $0x30] sm:$0xff]
        %v5711 = vld [vmem:[%s5703 + $0x38] sm:$0xff]
        %v5712 = vld [vmem:[%s5703 + $0x40] sm:$0xff]
        %v5713 = vld [vmem:[%s5703 + $0x48] sm:$0xff]
        %v5714 = vld [vmem:[%s5703 + $0x50] sm:$0xff]
        %v5715 = vld [vmem:[%s5703 + $0x58] sm:$0xff]
        %v5716 = vld [vmem:[%s5703 + $0x60] sm:$0xff]
        %v5717 = vld [vmem:[%s5703 + $0x68] sm:$0xff]
        %v5718 = vld [vmem:[%s5703 + $0x70] sm:$0xff]
        %v5719 = vld [vmem:[%s5703 + $0x78] sm:$0xff]
        %v5720 = vpack.c.bf16 %v5705, %v5704
        %v5721 = vpack.c.bf16 %v5707, %v5706
        %v5722 = vpack.c.bf16 %v5709, %v5708
        %v5723 = vpack.c.bf16 %v5711, %v5710
        %v5724 = vpack.c.bf16 %v5713, %v5712
        %v5725 = vpack.c.bf16 %v5715, %v5714
        %v5726 = vpack.c.bf16 %v5717, %v5716
        %v5727 = vpack.c.bf16 %v5719, %v5718
        %s5728 = scalar_lea.vmem %s1, 1536
        %v5729 = vld [vmem:[%s5728] sm:$0xf]
        %v5730 = vld [vmem:[%s5728 + $0x4] sm:$0xf]
        %v5731 = vld [vmem:[%s5728 + $0x8] sm:$0xf]
        %v5732 = vld [vmem:[%s5728 + $0xc] sm:$0xf]
        %v5733 = vld [vmem:[%s5728 + $0x10] sm:$0xf]
        %v5734 = vld [vmem:[%s5728 + $0x14] sm:$0xf]
        %v5735 = vld [vmem:[%s5728 + $0x18] sm:$0xf]
        %v5736 = vld [vmem:[%s5728 + $0x1c] sm:$0xf]
        %v5737 = vld [vmem:[%s5728 + $0x20] sm:$0xf]
        %v5738 = vld [vmem:[%s5728 + $0x24] sm:$0xf]
        %v5739 = vld [vmem:[%s5728 + $0x28] sm:$0xf]
        %v5740 = vld [vmem:[%s5728 + $0x2c] sm:$0xf]
        %v5741 = vld [vmem:[%s5728 + $0x30] sm:$0xf]
        %v5742 = vld [vmem:[%s5728 + $0x34] sm:$0xf]
        %v5743 = vld [vmem:[%s5728 + $0x38] sm:$0xf]
        %v5744 = vld [vmem:[%s5728 + $0x3c] sm:$0xf]
        %v5761 = vunpack.c.l.b16 %v5729
        %v5762 = vunpack.c.l.b16 %v5730
        %v5763 = vunpack.c.l.b16 %v5731
        %v5764 = vunpack.c.l.b16 %v5732
        %v5765 = vunpack.c.l.b16 %v5733
        %v5766 = vunpack.c.l.b16 %v5734
        %v5767 = vunpack.c.l.b16 %v5735
        %v5768 = vunpack.c.l.b16 %v5736
        %v5769 = vunpack.c.l.b16 %v5737
        %v5770 = vunpack.c.l.b16 %v5738
        %v5771 = vunpack.c.l.b16 %v5739
        %v5772 = vunpack.c.l.b16 %v5740
        %v5773 = vunpack.c.l.b16 %v5741
        %v5774 = vunpack.c.l.b16 %v5742
        %v5775 = vunpack.c.l.b16 %v5743
        %v5776 = vunpack.c.l.b16 %v5744
        %v5777 = vpack.c.b16 %v5762, %v5761
        %v5778 = vpack.c.b16 %v5764, %v5763
        %v5779 = vpack.c.b16 %v5766, %v5765
        %v5780 = vpack.c.b16 %v5768, %v5767
        %v5781 = vpack.c.b16 %v5770, %v5769
        %v5782 = vpack.c.b16 %v5772, %v5771
        %v5783 = vpack.c.b16 %v5774, %v5773
        %v5784 = vpack.c.b16 %v5776, %v5775
        %5793 = vmatprep.subr.bf16.mxu0 0
        %5794 = vmatpush1.bf16.msra.mxu0 %v5777
        %5795 = vmatprep.subr.bf16.mxu0 0
        %5796 = vmatpush1.bf16.msra.mxu0 %v5778
        %5797 = vmatprep.subr.bf16.mxu0 0
        %5798 = vmatpush1.bf16.msra.mxu0 %v5779
        %5799 = vmatprep.subr.bf16.mxu0 0
        %5800 = vmatpush1.bf16.msra.mxu0 %v5780
        %5801 = vmatprep.subr.bf16.mxu0 0
        %5802 = vmatpush1.bf16.msra.mxu0 %v5781
        %5803 = vmatprep.subr.bf16.mxu0 0
        %5804 = vmatpush1.bf16.msra.mxu0 %v5782
        %5805 = vmatprep.subr.bf16.mxu0 0
        %5806 = vmatpush1.bf16.msra.mxu0 %v5783
        %5807 = vmatprep.subr.bf16.mxu0 0
        %5808 = vmatpush1.bf16.msra.mxu0 %v5784
        %5809 = vmatprep.subr.bf16.mxu0 0
        %5810 = vmatpush1.bf16.msra.mxu0 0
        %5811 = vmatprep.subr.bf16.mxu0 0
        %5812 = vmatpush1.bf16.msra.mxu0 0
        %5813 = vmatprep.subr.bf16.mxu0 0
        %5814 = vmatpush1.bf16.msra.mxu0 0
        %5815 = vmatprep.subr.bf16.mxu0 0
        %5816 = vmatpush1.bf16.msra.mxu0 0
        %5817 = vmatprep.subr.bf16.mxu0 0
        %5818 = vmatpush1.bf16.msra.mxu0 0
        %5819 = vmatprep.subr.bf16.mxu0 0
        %5820 = vmatpush1.bf16.msra.mxu0 0
        %5821 = vmatprep.subr.bf16.mxu0 0
        %5822 = vmatpush1.bf16.msra.mxu0 0
        %5823 = vmatprep.subr.bf16.mxu0 0
        %5824 = vmatpush1.bf16.msra.mxu0 0
        %5825 = vmatprep.mubr.bf16.mxu0 0
        %5826 = vmatmul.mubr.bf16.gmra.mrb[0].mxu0 %v5720
        %v5827 = vpop.f32.mrb[0].mxu0
        %v5828 = vadd.f32 0.0, %v5827
        %v5829 = vpop.f32.mrb[0].mxu0
        %v5830 = vpop.f32.mrb[0].mxu0
        %v5831 = vadd.f32 0.0, %v5830
        %v5832 = vpop.f32.mrb[0].mxu0
        %5833 = vmatprep.mubr.bf16.mxu0 0
        %5834 = vmatmul.mubr.bf16.gmra.mrb[0].mxu0 %v5721
        %v5835 = vpop.f32.mrb[0].mxu0
        %v5836 = vadd.f32 0.0, %v5835
        %v5837 = vpop.f32.mrb[0].mxu0
        %v5838 = vpop.f32.mrb[0].mxu0
        %v5839 = vadd.f32 0.0, %v5838
        %v5840 = vpop.f32.mrb[0].mxu0
        %5841 = vmatprep.mubr.bf16.mxu0 0
        %5842 = vmatmul.mubr.bf16.gmra.mrb[0].mxu0 %v5722
        %v5843 = vpop.f32.mrb[0].mxu0
        %v5844 = vadd.f32 0.0, %v5843
        %v5845 = vpop.f32.mrb[0].mxu0
        %v5846 = vpop.f32.mrb[0].mxu0
        %v5847 = vadd.f32 0.0, %v5846
        %v5848 = vpop.f32.mrb[0].mxu0
        %5849 = vmatprep.mubr.bf16.mxu0 0
        %5850 = vmatmul.mubr.bf16.gmra.mrb[0].mxu0 %v5723
        %v5851 = vpop.f32.mrb[0].mxu0
        %v5852 = vadd.f32 0.0, %v5851
        %v5853 = vpop.f32.mrb[0].mxu0
        %v5854 = vpop.f32.mrb[0].mxu0
        %v5855 = vadd.f32 0.0, %v5854
        %v5856 = vpop.f32.mrb[0].mxu0
        %5857 = vmatprep.mubr.bf16.mxu0 0
        %5858 = vmatmul.mubr.bf16.gmra.mrb[0].mxu0 %v5724
        %v5859 = vpop.f32.mrb[0].mxu0
        %v5860 = vadd.f32 0.0, %v5859
        %v5861 = vpop.f32.mrb[0].mxu0
        %v5862 = vpop.f32.mrb[0].mxu0
        %v5863 = vadd.f32 0.0, %v5862
        %v5864 = vpop.f32.mrb[0].mxu0
        %5865 = vmatprep.mubr.bf16.mxu0 0
        %5866 = vmatmul.mubr.bf16.gmra.mrb[0].mxu0 %v5725
        %v5867 = vpop.f32.mrb[0].mxu0
        %v5868 = vadd.f32 0.0, %v5867
        %v5869 = vpop.f32.mrb[0].mxu0
        %v5870 = vpop.f32.mrb[0].mxu0
        %v5871 = vadd.f32 0.0, %v5870
        %v5872 = vpop.f32.mrb[0].mxu0
        %5873 = vmatprep.mubr.bf16.mxu0 0
        %5874 = vmatmul.mubr.bf16.gmra.mrb[0].mxu0 %v5726
        %v5875 = vpop.f32.mrb[0].mxu0
        %v5876 = vadd.f32 0.0, %v5875
        %v5877 = vpop.f32.mrb[0].mxu0
        %v5878 = vpop.f32.mrb[0].mxu0
        %v5879 = vadd.f32 0.0, %v5878
        %v5880 = vpop.f32.mrb[0].mxu0
        %5881 = vmatprep.mubr.bf16.mxu0 0
        %5882 = vmatmul.mubr.bf16.gmra.mrb[0].mxu0 %v5727
        %v5883 = vpop.f32.mrb[0].mxu0
        %v5884 = vadd.f32 0.0, %v5883
        %v5885 = vpop.f32.mrb[0].mxu0
        %v5886 = vpop.f32.mrb[0].mxu0
        %v5887 = vadd.f32 0.0, %v5886
        %v5888 = vpop.f32.mrb[0].mxu0
        %5889 = vdwg.mxu0
        %v5890 = vadd.f32 %v5686, %v5828
        %v5891 = vadd.f32 %v5687, %v5831
        %v5892 = vadd.f32 %v5688, %v5836
        %v5893 = vadd.f32 %v5689, %v5839
        %v5894 = vadd.f32 %v5690, %v5844
        %v5895 = vadd.f32 %v5691, %v5847
        %v5896 = vadd.f32 %v5692, %v5852
        %v5897 = vadd.f32 %v5693, %v5855
        %v5898 = vadd.f32 %v5694, %v5860
        %v5899 = vadd.f32 %v5695, %v5863
        %v5900 = vadd.f32 %v5696, %v5868
        %v5901 = vadd.f32 %v5697, %v5871
        %v5902 = vadd.f32 %v5698, %v5876
        %v5903 = vadd.f32 %v5699, %v5879
        %v5904 = vadd.f32 %v5700, %v5884
        %v5905 = vadd.f32 %v5701, %v5887
        %s5906 = sadd.s32 %s4509, 392
        %s5907 = scalar_lea.vmem [#allocation2], %s5906
        %v5908 = vld [vmem:[%s5907] sm:$0xff]
        %v5909 = vld [vmem:[%s5907 + $0x8] sm:$0xff]
        %v5910 = vld [vmem:[%s5907 + $0x10] sm:$0xff]
        %v5911 = vld [vmem:[%s5907 + $0x18] sm:$0xff]
        %v5912 = vld [vmem:[%s5907 + $0x20] sm:$0xff]
        %v5913 = vld [vmem:[%s5907 + $0x28] sm:$0xff]
        %v5914 = vld [vmem:[%s5907 + $0x30] sm:$0xff]
        %v5915 = vld [vmem:[%s5907 + $0x38] sm:$0xff]
        %v5916 = vld [vmem:[%s5907 + $0x40] sm:$0xff]
        %v5917 = vld [vmem:[%s5907 + $0x48] sm:$0xff]
        %v5918 = vld [vmem:[%s5907 + $0x50] sm:$0xff]
        %v5919 = vld [vmem:[%s5907 + $0x58] sm:$0xff]
        %v5920 = vld [vmem:[%s5907 + $0x60] sm:$0xff]
        %v5921 = vld [vmem:[%s5907 + $0x68] sm:$0xff]
        %v5922 = vld [vmem:[%s5907 + $0x70] sm:$0xff]
        %v5923 = vld [vmem:[%s5907 + $0x78] sm:$0xff]
        %v5924 = vpack.c.bf16 %v5909, %v5908
        %v5925 = vpack.c.bf16 %v5911, %v5910
        %v5926 = vpack.c.bf16 %v5913, %v5912
        %v5927 = vpack.c.bf16 %v5915, %v5914
        %v5928 = vpack.c.bf16 %v5917, %v5916
        %v5929 = vpack.c.bf16 %v5919, %v5918
        %v5930 = vpack.c.bf16 %v5921, %v5920
        %v5931 = vpack.c.bf16 %v5923, %v5922
        %s5932 = scalar_lea.vmem %s1, 1600
        %v5933 = vld [vmem:[%s5932] sm:$0xf]
        %v5934 = vld [vmem:[%s5932 + $0x4] sm:$0xf]
        %v5935 = vld [vmem:[%s5932 + $0x8] sm:$0xf]
        %v5936 = vld [vmem:[%s5932 + $0xc] sm:$0xf]
        %v5937 = vld [vmem:[%s5932 + $0x10] sm:$0xf]
        %v5938 = vld [vmem:[%s5932 + $0x14] sm:$0xf]
        %v5939 = vld [vmem:[%s5932 + $0x18] sm:$0xf]
        %v5940 = vld [vmem:[%s5932 + $0x1c] sm:$0xf]
        %v5941 = vld [vmem:[%s5932 + $0x20] sm:$0xf]
        %v5942 = vld [vmem:[%s5932 + $0x24] sm:$0xf]
        %v5943 = vld [vmem:[%s5932 + $0x28] sm:$0xf]
        %v5944 = vld [vmem:[%s5932 + $0x2c] sm:$0xf]
        %v5945 = vld [vmem:[%s5932 + $0x30] sm:$0xf]
        %v5946 = vld [vmem:[%s5932 + $0x34] sm:$0xf]
        %v5947 = vld [vmem:[%s5932 + $0x38] sm:$0xf]
        %v5948 = vld [vmem:[%s5932 + $0x3c] sm:$0xf]
        %v5965 = vunpack.c.l.b16 %v5933
        %v5966 = vunpack.c.l.b16 %v5934
        %v5967 = vunpack.c.l.b16 %v5935
        %v5968 = vunpack.c.l.b16 %v5936
        %v5969 = vunpack.c.l.b16 %v5937
        %v5970 = vunpack.c.l.b16 %v5938
        %v5971 = vunpack.c.l.b16 %v5939
        %v5972 = vunpack.c.l.b16 %v5940
        %v5973 = vunpack.c.l.b16 %v5941
        %v5974 = vunpack.c.l.b16 %v5942
        %v5975 = vunpack.c.l.b16 %v5943
        %v5976 = vunpack.c.l.b16 %v5944
        %v5977 = vunpack.c.l.b16 %v5945
        %v5978 = vunpack.c.l.b16 %v5946
        %v5979 = vunpack.c.l.b16 %v5947
        %v5980 = vunpack.c.l.b16 %v5948
        %v5981 = vpack.c.b16 %v5966, %v5965
        %v5982 = vpack.c.b16 %v5968, %v5967
        %v5983 = vpack.c.b16 %v5970, %v5969
        %v5984 = vpack.c.b16 %v5972, %v5971
        %v5985 = vpack.c.b16 %v5974, %v5973
        %v5986 = vpack.c.b16 %v5976, %v5975
        %v5987 = vpack.c.b16 %v5978, %v5977
        %v5988 = vpack.c.b16 %v5980, %v5979
        %5997 = vmatprep.subr.bf16.mxu0 0
        %5998 = vmatpush1.bf16.msra.mxu0 %v5981
        %5999 = vmatprep.subr.bf16.mxu0 0
        %6000 = vmatpush1.bf16.msra.mxu0 %v5982
        %6001 = vmatprep.subr.bf16.mxu0 0
        %6002 = vmatpush1.bf16.msra.mxu0 %v5983
        %6003 = vmatprep.subr.bf16.mxu0 0
        %6004 = vmatpush1.bf16.msra.mxu0 %v5984
        %6005 = vmatprep.subr.bf16.mxu0 0
        %6006 = vmatpush1.bf16.msra.mxu0 %v5985
        %6007 = vmatprep.subr.bf16.mxu0 0
        %6008 = vmatpush1.bf16.msra.mxu0 %v5986
        %6009 = vmatprep.subr.bf16.mxu0 0
        %6010 = vmatpush1.bf16.msra.mxu0 %v5987
        %6011 = vmatprep.subr.bf16.mxu0 0
        %6012 = vmatpush1.bf16.msra.mxu0 %v5988
        %6013 = vmatprep.subr.bf16.mxu0 0
        %6014 = vmatpush1.bf16.msra.mxu0 0
        %6015 = vmatprep.subr.bf16.mxu0 0
        %6016 = vmatpush1.bf16.msra.mxu0 0
        %6017 = vmatprep.subr.bf16.mxu0 0
        %6018 = vmatpush1.bf16.msra.mxu0 0
        %6019 = vmatprep.subr.bf16.mxu0 0
        %6020 = vmatpush1.bf16.msra.mxu0 0
        %6021 = vmatprep.subr.bf16.mxu0 0
        %6022 = vmatpush1.bf16.msra.mxu0 0
        %6023 = vmatprep.subr.bf16.mxu0 0
        %6024 = vmatpush1.bf16.msra.mxu0 0
        %6025 = vmatprep.subr.bf16.mxu0 0
        %6026 = vmatpush1.bf16.msra.mxu0 0
        %6027 = vmatprep.subr.bf16.mxu0 0
        %6028 = vmatpush1.bf16.msra.mxu0 0
        %6029 = vmatprep.mubr.bf16.mxu0 0
        %6030 = vmatmul.mubr.bf16.gmra.mrb[0].mxu0 %v5924
        %v6031 = vpop.f32.mrb[0].mxu0
        %v6032 = vadd.f32 0.0, %v6031
        %v6033 = vpop.f32.mrb[0].mxu0
        %v6034 = vpop.f32.mrb[0].mxu0
        %v6035 = vadd.f32 0.0, %v6034
        %v6036 = vpop.f32.mrb[0].mxu0
        %6037 = vmatprep.mubr.bf16.mxu0 0
        %6038 = vmatmul.mubr.bf16.gmra.mrb[0].mxu0 %v5925
        %v6039 = vpop.f32.mrb[0].mxu0
        %v6040 = vadd.f32 0.0, %v6039
        %v6041 = vpop.f32.mrb[0].mxu0
        %v6042 = vpop.f32.mrb[0].mxu0
        %v6043 = vadd.f32 0.0, %v6042
        %v6044 = vpop.f32.mrb[0].mxu0
        %6045 = vmatprep.mubr.bf16.mxu0 0
        %6046 = vmatmul.mubr.bf16.gmra.mrb[0].mxu0 %v5926
        %v6047 = vpop.f32.mrb[0].mxu0
        %v6048 = vadd.f32 0.0, %v6047
        %v6049 = vpop.f32.mrb[0].mxu0
        %v6050 = vpop.f32.mrb[0].mxu0
        %v6051 = vadd.f32 0.0, %v6050
        %v6052 = vpop.f32.mrb[0].mxu0
        %6053 = vmatprep.mubr.bf16.mxu0 0
        %6054 = vmatmul.mubr.bf16.gmra.mrb[0].mxu0 %v5927
        %v6055 = vpop.f32.mrb[0].mxu0
        %v6056 = vadd.f32 0.0, %v6055
        %v6057 = vpop.f32.mrb[0].mxu0
        %v6058 = vpop.f32.mrb[0].mxu0
        %v6059 = vadd.f32 0.0, %v6058
        %v6060 = vpop.f32.mrb[0].mxu0
        %6061 = vmatprep.mubr.bf16.mxu0 0
        %6062 = vmatmul.mubr.bf16.gmra.mrb[0].mxu0 %v5928
        %v6063 = vpop.f32.mrb[0].mxu0
        %v6064 = vadd.f32 0.0, %v6063
        %v6065 = vpop.f32.mrb[0].mxu0
        %v6066 = vpop.f32.mrb[0].mxu0
        %v6067 = vadd.f32 0.0, %v6066
        %v6068 = vpop.f32.mrb[0].mxu0
        %6069 = vmatprep.mubr.bf16.mxu0 0
        %6070 = vmatmul.mubr.bf16.gmra.mrb[0].mxu0 %v5929
        %v6071 = vpop.f32.mrb[0].mxu0
        %v6072 = vadd.f32 0.0, %v6071
        %v6073 = vpop.f32.mrb[0].mxu0
        %v6074 = vpop.f32.mrb[0].mxu0
        %v6075 = vadd.f32 0.0, %v6074
        %v6076 = vpop.f32.mrb[0].mxu0
        %6077 = vmatprep.mubr.bf16.mxu0 0
        %6078 = vmatmul.mubr.bf16.gmra.mrb[0].mxu0 %v5930
        %v6079 = vpop.f32.mrb[0].mxu0
        %v6080 = vadd.f32 0.0, %v6079
        %v6081 = vpop.f32.mrb[0].mxu0
        %v6082 = vpop.f32.mrb[0].mxu0
        %v6083 = vadd.f32 0.0, %v6082
        %v6084 = vpop.f32.mrb[0].mxu0
        %6085 = vmatprep.mubr.bf16.mxu0 0
        %6086 = vmatmul.mubr.bf16.gmra.mrb[0].mxu0 %v5931
        %v6087 = vpop.f32.mrb[0].mxu0
        %v6088 = vadd.f32 0.0, %v6087
        %v6089 = vpop.f32.mrb[0].mxu0
        %v6090 = vpop.f32.mrb[0].mxu0
        %v6091 = vadd.f32 0.0, %v6090
        %v6092 = vpop.f32.mrb[0].mxu0
        %6093 = vdwg.mxu0
        %v6094 = vadd.f32 %v5890, %v6032
        %v6095 = vadd.f32 %v5891, %v6035
        %v6096 = vadd.f32 %v5892, %v6040
        %v6097 = vadd.f32 %v5893, %v6043
        %v6098 = vadd.f32 %v5894, %v6048
        %v6099 = vadd.f32 %v5895, %v6051
        %v6100 = vadd.f32 %v5896, %v6056
        %v6101 = vadd.f32 %v5897, %v6059
        %v6102 = vadd.f32 %v5898, %v6064
        %v6103 = vadd.f32 %v5899, %v6067
        %v6104 = vadd.f32 %v5900, %v6072
        %v6105 = vadd.f32 %v5901, %v6075
        %v6106 = vadd.f32 %v5902, %v6080
        %v6107 = vadd.f32 %v5903, %v6083
        %v6108 = vadd.f32 %v5904, %v6088
        %v6109 = vadd.f32 %v5905, %v6091
        %s6110 = sadd.s32 %s4509, 396
        %s6111 = scalar_lea.vmem [#allocation2], %s6110
        %v6112 = vld [vmem:[%s6111] sm:$0xff]
        %v6113 = vld [vmem:[%s6111 + $0x8] sm:$0xff]
        %v6114 = vld [vmem:[%s6111 + $0x10] sm:$0xff]
        %v6115 = vld [vmem:[%s6111 + $0x18] sm:$0xff]
        %v6116 = vld [vmem:[%s6111 + $0x20] sm:$0xff]
        %v6117 = vld [vmem:[%s6111 + $0x28] sm:$0xff]
        %v6118 = vld [vmem:[%s6111 + $0x30] sm:$0xff]
        %v6119 = vld [vmem:[%s6111 + $0x38] sm:$0xff]
        %v6120 = vld [vmem:[%s6111 + $0x40] sm:$0xff]
        %v6121 = vld [vmem:[%s6111 + $0x48] sm:$0xff]
        %v6122 = vld [vmem:[%s6111 + $0x50] sm:$0xff]
        %v6123 = vld [vmem:[%s6111 + $0x58] sm:$0xff]
        %v6124 = vld [vmem:[%s6111 + $0x60] sm:$0xff]
        %v6125 = vld [vmem:[%s6111 + $0x68] sm:$0xff]
        %v6126 = vld [vmem:[%s6111 + $0x70] sm:$0xff]
        %v6127 = vld [vmem:[%s6111 + $0x78] sm:$0xff]
        %v6128 = vpack.c.bf16 %v6113, %v6112
        %v6129 = vpack.c.bf16 %v6115, %v6114
        %v6130 = vpack.c.bf16 %v6117, %v6116
        %v6131 = vpack.c.bf16 %v6119, %v6118
        %v6132 = vpack.c.bf16 %v6121, %v6120
        %v6133 = vpack.c.bf16 %v6123, %v6122
        %v6134 = vpack.c.bf16 %v6125, %v6124
        %v6135 = vpack.c.bf16 %v6127, %v6126
        %s6136 = scalar_lea.vmem %s1, 1664
        %v6137 = vld [vmem:[%s6136] sm:$0xf]
        %v6138 = vld [vmem:[%s6136 + $0x4] sm:$0xf]
        %v6139 = vld [vmem:[%s6136 + $0x8] sm:$0xf]
        %v6140 = vld [vmem:[%s6136 + $0xc] sm:$0xf]
        %v6141 = vld [vmem:[%s6136 + $0x10] sm:$0xf]
        %v6142 = vld [vmem:[%s6136 + $0x14] sm:$0xf]
        %v6143 = vld [vmem:[%s6136 + $0x18] sm:$0xf]
        %v6144 = vld [vmem:[%s6136 + $0x1c] sm:$0xf]
        %v6145 = vld [vmem:[%s6136 + $0x20] sm:$0xf]
        %v6146 = vld [vmem:[%s6136 + $0x24] sm:$0xf]
        %v6147 = vld [vmem:[%s6136 + $0x28] sm:$0xf]
        %v6148 = vld [vmem:[%s6136 + $0x2c] sm:$0xf]
        %v6149 = vld [vmem:[%s6136 + $0x30] sm:$0xf]
        %v6150 = vld [vmem:[%s6136 + $0x34] sm:$0xf]
        %v6151 = vld [vmem:[%s6136 + $0x38] sm:$0xf]
        %v6152 = vld [vmem:[%s6136 + $0x3c] sm:$0xf]
        %v6169 = vunpack.c.l.b16 %v6137
        %v6170 = vunpack.c.l.b16 %v6138
        %v6171 = vunpack.c.l.b16 %v6139
        %v6172 = vunpack.c.l.b16 %v6140
        %v6173 = vunpack.c.l.b16 %v6141
        %v6174 = vunpack.c.l.b16 %v6142
        %v6175 = vunpack.c.l.b16 %v6143
        %v6176 = vunpack.c.l.b16 %v6144
        %v6177 = vunpack.c.l.b16 %v6145
        %v6178 = vunpack.c.l.b16 %v6146
        %v6179 = vunpack.c.l.b16 %v6147
        %v6180 = vunpack.c.l.b16 %v6148
        %v6181 = vunpack.c.l.b16 %v6149
        %v6182 = vunpack.c.l.b16 %v6150
        %v6183 = vunpack.c.l.b16 %v6151
        %v6184 = vunpack.c.l.b16 %v6152
        %v6185 = vpack.c.b16 %v6170, %v6169
        %v6186 = vpack.c.b16 %v6172, %v6171
        %v6187 = vpack.c.b16 %v6174, %v6173
        %v6188 = vpack.c.b16 %v6176, %v6175
        %v6189 = vpack.c.b16 %v6178, %v6177
        %v6190 = vpack.c.b16 %v6180, %v6179
        %v6191 = vpack.c.b16 %v6182, %v6181
        %v6192 = vpack.c.b16 %v6184, %v6183
        %6201 = vmatprep.subr.bf16.mxu0 0
        %6202 = vmatpush1.bf16.msra.mxu0 %v6185
        %6203 = vmatprep.subr.bf16.mxu0 0
        %6204 = vmatpush1.bf16.msra.mxu0 %v6186
        %6205 = vmatprep.subr.bf16.mxu0 0
        %6206 = vmatpush1.bf16.msra.mxu0 %v6187
        %6207 = vmatprep.subr.bf16.mxu0 0
        %6208 = vmatpush1.bf16.msra.mxu0 %v6188
        %6209 = vmatprep.subr.bf16.mxu0 0
        %6210 = vmatpush1.bf16.msra.mxu0 %v6189
        %6211 = vmatprep.subr.bf16.mxu0 0
        %6212 = vmatpush1.bf16.msra.mxu0 %v6190
        %6213 = vmatprep.subr.bf16.mxu0 0
        %6214 = vmatpush1.bf16.msra.mxu0 %v6191
        %6215 = vmatprep.subr.bf16.mxu0 0
        %6216 = vmatpush1.bf16.msra.mxu0 %v6192
        %6217 = vmatprep.subr.bf16.mxu0 0
        %6218 = vmatpush1.bf16.msra.mxu0 0
        %6219 = vmatprep.subr.bf16.mxu0 0
        %6220 = vmatpush1.bf16.msra.mxu0 0
        %6221 = vmatprep.subr.bf16.mxu0 0
        %6222 = vmatpush1.bf16.msra.mxu0 0
        %6223 = vmatprep.subr.bf16.mxu0 0
        %6224 = vmatpush1.bf16.msra.mxu0 0
        %6225 = vmatprep.subr.bf16.mxu0 0
        %6226 = vmatpush1.bf16.msra.mxu0 0
        %6227 = vmatprep.subr.bf16.mxu0 0
        %6228 = vmatpush1.bf16.msra.mxu0 0
        %6229 = vmatprep.subr.bf16.mxu0 0
        %6230 = vmatpush1.bf16.msra.mxu0 0
        %6231 = vmatprep.subr.bf16.mxu0 0
        %6232 = vmatpush1.bf16.msra.mxu0 0
        %6233 = vmatprep.mubr.bf16.mxu0 0
        %6234 = vmatmul.mubr.bf16.gmra.mrb[0].mxu0 %v6128
        %v6235 = vpop.f32.mrb[0].mxu0
        %v6236 = vadd.f32 0.0, %v6235
        %v6237 = vpop.f32.mrb[0].mxu0
        %v6238 = vpop.f32.mrb[0].mxu0
        %v6239 = vadd.f32 0.0, %v6238
        %v6240 = vpop.f32.mrb[0].mxu0
        %6241 = vmatprep.mubr.bf16.mxu0 0
        %6242 = vmatmul.mubr.bf16.gmra.mrb[0].mxu0 %v6129
        %v6243 = vpop.f32.mrb[0].mxu0
        %v6244 = vadd.f32 0.0, %v6243
        %v6245 = vpop.f32.mrb[0].mxu0
        %v6246 = vpop.f32.mrb[0].mxu0
        %v6247 = vadd.f32 0.0, %v6246
        %v6248 = vpop.f32.mrb[0].mxu0
        %6249 = vmatprep.mubr.bf16.mxu0 0
        %6250 = vmatmul.mubr.bf16.gmra.mrb[0].mxu0 %v6130
        %v6251 = vpop.f32.mrb[0].mxu0
        %v6252 = vadd.f32 0.0, %v6251
        %v6253 = vpop.f32.mrb[0].mxu0
        %v6254 = vpop.f32.mrb[0].mxu0
        %v6255 = vadd.f32 0.0, %v6254
        %v6256 = vpop.f32.mrb[0].mxu0
        %6257 = vmatprep.mubr.bf16.mxu0 0
        %6258 = vmatmul.mubr.bf16.gmra.mrb[0].mxu0 %v6131
        %v6259 = vpop.f32.mrb[0].mxu0
        %v6260 = vadd.f32 0.0, %v6259
        %v6261 = vpop.f32.mrb[0].mxu0
        %v6262 = vpop.f32.mrb[0].mxu0
        %v6263 = vadd.f32 0.0, %v6262
        %v6264 = vpop.f32.mrb[0].mxu0
        %6265 = vmatprep.mubr.bf16.mxu0 0
        %6266 = vmatmul.mubr.bf16.gmra.mrb[0].mxu0 %v6132
        %v6267 = vpop.f32.mrb[0].mxu0
        %v6268 = vadd.f32 0.0, %v6267
        %v6269 = vpop.f32.mrb[0].mxu0
        %v6270 = vpop.f32.mrb[0].mxu0
        %v6271 = vadd.f32 0.0, %v6270
        %v6272 = vpop.f32.mrb[0].mxu0
        %6273 = vmatprep.mubr.bf16.mxu0 0
        %6274 = vmatmul.mubr.bf16.gmra.mrb[0].mxu0 %v6133
        %v6275 = vpop.f32.mrb[0].mxu0
        %v6276 = vadd.f32 0.0, %v6275
        %v6277 = vpop.f32.mrb[0].mxu0
        %v6278 = vpop.f32.mrb[0].mxu0
        %v6279 = vadd.f32 0.0, %v6278
        %v6280 = vpop.f32.mrb[0].mxu0
        %6281 = vmatprep.mubr.bf16.mxu0 0
        %6282 = vmatmul.mubr.bf16.gmra.mrb[0].mxu0 %v6134
        %v6283 = vpop.f32.mrb[0].mxu0
        %v6284 = vadd.f32 0.0, %v6283
        %v6285 = vpop.f32.mrb[0].mxu0
        %v6286 = vpop.f32.mrb[0].mxu0
        %v6287 = vadd.f32 0.0, %v6286
        %v6288 = vpop.f32.mrb[0].mxu0
        %6289 = vmatprep.mubr.bf16.mxu0 0
        %6290 = vmatmul.mubr.bf16.gmra.mrb[0].mxu0 %v6135
        %v6291 = vpop.f32.mrb[0].mxu0
        %v6292 = vadd.f32 0.0, %v6291
        %v6293 = vpop.f32.mrb[0].mxu0
        %v6294 = vpop.f32.mrb[0].mxu0
        %v6295 = vadd.f32 0.0, %v6294
        %v6296 = vpop.f32.mrb[0].mxu0
        %6297 = vdwg.mxu0
        %v6298 = vadd.f32 %v6094, %v6236
        %v6299 = vadd.f32 %v6095, %v6239
        %v6300 = vadd.f32 %v6096, %v6244
        %v6301 = vadd.f32 %v6097, %v6247
        %v6302 = vadd.f32 %v6098, %v6252
        %v6303 = vadd.f32 %v6099, %v6255
        %v6304 = vadd.f32 %v6100, %v6260
        %v6305 = vadd.f32 %v6101, %v6263
        %v6306 = vadd.f32 %v6102, %v6268
        %v6307 = vadd.f32 %v6103, %v6271
        %v6308 = vadd.f32 %v6104, %v6276
        %v6309 = vadd.f32 %v6105, %v6279
        %v6310 = vadd.f32 %v6106, %v6284
        %v6311 = vadd.f32 %v6107, %v6287
        %v6312 = vadd.f32 %v6108, %v6292
        %v6313 = vadd.f32 %v6109, %v6295
        %v6315 = vlaneseq
        %v6316 = vshrl.u32 %v6315, 7
        %v6317 = vsub.s32 0, %v6316
        %v6318 = vrot.slane %v4500, %v6317
        %v6320 = vmul.f32 %v6298, %v6318
        %v6321 = vmul.f32 %v6299, %v6318
        %v6322 = vmul.f32 %v6300, %v6318
        %v6323 = vmul.f32 %v6301, %v6318
        %v6324 = vmul.f32 %v6302, %v6318
        %v6325 = vmul.f32 %v6303, %v6318
        %v6326 = vmul.f32 %v6304, %v6318
        %v6327 = vmul.f32 %v6305, %v6318
        %v6328 = vmul.f32 %v6306, %v6318
        %v6329 = vmul.f32 %v6307, %v6318
        %v6330 = vmul.f32 %v6308, %v6318
        %v6331 = vmul.f32 %v6309, %v6318
        %v6332 = vmul.f32 %v6310, %v6318
        %v6333 = vmul.f32 %v6311, %v6318
        %v6334 = vmul.f32 %v6312, %v6318
        %v6335 = vmul.f32 %v6313, %v6318
        %v6337 = vlaneseq
        %v6338 = vshrl.u32 %v6337, 7
        %v6339 = vsub.s32 0, %v6338
        %v6340 = vrot.slane %v4502, %v6339
        %v6342 = vadd.f32 %v6320, %v6340
        %v6343 = vadd.f32 %v6321, %v6340
        %v6344 = vadd.f32 %v6322, %v6340
        %v6345 = vadd.f32 %v6323, %v6340
        %v6346 = vadd.f32 %v6324, %v6340
        %v6347 = vadd.f32 %v6325, %v6340
        %v6348 = vadd.f32 %v6326, %v6340
        %v6349 = vadd.f32 %v6327, %v6340
        %v6350 = vadd.f32 %v6328, %v6340
        %v6351 = vadd.f32 %v6329, %v6340
        %v6352 = vadd.f32 %v6330, %v6340
        %v6353 = vadd.f32 %v6331, %v6340
        %v6354 = vadd.f32 %v6332, %v6340
        %v6355 = vadd.f32 %v6333, %v6340
        %v6356 = vadd.f32 %v6334, %v6340
        %v6357 = vadd.f32 %v6335, %v6340
        %v6358 = vmax.f32 %v6342, 0.0
        %v6359 = vmax.f32 %v6343, 0.0
        %v6360 = vmax.f32 %v6344, 0.0
        %v6361 = vmax.f32 %v6345, 0.0
        %v6362 = vmax.f32 %v6346, 0.0
        %v6363 = vmax.f32 %v6347, 0.0
        %v6364 = vmax.f32 %v6348, 0.0
        %v6365 = vmax.f32 %v6349, 0.0
        %v6366 = vmax.f32 %v6350, 0.0
        %v6367 = vmax.f32 %v6351, 0.0
        %v6368 = vmax.f32 %v6352, 0.0
        %v6369 = vmax.f32 %v6353, 0.0
        %v6370 = vmax.f32 %v6354, 0.0
        %v6371 = vmax.f32 %v6355, 0.0
        %v6372 = vmax.f32 %v6356, 0.0
        %v6373 = vmax.f32 %v6357, 0.0
        %s6374 = scalar_lea.vmem [#allocation3], %s4510
        %6375 = vst [vmem:[%s6374] sm:$0xff] %v6358
        %6376 = vst [vmem:[%s6374 + $0x8] sm:$0xff] %v6359
        %6377 = vst [vmem:[%s6374 + $0x10] sm:$0xff] %v6360
        %6378 = vst [vmem:[%s6374 + $0x18] sm:$0xff] %v6361
        %6379 = vst [vmem:[%s6374 + $0x20] sm:$0xff] %v6362
        %6380 = vst [vmem:[%s6374 + $0x28] sm:$0xff] %v6363
        %6381 = vst [vmem:[%s6374 + $0x30] sm:$0xff] %v6364
        %6382 = vst [vmem:[%s6374 + $0x38] sm:$0xff] %v6365
        %6383 = vst [vmem:[%s6374 + $0x40] sm:$0xff] %v6366
        %6384 = vst [vmem:[%s6374 + $0x48] sm:$0xff] %v6367
        %6385 = vst [vmem:[%s6374 + $0x50] sm:$0xff] %v6368
        %6386 = vst [vmem:[%s6374 + $0x58] sm:$0xff] %v6369
        %6387 = vst [vmem:[%s6374 + $0x60] sm:$0xff] %v6370
        %6388 = vst [vmem:[%s6374 + $0x68] sm:$0xff] %v6371
        %6389 = vst [vmem:[%s6374 + $0x70] sm:$0xff] %v6372
        %6390 = vst [vmem:[%s6374 + $0x78] sm:$0xff] %v6373
      $region80: #{conv4_forward.1} parent=39 // loop_footer
        %s4508 = sadd.s32 1, %s4504
      $region81: #{conv4_forward.1} parent=39 // loop_footer_branch
        %4503 = sbr.rel target = $region77
      $region82: #{conv4_forward.1} parent=39 // loop_exit
        _
      loop: start=0, step=1, limit=8
      $region83: #{conv4_forward.1} parent=39 // loop_pre_header
        _
      $region84: #{conv4_forward.1} parent=39 // loop_header
        %s6392 = sphi 0, %s6396
        %p6393 = scmp.ge.s32.totalorder %s6392, 8
      $region85: #{conv4_forward.1} parent=39 // loop_header_branch
        %6395 = sbr.rel (%p6393) target = $region89
      $region86: #{conv4_forward.1} parent=39 // loop_body
        %s6397 = smul.u32 %s6392, 128
        %s6398 = sadd.s32 %s6397, 264
        %s6399 = scalar_lea.vmem [#allocation3], %s6398
        %v6400 = vld [vmem:[%s6399] sm:$0xff]
        %v6401 = vld [vmem:[%s6399 + $0x8] sm:$0xff]
        %v6402 = vld [vmem:[%s6399 + $0x10] sm:$0xff]
        %v6403 = vld [vmem:[%s6399 + $0x18] sm:$0xff]
        %v6404 = vld [vmem:[%s6399 + $0x20] sm:$0xff]
        %v6405 = vld [vmem:[%s6399 + $0x28] sm:$0xff]
        %v6406 = vld [vmem:[%s6399 + $0x30] sm:$0xff]
        %v6407 = vld [vmem:[%s6399 + $0x38] sm:$0xff]
        %v6408 = vld [vmem:[%s6399 + $0x40] sm:$0xff]
        %v6409 = vld [vmem:[%s6399 + $0x48] sm:$0xff]
        %v6410 = vld [vmem:[%s6399 + $0x50] sm:$0xff]
        %v6411 = vld [vmem:[%s6399 + $0x58] sm:$0xff]
        %v6412 = vld [vmem:[%s6399 + $0x60] sm:$0xff]
        %v6413 = vld [vmem:[%s6399 + $0x68] sm:$0xff]
        %v6414 = vld [vmem:[%s6399 + $0x70] sm:$0xff]
        %v6415 = vld [vmem:[%s6399 + $0x78] sm:$0xff]
        %s6416 = sadd.s32 %s6397, 268
        %s6417 = scalar_lea.vmem [#allocation3], %s6416
        %v6418 = vld [vmem:[%s6417] sm:$0xff]
        %v6419 = vld [vmem:[%s6417 + $0x8] sm:$0xff]
        %v6420 = vld [vmem:[%s6417 + $0x10] sm:$0xff]
        %v6421 = vld [vmem:[%s6417 + $0x18] sm:$0xff]
        %v6422 = vld [vmem:[%s6417 + $0x20] sm:$0xff]
        %v6423 = vld [vmem:[%s6417 + $0x28] sm:$0xff]
        %v6424 = vld [vmem:[%s6417 + $0x30] sm:$0xff]
        %v6425 = vld [vmem:[%s6417 + $0x38] sm:$0xff]
        %v6426 = vld [vmem:[%s6417 + $0x40] sm:$0xff]
        %v6427 = vld [vmem:[%s6417 + $0x48] sm:$0xff]
        %v6428 = vld [vmem:[%s6417 + $0x50] sm:$0xff]
        %v6429 = vld [vmem:[%s6417 + $0x58] sm:$0xff]
        %v6430 = vld [vmem:[%s6417 + $0x60] sm:$0xff]
        %v6431 = vld [vmem:[%s6417 + $0x68] sm:$0xff]
        %v6432 = vld [vmem:[%s6417 + $0x70] sm:$0xff]
        %v6433 = vld [vmem:[%s6417 + $0x78] sm:$0xff]
        %s6434 = sadd.s32 %s6397, 392
        %s6435 = scalar_lea.vmem [#allocation3], %s6434
        %v6436 = vld [vmem:[%s6435] sm:$0xff]
        %v6437 = vld [vmem:[%s6435 + $0x8] sm:$0xff]
        %v6438 = vld [vmem:[%s6435 + $0x10] sm:$0xff]
        %v6439 = vld [vmem:[%s6435 + $0x18] sm:$0xff]
        %v6440 = vld [vmem:[%s6435 + $0x20] sm:$0xff]
        %v6441 = vld [vmem:[%s6435 + $0x28] sm:$0xff]
        %v6442 = vld [vmem:[%s6435 + $0x30] sm:$0xff]
        %v6443 = vld [vmem:[%s6435 + $0x38] sm:$0xff]
        %v6444 = vld [vmem:[%s6435 + $0x40] sm:$0xff]
        %v6445 = vld [vmem:[%s6435 + $0x48] sm:$0xff]
        %v6446 = vld [vmem:[%s6435 + $0x50] sm:$0xff]
        %v6447 = vld [vmem:[%s6435 + $0x58] sm:$0xff]
        %v6448 = vld [vmem:[%s6435 + $0x60] sm:$0xff]
        %v6449 = vld [vmem:[%s6435 + $0x68] sm:$0xff]
        %v6450 = vld [vmem:[%s6435 + $0x70] sm:$0xff]
        %v6451 = vld [vmem:[%s6435 + $0x78] sm:$0xff]
        %s6452 = sadd.s32 %s6397, 396
        %s6453 = scalar_lea.vmem [#allocation3], %s6452
        %v6454 = vld [vmem:[%s6453] sm:$0xff]
        %v6455 = vld [vmem:[%s6453 + $0x8] sm:$0xff]
        %v6456 = vld [vmem:[%s6453 + $0x10] sm:$0xff]
        %v6457 = vld [vmem:[%s6453 + $0x18] sm:$0xff]
        %v6458 = vld [vmem:[%s6453 + $0x20] sm:$0xff]
        %v6459 = vld [vmem:[%s6453 + $0x28] sm:$0xff]
        %v6460 = vld [vmem:[%s6453 + $0x30] sm:$0xff]
        %v6461 = vld [vmem:[%s6453 + $0x38] sm:$0xff]
        %v6462 = vld [vmem:[%s6453 + $0x40] sm:$0xff]
        %v6463 = vld [vmem:[%s6453 + $0x48] sm:$0xff]
        %v6464 = vld [vmem:[%s6453 + $0x50] sm:$0xff]
        %v6465 = vld [vmem:[%s6453 + $0x58] sm:$0xff]
        %v6466 = vld [vmem:[%s6453 + $0x60] sm:$0xff]
        %v6467 = vld [vmem:[%s6453 + $0x68] sm:$0xff]
        %v6468 = vld [vmem:[%s6453 + $0x70] sm:$0xff]
        %v6469 = vld [vmem:[%s6453 + $0x78] sm:$0xff]
        %v6470 = vmax.f32 %v6400, %v6418
        %v6471 = vmax.f32 %v6401, %v6419
        %v6472 = vmax.f32 %v6402, %v6420
        %v6473 = vmax.f32 %v6403, %v6421
        %v6474 = vmax.f32 %v6404, %v6422
        %v6475 = vmax.f32 %v6405, %v6423
        %v6476 = vmax.f32 %v6406, %v6424
        %v6477 = vmax.f32 %v6407, %v6425
        %v6478 = vmax.f32 %v6408, %v6426
        %v6479 = vmax.f32 %v6409, %v6427
        %v6480 = vmax.f32 %v6410, %v6428
        %v6481 = vmax.f32 %v6411, %v6429
        %v6482 = vmax.f32 %v6412, %v6430
        %v6483 = vmax.f32 %v6413, %v6431
        %v6484 = vmax.f32 %v6414, %v6432
        %v6485 = vmax.f32 %v6415, %v6433
        %v6486 = vmax.f32 %v6436, %v6454
        %v6487 = vmax.f32 %v6437, %v6455
        %v6488 = vmax.f32 %v6438, %v6456
        %v6489 = vmax.f32 %v6439, %v6457
        %v6490 = vmax.f32 %v6440, %v6458
        %v6491 = vmax.f32 %v6441, %v6459
        %v6492 = vmax.f32 %v6442, %v6460
        %v6493 = vmax.f32 %v6443, %v6461
        %v6494 = vmax.f32 %v6444, %v6462
        %v6495 = vmax.f32 %v6445, %v6463
        %v6496 = vmax.f32 %v6446, %v6464
        %v6497 = vmax.f32 %v6447, %v6465
        %v6498 = vmax.f32 %v6448, %v6466
        %v6499 = vmax.f32 %v6449, %v6467
        %v6500 = vmax.f32 %v6450, %v6468
        %v6501 = vmax.f32 %v6451, %v6469
        %v6502 = vmax.f32 %v6470, %v6486
        %v6503 = vmax.f32 %v6471, %v6487
        %v6504 = vmax.f32 %v6472, %v6488
        %v6505 = vmax.f32 %v6473, %v6489
        %v6506 = vmax.f32 %v6474, %v6490
        %v6507 = vmax.f32 %v6475, %v6491
        %v6508 = vmax.f32 %v6476, %v6492
        %v6509 = vmax.f32 %v6477, %v6493
        %v6510 = vmax.f32 %v6478, %v6494
        %v6511 = vmax.f32 %v6479, %v6495
        %v6512 = vmax.f32 %v6480, %v6496
        %v6513 = vmax.f32 %v6481, %v6497
        %v6514 = vmax.f32 %v6482, %v6498
        %v6515 = vmax.f32 %v6483, %v6499
        %v6516 = vmax.f32 %v6484, %v6500
        %v6517 = vmax.f32 %v6485, %v6501
        %s6518 = sadd.s32 %s6397, 2048
        %s6519 = scalar_lea.vmem %s4, %s6518
        %v6520 = vld [vmem:[%s6519] sm:$0xff]
        %v6521 = vld [vmem:[%s6519 + $0x8] sm:$0xff]
        %v6522 = vld [vmem:[%s6519 + $0x10] sm:$0xff]
        %v6523 = vld [vmem:[%s6519 + $0x18] sm:$0xff]
        %v6524 = vld [vmem:[%s6519 + $0x20] sm:$0xff]
        %v6525 = vld [vmem:[%s6519 + $0x28] sm:$0xff]
        %v6526 = vld [vmem:[%s6519 + $0x30] sm:$0xff]
        %v6527 = vld [vmem:[%s6519 + $0x38] sm:$0xff]
        %v6528 = vld [vmem:[%s6519 + $0x40] sm:$0xff]
        %v6529 = vld [vmem:[%s6519 + $0x48] sm:$0xff]
        %v6530 = vld [vmem:[%s6519 + $0x50] sm:$0xff]
        %v6531 = vld [vmem:[%s6519 + $0x58] sm:$0xff]
        %v6532 = vld [vmem:[%s6519 + $0x60] sm:$0xff]
        %v6533 = vld [vmem:[%s6519 + $0x68] sm:$0xff]
        %v6534 = vld [vmem:[%s6519 + $0x70] sm:$0xff]
        %v6535 = vld [vmem:[%s6519 + $0x78] sm:$0xff]
        %v6536 = vmul.f32 %v6502, %v6520
        %v6537 = vmul.f32 %v6503, %v6521
        %v6538 = vmul.f32 %v6504, %v6522
        %v6539 = vmul.f32 %v6505, %v6523
        %v6540 = vmul.f32 %v6506, %v6524
        %v6541 = vmul.f32 %v6507, %v6525
        %v6542 = vmul.f32 %v6508, %v6526
        %v6543 = vmul.f32 %v6509, %v6527
        %v6544 = vmul.f32 %v6510, %v6528
        %v6545 = vmul.f32 %v6511, %v6529
        %v6546 = vmul.f32 %v6512, %v6530
        %v6547 = vmul.f32 %v6513, %v6531
        %v6548 = vmul.f32 %v6514, %v6532
        %v6549 = vmul.f32 %v6515, %v6533
        %v6550 = vmul.f32 %v6516, %v6534
        %v6551 = vmul.f32 %v6517, %v6535
        %s6552 = scalar_lea.vmem [#allocation2], %s6398
        %6553 = vst [vmem:[%s6552] sm:$0xff] %v6536
        %6554 = vst [vmem:[%s6552 + $0x8] sm:$0xff] %v6537
        %6555 = vst [vmem:[%s6552 + $0x10] sm:$0xff] %v6538
        %6556 = vst [vmem:[%s6552 + $0x18] sm:$0xff] %v6539
        %6557 = vst [vmem:[%s6552 + $0x20] sm:$0xff] %v6540
        %6558 = vst [vmem:[%s6552 + $0x28] sm:$0xff] %v6541
        %6559 = vst [vmem:[%s6552 + $0x30] sm:$0xff] %v6542
        %6560 = vst [vmem:[%s6552 + $0x38] sm:$0xff] %v6543
        %6561 = vst [vmem:[%s6552 + $0x40] sm:$0xff] %v6544
        %6562 = vst [vmem:[%s6552 + $0x48] sm:$0xff] %v6545
        %6563 = vst [vmem:[%s6552 + $0x50] sm:$0xff] %v6546
        %6564 = vst [vmem:[%s6552 + $0x58] sm:$0xff] %v6547
        %6565 = vst [vmem:[%s6552 + $0x60] sm:$0xff] %v6548
        %6566 = vst [vmem:[%s6552 + $0x68] sm:$0xff] %v6549
        %6567 = vst [vmem:[%s6552 + $0x70] sm:$0xff] %v6550
        %6568 = vst [vmem:[%s6552 + $0x78] sm:$0xff] %v6551
      $region87: #{conv4_forward.1} parent=39 // loop_footer
        %s6396 = sadd.s32 1, %s6392
      $region88: #{conv4_forward.1} parent=39 // loop_footer_branch
        %6391 = sbr.rel target = $region84
      $region89: #{conv4_forward.1} parent=39 // loop_exit
        _
      %s6569 = scalar_lea.vmem %s2, 3
      %v6570 = vld [vmem:[%s6569] sm:$0x1]
      %s6571 = scalar_lea.vmem %s3, 3
      %v6572 = vld [vmem:[%s6571] sm:$0x1]
      loop: start=0, step=1, limit=8
      $region90: #{conv4_forward.1} parent=39 // loop_pre_header
        _
      $region91: #{conv4_forward.1} parent=39 // loop_header
        %s6574 = sphi 0, %s6578
        %p6575 = scmp.ge.s32.totalorder %s6574, 8
      $region92: #{conv4_forward.1} parent=39 // loop_header_branch
        %6577 = sbr.rel (%p6575) target = $region96
      $region93: #{conv4_forward.1} parent=39 // loop_body
        %s6579 = smul.u32 %s6574, 128
        %s6580 = sadd.s32 %s6579, 264
        %s6581 = scalar_lea.vmem [#allocation2], %s6579
        %v6582 = vld [vmem:[%s6581] sm:$0xff]
        %v6583 = vld [vmem:[%s6581 + $0x8] sm:$0xff]
        %v6584 = vld [vmem:[%s6581 + $0x10] sm:$0xff]
        %v6585 = vld [vmem:[%s6581 + $0x18] sm:$0xff]
        %v6586 = vld [vmem:[%s6581 + $0x20] sm:$0xff]
        %v6587 = vld [vmem:[%s6581 + $0x28] sm:$0xff]
        %v6588 = vld [vmem:[%s6581 + $0x30] sm:$0xff]
        %v6589 = vld [vmem:[%s6581 + $0x38] sm:$0xff]
        %v6590 = vld [vmem:[%s6581 + $0x40] sm:$0xff]
        %v6591 = vld [vmem:[%s6581 + $0x48] sm:$0xff]
        %v6592 = vld [vmem:[%s6581 + $0x50] sm:$0xff]
        %v6593 = vld [vmem:[%s6581 + $0x58] sm:$0xff]
        %v6594 = vld [vmem:[%s6581 + $0x60] sm:$0xff]
        %v6595 = vld [vmem:[%s6581 + $0x68] sm:$0xff]
        %v6596 = vld [vmem:[%s6581 + $0x70] sm:$0xff]
        %v6597 = vld [vmem:[%s6581 + $0x78] sm:$0xff]
        %v6598 = vpack.c.bf16 %v6583, %v6582
        %v6599 = vpack.c.bf16 %v6585, %v6584
        %v6600 = vpack.c.bf16 %v6587, %v6586
        %v6601 = vpack.c.bf16 %v6589, %v6588
        %v6602 = vpack.c.bf16 %v6591, %v6590
        %v6603 = vpack.c.bf16 %v6593, %v6592
        %v6604 = vpack.c.bf16 %v6595, %v6594
        %v6605 = vpack.c.bf16 %v6597, %v6596
        %s6606 = scalar_lea.vmem %s1, 1728
        %v6607 = vld [vmem:[%s6606] sm:$0xf]
        %v6608 = vld [vmem:[%s6606 + $0x4] sm:$0xf]
        %v6609 = vld [vmem:[%s6606 + $0x8] sm:$0xf]
        %v6610 = vld [vmem:[%s6606 + $0xc] sm:$0xf]
        %v6611 = vld [vmem:[%s6606 + $0x10] sm:$0xf]
        %v6612 = vld [vmem:[%s6606 + $0x14] sm:$0xf]
        %v6613 = vld [vmem:[%s6606 + $0x18] sm:$0xf]
        %v6614 = vld [vmem:[%s6606 + $0x1c] sm:$0xf]
        %v6615 = vld [vmem:[%s6606 + $0x20] sm:$0xf]
        %v6616 = vld [vmem:[%s6606 + $0x24] sm:$0xf]
        %v6617 = vld [vmem:[%s6606 + $0x28] sm:$0xf]
        %v6618 = vld [vmem:[%s6606 + $0x2c] sm:$0xf]
        %v6619 = vld [vmem:[%s6606 + $0x30] sm:$0xf]
        %v6620 = vld [vmem:[%s6606 + $0x34] sm:$0xf]
        %v6621 = vld [vmem:[%s6606 + $0x38] sm:$0xf]
        %v6622 = vld [vmem:[%s6606 + $0x3c] sm:$0xf]
        %s6623 = sadd.s32 %s6579, 8
        %s6624 = scalar_lea.vmem [#allocation2], %s6623
        %v6625 = vld [vmem:[%s6624] sm:$0xff]
        %v6626 = vld [vmem:[%s6624 + $0x8] sm:$0xff]
        %v6627 = vld [vmem:[%s6624 + $0x10] sm:$0xff]
        %v6628 = vld [vmem:[%s6624 + $0x18] sm:$0xff]
        %v6629 = vld [vmem:[%s6624 + $0x20] sm:$0xff]
        %v6630 = vld [vmem:[%s6624 + $0x28] sm:$0xff]
        %v6631 = vld [vmem:[%s6624 + $0x30] sm:$0xff]
        %v6632 = vld [vmem:[%s6624 + $0x38] sm:$0xff]
        %v6633 = vld [vmem:[%s6624 + $0x40] sm:$0xff]
        %v6634 = vld [vmem:[%s6624 + $0x48] sm:$0xff]
        %v6635 = vld [vmem:[%s6624 + $0x50] sm:$0xff]
        %v6636 = vld [vmem:[%s6624 + $0x58] sm:$0xff]
        %v6637 = vld [vmem:[%s6624 + $0x60] sm:$0xff]
        %v6638 = vld [vmem:[%s6624 + $0x68] sm:$0xff]
        %v6639 = vld [vmem:[%s6624 + $0x70] sm:$0xff]
        %v6640 = vld [vmem:[%s6624 + $0x78] sm:$0xff]
        %v6641 = vpack.c.bf16 %v6626, %v6625
        %v6642 = vpack.c.bf16 %v6628, %v6627
        %v6643 = vpack.c.bf16 %v6630, %v6629
        %v6644 = vpack.c.bf16 %v6632, %v6631
        %v6645 = vpack.c.bf16 %v6634, %v6633
        %v6646 = vpack.c.bf16 %v6636, %v6635
        %v6647 = vpack.c.bf16 %v6638, %v6637
        %v6648 = vpack.c.bf16 %v6640, %v6639
        %s6649 = scalar_lea.vmem %s1, 1792
        %v6650 = vld [vmem:[%s6649] sm:$0xf]
        %v6651 = vld [vmem:[%s6649 + $0x4] sm:$0xf]
        %v6652 = vld [vmem:[%s6649 + $0x8] sm:$0xf]
        %v6653 = vld [vmem:[%s6649 + $0xc] sm:$0xf]
        %v6654 = vld [vmem:[%s6649 + $0x10] sm:$0xf]
        %v6655 = vld [vmem:[%s6649 + $0x14] sm:$0xf]
        %v6656 = vld [vmem:[%s6649 + $0x18] sm:$0xf]
        %v6657 = vld [vmem:[%s6649 + $0x1c] sm:$0xf]
        %v6658 = vld [vmem:[%s6649 + $0x20] sm:$0xf]
        %v6659 = vld [vmem:[%s6649 + $0x24] sm:$0xf]
        %v6660 = vld [vmem:[%s6649 + $0x28] sm:$0xf]
        %v6661 = vld [vmem:[%s6649 + $0x2c] sm:$0xf]
        %v6662 = vld [vmem:[%s6649 + $0x30] sm:$0xf]
        %v6663 = vld [vmem:[%s6649 + $0x34] sm:$0xf]
        %v6664 = vld [vmem:[%s6649 + $0x38] sm:$0xf]
        %v6665 = vld [vmem:[%s6649 + $0x3c] sm:$0xf]
        %v6682 = vunpack.c.l.b16 %v6650
        %v6683 = vunpack.c.l.b16 %v6651
        %v6684 = vunpack.c.l.b16 %v6652
        %v6685 = vunpack.c.l.b16 %v6653
        %v6686 = vunpack.c.l.b16 %v6654
        %v6687 = vunpack.c.l.b16 %v6655
        %v6688 = vunpack.c.l.b16 %v6656
        %v6689 = vunpack.c.l.b16 %v6657
        %v6690 = vunpack.c.l.b16 %v6658
        %v6691 = vunpack.c.l.b16 %v6659
        %v6692 = vunpack.c.l.b16 %v6660
        %v6693 = vunpack.c.l.b16 %v6661
        %v6694 = vunpack.c.l.b16 %v6662
        %v6695 = vunpack.c.l.b16 %v6663
        %v6696 = vunpack.c.l.b16 %v6664
        %v6697 = vunpack.c.l.b16 %v6665
        %v6698 = vpack.c.b16 %v6683, %v6682
        %v6699 = vpack.c.b16 %v6685, %v6684
        %v6700 = vpack.c.b16 %v6687, %v6686
        %v6701 = vpack.c.b16 %v6689, %v6688
        %v6702 = vpack.c.b16 %v6691, %v6690
        %v6703 = vpack.c.b16 %v6693, %v6692
        %v6704 = vpack.c.b16 %v6695, %v6694
        %v6705 = vpack.c.b16 %v6697, %v6696
        %6714 = vmatprep.subr.bf16.mxu0 0
        %6715 = vmatpush1.bf16.msra.mxu0 %v6698
        %6716 = vmatprep.subr.bf16.mxu0 0
        %6717 = vmatpush1.bf16.msra.mxu0 %v6699
        %6718 = vmatprep.subr.bf16.mxu0 0
        %6719 = vmatpush1.bf16.msra.mxu0 %v6700
        %6720 = vmatprep.subr.bf16.mxu0 0
        %6721 = vmatpush1.bf16.msra.mxu0 %v6701
        %6722 = vmatprep.subr.bf16.mxu0 0
        %6723 = vmatpush1.bf16.msra.mxu0 %v6702
        %6724 = vmatprep.subr.bf16.mxu0 0
        %6725 = vmatpush1.bf16.msra.mxu0 %v6703
        %6726 = vmatprep.subr.bf16.mxu0 0
        %6727 = vmatpush1.bf16.msra.mxu0 %v6704
        %6728 = vmatprep.subr.bf16.mxu0 0
        %6729 = vmatpush1.bf16.msra.mxu0 %v6705
        %6730 = vmatprep.subr.bf16.mxu0 0
        %6731 = vmatpush1.bf16.msra.mxu0 0
        %6732 = vmatprep.subr.bf16.mxu0 0
        %6733 = vmatpush1.bf16.msra.mxu0 0
        %6734 = vmatprep.subr.bf16.mxu0 0
        %6735 = vmatpush1.bf16.msra.mxu0 0
        %6736 = vmatprep.subr.bf16.mxu0 0
        %6737 = vmatpush1.bf16.msra.mxu0 0
        %6738 = vmatprep.subr.bf16.mxu0 0
        %6739 = vmatpush1.bf16.msra.mxu0 0
        %6740 = vmatprep.subr.bf16.mxu0 0
        %6741 = vmatpush1.bf16.msra.mxu0 0
        %6742 = vmatprep.subr.bf16.mxu0 0
        %6743 = vmatpush1.bf16.msra.mxu0 0
        %6744 = vmatprep.subr.bf16.mxu0 0
        %6745 = vmatpush1.bf16.msra.mxu0 0
        %6746 = vmatprep.mubr.bf16.mxu0 0
        %6747 = vmatmul.mubr.bf16.gmra.mrb[0].mxu0 %v6641
        %v6748 = vpop.f32.mrb[0].mxu0
        %v6749 = vadd.f32 0.0, %v6748
        %v6750 = vpop.f32.mrb[0].mxu0
        %v6751 = vpop.f32.mrb[0].mxu0
        %v6752 = vadd.f32 0.0, %v6751
        %v6753 = vpop.f32.mrb[0].mxu0
        %6754 = vmatprep.mubr.bf16.mxu0 0
        %6755 = vmatmul.mubr.bf16.gmra.mrb[0].mxu0 %v6642
        %v6756 = vpop.f32.mrb[0].mxu0
        %v6757 = vadd.f32 0.0, %v6756
        %v6758 = vpop.f32.mrb[0].mxu0
        %v6759 = vpop.f32.mrb[0].mxu0
        %v6760 = vadd.f32 0.0, %v6759
        %v6761 = vpop.f32.mrb[0].mxu0
        %6762 = vmatprep.mubr.bf16.mxu0 0
        %6763 = vmatmul.mubr.bf16.gmra.mrb[0].mxu0 %v6643
        %v6764 = vpop.f32.mrb[0].mxu0
        %v6765 = vadd.f32 0.0, %v6764
        %v6766 = vpop.f32.mrb[0].mxu0
        %v6767 = vpop.f32.mrb[0].mxu0
        %v6768 = vadd.f32 0.0, %v6767
        %v6769 = vpop.f32.mrb[0].mxu0
        %6770 = vmatprep.mubr.bf16.mxu0 0
        %6771 = vmatmul.mubr.bf16.gmra.mrb[0].mxu0 %v6644
        %v6772 = vpop.f32.mrb[0].mxu0
        %v6773 = vadd.f32 0.0, %v6772
        %v6774 = vpop.f32.mrb[0].mxu0
        %v6775 = vpop.f32.mrb[0].mxu0
        %v6776 = vadd.f32 0.0, %v6775
        %v6777 = vpop.f32.mrb[0].mxu0
        %6778 = vmatprep.mubr.bf16.mxu0 0
        %6779 = vmatmul.mubr.bf16.gmra.mrb[0].mxu0 %v6645
        %v6780 = vpop.f32.mrb[0].mxu0
        %v6781 = vadd.f32 0.0, %v6780
        %v6782 = vpop.f32.mrb[0].mxu0
        %v6783 = vpop.f32.mrb[0].mxu0
        %v6784 = vadd.f32 0.0, %v6783
        %v6785 = vpop.f32.mrb[0].mxu0
        %6786 = vmatprep.mubr.bf16.mxu0 0
        %6787 = vmatmul.mubr.bf16.gmra.mrb[0].mxu0 %v6646
        %v6788 = vpop.f32.mrb[0].mxu0
        %v6789 = vadd.f32 0.0, %v6788
        %v6790 = vpop.f32.mrb[0].mxu0
        %v6791 = vpop.f32.mrb[0].mxu0
        %v6792 = vadd.f32 0.0, %v6791
        %v6793 = vpop.f32.mrb[0].mxu0
        %6794 = vmatprep.mubr.bf16.mxu0 0
        %6795 = vmatmul.mubr.bf16.gmra.mrb[0].mxu0 %v6647
        %v6796 = vpop.f32.mrb[0].mxu0
        %v6797 = vadd.f32 0.0, %v6796
        %v6798 = vpop.f32.mrb[0].mxu0
        %v6799 = vpop.f32.mrb[0].mxu0
        %v6800 = vadd.f32 0.0, %v6799
        %v6801 = vpop.f32.mrb[0].mxu0
        %6802 = vmatprep.mubr.bf16.mxu0 0
        %6803 = vmatmul.mubr.bf16.gmra.mrb[0].mxu0 %v6648
        %v6804 = vpop.f32.mrb[0].mxu0
        %v6805 = vadd.f32 0.0, %v6804
        %v6806 = vpop.f32.mrb[0].mxu0
        %v6807 = vpop.f32.mrb[0].mxu0
        %v6808 = vadd.f32 0.0, %v6807
        %v6809 = vpop.f32.mrb[0].mxu0
        %6810 = vdwg.mxu0
        %v6827 = vunpack.c.l.b16 %v6607
        %v6828 = vunpack.c.l.b16 %v6608
        %v6829 = vunpack.c.l.b16 %v6609
        %v6830 = vunpack.c.l.b16 %v6610
        %v6831 = vunpack.c.l.b16 %v6611
        %v6832 = vunpack.c.l.b16 %v6612
        %v6833 = vunpack.c.l.b16 %v6613
        %v6834 = vunpack.c.l.b16 %v6614
        %v6835 = vunpack.c.l.b16 %v6615
        %v6836 = vunpack.c.l.b16 %v6616
        %v6837 = vunpack.c.l.b16 %v6617
        %v6838 = vunpack.c.l.b16 %v6618
        %v6839 = vunpack.c.l.b16 %v6619
        %v6840 = vunpack.c.l.b16 %v6620
        %v6841 = vunpack.c.l.b16 %v6621
        %v6842 = vunpack.c.l.b16 %v6622
        %v6843 = vpack.c.b16 %v6828, %v6827
        %v6844 = vpack.c.b16 %v6830, %v6829
        %v6845 = vpack.c.b16 %v6832, %v6831
        %v6846 = vpack.c.b16 %v6834, %v6833
        %v6847 = vpack.c.b16 %v6836, %v6835
        %v6848 = vpack.c.b16 %v6838, %v6837
        %v6849 = vpack.c.b16 %v6840, %v6839
        %v6850 = vpack.c.b16 %v6842, %v6841
        %6859 = vmatprep.subr.bf16.mxu0 0
        %6860 = vmatpush1.bf16.msra.mxu0 %v6843
        %6861 = vmatprep.subr.bf16.mxu0 0
        %6862 = vmatpush1.bf16.msra.mxu0 %v6844
        %6863 = vmatprep.subr.bf16.mxu0 0
        %6864 = vmatpush1.bf16.msra.mxu0 %v6845
        %6865 = vmatprep.subr.bf16.mxu0 0
        %6866 = vmatpush1.bf16.msra.mxu0 %v6846
        %6867 = vmatprep.subr.bf16.mxu0 0
        %6868 = vmatpush1.bf16.msra.mxu0 %v6847
        %6869 = vmatprep.subr.bf16.mxu0 0
        %6870 = vmatpush1.bf16.msra.mxu0 %v6848
        %6871 = vmatprep.subr.bf16.mxu0 0
        %6872 = vmatpush1.bf16.msra.mxu0 %v6849
        %6873 = vmatprep.subr.bf16.mxu0 0
        %6874 = vmatpush1.bf16.msra.mxu0 %v6850
        %6875 = vmatprep.subr.bf16.mxu0 0
        %6876 = vmatpush1.bf16.msra.mxu0 0
        %6877 = vmatprep.subr.bf16.mxu0 0
        %6878 = vmatpush1.bf16.msra.mxu0 0
        %6879 = vmatprep.subr.bf16.mxu0 0
        %6880 = vmatpush1.bf16.msra.mxu0 0
        %6881 = vmatprep.subr.bf16.mxu0 0
        %6882 = vmatpush1.bf16.msra.mxu0 0
        %6883 = vmatprep.subr.bf16.mxu0 0
        %6884 = vmatpush1.bf16.msra.mxu0 0
        %6885 = vmatprep.subr.bf16.mxu0 0
        %6886 = vmatpush1.bf16.msra.mxu0 0
        %6887 = vmatprep.subr.bf16.mxu0 0
        %6888 = vmatpush1.bf16.msra.mxu0 0
        %6889 = vmatprep.subr.bf16.mxu0 0
        %6890 = vmatpush1.bf16.msra.mxu0 0
        %6891 = vmatprep.mubr.bf16.mxu0 0
        %6892 = vmatmul.mubr.bf16.gmra.mrb[0].mxu0 %v6598
        %v6893 = vpop.f32.mrb[0].mxu0
        %v6894 = vadd.f32 %v6749, %v6893
        %v6895 = vpop.f32.mrb[0].mxu0
        %v6896 = vpop.f32.mrb[0].mxu0
        %v6897 = vadd.f32 %v6752, %v6896
        %v6898 = vpop.f32.mrb[0].mxu0
        %6899 = vmatprep.mubr.bf16.mxu0 0
        %6900 = vmatmul.mubr.bf16.gmra.mrb[0].mxu0 %v6599
        %v6901 = vpop.f32.mrb[0].mxu0
        %v6902 = vadd.f32 %v6757, %v6901
        %v6903 = vpop.f32.mrb[0].mxu0
        %v6904 = vpop.f32.mrb[0].mxu0
        %v6905 = vadd.f32 %v6760, %v6904
        %v6906 = vpop.f32.mrb[0].mxu0
        %6907 = vmatprep.mubr.bf16.mxu0 0
        %6908 = vmatmul.mubr.bf16.gmra.mrb[0].mxu0 %v6600
        %v6909 = vpop.f32.mrb[0].mxu0
        %v6910 = vadd.f32 %v6765, %v6909
        %v6911 = vpop.f32.mrb[0].mxu0
        %v6912 = vpop.f32.mrb[0].mxu0
        %v6913 = vadd.f32 %v6768, %v6912
        %v6914 = vpop.f32.mrb[0].mxu0
        %6915 = vmatprep.mubr.bf16.mxu0 0
        %6916 = vmatmul.mubr.bf16.gmra.mrb[0].mxu0 %v6601
        %v6917 = vpop.f32.mrb[0].mxu0
        %v6918 = vadd.f32 %v6773, %v6917
        %v6919 = vpop.f32.mrb[0].mxu0
        %v6920 = vpop.f32.mrb[0].mxu0
        %v6921 = vadd.f32 %v6776, %v6920
        %v6922 = vpop.f32.mrb[0].mxu0
        %6923 = vmatprep.mubr.bf16.mxu0 0
        %6924 = vmatmul.mubr.bf16.gmra.mrb[0].mxu0 %v6602
        %v6925 = vpop.f32.mrb[0].mxu0
        %v6926 = vadd.f32 %v6781, %v6925
        %v6927 = vpop.f32.mrb[0].mxu0
        %v6928 = vpop.f32.mrb[0].mxu0
        %v6929 = vadd.f32 %v6784, %v6928
        %v6930 = vpop.f32.mrb[0].mxu0
        %6931 = vmatprep.mubr.bf16.mxu0 0
        %6932 = vmatmul.mubr.bf16.gmra.mrb[0].mxu0 %v6603
        %v6933 = vpop.f32.mrb[0].mxu0
        %v6934 = vadd.f32 %v6789, %v6933
        %v6935 = vpop.f32.mrb[0].mxu0
        %v6936 = vpop.f32.mrb[0].mxu0
        %v6937 = vadd.f32 %v6792, %v6936
        %v6938 = vpop.f32.mrb[0].mxu0
        %6939 = vmatprep.mubr.bf16.mxu0 0
        %6940 = vmatmul.mubr.bf16.gmra.mrb[0].mxu0 %v6604
        %v6941 = vpop.f32.mrb[0].mxu0
        %v6942 = vadd.f32 %v6797, %v6941
        %v6943 = vpop.f32.mrb[0].mxu0
        %v6944 = vpop.f32.mrb[0].mxu0
        %v6945 = vadd.f32 %v6800, %v6944
        %v6946 = vpop.f32.mrb[0].mxu0
        %6947 = vmatprep.mubr.bf16.mxu0 0
        %6948 = vmatmul.mubr.bf16.gmra.mrb[0].mxu0 %v6605
        %v6949 = vpop.f32.mrb[0].mxu0
        %v6950 = vadd.f32 %v6805, %v6949
        %v6951 = vpop.f32.mrb[0].mxu0
        %v6952 = vpop.f32.mrb[0].mxu0
        %v6953 = vadd.f32 %v6808, %v6952
        %v6954 = vpop.f32.mrb[0].mxu0
        %6955 = vdwg.mxu0
        %s6956 = sadd.s32 %s6579, 16
        %s6957 = scalar_lea.vmem [#allocation2], %s6956
        %v6958 = vld [vmem:[%s6957] sm:$0xff]
        %v6959 = vld [vmem:[%s6957 + $0x8] sm:$0xff]
        %v6960 = vld [vmem:[%s6957 + $0x10] sm:$0xff]
        %v6961 = vld [vmem:[%s6957 + $0x18] sm:$0xff]
        %v6962 = vld [vmem:[%s6957 + $0x20] sm:$0xff]
        %v6963 = vld [vmem:[%s6957 + $0x28] sm:$0xff]
        %v6964 = vld [vmem:[%s6957 + $0x30] sm:$0xff]
        %v6965 = vld [vmem:[%s6957 + $0x38] sm:$0xff]
        %v6966 = vld [vmem:[%s6957 + $0x40] sm:$0xff]
        %v6967 = vld [vmem:[%s6957 + $0x48] sm:$0xff]
        %v6968 = vld [vmem:[%s6957 + $0x50] sm:$0xff]
        %v6969 = vld [vmem:[%s6957 + $0x58] sm:$0xff]
        %v6970 = vld [vmem:[%s6957 + $0x60] sm:$0xff]
        %v6971 = vld [vmem:[%s6957 + $0x68] sm:$0xff]
        %v6972 = vld [vmem:[%s6957 + $0x70] sm:$0xff]
        %v6973 = vld [vmem:[%s6957 + $0x78] sm:$0xff]
        %v6974 = vpack.c.bf16 %v6959, %v6958
        %v6975 = vpack.c.bf16 %v6961, %v6960
        %v6976 = vpack.c.bf16 %v6963, %v6962
        %v6977 = vpack.c.bf16 %v6965, %v6964
        %v6978 = vpack.c.bf16 %v6967, %v6966
        %v6979 = vpack.c.bf16 %v6969, %v6968
        %v6980 = vpack.c.bf16 %v6971, %v6970
        %v6981 = vpack.c.bf16 %v6973, %v6972
        %s6982 = scalar_lea.vmem %s1, 1856
        %v6983 = vld [vmem:[%s6982] sm:$0xf]
        %v6984 = vld [vmem:[%s6982 + $0x4] sm:$0xf]
        %v6985 = vld [vmem:[%s6982 + $0x8] sm:$0xf]
        %v6986 = vld [vmem:[%s6982 + $0xc] sm:$0xf]
        %v6987 = vld [vmem:[%s6982 + $0x10] sm:$0xf]
        %v6988 = vld [vmem:[%s6982 + $0x14] sm:$0xf]
        %v6989 = vld [vmem:[%s6982 + $0x18] sm:$0xf]
        %v6990 = vld [vmem:[%s6982 + $0x1c] sm:$0xf]
        %v6991 = vld [vmem:[%s6982 + $0x20] sm:$0xf]
        %v6992 = vld [vmem:[%s6982 + $0x24] sm:$0xf]
        %v6993 = vld [vmem:[%s6982 + $0x28] sm:$0xf]
        %v6994 = vld [vmem:[%s6982 + $0x2c] sm:$0xf]
        %v6995 = vld [vmem:[%s6982 + $0x30] sm:$0xf]
        %v6996 = vld [vmem:[%s6982 + $0x34] sm:$0xf]
        %v6997 = vld [vmem:[%s6982 + $0x38] sm:$0xf]
        %v6998 = vld [vmem:[%s6982 + $0x3c] sm:$0xf]
        %v7015 = vunpack.c.l.b16 %v6983
        %v7016 = vunpack.c.l.b16 %v6984
        %v7017 = vunpack.c.l.b16 %v6985
        %v7018 = vunpack.c.l.b16 %v6986
        %v7019 = vunpack.c.l.b16 %v6987
        %v7020 = vunpack.c.l.b16 %v6988
        %v7021 = vunpack.c.l.b16 %v6989
        %v7022 = vunpack.c.l.b16 %v6990
        %v7023 = vunpack.c.l.b16 %v6991
        %v7024 = vunpack.c.l.b16 %v6992
        %v7025 = vunpack.c.l.b16 %v6993
        %v7026 = vunpack.c.l.b16 %v6994
        %v7027 = vunpack.c.l.b16 %v6995
        %v7028 = vunpack.c.l.b16 %v6996
        %v7029 = vunpack.c.l.b16 %v6997
        %v7030 = vunpack.c.l.b16 %v6998
        %v7031 = vpack.c.b16 %v7016, %v7015
        %v7032 = vpack.c.b16 %v7018, %v7017
        %v7033 = vpack.c.b16 %v7020, %v7019
        %v7034 = vpack.c.b16 %v7022, %v7021
        %v7035 = vpack.c.b16 %v7024, %v7023
        %v7036 = vpack.c.b16 %v7026, %v7025
        %v7037 = vpack.c.b16 %v7028, %v7027
        %v7038 = vpack.c.b16 %v7030, %v7029
        %7047 = vmatprep.subr.bf16.mxu0 0
        %7048 = vmatpush1.bf16.msra.mxu0 %v7031
        %7049 = vmatprep.subr.bf16.mxu0 0
        %7050 = vmatpush1.bf16.msra.mxu0 %v7032
        %7051 = vmatprep.subr.bf16.mxu0 0
        %7052 = vmatpush1.bf16.msra.mxu0 %v7033
        %7053 = vmatprep.subr.bf16.mxu0 0
        %7054 = vmatpush1.bf16.msra.mxu0 %v7034
        %7055 = vmatprep.subr.bf16.mxu0 0
        %7056 = vmatpush1.bf16.msra.mxu0 %v7035
        %7057 = vmatprep.subr.bf16.mxu0 0
        %7058 = vmatpush1.bf16.msra.mxu0 %v7036
        %7059 = vmatprep.subr.bf16.mxu0 0
        %7060 = vmatpush1.bf16.msra.mxu0 %v7037
        %7061 = vmatprep.subr.bf16.mxu0 0
        %7062 = vmatpush1.bf16.msra.mxu0 %v7038
        %7063 = vmatprep.subr.bf16.mxu0 0
        %7064 = vmatpush1.bf16.msra.mxu0 0
        %7065 = vmatprep.subr.bf16.mxu0 0
        %7066 = vmatpush1.bf16.msra.mxu0 0
        %7067 = vmatprep.subr.bf16.mxu0 0
        %7068 = vmatpush1.bf16.msra.mxu0 0
        %7069 = vmatprep.subr.bf16.mxu0 0
        %7070 = vmatpush1.bf16.msra.mxu0 0
        %7071 = vmatprep.subr.bf16.mxu0 0
        %7072 = vmatpush1.bf16.msra.mxu0 0
        %7073 = vmatprep.subr.bf16.mxu0 0
        %7074 = vmatpush1.bf16.msra.mxu0 0
        %7075 = vmatprep.subr.bf16.mxu0 0
        %7076 = vmatpush1.bf16.msra.mxu0 0
        %7077 = vmatprep.subr.bf16.mxu0 0
        %7078 = vmatpush1.bf16.msra.mxu0 0
        %7079 = vmatprep.mubr.bf16.mxu0 0
        %7080 = vmatmul.mubr.bf16.gmra.mrb[0].mxu0 %v6974
        %v7081 = vpop.f32.mrb[0].mxu0
        %v7082 = vadd.f32 0.0, %v7081
        %v7083 = vpop.f32.mrb[0].mxu0
        %v7084 = vpop.f32.mrb[0].mxu0
        %v7085 = vadd.f32 0.0, %v7084
        %v7086 = vpop.f32.mrb[0].mxu0
        %7087 = vmatprep.mubr.bf16.mxu0 0
        %7088 = vmatmul.mubr.bf16.gmra.mrb[0].mxu0 %v6975
        %v7089 = vpop.f32.mrb[0].mxu0
        %v7090 = vadd.f32 0.0, %v7089
        %v7091 = vpop.f32.mrb[0].mxu0
        %v7092 = vpop.f32.mrb[0].mxu0
        %v7093 = vadd.f32 0.0, %v7092
        %v7094 = vpop.f32.mrb[0].mxu0
        %7095 = vmatprep.mubr.bf16.mxu0 0
        %7096 = vmatmul.mubr.bf16.gmra.mrb[0].mxu0 %v6976
        %v7097 = vpop.f32.mrb[0].mxu0
        %v7098 = vadd.f32 0.0, %v7097
        %v7099 = vpop.f32.mrb[0].mxu0
        %v7100 = vpop.f32.mrb[0].mxu0
        %v7101 = vadd.f32 0.0, %v7100
        %v7102 = vpop.f32.mrb[0].mxu0
        %7103 = vmatprep.mubr.bf16.mxu0 0
        %7104 = vmatmul.mubr.bf16.gmra.mrb[0].mxu0 %v6977
        %v7105 = vpop.f32.mrb[0].mxu0
        %v7106 = vadd.f32 0.0, %v7105
        %v7107 = vpop.f32.mrb[0].mxu0
        %v7108 = vpop.f32.mrb[0].mxu0
        %v7109 = vadd.f32 0.0, %v7108
        %v7110 = vpop.f32.mrb[0].mxu0
        %7111 = vmatprep.mubr.bf16.mxu0 0
        %7112 = vmatmul.mubr.bf16.gmra.mrb[0].mxu0 %v6978
        %v7113 = vpop.f32.mrb[0].mxu0
        %v7114 = vadd.f32 0.0, %v7113
        %v7115 = vpop.f32.mrb[0].mxu0
        %v7116 = vpop.f32.mrb[0].mxu0
        %v7117 = vadd.f32 0.0, %v7116
        %v7118 = vpop.f32.mrb[0].mxu0
        %7119 = vmatprep.mubr.bf16.mxu0 0
        %7120 = vmatmul.mubr.bf16.gmra.mrb[0].mxu0 %v6979
        %v7121 = vpop.f32.mrb[0].mxu0
        %v7122 = vadd.f32 0.0, %v7121
        %v7123 = vpop.f32.mrb[0].mxu0
        %v7124 = vpop.f32.mrb[0].mxu0
        %v7125 = vadd.f32 0.0, %v7124
        %v7126 = vpop.f32.mrb[0].mxu0
        %7127 = vmatprep.mubr.bf16.mxu0 0
        %7128 = vmatmul.mubr.bf16.gmra.mrb[0].mxu0 %v6980
        %v7129 = vpop.f32.mrb[0].mxu0
        %v7130 = vadd.f32 0.0, %v7129
        %v7131 = vpop.f32.mrb[0].mxu0
        %v7132 = vpop.f32.mrb[0].mxu0
        %v7133 = vadd.f32 0.0, %v7132
        %v7134 = vpop.f32.mrb[0].mxu0
        %7135 = vmatprep.mubr.bf16.mxu0 0
        %7136 = vmatmul.mubr.bf16.gmra.mrb[0].mxu0 %v6981
        %v7137 = vpop.f32.mrb[0].mxu0
        %v7138 = vadd.f32 0.0, %v7137
        %v7139 = vpop.f32.mrb[0].mxu0
        %v7140 = vpop.f32.mrb[0].mxu0
        %v7141 = vadd.f32 0.0, %v7140
        %v7142 = vpop.f32.mrb[0].mxu0
        %7143 = vdwg.mxu0
        %v7144 = vadd.f32 %v6894, %v7082
        %v7145 = vadd.f32 %v6897, %v7085
        %v7146 = vadd.f32 %v6902, %v7090
        %v7147 = vadd.f32 %v6905, %v7093
        %v7148 = vadd.f32 %v6910, %v7098
        %v7149 = vadd.f32 %v6913, %v7101
        %v7150 = vadd.f32 %v6918, %v7106
        %v7151 = vadd.f32 %v6921, %v7109
        %v7152 = vadd.f32 %v6926, %v7114
        %v7153 = vadd.f32 %v6929, %v7117
        %v7154 = vadd.f32 %v6934, %v7122
        %v7155 = vadd.f32 %v6937, %v7125
        %v7156 = vadd.f32 %v6942, %v7130
        %v7157 = vadd.f32 %v6945, %v7133
        %v7158 = vadd.f32 %v6950, %v7138
        %v7159 = vadd.f32 %v6953, %v7141
        %s7160 = sadd.s32 %s6579, 256
        %s7161 = scalar_lea.vmem [#allocation2], %s7160
        %v7162 = vld [vmem:[%s7161] sm:$0xff]
        %v7163 = vld [vmem:[%s7161 + $0x8] sm:$0xff]
        %v7164 = vld [vmem:[%s7161 + $0x10] sm:$0xff]
        %v7165 = vld [vmem:[%s7161 + $0x18] sm:$0xff]
        %v7166 = vld [vmem:[%s7161 + $0x20] sm:$0xff]
        %v7167 = vld [vmem:[%s7161 + $0x28] sm:$0xff]
        %v7168 = vld [vmem:[%s7161 + $0x30] sm:$0xff]
        %v7169 = vld [vmem:[%s7161 + $0x38] sm:$0xff]
        %v7170 = vld [vmem:[%s7161 + $0x40] sm:$0xff]
        %v7171 = vld [vmem:[%s7161 + $0x48] sm:$0xff]
        %v7172 = vld [vmem:[%s7161 + $0x50] sm:$0xff]
        %v7173 = vld [vmem:[%s7161 + $0x58] sm:$0xff]
        %v7174 = vld [vmem:[%s7161 + $0x60] sm:$0xff]
        %v7175 = vld [vmem:[%s7161 + $0x68] sm:$0xff]
        %v7176 = vld [vmem:[%s7161 + $0x70] sm:$0xff]
        %v7177 = vld [vmem:[%s7161 + $0x78] sm:$0xff]
        %v7178 = vpack.c.bf16 %v7163, %v7162
        %v7179 = vpack.c.bf16 %v7165, %v7164
        %v7180 = vpack.c.bf16 %v7167, %v7166
        %v7181 = vpack.c.bf16 %v7169, %v7168
        %v7182 = vpack.c.bf16 %v7171, %v7170
        %v7183 = vpack.c.bf16 %v7173, %v7172
        %v7184 = vpack.c.bf16 %v7175, %v7174
        %v7185 = vpack.c.bf16 %v7177, %v7176
        %s7186 = scalar_lea.vmem %s1, 1920
        %v7187 = vld [vmem:[%s7186] sm:$0xf]
        %v7188 = vld [vmem:[%s7186 + $0x4] sm:$0xf]
        %v7189 = vld [vmem:[%s7186 + $0x8] sm:$0xf]
        %v7190 = vld [vmem:[%s7186 + $0xc] sm:$0xf]
        %v7191 = vld [vmem:[%s7186 + $0x10] sm:$0xf]
        %v7192 = vld [vmem:[%s7186 + $0x14] sm:$0xf]
        %v7193 = vld [vmem:[%s7186 + $0x18] sm:$0xf]
        %v7194 = vld [vmem:[%s7186 + $0x1c] sm:$0xf]
        %v7195 = vld [vmem:[%s7186 + $0x20] sm:$0xf]
        %v7196 = vld [vmem:[%s7186 + $0x24] sm:$0xf]
        %v7197 = vld [vmem:[%s7186 + $0x28] sm:$0xf]
        %v7198 = vld [vmem:[%s7186 + $0x2c] sm:$0xf]
        %v7199 = vld [vmem:[%s7186 + $0x30] sm:$0xf]
        %v7200 = vld [vmem:[%s7186 + $0x34] sm:$0xf]
        %v7201 = vld [vmem:[%s7186 + $0x38] sm:$0xf]
        %v7202 = vld [vmem:[%s7186 + $0x3c] sm:$0xf]
        %v7219 = vunpack.c.l.b16 %v7187
        %v7220 = vunpack.c.l.b16 %v7188
        %v7221 = vunpack.c.l.b16 %v7189
        %v7222 = vunpack.c.l.b16 %v7190
        %v7223 = vunpack.c.l.b16 %v7191
        %v7224 = vunpack.c.l.b16 %v7192
        %v7225 = vunpack.c.l.b16 %v7193
        %v7226 = vunpack.c.l.b16 %v7194
        %v7227 = vunpack.c.l.b16 %v7195
        %v7228 = vunpack.c.l.b16 %v7196
        %v7229 = vunpack.c.l.b16 %v7197
        %v7230 = vunpack.c.l.b16 %v7198
        %v7231 = vunpack.c.l.b16 %v7199
        %v7232 = vunpack.c.l.b16 %v7200
        %v7233 = vunpack.c.l.b16 %v7201
        %v7234 = vunpack.c.l.b16 %v7202
        %v7235 = vpack.c.b16 %v7220, %v7219
        %v7236 = vpack.c.b16 %v7222, %v7221
        %v7237 = vpack.c.b16 %v7224, %v7223
        %v7238 = vpack.c.b16 %v7226, %v7225
        %v7239 = vpack.c.b16 %v7228, %v7227
        %v7240 = vpack.c.b16 %v7230, %v7229
        %v7241 = vpack.c.b16 %v7232, %v7231
        %v7242 = vpack.c.b16 %v7234, %v7233
        %7251 = vmatprep.subr.bf16.mxu0 0
        %7252 = vmatpush1.bf16.msra.mxu0 %v7235
        %7253 = vmatprep.subr.bf16.mxu0 0
        %7254 = vmatpush1.bf16.msra.mxu0 %v7236
        %7255 = vmatprep.subr.bf16.mxu0 0
        %7256 = vmatpush1.bf16.msra.mxu0 %v7237
        %7257 = vmatprep.subr.bf16.mxu0 0
        %7258 = vmatpush1.bf16.msra.mxu0 %v7238
        %7259 = vmatprep.subr.bf16.mxu0 0
        %7260 = vmatpush1.bf16.msra.mxu0 %v7239
        %7261 = vmatprep.subr.bf16.mxu0 0
        %7262 = vmatpush1.bf16.msra.mxu0 %v7240
        %7263 = vmatprep.subr.bf16.mxu0 0
        %7264 = vmatpush1.bf16.msra.mxu0 %v7241
        %7265 = vmatprep.subr.bf16.mxu0 0
        %7266 = vmatpush1.bf16.msra.mxu0 %v7242
        %7267 = vmatprep.subr.bf16.mxu0 0
        %7268 = vmatpush1.bf16.msra.mxu0 0
        %7269 = vmatprep.subr.bf16.mxu0 0
        %7270 = vmatpush1.bf16.msra.mxu0 0
        %7271 = vmatprep.subr.bf16.mxu0 0
        %7272 = vmatpush1.bf16.msra.mxu0 0
        %7273 = vmatprep.subr.bf16.mxu0 0
        %7274 = vmatpush1.bf16.msra.mxu0 0
        %7275 = vmatprep.subr.bf16.mxu0 0
        %7276 = vmatpush1.bf16.msra.mxu0 0
        %7277 = vmatprep.subr.bf16.mxu0 0
        %7278 = vmatpush1.bf16.msra.mxu0 0
        %7279 = vmatprep.subr.bf16.mxu0 0
        %7280 = vmatpush1.bf16.msra.mxu0 0
        %7281 = vmatprep.subr.bf16.mxu0 0
        %7282 = vmatpush1.bf16.msra.mxu0 0
        %7283 = vmatprep.mubr.bf16.mxu0 0
        %7284 = vmatmul.mubr.bf16.gmra.mrb[0].mxu0 %v7178
        %v7285 = vpop.f32.mrb[0].mxu0
        %v7286 = vadd.f32 0.0, %v7285
        %v7287 = vpop.f32.mrb[0].mxu0
        %v7288 = vpop.f32.mrb[0].mxu0
        %v7289 = vadd.f32 0.0, %v7288
        %v7290 = vpop.f32.mrb[0].mxu0
        %7291 = vmatprep.mubr.bf16.mxu0 0
        %7292 = vmatmul.mubr.bf16.gmra.mrb[0].mxu0 %v7179
        %v7293 = vpop.f32.mrb[0].mxu0
        %v7294 = vadd.f32 0.0, %v7293
        %v7295 = vpop.f32.mrb[0].mxu0
        %v7296 = vpop.f32.mrb[0].mxu0
        %v7297 = vadd.f32 0.0, %v7296
        %v7298 = vpop.f32.mrb[0].mxu0
        %7299 = vmatprep.mubr.bf16.mxu0 0
        %7300 = vmatmul.mubr.bf16.gmra.mrb[0].mxu0 %v7180
        %v7301 = vpop.f32.mrb[0].mxu0
        %v7302 = vadd.f32 0.0, %v7301
        %v7303 = vpop.f32.mrb[0].mxu0
        %v7304 = vpop.f32.mrb[0].mxu0
        %v7305 = vadd.f32 0.0, %v7304
        %v7306 = vpop.f32.mrb[0].mxu0
        %7307 = vmatprep.mubr.bf16.mxu0 0
        %7308 = vmatmul.mubr.bf16.gmra.mrb[0].mxu0 %v7181
        %v7309 = vpop.f32.mrb[0].mxu0
        %v7310 = vadd.f32 0.0, %v7309
        %v7311 = vpop.f32.mrb[0].mxu0
        %v7312 = vpop.f32.mrb[0].mxu0
        %v7313 = vadd.f32 0.0, %v7312
        %v7314 = vpop.f32.mrb[0].mxu0
        %7315 = vmatprep.mubr.bf16.mxu0 0
        %7316 = vmatmul.mubr.bf16.gmra.mrb[0].mxu0 %v7182
        %v7317 = vpop.f32.mrb[0].mxu0
        %v7318 = vadd.f32 0.0, %v7317
        %v7319 = vpop.f32.mrb[0].mxu0
        %v7320 = vpop.f32.mrb[0].mxu0
        %v7321 = vadd.f32 0.0, %v7320
        %v7322 = vpop.f32.mrb[0].mxu0
        %7323 = vmatprep.mubr.bf16.mxu0 0
        %7324 = vmatmul.mubr.bf16.gmra.mrb[0].mxu0 %v7183
        %v7325 = vpop.f32.mrb[0].mxu0
        %v7326 = vadd.f32 0.0, %v7325
        %v7327 = vpop.f32.mrb[0].mxu0
        %v7328 = vpop.f32.mrb[0].mxu0
        %v7329 = vadd.f32 0.0, %v7328
        %v7330 = vpop.f32.mrb[0].mxu0
        %7331 = vmatprep.mubr.bf16.mxu0 0
        %7332 = vmatmul.mubr.bf16.gmra.mrb[0].mxu0 %v7184
        %v7333 = vpop.f32.mrb[0].mxu0
        %v7334 = vadd.f32 0.0, %v7333
        %v7335 = vpop.f32.mrb[0].mxu0
        %v7336 = vpop.f32.mrb[0].mxu0
        %v7337 = vadd.f32 0.0, %v7336
        %v7338 = vpop.f32.mrb[0].mxu0
        %7339 = vmatprep.mubr.bf16.mxu0 0
        %7340 = vmatmul.mubr.bf16.gmra.mrb[0].mxu0 %v7185
        %v7341 = vpop.f32.mrb[0].mxu0
        %v7342 = vadd.f32 0.0, %v7341
        %v7343 = vpop.f32.mrb[0].mxu0
        %v7344 = vpop.f32.mrb[0].mxu0
        %v7345 = vadd.f32 0.0, %v7344
        %v7346 = vpop.f32.mrb[0].mxu0
        %7347 = vdwg.mxu0
        %v7348 = vadd.f32 %v7144, %v7286
        %v7349 = vadd.f32 %v7145, %v7289
        %v7350 = vadd.f32 %v7146, %v7294
        %v7351 = vadd.f32 %v7147, %v7297
        %v7352 = vadd.f32 %v7148, %v7302
        %v7353 = vadd.f32 %v7149, %v7305
        %v7354 = vadd.f32 %v7150, %v7310
        %v7355 = vadd.f32 %v7151, %v7313
        %v7356 = vadd.f32 %v7152, %v7318
        %v7357 = vadd.f32 %v7153, %v7321
        %v7358 = vadd.f32 %v7154, %v7326
        %v7359 = vadd.f32 %v7155, %v7329
        %v7360 = vadd.f32 %v7156, %v7334
        %v7361 = vadd.f32 %v7157, %v7337
        %v7362 = vadd.f32 %v7158, %v7342
        %v7363 = vadd.f32 %v7159, %v7345
        %s7364 = scalar_lea.vmem [#allocation2], %s6580
        %v7365 = vld [vmem:[%s7364] sm:$0xff]
        %v7366 = vld [vmem:[%s7364 + $0x8] sm:$0xff]
        %v7367 = vld [vmem:[%s7364 + $0x10] sm:$0xff]
        %v7368 = vld [vmem:[%s7364 + $0x18] sm:$0xff]
        %v7369 = vld [vmem:[%s7364 + $0x20] sm:$0xff]
        %v7370 = vld [vmem:[%s7364 + $0x28] sm:$0xff]
        %v7371 = vld [vmem:[%s7364 + $0x30] sm:$0xff]
        %v7372 = vld [vmem:[%s7364 + $0x38] sm:$0xff]
        %v7373 = vld [vmem:[%s7364 + $0x40] sm:$0xff]
        %v7374 = vld [vmem:[%s7364 + $0x48] sm:$0xff]
        %v7375 = vld [vmem:[%s7364 + $0x50] sm:$0xff]
        %v7376 = vld [vmem:[%s7364 + $0x58] sm:$0xff]
        %v7377 = vld [vmem:[%s7364 + $0x60] sm:$0xff]
        %v7378 = vld [vmem:[%s7364 + $0x68] sm:$0xff]
        %v7379 = vld [vmem:[%s7364 + $0x70] sm:$0xff]
        %v7380 = vld [vmem:[%s7364 + $0x78] sm:$0xff]
        %v7381 = vpack.c.bf16 %v7366, %v7365
        %v7382 = vpack.c.bf16 %v7368, %v7367
        %v7383 = vpack.c.bf16 %v7370, %v7369
        %v7384 = vpack.c.bf16 %v7372, %v7371
        %v7385 = vpack.c.bf16 %v7374, %v7373
        %v7386 = vpack.c.bf16 %v7376, %v7375
        %v7387 = vpack.c.bf16 %v7378, %v7377
        %v7388 = vpack.c.bf16 %v7380, %v7379
        %s7389 = scalar_lea.vmem %s1, 1984
        %v7390 = vld [vmem:[%s7389] sm:$0xf]
        %v7391 = vld [vmem:[%s7389 + $0x4] sm:$0xf]
        %v7392 = vld [vmem:[%s7389 + $0x8] sm:$0xf]
        %v7393 = vld [vmem:[%s7389 + $0xc] sm:$0xf]
        %v7394 = vld [vmem:[%s7389 + $0x10] sm:$0xf]
        %v7395 = vld [vmem:[%s7389 + $0x14] sm:$0xf]
        %v7396 = vld [vmem:[%s7389 + $0x18] sm:$0xf]
        %v7397 = vld [vmem:[%s7389 + $0x1c] sm:$0xf]
        %v7398 = vld [vmem:[%s7389 + $0x20] sm:$0xf]
        %v7399 = vld [vmem:[%s7389 + $0x24] sm:$0xf]
        %v7400 = vld [vmem:[%s7389 + $0x28] sm:$0xf]
        %v7401 = vld [vmem:[%s7389 + $0x2c] sm:$0xf]
        %v7402 = vld [vmem:[%s7389 + $0x30] sm:$0xf]
        %v7403 = vld [vmem:[%s7389 + $0x34] sm:$0xf]
        %v7404 = vld [vmem:[%s7389 + $0x38] sm:$0xf]
        %v7405 = vld [vmem:[%s7389 + $0x3c] sm:$0xf]
        %v7422 = vunpack.c.l.b16 %v7390
        %v7423 = vunpack.c.l.b16 %v7391
        %v7424 = vunpack.c.l.b16 %v7392
        %v7425 = vunpack.c.l.b16 %v7393
        %v7426 = vunpack.c.l.b16 %v7394
        %v7427 = vunpack.c.l.b16 %v7395
        %v7428 = vunpack.c.l.b16 %v7396
        %v7429 = vunpack.c.l.b16 %v7397
        %v7430 = vunpack.c.l.b16 %v7398
        %v7431 = vunpack.c.l.b16 %v7399
        %v7432 = vunpack.c.l.b16 %v7400
        %v7433 = vunpack.c.l.b16 %v7401
        %v7434 = vunpack.c.l.b16 %v7402
        %v7435 = vunpack.c.l.b16 %v7403
        %v7436 = vunpack.c.l.b16 %v7404
        %v7437 = vunpack.c.l.b16 %v7405
        %v7438 = vpack.c.b16 %v7423, %v7422
        %v7439 = vpack.c.b16 %v7425, %v7424
        %v7440 = vpack.c.b16 %v7427, %v7426
        %v7441 = vpack.c.b16 %v7429, %v7428
        %v7442 = vpack.c.b16 %v7431, %v7430
        %v7443 = vpack.c.b16 %v7433, %v7432
        %v7444 = vpack.c.b16 %v7435, %v7434
        %v7445 = vpack.c.b16 %v7437, %v7436
        %7454 = vmatprep.subr.bf16.mxu0 0
        %7455 = vmatpush1.bf16.msra.mxu0 %v7438
        %7456 = vmatprep.subr.bf16.mxu0 0
        %7457 = vmatpush1.bf16.msra.mxu0 %v7439
        %7458 = vmatprep.subr.bf16.mxu0 0
        %7459 = vmatpush1.bf16.msra.mxu0 %v7440
        %7460 = vmatprep.subr.bf16.mxu0 0
        %7461 = vmatpush1.bf16.msra.mxu0 %v7441
        %7462 = vmatprep.subr.bf16.mxu0 0
        %7463 = vmatpush1.bf16.msra.mxu0 %v7442
        %7464 = vmatprep.subr.bf16.mxu0 0
        %7465 = vmatpush1.bf16.msra.mxu0 %v7443
        %7466 = vmatprep.subr.bf16.mxu0 0
        %7467 = vmatpush1.bf16.msra.mxu0 %v7444
        %7468 = vmatprep.subr.bf16.mxu0 0
        %7469 = vmatpush1.bf16.msra.mxu0 %v7445
        %7470 = vmatprep.subr.bf16.mxu0 0
        %7471 = vmatpush1.bf16.msra.mxu0 0
        %7472 = vmatprep.subr.bf16.mxu0 0
        %7473 = vmatpush1.bf16.msra.mxu0 0
        %7474 = vmatprep.subr.bf16.mxu0 0
        %7475 = vmatpush1.bf16.msra.mxu0 0
        %7476 = vmatprep.subr.bf16.mxu0 0
        %7477 = vmatpush1.bf16.msra.mxu0 0
        %7478 = vmatprep.subr.bf16.mxu0 0
        %7479 = vmatpush1.bf16.msra.mxu0 0
        %7480 = vmatprep.subr.bf16.mxu0 0
        %7481 = vmatpush1.bf16.msra.mxu0 0
        %7482 = vmatprep.subr.bf16.mxu0 0
        %7483 = vmatpush1.bf16.msra.mxu0 0
        %7484 = vmatprep.subr.bf16.mxu0 0
        %7485 = vmatpush1.bf16.msra.mxu0 0
        %7486 = vmatprep.mubr.bf16.mxu0 0
        %7487 = vmatmul.mubr.bf16.gmra.mrb[0].mxu0 %v7381
        %v7488 = vpop.f32.mrb[0].mxu0
        %v7489 = vadd.f32 0.0, %v7488
        %v7490 = vpop.f32.mrb[0].mxu0
        %v7491 = vpop.f32.mrb[0].mxu0
        %v7492 = vadd.f32 0.0, %v7491
        %v7493 = vpop.f32.mrb[0].mxu0
        %7494 = vmatprep.mubr.bf16.mxu0 0
        %7495 = vmatmul.mubr.bf16.gmra.mrb[0].mxu0 %v7382
        %v7496 = vpop.f32.mrb[0].mxu0
        %v7497 = vadd.f32 0.0, %v7496
        %v7498 = vpop.f32.mrb[0].mxu0
        %v7499 = vpop.f32.mrb[0].mxu0
        %v7500 = vadd.f32 0.0, %v7499
        %v7501 = vpop.f32.mrb[0].mxu0
        %7502 = vmatprep.mubr.bf16.mxu0 0
        %7503 = vmatmul.mubr.bf16.gmra.mrb[0].mxu0 %v7383
        %v7504 = vpop.f32.mrb[0].mxu0
        %v7505 = vadd.f32 0.0, %v7504
        %v7506 = vpop.f32.mrb[0].mxu0
        %v7507 = vpop.f32.mrb[0].mxu0
        %v7508 = vadd.f32 0.0, %v7507
        %v7509 = vpop.f32.mrb[0].mxu0
        %7510 = vmatprep.mubr.bf16.mxu0 0
        %7511 = vmatmul.mubr.bf16.gmra.mrb[0].mxu0 %v7384
        %v7512 = vpop.f32.mrb[0].mxu0
        %v7513 = vadd.f32 0.0, %v7512
        %v7514 = vpop.f32.mrb[0].mxu0
        %v7515 = vpop.f32.mrb[0].mxu0
        %v7516 = vadd.f32 0.0, %v7515
        %v7517 = vpop.f32.mrb[0].mxu0
        %7518 = vmatprep.mubr.bf16.mxu0 0
        %7519 = vmatmul.mubr.bf16.gmra.mrb[0].mxu0 %v7385
        %v7520 = vpop.f32.mrb[0].mxu0
        %v7521 = vadd.f32 0.0, %v7520
        %v7522 = vpop.f32.mrb[0].mxu0
        %v7523 = vpop.f32.mrb[0].mxu0
        %v7524 = vadd.f32 0.0, %v7523
        %v7525 = vpop.f32.mrb[0].mxu0
        %7526 = vmatprep.mubr.bf16.mxu0 0
        %7527 = vmatmul.mubr.bf16.gmra.mrb[0].mxu0 %v7386
        %v7528 = vpop.f32.mrb[0].mxu0
        %v7529 = vadd.f32 0.0, %v7528
        %v7530 = vpop.f32.mrb[0].mxu0
        %v7531 = vpop.f32.mrb[0].mxu0
        %v7532 = vadd.f32 0.0, %v7531
        %v7533 = vpop.f32.mrb[0].mxu0
        %7534 = vmatprep.mubr.bf16.mxu0 0
        %7535 = vmatmul.mubr.bf16.gmra.mrb[0].mxu0 %v7387
        %v7536 = vpop.f32.mrb[0].mxu0
        %v7537 = vadd.f32 0.0, %v7536
        %v7538 = vpop.f32.mrb[0].mxu0
        %v7539 = vpop.f32.mrb[0].mxu0
        %v7540 = vadd.f32 0.0, %v7539
        %v7541 = vpop.f32.mrb[0].mxu0
        %7542 = vmatprep.mubr.bf16.mxu0 0
        %7543 = vmatmul.mubr.bf16.gmra.mrb[0].mxu0 %v7388
        %v7544 = vpop.f32.mrb[0].mxu0
        %v7545 = vadd.f32 0.0, %v7544
        %v7546 = vpop.f32.mrb[0].mxu0
        %v7547 = vpop.f32.mrb[0].mxu0
        %v7548 = vadd.f32 0.0, %v7547
        %v7549 = vpop.f32.mrb[0].mxu0
        %7550 = vdwg.mxu0
        %v7551 = vadd.f32 %v7348, %v7489
        %v7552 = vadd.f32 %v7349, %v7492
        %v7553 = vadd.f32 %v7350, %v7497
        %v7554 = vadd.f32 %v7351, %v7500
        %v7555 = vadd.f32 %v7352, %v7505
        %v7556 = vadd.f32 %v7353, %v7508
        %v7557 = vadd.f32 %v7354, %v7513
        %v7558 = vadd.f32 %v7355, %v7516
        %v7559 = vadd.f32 %v7356, %v7521
        %v7560 = vadd.f32 %v7357, %v7524
        %v7561 = vadd.f32 %v7358, %v7529
        %v7562 = vadd.f32 %v7359, %v7532
        %v7563 = vadd.f32 %v7360, %v7537
        %v7564 = vadd.f32 %v7361, %v7540
        %v7565 = vadd.f32 %v7362, %v7545
        %v7566 = vadd.f32 %v7363, %v7548
        %s7567 = sadd.s32 %s6579, 272
        %s7568 = scalar_lea.vmem [#allocation2], %s7567
        %v7569 = vld [vmem:[%s7568] sm:$0xff]
        %v7570 = vld [vmem:[%s7568 + $0x8] sm:$0xff]
        %v7571 = vld [vmem:[%s7568 + $0x10] sm:$0xff]
        %v7572 = vld [vmem:[%s7568 + $0x18] sm:$0xff]
        %v7573 = vld [vmem:[%s7568 + $0x20] sm:$0xff]
        %v7574 = vld [vmem:[%s7568 + $0x28] sm:$0xff]
        %v7575 = vld [vmem:[%s7568 + $0x30] sm:$0xff]
        %v7576 = vld [vmem:[%s7568 + $0x38] sm:$0xff]
        %v7577 = vld [vmem:[%s7568 + $0x40] sm:$0xff]
        %v7578 = vld [vmem:[%s7568 + $0x48] sm:$0xff]
        %v7579 = vld [vmem:[%s7568 + $0x50] sm:$0xff]
        %v7580 = vld [vmem:[%s7568 + $0x58] sm:$0xff]
        %v7581 = vld [vmem:[%s7568 + $0x60] sm:$0xff]
        %v7582 = vld [vmem:[%s7568 + $0x68] sm:$0xff]
        %v7583 = vld [vmem:[%s7568 + $0x70] sm:$0xff]
        %v7584 = vld [vmem:[%s7568 + $0x78] sm:$0xff]
        %v7585 = vpack.c.bf16 %v7570, %v7569
        %v7586 = vpack.c.bf16 %v7572, %v7571
        %v7587 = vpack.c.bf16 %v7574, %v7573
        %v7588 = vpack.c.bf16 %v7576, %v7575
        %v7589 = vpack.c.bf16 %v7578, %v7577
        %v7590 = vpack.c.bf16 %v7580, %v7579
        %v7591 = vpack.c.bf16 %v7582, %v7581
        %v7592 = vpack.c.bf16 %v7584, %v7583
        %s7593 = scalar_lea.vmem %s1, 2048
        %v7594 = vld [vmem:[%s7593] sm:$0xf]
        %v7595 = vld [vmem:[%s7593 + $0x4] sm:$0xf]
        %v7596 = vld [vmem:[%s7593 + $0x8] sm:$0xf]
        %v7597 = vld [vmem:[%s7593 + $0xc] sm:$0xf]
        %v7598 = vld [vmem:[%s7593 + $0x10] sm:$0xf]
        %v7599 = vld [vmem:[%s7593 + $0x14] sm:$0xf]
        %v7600 = vld [vmem:[%s7593 + $0x18] sm:$0xf]
        %v7601 = vld [vmem:[%s7593 + $0x1c] sm:$0xf]
        %v7602 = vld [vmem:[%s7593 + $0x20] sm:$0xf]
        %v7603 = vld [vmem:[%s7593 + $0x24] sm:$0xf]
        %v7604 = vld [vmem:[%s7593 + $0x28] sm:$0xf]
        %v7605 = vld [vmem:[%s7593 + $0x2c] sm:$0xf]
        %v7606 = vld [vmem:[%s7593 + $0x30] sm:$0xf]
        %v7607 = vld [vmem:[%s7593 + $0x34] sm:$0xf]
        %v7608 = vld [vmem:[%s7593 + $0x38] sm:$0xf]
        %v7609 = vld [vmem:[%s7593 + $0x3c] sm:$0xf]
        %v7626 = vunpack.c.l.b16 %v7594
        %v7627 = vunpack.c.l.b16 %v7595
        %v7628 = vunpack.c.l.b16 %v7596
        %v7629 = vunpack.c.l.b16 %v7597
        %v7630 = vunpack.c.l.b16 %v7598
        %v7631 = vunpack.c.l.b16 %v7599
        %v7632 = vunpack.c.l.b16 %v7600
        %v7633 = vunpack.c.l.b16 %v7601
        %v7634 = vunpack.c.l.b16 %v7602
        %v7635 = vunpack.c.l.b16 %v7603
        %v7636 = vunpack.c.l.b16 %v7604
        %v7637 = vunpack.c.l.b16 %v7605
        %v7638 = vunpack.c.l.b16 %v7606
        %v7639 = vunpack.c.l.b16 %v7607
        %v7640 = vunpack.c.l.b16 %v7608
        %v7641 = vunpack.c.l.b16 %v7609
        %v7642 = vpack.c.b16 %v7627, %v7626
        %v7643 = vpack.c.b16 %v7629, %v7628
        %v7644 = vpack.c.b16 %v7631, %v7630
        %v7645 = vpack.c.b16 %v7633, %v7632
        %v7646 = vpack.c.b16 %v7635, %v7634
        %v7647 = vpack.c.b16 %v7637, %v7636
        %v7648 = vpack.c.b16 %v7639, %v7638
        %v7649 = vpack.c.b16 %v7641, %v7640
        %7658 = vmatprep.subr.bf16.mxu0 0
        %7659 = vmatpush1.bf16.msra.mxu0 %v7642
        %7660 = vmatprep.subr.bf16.mxu0 0
        %7661 = vmatpush1.bf16.msra.mxu0 %v7643
        %7662 = vmatprep.subr.bf16.mxu0 0
        %7663 = vmatpush1.bf16.msra.mxu0 %v7644
        %7664 = vmatprep.subr.bf16.mxu0 0
        %7665 = vmatpush1.bf16.msra.mxu0 %v7645
        %7666 = vmatprep.subr.bf16.mxu0 0
        %7667 = vmatpush1.bf16.msra.mxu0 %v7646
        %7668 = vmatprep.subr.bf16.mxu0 0
        %7669 = vmatpush1.bf16.msra.mxu0 %v7647
        %7670 = vmatprep.subr.bf16.mxu0 0
        %7671 = vmatpush1.bf16.msra.mxu0 %v7648
        %7672 = vmatprep.subr.bf16.mxu0 0
        %7673 = vmatpush1.bf16.msra.mxu0 %v7649
        %7674 = vmatprep.subr.bf16.mxu0 0
        %7675 = vmatpush1.bf16.msra.mxu0 0
        %7676 = vmatprep.subr.bf16.mxu0 0
        %7677 = vmatpush1.bf16.msra.mxu0 0
        %7678 = vmatprep.subr.bf16.mxu0 0
        %7679 = vmatpush1.bf16.msra.mxu0 0
        %7680 = vmatprep.subr.bf16.mxu0 0
        %7681 = vmatpush1.bf16.msra.mxu0 0
        %7682 = vmatprep.subr.bf16.mxu0 0
        %7683 = vmatpush1.bf16.msra.mxu0 0
        %7684 = vmatprep.subr.bf16.mxu0 0
        %7685 = vmatpush1.bf16.msra.mxu0 0
        %7686 = vmatprep.subr.bf16.mxu0 0
        %7687 = vmatpush1.bf16.msra.mxu0 0
        %7688 = vmatprep.subr.bf16.mxu0 0
        %7689 = vmatpush1.bf16.msra.mxu0 0
        %7690 = vmatprep.mubr.bf16.mxu0 0
        %7691 = vmatmul.mubr.bf16.gmra.mrb[0].mxu0 %v7585
        %v7692 = vpop.f32.mrb[0].mxu0
        %v7693 = vadd.f32 0.0, %v7692
        %v7694 = vpop.f32.mrb[0].mxu0
        %v7695 = vpop.f32.mrb[0].mxu0
        %v7696 = vadd.f32 0.0, %v7695
        %v7697 = vpop.f32.mrb[0].mxu0
        %7698 = vmatprep.mubr.bf16.mxu0 0
        %7699 = vmatmul.mubr.bf16.gmra.mrb[0].mxu0 %v7586
        %v7700 = vpop.f32.mrb[0].mxu0
        %v7701 = vadd.f32 0.0, %v7700
        %v7702 = vpop.f32.mrb[0].mxu0
        %v7703 = vpop.f32.mrb[0].mxu0
        %v7704 = vadd.f32 0.0, %v7703
        %v7705 = vpop.f32.mrb[0].mxu0
        %7706 = vmatprep.mubr.bf16.mxu0 0
        %7707 = vmatmul.mubr.bf16.gmra.mrb[0].mxu0 %v7587
        %v7708 = vpop.f32.mrb[0].mxu0
        %v7709 = vadd.f32 0.0, %v7708
        %v7710 = vpop.f32.mrb[0].mxu0
        %v7711 = vpop.f32.mrb[0].mxu0
        %v7712 = vadd.f32 0.0, %v7711
        %v7713 = vpop.f32.mrb[0].mxu0
        %7714 = vmatprep.mubr.bf16.mxu0 0
        %7715 = vmatmul.mubr.bf16.gmra.mrb[0].mxu0 %v7588
        %v7716 = vpop.f32.mrb[0].mxu0
        %v7717 = vadd.f32 0.0, %v7716
        %v7718 = vpop.f32.mrb[0].mxu0
        %v7719 = vpop.f32.mrb[0].mxu0
        %v7720 = vadd.f32 0.0, %v7719
        %v7721 = vpop.f32.mrb[0].mxu0
        %7722 = vmatprep.mubr.bf16.mxu0 0
        %7723 = vmatmul.mubr.bf16.gmra.mrb[0].mxu0 %v7589
        %v7724 = vpop.f32.mrb[0].mxu0
        %v7725 = vadd.f32 0.0, %v7724
        %v7726 = vpop.f32.mrb[0].mxu0
        %v7727 = vpop.f32.mrb[0].mxu0
        %v7728 = vadd.f32 0.0, %v7727
        %v7729 = vpop.f32.mrb[0].mxu0
        %7730 = vmatprep.mubr.bf16.mxu0 0
        %7731 = vmatmul.mubr.bf16.gmra.mrb[0].mxu0 %v7590
        %v7732 = vpop.f32.mrb[0].mxu0
        %v7733 = vadd.f32 0.0, %v7732
        %v7734 = vpop.f32.mrb[0].mxu0
        %v7735 = vpop.f32.mrb[0].mxu0
        %v7736 = vadd.f32 0.0, %v7735
        %v7737 = vpop.f32.mrb[0].mxu0
        %7738 = vmatprep.mubr.bf16.mxu0 0
        %7739 = vmatmul.mubr.bf16.gmra.mrb[0].mxu0 %v7591
        %v7740 = vpop.f32.mrb[0].mxu0
        %v7741 = vadd.f32 0.0, %v7740
        %v7742 = vpop.f32.mrb[0].mxu0
        %v7743 = vpop.f32.mrb[0].mxu0
        %v7744 = vadd.f32 0.0, %v7743
        %v7745 = vpop.f32.mrb[0].mxu0
        %7746 = vmatprep.mubr.bf16.mxu0 0
        %7747 = vmatmul.mubr.bf16.gmra.mrb[0].mxu0 %v7592
        %v7748 = vpop.f32.mrb[0].mxu0
        %v7749 = vadd.f32 0.0, %v7748
        %v7750 = vpop.f32.mrb[0].mxu0
        %v7751 = vpop.f32.mrb[0].mxu0
        %v7752 = vadd.f32 0.0, %v7751
        %v7753 = vpop.f32.mrb[0].mxu0
        %7754 = vdwg.mxu0
        %v7755 = vadd.f32 %v7551, %v7693
        %v7756 = vadd.f32 %v7552, %v7696
        %v7757 = vadd.f32 %v7553, %v7701
        %v7758 = vadd.f32 %v7554, %v7704
        %v7759 = vadd.f32 %v7555, %v7709
        %v7760 = vadd.f32 %v7556, %v7712
        %v7761 = vadd.f32 %v7557, %v7717
        %v7762 = vadd.f32 %v7558, %v7720
        %v7763 = vadd.f32 %v7559, %v7725
        %v7764 = vadd.f32 %v7560, %v7728
        %v7765 = vadd.f32 %v7561, %v7733
        %v7766 = vadd.f32 %v7562, %v7736
        %v7767 = vadd.f32 %v7563, %v7741
        %v7768 = vadd.f32 %v7564, %v7744
        %v7769 = vadd.f32 %v7565, %v7749
        %v7770 = vadd.f32 %v7566, %v7752
        %s7771 = sadd.s32 %s6579, 512
        %s7772 = scalar_lea.vmem [#allocation2], %s7771
        %v7773 = vld [vmem:[%s7772] sm:$0xff]
        %v7774 = vld [vmem:[%s7772 + $0x8] sm:$0xff]
        %v7775 = vld [vmem:[%s7772 + $0x10] sm:$0xff]
        %v7776 = vld [vmem:[%s7772 + $0x18] sm:$0xff]
        %v7777 = vld [vmem:[%s7772 + $0x20] sm:$0xff]
        %v7778 = vld [vmem:[%s7772 + $0x28] sm:$0xff]
        %v7779 = vld [vmem:[%s7772 + $0x30] sm:$0xff]
        %v7780 = vld [vmem:[%s7772 + $0x38] sm:$0xff]
        %v7781 = vld [vmem:[%s7772 + $0x40] sm:$0xff]
        %v7782 = vld [vmem:[%s7772 + $0x48] sm:$0xff]
        %v7783 = vld [vmem:[%s7772 + $0x50] sm:$0xff]
        %v7784 = vld [vmem:[%s7772 + $0x58] sm:$0xff]
        %v7785 = vld [vmem:[%s7772 + $0x60] sm:$0xff]
        %v7786 = vld [vmem:[%s7772 + $0x68] sm:$0xff]
        %v7787 = vld [vmem:[%s7772 + $0x70] sm:$0xff]
        %v7788 = vld [vmem:[%s7772 + $0x78] sm:$0xff]
        %v7789 = vpack.c.bf16 %v7774, %v7773
        %v7790 = vpack.c.bf16 %v7776, %v7775
        %v7791 = vpack.c.bf16 %v7778, %v7777
        %v7792 = vpack.c.bf16 %v7780, %v7779
        %v7793 = vpack.c.bf16 %v7782, %v7781
        %v7794 = vpack.c.bf16 %v7784, %v7783
        %v7795 = vpack.c.bf16 %v7786, %v7785
        %v7796 = vpack.c.bf16 %v7788, %v7787
        %s7797 = scalar_lea.vmem %s1, 2112
        %v7798 = vld [vmem:[%s7797] sm:$0xf]
        %v7799 = vld [vmem:[%s7797 + $0x4] sm:$0xf]
        %v7800 = vld [vmem:[%s7797 + $0x8] sm:$0xf]
        %v7801 = vld [vmem:[%s7797 + $0xc] sm:$0xf]
        %v7802 = vld [vmem:[%s7797 + $0x10] sm:$0xf]
        %v7803 = vld [vmem:[%s7797 + $0x14] sm:$0xf]
        %v7804 = vld [vmem:[%s7797 + $0x18] sm:$0xf]
        %v7805 = vld [vmem:[%s7797 + $0x1c] sm:$0xf]
        %v7806 = vld [vmem:[%s7797 + $0x20] sm:$0xf]
        %v7807 = vld [vmem:[%s7797 + $0x24] sm:$0xf]
        %v7808 = vld [vmem:[%s7797 + $0x28] sm:$0xf]
        %v7809 = vld [vmem:[%s7797 + $0x2c] sm:$0xf]
        %v7810 = vld [vmem:[%s7797 + $0x30] sm:$0xf]
        %v7811 = vld [vmem:[%s7797 + $0x34] sm:$0xf]
        %v7812 = vld [vmem:[%s7797 + $0x38] sm:$0xf]
        %v7813 = vld [vmem:[%s7797 + $0x3c] sm:$0xf]
        %v7830 = vunpack.c.l.b16 %v7798
        %v7831 = vunpack.c.l.b16 %v7799
        %v7832 = vunpack.c.l.b16 %v7800
        %v7833 = vunpack.c.l.b16 %v7801
        %v7834 = vunpack.c.l.b16 %v7802
        %v7835 = vunpack.c.l.b16 %v7803
        %v7836 = vunpack.c.l.b16 %v7804
        %v7837 = vunpack.c.l.b16 %v7805
        %v7838 = vunpack.c.l.b16 %v7806
        %v7839 = vunpack.c.l.b16 %v7807
        %v7840 = vunpack.c.l.b16 %v7808
        %v7841 = vunpack.c.l.b16 %v7809
        %v7842 = vunpack.c.l.b16 %v7810
        %v7843 = vunpack.c.l.b16 %v7811
        %v7844 = vunpack.c.l.b16 %v7812
        %v7845 = vunpack.c.l.b16 %v7813
        %v7846 = vpack.c.b16 %v7831, %v7830
        %v7847 = vpack.c.b16 %v7833, %v7832
        %v7848 = vpack.c.b16 %v7835, %v7834
        %v7849 = vpack.c.b16 %v7837, %v7836
        %v7850 = vpack.c.b16 %v7839, %v7838
        %v7851 = vpack.c.b16 %v7841, %v7840
        %v7852 = vpack.c.b16 %v7843, %v7842
        %v7853 = vpack.c.b16 %v7845, %v7844
        %7862 = vmatprep.subr.bf16.mxu0 0
        %7863 = vmatpush1.bf16.msra.mxu0 %v7846
        %7864 = vmatprep.subr.bf16.mxu0 0
        %7865 = vmatpush1.bf16.msra.mxu0 %v7847
        %7866 = vmatprep.subr.bf16.mxu0 0
        %7867 = vmatpush1.bf16.msra.mxu0 %v7848
        %7868 = vmatprep.subr.bf16.mxu0 0
        %7869 = vmatpush1.bf16.msra.mxu0 %v7849
        %7870 = vmatprep.subr.bf16.mxu0 0
        %7871 = vmatpush1.bf16.msra.mxu0 %v7850
        %7872 = vmatprep.subr.bf16.mxu0 0
        %7873 = vmatpush1.bf16.msra.mxu0 %v7851
        %7874 = vmatprep.subr.bf16.mxu0 0
        %7875 = vmatpush1.bf16.msra.mxu0 %v7852
        %7876 = vmatprep.subr.bf16.mxu0 0
        %7877 = vmatpush1.bf16.msra.mxu0 %v7853
        %7878 = vmatprep.subr.bf16.mxu0 0
        %7879 = vmatpush1.bf16.msra.mxu0 0
        %7880 = vmatprep.subr.bf16.mxu0 0
        %7881 = vmatpush1.bf16.msra.mxu0 0
        %7882 = vmatprep.subr.bf16.mxu0 0
        %7883 = vmatpush1.bf16.msra.mxu0 0
        %7884 = vmatprep.subr.bf16.mxu0 0
        %7885 = vmatpush1.bf16.msra.mxu0 0
        %7886 = vmatprep.subr.bf16.mxu0 0
        %7887 = vmatpush1.bf16.msra.mxu0 0
        %7888 = vmatprep.subr.bf16.mxu0 0
        %7889 = vmatpush1.bf16.msra.mxu0 0
        %7890 = vmatprep.subr.bf16.mxu0 0
        %7891 = vmatpush1.bf16.msra.mxu0 0
        %7892 = vmatprep.subr.bf16.mxu0 0
        %7893 = vmatpush1.bf16.msra.mxu0 0
        %7894 = vmatprep.mubr.bf16.mxu0 0
        %7895 = vmatmul.mubr.bf16.gmra.mrb[0].mxu0 %v7789
        %v7896 = vpop.f32.mrb[0].mxu0
        %v7897 = vadd.f32 0.0, %v7896
        %v7898 = vpop.f32.mrb[0].mxu0
        %v7899 = vpop.f32.mrb[0].mxu0
        %v7900 = vadd.f32 0.0, %v7899
        %v7901 = vpop.f32.mrb[0].mxu0
        %7902 = vmatprep.mubr.bf16.mxu0 0
        %7903 = vmatmul.mubr.bf16.gmra.mrb[0].mxu0 %v7790
        %v7904 = vpop.f32.mrb[0].mxu0
        %v7905 = vadd.f32 0.0, %v7904
        %v7906 = vpop.f32.mrb[0].mxu0
        %v7907 = vpop.f32.mrb[0].mxu0
        %v7908 = vadd.f32 0.0, %v7907
        %v7909 = vpop.f32.mrb[0].mxu0
        %7910 = vmatprep.mubr.bf16.mxu0 0
        %7911 = vmatmul.mubr.bf16.gmra.mrb[0].mxu0 %v7791
        %v7912 = vpop.f32.mrb[0].mxu0
        %v7913 = vadd.f32 0.0, %v7912
        %v7914 = vpop.f32.mrb[0].mxu0
        %v7915 = vpop.f32.mrb[0].mxu0
        %v7916 = vadd.f32 0.0, %v7915
        %v7917 = vpop.f32.mrb[0].mxu0
        %7918 = vmatprep.mubr.bf16.mxu0 0
        %7919 = vmatmul.mubr.bf16.gmra.mrb[0].mxu0 %v7792
        %v7920 = vpop.f32.mrb[0].mxu0
        %v7921 = vadd.f32 0.0, %v7920
        %v7922 = vpop.f32.mrb[0].mxu0
        %v7923 = vpop.f32.mrb[0].mxu0
        %v7924 = vadd.f32 0.0, %v7923
        %v7925 = vpop.f32.mrb[0].mxu0
        %7926 = vmatprep.mubr.bf16.mxu0 0
        %7927 = vmatmul.mubr.bf16.gmra.mrb[0].mxu0 %v7793
        %v7928 = vpop.f32.mrb[0].mxu0
        %v7929 = vadd.f32 0.0, %v7928
        %v7930 = vpop.f32.mrb[0].mxu0
        %v7931 = vpop.f32.mrb[0].mxu0
        %v7932 = vadd.f32 0.0, %v7931
        %v7933 = vpop.f32.mrb[0].mxu0
        %7934 = vmatprep.mubr.bf16.mxu0 0
        %7935 = vmatmul.mubr.bf16.gmra.mrb[0].mxu0 %v7794
        %v7936 = vpop.f32.mrb[0].mxu0
        %v7937 = vadd.f32 0.0, %v7936
        %v7938 = vpop.f32.mrb[0].mxu0
        %v7939 = vpop.f32.mrb[0].mxu0
        %v7940 = vadd.f32 0.0, %v7939
        %v7941 = vpop.f32.mrb[0].mxu0
        %7942 = vmatprep.mubr.bf16.mxu0 0
        %7943 = vmatmul.mubr.bf16.gmra.mrb[0].mxu0 %v7795
        %v7944 = vpop.f32.mrb[0].mxu0
        %v7945 = vadd.f32 0.0, %v7944
        %v7946 = vpop.f32.mrb[0].mxu0
        %v7947 = vpop.f32.mrb[0].mxu0
        %v7948 = vadd.f32 0.0, %v7947
        %v7949 = vpop.f32.mrb[0].mxu0
        %7950 = vmatprep.mubr.bf16.mxu0 0
        %7951 = vmatmul.mubr.bf16.gmra.mrb[0].mxu0 %v7796
        %v7952 = vpop.f32.mrb[0].mxu0
        %v7953 = vadd.f32 0.0, %v7952
        %v7954 = vpop.f32.mrb[0].mxu0
        %v7955 = vpop.f32.mrb[0].mxu0
        %v7956 = vadd.f32 0.0, %v7955
        %v7957 = vpop.f32.mrb[0].mxu0
        %7958 = vdwg.mxu0
        %v7959 = vadd.f32 %v7755, %v7897
        %v7960 = vadd.f32 %v7756, %v7900
        %v7961 = vadd.f32 %v7757, %v7905
        %v7962 = vadd.f32 %v7758, %v7908
        %v7963 = vadd.f32 %v7759, %v7913
        %v7964 = vadd.f32 %v7760, %v7916
        %v7965 = vadd.f32 %v7761, %v7921
        %v7966 = vadd.f32 %v7762, %v7924
        %v7967 = vadd.f32 %v7763, %v7929
        %v7968 = vadd.f32 %v7764, %v7932
        %v7969 = vadd.f32 %v7765, %v7937
        %v7970 = vadd.f32 %v7766, %v7940
        %v7971 = vadd.f32 %v7767, %v7945
        %v7972 = vadd.f32 %v7768, %v7948
        %v7973 = vadd.f32 %v7769, %v7953
        %v7974 = vadd.f32 %v7770, %v7956
        %s7975 = sadd.s32 %s6579, 520
        %s7976 = scalar_lea.vmem [#allocation2], %s7975
        %v7977 = vld [vmem:[%s7976] sm:$0xff]
        %v7978 = vld [vmem:[%s7976 + $0x8] sm:$0xff]
        %v7979 = vld [vmem:[%s7976 + $0x10] sm:$0xff]
        %v7980 = vld [vmem:[%s7976 + $0x18] sm:$0xff]
        %v7981 = vld [vmem:[%s7976 + $0x20] sm:$0xff]
        %v7982 = vld [vmem:[%s7976 + $0x28] sm:$0xff]
        %v7983 = vld [vmem:[%s7976 + $0x30] sm:$0xff]
        %v7984 = vld [vmem:[%s7976 + $0x38] sm:$0xff]
        %v7985 = vld [vmem:[%s7976 + $0x40] sm:$0xff]
        %v7986 = vld [vmem:[%s7976 + $0x48] sm:$0xff]
        %v7987 = vld [vmem:[%s7976 + $0x50] sm:$0xff]
        %v7988 = vld [vmem:[%s7976 + $0x58] sm:$0xff]
        %v7989 = vld [vmem:[%s7976 + $0x60] sm:$0xff]
        %v7990 = vld [vmem:[%s7976 + $0x68] sm:$0xff]
        %v7991 = vld [vmem:[%s7976 + $0x70] sm:$0xff]
        %v7992 = vld [vmem:[%s7976 + $0x78] sm:$0xff]
        %v7993 = vpack.c.bf16 %v7978, %v7977
        %v7994 = vpack.c.bf16 %v7980, %v7979
        %v7995 = vpack.c.bf16 %v7982, %v7981
        %v7996 = vpack.c.bf16 %v7984, %v7983
        %v7997 = vpack.c.bf16 %v7986, %v7985
        %v7998 = vpack.c.bf16 %v7988, %v7987
        %v7999 = vpack.c.bf16 %v7990, %v7989
        %v8000 = vpack.c.bf16 %v7992, %v7991
        %s8001 = scalar_lea.vmem %s1, 2176
        %v8002 = vld [vmem:[%s8001] sm:$0xf]
        %v8003 = vld [vmem:[%s8001 + $0x4] sm:$0xf]
        %v8004 = vld [vmem:[%s8001 + $0x8] sm:$0xf]
        %v8005 = vld [vmem:[%s8001 + $0xc] sm:$0xf]
        %v8006 = vld [vmem:[%s8001 + $0x10] sm:$0xf]
        %v8007 = vld [vmem:[%s8001 + $0x14] sm:$0xf]
        %v8008 = vld [vmem:[%s8001 + $0x18] sm:$0xf]
        %v8009 = vld [vmem:[%s8001 + $0x1c] sm:$0xf]
        %v8010 = vld [vmem:[%s8001 + $0x20] sm:$0xf]
        %v8011 = vld [vmem:[%s8001 + $0x24] sm:$0xf]
        %v8012 = vld [vmem:[%s8001 + $0x28] sm:$0xf]
        %v8013 = vld [vmem:[%s8001 + $0x2c] sm:$0xf]
        %v8014 = vld [vmem:[%s8001 + $0x30] sm:$0xf]
        %v8015 = vld [vmem:[%s8001 + $0x34] sm:$0xf]
        %v8016 = vld [vmem:[%s8001 + $0x38] sm:$0xf]
        %v8017 = vld [vmem:[%s8001 + $0x3c] sm:$0xf]
        %v8034 = vunpack.c.l.b16 %v8002
        %v8035 = vunpack.c.l.b16 %v8003
        %v8036 = vunpack.c.l.b16 %v8004
        %v8037 = vunpack.c.l.b16 %v8005
        %v8038 = vunpack.c.l.b16 %v8006
        %v8039 = vunpack.c.l.b16 %v8007
        %v8040 = vunpack.c.l.b16 %v8008
        %v8041 = vunpack.c.l.b16 %v8009
        %v8042 = vunpack.c.l.b16 %v8010
        %v8043 = vunpack.c.l.b16 %v8011
        %v8044 = vunpack.c.l.b16 %v8012
        %v8045 = vunpack.c.l.b16 %v8013
        %v8046 = vunpack.c.l.b16 %v8014
        %v8047 = vunpack.c.l.b16 %v8015
        %v8048 = vunpack.c.l.b16 %v8016
        %v8049 = vunpack.c.l.b16 %v8017
        %v8050 = vpack.c.b16 %v8035, %v8034
        %v8051 = vpack.c.b16 %v8037, %v8036
        %v8052 = vpack.c.b16 %v8039, %v8038
        %v8053 = vpack.c.b16 %v8041, %v8040
        %v8054 = vpack.c.b16 %v8043, %v8042
        %v8055 = vpack.c.b16 %v8045, %v8044
        %v8056 = vpack.c.b16 %v8047, %v8046
        %v8057 = vpack.c.b16 %v8049, %v8048
        %8066 = vmatprep.subr.bf16.mxu0 0
        %8067 = vmatpush1.bf16.msra.mxu0 %v8050
        %8068 = vmatprep.subr.bf16.mxu0 0
        %8069 = vmatpush1.bf16.msra.mxu0 %v8051
        %8070 = vmatprep.subr.bf16.mxu0 0
        %8071 = vmatpush1.bf16.msra.mxu0 %v8052
        %8072 = vmatprep.subr.bf16.mxu0 0
        %8073 = vmatpush1.bf16.msra.mxu0 %v8053
        %8074 = vmatprep.subr.bf16.mxu0 0
        %8075 = vmatpush1.bf16.msra.mxu0 %v8054
        %8076 = vmatprep.subr.bf16.mxu0 0
        %8077 = vmatpush1.bf16.msra.mxu0 %v8055
        %8078 = vmatprep.subr.bf16.mxu0 0
        %8079 = vmatpush1.bf16.msra.mxu0 %v8056
        %8080 = vmatprep.subr.bf16.mxu0 0
        %8081 = vmatpush1.bf16.msra.mxu0 %v8057
        %8082 = vmatprep.subr.bf16.mxu0 0
        %8083 = vmatpush1.bf16.msra.mxu0 0
        %8084 = vmatprep.subr.bf16.mxu0 0
        %8085 = vmatpush1.bf16.msra.mxu0 0
        %8086 = vmatprep.subr.bf16.mxu0 0
        %8087 = vmatpush1.bf16.msra.mxu0 0
        %8088 = vmatprep.subr.bf16.mxu0 0
        %8089 = vmatpush1.bf16.msra.mxu0 0
        %8090 = vmatprep.subr.bf16.mxu0 0
        %8091 = vmatpush1.bf16.msra.mxu0 0
        %8092 = vmatprep.subr.bf16.mxu0 0
        %8093 = vmatpush1.bf16.msra.mxu0 0
        %8094 = vmatprep.subr.bf16.mxu0 0
        %8095 = vmatpush1.bf16.msra.mxu0 0
        %8096 = vmatprep.subr.bf16.mxu0 0
        %8097 = vmatpush1.bf16.msra.mxu0 0
        %8098 = vmatprep.mubr.bf16.mxu0 0
        %8099 = vmatmul.mubr.bf16.gmra.mrb[0].mxu0 %v7993
        %v8100 = vpop.f32.mrb[0].mxu0
        %v8101 = vadd.f32 0.0, %v8100
        %v8102 = vpop.f32.mrb[0].mxu0
        %v8103 = vpop.f32.mrb[0].mxu0
        %v8104 = vadd.f32 0.0, %v8103
        %v8105 = vpop.f32.mrb[0].mxu0
        %8106 = vmatprep.mubr.bf16.mxu0 0
        %8107 = vmatmul.mubr.bf16.gmra.mrb[0].mxu0 %v7994
        %v8108 = vpop.f32.mrb[0].mxu0
        %v8109 = vadd.f32 0.0, %v8108
        %v8110 = vpop.f32.mrb[0].mxu0
        %v8111 = vpop.f32.mrb[0].mxu0
        %v8112 = vadd.f32 0.0, %v8111
        %v8113 = vpop.f32.mrb[0].mxu0
        %8114 = vmatprep.mubr.bf16.mxu0 0
        %8115 = vmatmul.mubr.bf16.gmra.mrb[0].mxu0 %v7995
        %v8116 = vpop.f32.mrb[0].mxu0
        %v8117 = vadd.f32 0.0, %v8116
        %v8118 = vpop.f32.mrb[0].mxu0
        %v8119 = vpop.f32.mrb[0].mxu0
        %v8120 = vadd.f32 0.0, %v8119
        %v8121 = vpop.f32.mrb[0].mxu0
        %8122 = vmatprep.mubr.bf16.mxu0 0
        %8123 = vmatmul.mubr.bf16.gmra.mrb[0].mxu0 %v7996
        %v8124 = vpop.f32.mrb[0].mxu0
        %v8125 = vadd.f32 0.0, %v8124
        %v8126 = vpop.f32.mrb[0].mxu0
        %v8127 = vpop.f32.mrb[0].mxu0
        %v8128 = vadd.f32 0.0, %v8127
        %v8129 = vpop.f32.mrb[0].mxu0
        %8130 = vmatprep.mubr.bf16.mxu0 0
        %8131 = vmatmul.mubr.bf16.gmra.mrb[0].mxu0 %v7997
        %v8132 = vpop.f32.mrb[0].mxu0
        %v8133 = vadd.f32 0.0, %v8132
        %v8134 = vpop.f32.mrb[0].mxu0
        %v8135 = vpop.f32.mrb[0].mxu0
        %v8136 = vadd.f32 0.0, %v8135
        %v8137 = vpop.f32.mrb[0].mxu0
        %8138 = vmatprep.mubr.bf16.mxu0 0
        %8139 = vmatmul.mubr.bf16.gmra.mrb[0].mxu0 %v7998
        %v8140 = vpop.f32.mrb[0].mxu0
        %v8141 = vadd.f32 0.0, %v8140
        %v8142 = vpop.f32.mrb[0].mxu0
        %v8143 = vpop.f32.mrb[0].mxu0
        %v8144 = vadd.f32 0.0, %v8143
        %v8145 = vpop.f32.mrb[0].mxu0
        %8146 = vmatprep.mubr.bf16.mxu0 0
        %8147 = vmatmul.mubr.bf16.gmra.mrb[0].mxu0 %v7999
        %v8148 = vpop.f32.mrb[0].mxu0
        %v8149 = vadd.f32 0.0, %v8148
        %v8150 = vpop.f32.mrb[0].mxu0
        %v8151 = vpop.f32.mrb[0].mxu0
        %v8152 = vadd.f32 0.0, %v8151
        %v8153 = vpop.f32.mrb[0].mxu0
        %8154 = vmatprep.mubr.bf16.mxu0 0
        %8155 = vmatmul.mubr.bf16.gmra.mrb[0].mxu0 %v8000
        %v8156 = vpop.f32.mrb[0].mxu0
        %v8157 = vadd.f32 0.0, %v8156
        %v8158 = vpop.f32.mrb[0].mxu0
        %v8159 = vpop.f32.mrb[0].mxu0
        %v8160 = vadd.f32 0.0, %v8159
        %v8161 = vpop.f32.mrb[0].mxu0
        %8162 = vdwg.mxu0
        %v8163 = vadd.f32 %v7959, %v8101
        %v8164 = vadd.f32 %v7960, %v8104
        %v8165 = vadd.f32 %v7961, %v8109
        %v8166 = vadd.f32 %v7962, %v8112
        %v8167 = vadd.f32 %v7963, %v8117
        %v8168 = vadd.f32 %v7964, %v8120
        %v8169 = vadd.f32 %v7965, %v8125
        %v8170 = vadd.f32 %v7966, %v8128
        %v8171 = vadd.f32 %v7967, %v8133
        %v8172 = vadd.f32 %v7968, %v8136
        %v8173 = vadd.f32 %v7969, %v8141
        %v8174 = vadd.f32 %v7970, %v8144
        %v8175 = vadd.f32 %v7971, %v8149
        %v8176 = vadd.f32 %v7972, %v8152
        %v8177 = vadd.f32 %v7973, %v8157
        %v8178 = vadd.f32 %v7974, %v8160
        %s8179 = sadd.s32 %s6579, 528
        %s8180 = scalar_lea.vmem [#allocation2], %s8179
        %v8181 = vld [vmem:[%s8180] sm:$0xff]
        %v8182 = vld [vmem:[%s8180 + $0x8] sm:$0xff]
        %v8183 = vld [vmem:[%s8180 + $0x10] sm:$0xff]
        %v8184 = vld [vmem:[%s8180 + $0x18] sm:$0xff]
        %v8185 = vld [vmem:[%s8180 + $0x20] sm:$0xff]
        %v8186 = vld [vmem:[%s8180 + $0x28] sm:$0xff]
        %v8187 = vld [vmem:[%s8180 + $0x30] sm:$0xff]
        %v8188 = vld [vmem:[%s8180 + $0x38] sm:$0xff]
        %v8189 = vld [vmem:[%s8180 + $0x40] sm:$0xff]
        %v8190 = vld [vmem:[%s8180 + $0x48] sm:$0xff]
        %v8191 = vld [vmem:[%s8180 + $0x50] sm:$0xff]
        %v8192 = vld [vmem:[%s8180 + $0x58] sm:$0xff]
        %v8193 = vld [vmem:[%s8180 + $0x60] sm:$0xff]
        %v8194 = vld [vmem:[%s8180 + $0x68] sm:$0xff]
        %v8195 = vld [vmem:[%s8180 + $0x70] sm:$0xff]
        %v8196 = vld [vmem:[%s8180 + $0x78] sm:$0xff]
        %v8197 = vpack.c.bf16 %v8182, %v8181
        %v8198 = vpack.c.bf16 %v8184, %v8183
        %v8199 = vpack.c.bf16 %v8186, %v8185
        %v8200 = vpack.c.bf16 %v8188, %v8187
        %v8201 = vpack.c.bf16 %v8190, %v8189
        %v8202 = vpack.c.bf16 %v8192, %v8191
        %v8203 = vpack.c.bf16 %v8194, %v8193
        %v8204 = vpack.c.bf16 %v8196, %v8195
        %s8205 = scalar_lea.vmem %s1, 2240
        %v8206 = vld [vmem:[%s8205] sm:$0xf]
        %v8207 = vld [vmem:[%s8205 + $0x4] sm:$0xf]
        %v8208 = vld [vmem:[%s8205 + $0x8] sm:$0xf]
        %v8209 = vld [vmem:[%s8205 + $0xc] sm:$0xf]
        %v8210 = vld [vmem:[%s8205 + $0x10] sm:$0xf]
        %v8211 = vld [vmem:[%s8205 + $0x14] sm:$0xf]
        %v8212 = vld [vmem:[%s8205 + $0x18] sm:$0xf]
        %v8213 = vld [vmem:[%s8205 + $0x1c] sm:$0xf]
        %v8214 = vld [vmem:[%s8205 + $0x20] sm:$0xf]
        %v8215 = vld [vmem:[%s8205 + $0x24] sm:$0xf]
        %v8216 = vld [vmem:[%s8205 + $0x28] sm:$0xf]
        %v8217 = vld [vmem:[%s8205 + $0x2c] sm:$0xf]
        %v8218 = vld [vmem:[%s8205 + $0x30] sm:$0xf]
        %v8219 = vld [vmem:[%s8205 + $0x34] sm:$0xf]
        %v8220 = vld [vmem:[%s8205 + $0x38] sm:$0xf]
        %v8221 = vld [vmem:[%s8205 + $0x3c] sm:$0xf]
        %v8238 = vunpack.c.l.b16 %v8206
        %v8239 = vunpack.c.l.b16 %v8207
        %v8240 = vunpack.c.l.b16 %v8208
        %v8241 = vunpack.c.l.b16 %v8209
        %v8242 = vunpack.c.l.b16 %v8210
        %v8243 = vunpack.c.l.b16 %v8211
        %v8244 = vunpack.c.l.b16 %v8212
        %v8245 = vunpack.c.l.b16 %v8213
        %v8246 = vunpack.c.l.b16 %v8214
        %v8247 = vunpack.c.l.b16 %v8215
        %v8248 = vunpack.c.l.b16 %v8216
        %v8249 = vunpack.c.l.b16 %v8217
        %v8250 = vunpack.c.l.b16 %v8218
        %v8251 = vunpack.c.l.b16 %v8219
        %v8252 = vunpack.c.l.b16 %v8220
        %v8253 = vunpack.c.l.b16 %v8221
        %v8254 = vpack.c.b16 %v8239, %v8238
        %v8255 = vpack.c.b16 %v8241, %v8240
        %v8256 = vpack.c.b16 %v8243, %v8242
        %v8257 = vpack.c.b16 %v8245, %v8244
        %v8258 = vpack.c.b16 %v8247, %v8246
        %v8259 = vpack.c.b16 %v8249, %v8248
        %v8260 = vpack.c.b16 %v8251, %v8250
        %v8261 = vpack.c.b16 %v8253, %v8252
        %8270 = vmatprep.subr.bf16.mxu0 0
        %8271 = vmatpush1.bf16.msra.mxu0 %v8254
        %8272 = vmatprep.subr.bf16.mxu0 0
        %8273 = vmatpush1.bf16.msra.mxu0 %v8255
        %8274 = vmatprep.subr.bf16.mxu0 0
        %8275 = vmatpush1.bf16.msra.mxu0 %v8256
        %8276 = vmatprep.subr.bf16.mxu0 0
        %8277 = vmatpush1.bf16.msra.mxu0 %v8257
        %8278 = vmatprep.subr.bf16.mxu0 0
        %8279 = vmatpush1.bf16.msra.mxu0 %v8258
        %8280 = vmatprep.subr.bf16.mxu0 0
        %8281 = vmatpush1.bf16.msra.mxu0 %v8259
        %8282 = vmatprep.subr.bf16.mxu0 0
        %8283 = vmatpush1.bf16.msra.mxu0 %v8260
        %8284 = vmatprep.subr.bf16.mxu0 0
        %8285 = vmatpush1.bf16.msra.mxu0 %v8261
        %8286 = vmatprep.subr.bf16.mxu0 0
        %8287 = vmatpush1.bf16.msra.mxu0 0
        %8288 = vmatprep.subr.bf16.mxu0 0
        %8289 = vmatpush1.bf16.msra.mxu0 0
        %8290 = vmatprep.subr.bf16.mxu0 0
        %8291 = vmatpush1.bf16.msra.mxu0 0
        %8292 = vmatprep.subr.bf16.mxu0 0
        %8293 = vmatpush1.bf16.msra.mxu0 0
        %8294 = vmatprep.subr.bf16.mxu0 0
        %8295 = vmatpush1.bf16.msra.mxu0 0
        %8296 = vmatprep.subr.bf16.mxu0 0
        %8297 = vmatpush1.bf16.msra.mxu0 0
        %8298 = vmatprep.subr.bf16.mxu0 0
        %8299 = vmatpush1.bf16.msra.mxu0 0
        %8300 = vmatprep.subr.bf16.mxu0 0
        %8301 = vmatpush1.bf16.msra.mxu0 0
        %8302 = vmatprep.mubr.bf16.mxu0 0
        %8303 = vmatmul.mubr.bf16.gmra.mrb[0].mxu0 %v8197
        %v8304 = vpop.f32.mrb[0].mxu0
        %v8305 = vadd.f32 0.0, %v8304
        %v8306 = vpop.f32.mrb[0].mxu0
        %v8307 = vpop.f32.mrb[0].mxu0
        %v8308 = vadd.f32 0.0, %v8307
        %v8309 = vpop.f32.mrb[0].mxu0
        %8310 = vmatprep.mubr.bf16.mxu0 0
        %8311 = vmatmul.mubr.bf16.gmra.mrb[0].mxu0 %v8198
        %v8312 = vpop.f32.mrb[0].mxu0
        %v8313 = vadd.f32 0.0, %v8312
        %v8314 = vpop.f32.mrb[0].mxu0
        %v8315 = vpop.f32.mrb[0].mxu0
        %v8316 = vadd.f32 0.0, %v8315
        %v8317 = vpop.f32.mrb[0].mxu0
        %8318 = vmatprep.mubr.bf16.mxu0 0
        %8319 = vmatmul.mubr.bf16.gmra.mrb[0].mxu0 %v8199
        %v8320 = vpop.f32.mrb[0].mxu0
        %v8321 = vadd.f32 0.0, %v8320
        %v8322 = vpop.f32.mrb[0].mxu0
        %v8323 = vpop.f32.mrb[0].mxu0
        %v8324 = vadd.f32 0.0, %v8323
        %v8325 = vpop.f32.mrb[0].mxu0
        %8326 = vmatprep.mubr.bf16.mxu0 0
        %8327 = vmatmul.mubr.bf16.gmra.mrb[0].mxu0 %v8200
        %v8328 = vpop.f32.mrb[0].mxu0
        %v8329 = vadd.f32 0.0, %v8328
        %v8330 = vpop.f32.mrb[0].mxu0
        %v8331 = vpop.f32.mrb[0].mxu0
        %v8332 = vadd.f32 0.0, %v8331
        %v8333 = vpop.f32.mrb[0].mxu0
        %8334 = vmatprep.mubr.bf16.mxu0 0
        %8335 = vmatmul.mubr.bf16.gmra.mrb[0].mxu0 %v8201
        %v8336 = vpop.f32.mrb[0].mxu0
        %v8337 = vadd.f32 0.0, %v8336
        %v8338 = vpop.f32.mrb[0].mxu0
        %v8339 = vpop.f32.mrb[0].mxu0
        %v8340 = vadd.f32 0.0, %v8339
        %v8341 = vpop.f32.mrb[0].mxu0
        %8342 = vmatprep.mubr.bf16.mxu0 0
        %8343 = vmatmul.mubr.bf16.gmra.mrb[0].mxu0 %v8202
        %v8344 = vpop.f32.mrb[0].mxu0
        %v8345 = vadd.f32 0.0, %v8344
        %v8346 = vpop.f32.mrb[0].mxu0
        %v8347 = vpop.f32.mrb[0].mxu0
        %v8348 = vadd.f32 0.0, %v8347
        %v8349 = vpop.f32.mrb[0].mxu0
        %8350 = vmatprep.mubr.bf16.mxu0 0
        %8351 = vmatmul.mubr.bf16.gmra.mrb[0].mxu0 %v8203
        %v8352 = vpop.f32.mrb[0].mxu0
        %v8353 = vadd.f32 0.0, %v8352
        %v8354 = vpop.f32.mrb[0].mxu0
        %v8355 = vpop.f32.mrb[0].mxu0
        %v8356 = vadd.f32 0.0, %v8355
        %v8357 = vpop.f32.mrb[0].mxu0
        %8358 = vmatprep.mubr.bf16.mxu0 0
        %8359 = vmatmul.mubr.bf16.gmra.mrb[0].mxu0 %v8204
        %v8360 = vpop.f32.mrb[0].mxu0
        %v8361 = vadd.f32 0.0, %v8360
        %v8362 = vpop.f32.mrb[0].mxu0
        %v8363 = vpop.f32.mrb[0].mxu0
        %v8364 = vadd.f32 0.0, %v8363
        %v8365 = vpop.f32.mrb[0].mxu0
        %8366 = vdwg.mxu0
        %v8367 = vadd.f32 %v8163, %v8305
        %v8368 = vadd.f32 %v8164, %v8308
        %v8369 = vadd.f32 %v8165, %v8313
        %v8370 = vadd.f32 %v8166, %v8316
        %v8371 = vadd.f32 %v8167, %v8321
        %v8372 = vadd.f32 %v8168, %v8324
        %v8373 = vadd.f32 %v8169, %v8329
        %v8374 = vadd.f32 %v8170, %v8332
        %v8375 = vadd.f32 %v8171, %v8337
        %v8376 = vadd.f32 %v8172, %v8340
        %v8377 = vadd.f32 %v8173, %v8345
        %v8378 = vadd.f32 %v8174, %v8348
        %v8379 = vadd.f32 %v8175, %v8353
        %v8380 = vadd.f32 %v8176, %v8356
        %v8381 = vadd.f32 %v8177, %v8361
        %v8382 = vadd.f32 %v8178, %v8364
        %v8384 = vlaneseq
        %v8385 = vshrl.u32 %v8384, 7
        %v8386 = vsub.s32 0, %v8385
        %v8387 = vrot.slane %v6570, %v8386
        %v8389 = vmul.f32 %v8367, %v8387
        %v8390 = vmul.f32 %v8368, %v8387
        %v8391 = vmul.f32 %v8369, %v8387
        %v8392 = vmul.f32 %v8370, %v8387
        %v8393 = vmul.f32 %v8371, %v8387
        %v8394 = vmul.f32 %v8372, %v8387
        %v8395 = vmul.f32 %v8373, %v8387
        %v8396 = vmul.f32 %v8374, %v8387
        %v8397 = vmul.f32 %v8375, %v8387
        %v8398 = vmul.f32 %v8376, %v8387
        %v8399 = vmul.f32 %v8377, %v8387
        %v8400 = vmul.f32 %v8378, %v8387
        %v8401 = vmul.f32 %v8379, %v8387
        %v8402 = vmul.f32 %v8380, %v8387
        %v8403 = vmul.f32 %v8381, %v8387
        %v8404 = vmul.f32 %v8382, %v8387
        %v8406 = vlaneseq
        %v8407 = vshrl.u32 %v8406, 7
        %v8408 = vsub.s32 0, %v8407
        %v8409 = vrot.slane %v6572, %v8408
        %v8411 = vadd.f32 %v8389, %v8409
        %v8412 = vadd.f32 %v8390, %v8409
        %v8413 = vadd.f32 %v8391, %v8409
        %v8414 = vadd.f32 %v8392, %v8409
        %v8415 = vadd.f32 %v8393, %v8409
        %v8416 = vadd.f32 %v8394, %v8409
        %v8417 = vadd.f32 %v8395, %v8409
        %v8418 = vadd.f32 %v8396, %v8409
        %v8419 = vadd.f32 %v8397, %v8409
        %v8420 = vadd.f32 %v8398, %v8409
        %v8421 = vadd.f32 %v8399, %v8409
        %v8422 = vadd.f32 %v8400, %v8409
        %v8423 = vadd.f32 %v8401, %v8409
        %v8424 = vadd.f32 %v8402, %v8409
        %v8425 = vadd.f32 %v8403, %v8409
        %v8426 = vadd.f32 %v8404, %v8409
        %v8427 = vmax.f32 %v8411, 0.0
        %v8428 = vmax.f32 %v8412, 0.0
        %v8429 = vmax.f32 %v8413, 0.0
        %v8430 = vmax.f32 %v8414, 0.0
        %v8431 = vmax.f32 %v8415, 0.0
        %v8432 = vmax.f32 %v8416, 0.0
        %v8433 = vmax.f32 %v8417, 0.0
        %v8434 = vmax.f32 %v8418, 0.0
        %v8435 = vmax.f32 %v8419, 0.0
        %v8436 = vmax.f32 %v8420, 0.0
        %v8437 = vmax.f32 %v8421, 0.0
        %v8438 = vmax.f32 %v8422, 0.0
        %v8439 = vmax.f32 %v8423, 0.0
        %v8440 = vmax.f32 %v8424, 0.0
        %v8441 = vmax.f32 %v8425, 0.0
        %v8442 = vmax.f32 %v8426, 0.0
        %s8443 = scalar_lea.vmem [#allocation3], %s6580
        %8444 = vst [vmem:[%s8443] sm:$0xff] %v8427
        %8445 = vst [vmem:[%s8443 + $0x8] sm:$0xff] %v8428
        %8446 = vst [vmem:[%s8443 + $0x10] sm:$0xff] %v8429
        %8447 = vst [vmem:[%s8443 + $0x18] sm:$0xff] %v8430
        %8448 = vst [vmem:[%s8443 + $0x20] sm:$0xff] %v8431
        %8449 = vst [vmem:[%s8443 + $0x28] sm:$0xff] %v8432
        %8450 = vst [vmem:[%s8443 + $0x30] sm:$0xff] %v8433
        %8451 = vst [vmem:[%s8443 + $0x38] sm:$0xff] %v8434
        %8452 = vst [vmem:[%s8443 + $0x40] sm:$0xff] %v8435
        %8453 = vst [vmem:[%s8443 + $0x48] sm:$0xff] %v8436
        %8454 = vst [vmem:[%s8443 + $0x50] sm:$0xff] %v8437
        %8455 = vst [vmem:[%s8443 + $0x58] sm:$0xff] %v8438
        %8456 = vst [vmem:[%s8443 + $0x60] sm:$0xff] %v8439
        %8457 = vst [vmem:[%s8443 + $0x68] sm:$0xff] %v8440
        %8458 = vst [vmem:[%s8443 + $0x70] sm:$0xff] %v8441
        %8459 = vst [vmem:[%s8443 + $0x78] sm:$0xff] %v8442
      $region94: #{conv4_forward.1} parent=39 // loop_footer
        %s6578 = sadd.s32 1, %s6574
      $region95: #{conv4_forward.1} parent=39 // loop_footer_branch
        %6573 = sbr.rel target = $region91
      $region96: #{conv4_forward.1} parent=39 // loop_exit
        _
      loop: start=0, step=1, limit=8
      $region97: #{conv4_forward.1} parent=39 // loop_pre_header
        _
      $region98: #{conv4_forward.1} parent=39 // loop_header
        %s8461 = sphi 0, %s8465
        %p8462 = scmp.ge.s32.totalorder %s8461, 8
      $region99: #{conv4_forward.1} parent=39 // loop_header_branch
        %8464 = sbr.rel (%p8462) target = $region103
      $region100: #{conv4_forward.1} parent=39 // loop_body
        %s8466 = smul.u32 %s8461, 128
        %s8467 = sadd.s32 %s8466, 264
        %s8468 = scalar_lea.vmem [#allocation3], %s8467
        %v8469 = vld [vmem:[%s8468] sm:$0xff]
        %v8470 = vld [vmem:[%s8468 + $0x8] sm:$0xff]
        %v8471 = vld [vmem:[%s8468 + $0x10] sm:$0xff]
        %v8472 = vld [vmem:[%s8468 + $0x18] sm:$0xff]
        %v8473 = vld [vmem:[%s8468 + $0x20] sm:$0xff]
        %v8474 = vld [vmem:[%s8468 + $0x28] sm:$0xff]
        %v8475 = vld [vmem:[%s8468 + $0x30] sm:$0xff]
        %v8476 = vld [vmem:[%s8468 + $0x38] sm:$0xff]
        %v8477 = vld [vmem:[%s8468 + $0x40] sm:$0xff]
        %v8478 = vld [vmem:[%s8468 + $0x48] sm:$0xff]
        %v8479 = vld [vmem:[%s8468 + $0x50] sm:$0xff]
        %v8480 = vld [vmem:[%s8468 + $0x58] sm:$0xff]
        %v8481 = vld [vmem:[%s8468 + $0x60] sm:$0xff]
        %v8482 = vld [vmem:[%s8468 + $0x68] sm:$0xff]
        %v8483 = vld [vmem:[%s8468 + $0x70] sm:$0xff]
        %v8484 = vld [vmem:[%s8468 + $0x78] sm:$0xff]
        %s8485 = sadd.s32 %s8466, 272
        %s8486 = scalar_lea.vmem [#allocation3], %s8485
        %v8487 = vld [vmem:[%s8486] sm:$0xff]
        %v8488 = vld [vmem:[%s8486 + $0x8] sm:$0xff]
        %v8489 = vld [vmem:[%s8486 + $0x10] sm:$0xff]
        %v8490 = vld [vmem:[%s8486 + $0x18] sm:$0xff]
        %v8491 = vld [vmem:[%s8486 + $0x20] sm:$0xff]
        %v8492 = vld [vmem:[%s8486 + $0x28] sm:$0xff]
        %v8493 = vld [vmem:[%s8486 + $0x30] sm:$0xff]
        %v8494 = vld [vmem:[%s8486 + $0x38] sm:$0xff]
        %v8495 = vld [vmem:[%s8486 + $0x40] sm:$0xff]
        %v8496 = vld [vmem:[%s8486 + $0x48] sm:$0xff]
        %v8497 = vld [vmem:[%s8486 + $0x50] sm:$0xff]
        %v8498 = vld [vmem:[%s8486 + $0x58] sm:$0xff]
        %v8499 = vld [vmem:[%s8486 + $0x60] sm:$0xff]
        %v8500 = vld [vmem:[%s8486 + $0x68] sm:$0xff]
        %v8501 = vld [vmem:[%s8486 + $0x70] sm:$0xff]
        %v8502 = vld [vmem:[%s8486 + $0x78] sm:$0xff]
        %s8503 = sadd.s32 %s8466, 520
        %s8504 = scalar_lea.vmem [#allocation3], %s8503
        %v8505 = vld [vmem:[%s8504] sm:$0xff]
        %v8506 = vld [vmem:[%s8504 + $0x8] sm:$0xff]
        %v8507 = vld [vmem:[%s8504 + $0x10] sm:$0xff]
        %v8508 = vld [vmem:[%s8504 + $0x18] sm:$0xff]
        %v8509 = vld [vmem:[%s8504 + $0x20] sm:$0xff]
        %v8510 = vld [vmem:[%s8504 + $0x28] sm:$0xff]
        %v8511 = vld [vmem:[%s8504 + $0x30] sm:$0xff]
        %v8512 = vld [vmem:[%s8504 + $0x38] sm:$0xff]
        %v8513 = vld [vmem:[%s8504 + $0x40] sm:$0xff]
        %v8514 = vld [vmem:[%s8504 + $0x48] sm:$0xff]
        %v8515 = vld [vmem:[%s8504 + $0x50] sm:$0xff]
        %v8516 = vld [vmem:[%s8504 + $0x58] sm:$0xff]
        %v8517 = vld [vmem:[%s8504 + $0x60] sm:$0xff]
        %v8518 = vld [vmem:[%s8504 + $0x68] sm:$0xff]
        %v8519 = vld [vmem:[%s8504 + $0x70] sm:$0xff]
        %v8520 = vld [vmem:[%s8504 + $0x78] sm:$0xff]
        %s8521 = sadd.s32 %s8466, 528
        %s8522 = scalar_lea.vmem [#allocation3], %s8521
        %v8523 = vld [vmem:[%s8522] sm:$0xff]
        %v8524 = vld [vmem:[%s8522 + $0x8] sm:$0xff]
        %v8525 = vld [vmem:[%s8522 + $0x10] sm:$0xff]
        %v8526 = vld [vmem:[%s8522 + $0x18] sm:$0xff]
        %v8527 = vld [vmem:[%s8522 + $0x20] sm:$0xff]
        %v8528 = vld [vmem:[%s8522 + $0x28] sm:$0xff]
        %v8529 = vld [vmem:[%s8522 + $0x30] sm:$0xff]
        %v8530 = vld [vmem:[%s8522 + $0x38] sm:$0xff]
        %v8531 = vld [vmem:[%s8522 + $0x40] sm:$0xff]
        %v8532 = vld [vmem:[%s8522 + $0x48] sm:$0xff]
        %v8533 = vld [vmem:[%s8522 + $0x50] sm:$0xff]
        %v8534 = vld [vmem:[%s8522 + $0x58] sm:$0xff]
        %v8535 = vld [vmem:[%s8522 + $0x60] sm:$0xff]
        %v8536 = vld [vmem:[%s8522 + $0x68] sm:$0xff]
        %v8537 = vld [vmem:[%s8522 + $0x70] sm:$0xff]
        %v8538 = vld [vmem:[%s8522 + $0x78] sm:$0xff]
        %v8539 = vmax.f32 %v8469, %v8487
        %v8540 = vmax.f32 %v8470, %v8488
        %v8541 = vmax.f32 %v8471, %v8489
        %v8542 = vmax.f32 %v8472, %v8490
        %v8543 = vmax.f32 %v8473, %v8491
        %v8544 = vmax.f32 %v8474, %v8492
        %v8545 = vmax.f32 %v8475, %v8493
        %v8546 = vmax.f32 %v8476, %v8494
        %v8547 = vmax.f32 %v8477, %v8495
        %v8548 = vmax.f32 %v8478, %v8496
        %v8549 = vmax.f32 %v8479, %v8497
        %v8550 = vmax.f32 %v8480, %v8498
        %v8551 = vmax.f32 %v8481, %v8499
        %v8552 = vmax.f32 %v8482, %v8500
        %v8553 = vmax.f32 %v8483, %v8501
        %v8554 = vmax.f32 %v8484, %v8502
        %v8555 = vmax.f32 %v8505, %v8523
        %v8556 = vmax.f32 %v8506, %v8524
        %v8557 = vmax.f32 %v8507, %v8525
        %v8558 = vmax.f32 %v8508, %v8526
        %v8559 = vmax.f32 %v8509, %v8527
        %v8560 = vmax.f32 %v8510, %v8528
        %v8561 = vmax.f32 %v8511, %v8529
        %v8562 = vmax.f32 %v8512, %v8530
        %v8563 = vmax.f32 %v8513, %v8531
        %v8564 = vmax.f32 %v8514, %v8532
        %v8565 = vmax.f32 %v8515, %v8533
        %v8566 = vmax.f32 %v8516, %v8534
        %v8567 = vmax.f32 %v8517, %v8535
        %v8568 = vmax.f32 %v8518, %v8536
        %v8569 = vmax.f32 %v8519, %v8537
        %v8570 = vmax.f32 %v8520, %v8538
        %v8571 = vmax.f32 %v8539, %v8555
        %v8572 = vmax.f32 %v8540, %v8556
        %v8573 = vmax.f32 %v8541, %v8557
        %v8574 = vmax.f32 %v8542, %v8558
        %v8575 = vmax.f32 %v8543, %v8559
        %v8576 = vmax.f32 %v8544, %v8560
        %v8577 = vmax.f32 %v8545, %v8561
        %v8578 = vmax.f32 %v8546, %v8562
        %v8579 = vmax.f32 %v8547, %v8563
        %v8580 = vmax.f32 %v8548, %v8564
        %v8581 = vmax.f32 %v8549, %v8565
        %v8582 = vmax.f32 %v8550, %v8566
        %v8583 = vmax.f32 %v8551, %v8567
        %v8584 = vmax.f32 %v8552, %v8568
        %v8585 = vmax.f32 %v8553, %v8569
        %v8586 = vmax.f32 %v8554, %v8570
        %s8587 = sadd.s32 %s8466, 3072
        %s8588 = scalar_lea.vmem %s4, %s8587
        %v8589 = vld [vmem:[%s8588] sm:$0xff]
        %v8590 = vld [vmem:[%s8588 + $0x8] sm:$0xff]
        %v8591 = vld [vmem:[%s8588 + $0x10] sm:$0xff]
        %v8592 = vld [vmem:[%s8588 + $0x18] sm:$0xff]
        %v8593 = vld [vmem:[%s8588 + $0x20] sm:$0xff]
        %v8594 = vld [vmem:[%s8588 + $0x28] sm:$0xff]
        %v8595 = vld [vmem:[%s8588 + $0x30] sm:$0xff]
        %v8596 = vld [vmem:[%s8588 + $0x38] sm:$0xff]
        %v8597 = vld [vmem:[%s8588 + $0x40] sm:$0xff]
        %v8598 = vld [vmem:[%s8588 + $0x48] sm:$0xff]
        %v8599 = vld [vmem:[%s8588 + $0x50] sm:$0xff]
        %v8600 = vld [vmem:[%s8588 + $0x58] sm:$0xff]
        %v8601 = vld [vmem:[%s8588 + $0x60] sm:$0xff]
        %v8602 = vld [vmem:[%s8588 + $0x68] sm:$0xff]
        %v8603 = vld [vmem:[%s8588 + $0x70] sm:$0xff]
        %v8604 = vld [vmem:[%s8588 + $0x78] sm:$0xff]
        %v8605 = vmul.f32 %v8571, %v8589
        %v8606 = vmul.f32 %v8572, %v8590
        %v8607 = vmul.f32 %v8573, %v8591
        %v8608 = vmul.f32 %v8574, %v8592
        %v8609 = vmul.f32 %v8575, %v8593
        %v8610 = vmul.f32 %v8576, %v8594
        %v8611 = vmul.f32 %v8577, %v8595
        %v8612 = vmul.f32 %v8578, %v8596
        %v8613 = vmul.f32 %v8579, %v8597
        %v8614 = vmul.f32 %v8580, %v8598
        %v8615 = vmul.f32 %v8581, %v8599
        %v8616 = vmul.f32 %v8582, %v8600
        %v8617 = vmul.f32 %v8583, %v8601
        %v8618 = vmul.f32 %v8584, %v8602
        %v8619 = vmul.f32 %v8585, %v8603
        %v8620 = vmul.f32 %v8586, %v8604
        %s8621 = scalar_lea.vmem [#allocation2], %s8467
        %8622 = vst [vmem:[%s8621] sm:$0xff] %v8605
        %8623 = vst [vmem:[%s8621 + $0x8] sm:$0xff] %v8606
        %8624 = vst [vmem:[%s8621 + $0x10] sm:$0xff] %v8607
        %8625 = vst [vmem:[%s8621 + $0x18] sm:$0xff] %v8608
        %8626 = vst [vmem:[%s8621 + $0x20] sm:$0xff] %v8609
        %8627 = vst [vmem:[%s8621 + $0x28] sm:$0xff] %v8610
        %8628 = vst [vmem:[%s8621 + $0x30] sm:$0xff] %v8611
        %8629 = vst [vmem:[%s8621 + $0x38] sm:$0xff] %v8612
        %8630 = vst [vmem:[%s8621 + $0x40] sm:$0xff] %v8613
        %8631 = vst [vmem:[%s8621 + $0x48] sm:$0xff] %v8614
        %8632 = vst [vmem:[%s8621 + $0x50] sm:$0xff] %v8615
        %8633 = vst [vmem:[%s8621 + $0x58] sm:$0xff] %v8616
        %8634 = vst [vmem:[%s8621 + $0x60] sm:$0xff] %v8617
        %8635 = vst [vmem:[%s8621 + $0x68] sm:$0xff] %v8618
        %8636 = vst [vmem:[%s8621 + $0x70] sm:$0xff] %v8619
        %8637 = vst [vmem:[%s8621 + $0x78] sm:$0xff] %v8620
      $region101: #{conv4_forward.1} parent=39 // loop_footer
        %s8465 = sadd.s32 1, %s8461
      $region102: #{conv4_forward.1} parent=39 // loop_footer_branch
        %8460 = sbr.rel target = $region98
      $region103: #{conv4_forward.1} parent=39 // loop_exit
        _
      %v8638 = vld [vmem:[#allocation2 + $0x210] sm:$0x1]
      %8639 = vst [vmem:[%s220] sm:$0x1] %v8638
      %p8640 = scmp.lt.s32.totalorder %s16, 1
      %s8641 = scalar_select %p8640, %s16, 1
      %s8642 = scalar_lea.vmem %s5, %s8641
      // Predicated region
      $region104: #{conv4_forward.1} parent=39 // pred_check
        %p8643 = pneg %p144
      $region105: #{conv4_forward.1} parent=39 // pred_check_branch
        %8645 = sbr.rel (%p8643) target = $region107
      $region106: #{conv4_forward.1} parent=39 // pred_region
        _
      $region107: #{conv4_forward.1} parent=39 // pred_fallthru
        _
    $region40: #{conv4_forward.1} parent=5 // pred_fallthru
      _
    %p8646 = scmp.le.s32.totalorder 2, %s11
    // Predicated region
    $region108: #{conv4_forward.1} parent=5 // pred_check
      %p8647 = pneg %p8646
    $region109: #{conv4_forward.1} parent=5 // pred_check_branch
      %8649 = sbr.rel (%p8647) target = $region111
    $region110: #{conv4_forward.1} parent=5 // pred_region
      %s8650 = ssub.s32 %s11, 2
      // Predicated region
      $region112: #{conv4_forward.1} parent=110 // pred_check
        %p8651 = pneg %p150
      $region113: #{conv4_forward.1} parent=110 // pred_check_branch
        %8653 = sbr.rel (%p8651) target = $region115
      $region114: #{conv4_forward.1} parent=110 // pred_region
        %p8654 = scmp.lt.s32.totalorder %s17, 1
        %s8655 = scalar_select %p8654, %s17, 1
        %s8656 = scalar_lea.vmem %s5, %s8655
      $region115: #{conv4_forward.1} parent=110 // pred_fallthru
        _
    $region111: #{conv4_forward.1} parent=5 // pred_fallthru
      _
  $region6: #{conv4_forward.1} parent=0 // loop_footer
    %s15 = sadd.s32 1, %s11
  $region7: #{conv4_forward.1} parent=0 // loop_footer_branch
    %10 = sbr.rel target = $region3
  $region8: #{conv4_forward.1} parent=0 // loop_exit
    _

</llo_original>
